<compile_context>
chip_gen: v6e
topology: v6e:2x2x1
jax: 0.10.0
libtpu: 0.0.40
codegen_flags: <defaults>
</compile_context>

<pallas_src>
import functools
import math

import jax
import jax.numpy as jnp
from jax import lax
from jax.experimental import pallas as pl
from jax.experimental.pallas import tpu as pltpu


HID_PAD = 128          # hidden_size (32) padded to one full lane width
EMB_PAD = 384          # embedding_dim (300) padded to 3*128
_VMEM_LIMIT = 32 * 1024 * 1024


def _round_up(x, m):
    return ((x + m - 1) // m) * m


def _row_tiles(m, tm_max=256):
    """Pick an M tile (<=256 rows) and the padded M."""
    if m <= tm_max:
        return m, m
    return tm_max, _round_up(m, tm_max)


# ----------------------------- tiled linear GEMM -----------------------------

def _linear_kernel(x_ref, w_ref, b_ref, o_ref, acc_ref, *, act, nk):
    @pl.when(pl.program_id(2) == 0)
    def _():
        acc_ref[...] = jnp.zeros_like(acc_ref)

    acc_ref[...] += jnp.dot(x_ref[...].astype(jnp.bfloat16), w_ref[...],
                            preferred_element_type=jnp.float32)

    @pl.when(pl.program_id(2) == nk - 1)
    def _():
        y = acc_ref[...] + b_ref[...]
        if act == "relu":
            y = jnp.maximum(y, 0.0)
        elif act == "tanh":
            y = jnp.tanh(y)
        elif act == "sigmoid":
            y = jax.nn.sigmoid(y)
        o_ref[...] = y


def pallas_linear(x, w, b, act="none", tm_max=256, tk_max=512, tn_max=512):
    """y = act(x @ w + b); bf16 MXU operands, f32 VMEM accumulator, tiled grid."""
    M, K = x.shape
    K2, N = w.shape
    assert K == K2
    # M tiling
    if M <= tm_max:
        tm, M_pad = M, M
    else:
        tm, M_pad = tm_max, _round_up(M, tm_max)
    # K tiling (full block when small; K is the reduction ("arbitrary") axis)
    if K <= tk_max:
        tk, K_pad = K, K
    else:
        tk, K_pad = tk_max, _round_up(K, tk_max)
    # N: lane-dense output (pad to a multiple of 128), slice outside
    N_pad = _round_up(N, 128)
    if N_pad <= tn_max:
        tn = N_pad
    else:
        tn, N_pad = tn_max, _round_up(N_pad, tn_max)

    xp = x if (M_pad == M and K_pad == K) else jnp.pad(x, ((0, M_pad - M), (0, K_pad - K)))
    wp = w if (K_pad == K and N_pad == N) else jnp.pad(w, ((0, K_pad - K), (0, N_pad - N)))
    bp = b if N_pad == N else jnp.pad(b, (0, N_pad - N))
    wp = wp.astype(jnp.bfloat16)

    nk = K_pad // tk
    out = pl.pallas_call(
        functools.partial(_linear_kernel, act=act, nk=nk),
        out_shape=jax.ShapeDtypeStruct((M_pad, N_pad), jnp.float32),
        grid=(M_pad // tm, N_pad // tn, nk),
        in_specs=[pl.BlockSpec((tm, tk), lambda i, j, k: (i, k)),
                  pl.BlockSpec((tk, tn), lambda i, j, k: (k, j)),
                  pl.BlockSpec((1, tn), lambda i, j, k: (0, j))],
        out_specs=pl.BlockSpec((tm, tn), lambda i, j, k: (i, j)),
        scratch_shapes=[pltpu.VMEM((tm, tn), jnp.float32)],
        compiler_params=pltpu.CompilerParams(
            dimension_semantics=("parallel", "parallel", "arbitrary"),
            vmem_limit_bytes=_VMEM_LIMIT),
    )(xp, wp, bp.reshape(1, N_pad))
    if M_pad != M or N_pad != N:
        out = out[:M, :N]
    return out


# --------------------------- fused highway stack -----------------------------

def _highway_kernel(x_ref, w_ref, b_ref, o_ref, *, hp, nlayers):
    x = x_ref[...]                                                    # (tm, Hp) f32
    for layer in range(nlayers):
        y = jnp.dot(x.astype(jnp.bfloat16), w_ref[layer],
                    preferred_element_type=jnp.float32) + b_ref[layer]
        g = jax.nn.sigmoid(y[:, 0 * hp:1 * hp])
        n = jnp.tanh(y[:, 1 * hp:2 * hp])
        lin = y[:, 2 * hp:3 * hp]
        x = g * n + (1.0 - g) * lin
    o_ref[...] = x


def pallas_highway(x, w_all, b_all):
    """All highway layers in one kernel; per layer one x@(Hp,3Hp) GEMM."""
    M, Hp = x.shape
    L = w_all.shape[0]
    tm, M_pad = _row_tiles(M)
    xp = x if M_pad == M else jnp.pad(x, ((0, M_pad - M), (0, 0)))
    out = pl.pallas_call(
        functools.partial(_highway_kernel, hp=Hp, nlayers=L),
        out_shape=jax.ShapeDtypeStruct((M_pad, Hp), jnp.float32),
        grid=(M_pad // tm,),
        in_specs=[pl.BlockSpec((tm, Hp), lambda i: (i, 0)),
                  pl.BlockSpec((L, Hp, 3 * Hp), lambda i: (0, 0, 0)),
                  pl.BlockSpec((L, 1, 3 * Hp), lambda i: (0, 0, 0))],
        out_specs=pl.BlockSpec((tm, Hp), lambda i: (i, 0)),
        compiler_params=pltpu.CompilerParams(
            dimension_semantics=("parallel",), vmem_limit_bytes=_VMEM_LIMIT),
    )(xp, w_all.astype(jnp.bfloat16), b_all)
    return out if M_pad == M else out[:M]


# ------------------------------ self attention -------------------------------

def _self_attn_kernel(p_ref, wu_ref, wm_ref, wp_ref, o_ref):
    p = p_ref[0]                                                      # (S, Hp) f32
    p_bf = p.astype(jnp.bfloat16)
    # per-column term  w_up . p[j]     -> (1, S)  (MXU absorbs the transpose)
    su = lax.dot_general(wu_ref[...].astype(jnp.bfloat16), p_bf,
                         (((1,), (1,)), ((), ())),
                         preferred_element_type=jnp.float32)
    # per-row term     w_mid . p[i]    -> (S, 1)  (VPU lane reduction)
    sm = jnp.sum(p * wm_ref[...], axis=-1, keepdims=True)
    # cross term       w_prod . (p[i]*p[j])  without materializing p.T
    cross = lax.dot_general((p * wp_ref[...]).astype(jnp.bfloat16), p_bf,
                            (((1,), (1,)), ((), ())),
                            preferred_element_type=jnp.float32)       # (S, S)
    a = cross + su + sm
    a = a - jnp.max(a, axis=-1, keepdims=True)
    e = jnp.exp(a)
    sa = e / jnp.sum(e, axis=-1, keepdims=True)                       # softmax over j
    o_ref[0] = jnp.dot(sa.astype(jnp.bfloat16), p_bf,
                       preferred_element_type=jnp.float32)            # (S, Hp)


def pallas_self_attention(p, w_up, w_mid, w_prod):
    B, S, Hp = p.shape
    return pl.pallas_call(
        _self_attn_kernel,
        out_shape=jax.ShapeDtypeStruct((B, S, Hp), jnp.float32),
        grid=(B,),
        in_specs=[pl.BlockSpec((1, S, Hp), lambda b: (b, 0, 0)),
                  pl.BlockSpec((1, Hp), lambda b: (0, 0)),
                  pl.BlockSpec((1, Hp), lambda b: (0, 0)),
                  pl.BlockSpec((1, Hp), lambda b: (0, 0))],
        out_specs=pl.BlockSpec((1, S, Hp), lambda b: (b, 0, 0)),
        compiler_params=pltpu.CompilerParams(
            dimension_semantics=("parallel",), vmem_limit_bytes=_VMEM_LIMIT),
    )(p, w_up, w_mid, w_prod)


# --------------------------------- fuse gate ---------------------------------

def _fuse_gate_kernel(ph_ref, pa_ref, w_ref, b_ref, o_ref):
    ph = ph_ref[...]
    pa = pa_ref[...]
    xcat = jnp.concatenate([ph, pa], axis=-1).astype(jnp.bfloat16)    # (tm, 2Hp)
    y = jnp.dot(xcat, w_ref[...], preferred_element_type=jnp.float32) + b_ref[...]
    z = jnp.tanh(y)
    s = jax.nn.sigmoid(y)         # reference: r = f = sigmoid(fc1(x)); compute once
    o_ref[...] = s * ph + s * z


def pallas_fuse_gate(p_hat, p_att, w1, b1):
    M, Hp = p_hat.shape
    tm, M_pad = _row_tiles(M)
    ph = p_hat if M_pad == M else jnp.pad(p_hat, ((0, M_pad - M), (0, 0)))
    pa = p_att if M_pad == M else jnp.pad(p_att, ((0, M_pad - M), (0, 0)))
    out = pl.pallas_call(
        _fuse_gate_kernel,
        out_shape=jax.ShapeDtypeStruct((M_pad, Hp), jnp.float32),
        grid=(M_pad // tm,),
        in_specs=[pl.BlockSpec((tm, Hp), lambda i: (i, 0)),
                  pl.BlockSpec((tm, Hp), lambda i: (i, 0)),
                  pl.BlockSpec((2 * Hp, Hp), lambda i: (0, 0)),
                  pl.BlockSpec((1, Hp), lambda i: (0, 0))],
        out_specs=pl.BlockSpec((tm, Hp), lambda i: (i, 0)),
        compiler_params=pltpu.CompilerParams(
            dimension_semantics=("parallel",), vmem_limit_bytes=_VMEM_LIMIT),
    )(ph, pa, w1.astype(jnp.bfloat16), b1.reshape(1, Hp))
    return out if M_pad == M else out[:M]


# ------------------- interaction outer-product + 1x1 conv --------------------

def _interact_kernel(p_ref, h_ref, w_ref, b_ref, o_ref):
    ti = p_ref.shape[1]
    S = h_ref.shape[1]
    Hp = p_ref.shape[2]
    C = w_ref.shape[1]
    p = p_ref[0]                                                      # (ti, Hp)
    h = h_ref[0]                                                      # (S, Hp)
    intr = p[:, None, :] * h[None, :, :]                              # (ti, S, Hp)
    y = jnp.dot(intr.reshape(ti * S, Hp).astype(jnp.bfloat16), w_ref[...],
                preferred_element_type=jnp.float32) + b_ref[...]
    o_ref[0] = y.reshape(ti, S, C)


def pallas_interact_conv1x1(p_enc, h_enc, w, b):
    B, S, Hp = p_enc.shape
    C = w.shape[1]
    Cpad = _round_up(C, 128)                       # lane-dense output, sliced outside
    wp = jnp.pad(w, ((0, 0), (0, Cpad - C))).astype(jnp.bfloat16)
    bp = jnp.pad(b, (0, Cpad - C)).reshape(1, Cpad)
    ti = min(8, S)
    assert S % ti == 0
    out = pl.pallas_call(
        _interact_kernel,
        out_shape=jax.ShapeDtypeStruct((B, S, S, Cpad), jnp.float32),
        grid=(B, S // ti),
        in_specs=[pl.BlockSpec((1, ti, Hp), lambda b_, i: (b_, i, 0)),
                  pl.BlockSpec((1, S, Hp), lambda b_, i: (b_, 0, 0)),
                  pl.BlockSpec((Hp, Cpad), lambda b_, i: (0, 0)),
                  pl.BlockSpec((1, Cpad), lambda b_, i: (0, 0))],
        out_specs=pl.BlockSpec((1, ti, S, Cpad), lambda b_, i: (b_, i, 0, 0)),
        compiler_params=pltpu.CompilerParams(
            dimension_semantics=("parallel", "parallel"),
            vmem_limit_bytes=_VMEM_LIMIT),
    )(p_enc, h_enc, wp, bp)
    return out[..., :C]


# --------------------- 3x3 conv with fused im2col + relu ---------------------

def _conv3x3_relu_kernel(x_ref, w_ref, o_ref, *, k, wp_stride):
    # x_ref: (1, Hp*Wp + 2, Cin) row-flattened zero-padded image
    # w_ref: (k*k, Cin, Cout) bf16;  o_ref: (1, Hs*Wp, Cout)
    mo = o_ref.shape[1]
    cout = o_ref.shape[2]
    acc = jnp.zeros((mo, cout), jnp.float32)
    for kh in range(k):
        for kw in range(k):
            off = kh * wp_stride + kw                       # static offset
            xs = x_ref[0, off:off + mo, :].astype(jnp.bfloat16)
            acc = acc + jnp.dot(xs, w_ref[kh * k + kw],
                                preferred_element_type=jnp.float32)
    o_ref[0] = jnp.maximum(acc, 0.0)                        # fused relu


def pallas_conv3x3_relu(x, w_gemm):
    """3x3 'same' conv (bias-free) + relu; im2col folded into the kernel as
    k*k shifted GEMMs over a row-flattened padded image (columns >= Ws of each
    output row are wrap garbage and are sliced off)."""
    B, Hs, Ws, Cin = x.shape
    k = 3
    Cout = w_gemm.shape[1]
    Hp, Wp = Hs + 2, Ws + 2
    xp = jnp.pad(x, ((0, 0), (1, 1), (1, 1), (0, 0)))
    xf = xp.reshape(B, Hp * Wp, Cin)
    xf = jnp.pad(xf, ((0, 0), (0, 2), (0, 0)))              # halo rows for tail windows
    Lx = Hp * Wp + 2
    Mo = Hs * Wp
    w3 = w_gemm.reshape(k * k, Cin, Cout).astype(jnp.bfloat16)
    y = pl.pallas_call(
        functools.partial(_conv3x3_relu_kernel, k=k, wp_stride=Wp),
        out_shape=jax.ShapeDtypeStruct((B, Mo, Cout), jnp.float32),
        grid=(B,),
        in_specs=[pl.BlockSpec((1, Lx, Cin), lambda b: (b, 0, 0)),
                  pl.BlockSpec((k * k, Cin, Cout), lambda b: (0, 0, 0))],
        out_specs=pl.BlockSpec((1, Mo, Cout), lambda b: (b, 0, 0)),
        compiler_params=pltpu.CompilerParams(
            dimension_semantics=("parallel",), vmem_limit_bytes=_VMEM_LIMIT),
    )(xf, w3)
    return y.reshape(B, Hs, Wp, Cout)[:, :, :Ws, :]


# ------------------------------- JAX glue ops --------------------------------

def max_pool_2x2(x):
    # TODO(synk): 2x2/stride-2 max-pool kept in plain JAX (tiny window reduce).
    B, Hs, Ws, C = x.shape
    x = x.reshape(B, Hs // 2, 2, Ws // 2, 2, C)
    return jnp.max(x, axis=(2, 4))


# ------------------------------- DIIN forward --------------------------------

class Conf:
    vocab_size = 50
    embedding_dim = 300
    padding_idx = 0
    hidden_size = 32
    num_layers = 2
    dense_net_first_scale_down_ratio = 0.5
    first_scale_down_kernel = 1          # fused interaction+conv kernel assumes 1x1
    dense_net_growth_rate = 4
    dense_net_transition_rate = 0.5
    dense_net_layers = 2
    dense_net_kernel_size = 3
    seq_len = 8
    batch = 2


def _init_params(key, conf):
    kit = iter(jax.random.split(key, 64))

    def nrm(shape, scale=0.1):
        return scale * jax.random.normal(next(kit), shape, dtype=jnp.float32)

    H, Hp = conf.hidden_size, HID_PAD
    E, Ep = conf.embedding_dim, EMB_PAD
    params = {}

    emb = nrm((conf.vocab_size, E), 0.5)
    emb = emb.at[conf.padding_idx].set(0.0)                 # padding_idx row zeroed
    params["embedding"] = jnp.pad(emb, ((0, 0), (0, Ep - E)))          # 300 -> 384 lanes
    params["translate_w"] = jnp.pad(nrm((E, H)), ((0, Ep - E), (0, Hp - H)))
    params["translate_b"] = jnp.pad(nrm((H,), 0.01), (0, Hp - H))

    # Highway: per layer [gate | nonlinear | linear] fused into one (Hp, 3Hp) GEMM.
    w_layers, b_layers = [], []
    for _ in range(conf.num_layers):
        ws = [jnp.pad(nrm((H, H)), ((0, Hp - H), (0, Hp - H))) for _ in range(3)]
        bs = [jnp.pad(nrm((H,), 0.01), (0, Hp - H)) for _ in range(3)]
        w_layers.append(jnp.concatenate(ws, axis=1))                  # (Hp, 3Hp)
        b_layers.append(jnp.concatenate(bs, axis=0)[None, :])         # (1, 3Hp)
    params["highway_w"] = jnp.stack(w_layers)                          # (L, Hp, 3Hp)
    params["highway_b"] = jnp.stack(b_layers)                          # (L, 1, 3Hp)

    # self_attention Linear(3H, 1, bias=False) split into its up/mid/prod chunks.
    params["attn_w_up"] = jnp.pad(nrm((1, H)), ((0, 0), (0, Hp - H)))
    params["attn_w_mid"] = jnp.pad(nrm((1, H)), ((0, 0), (0, Hp - H)))
    params["attn_w_prod"] = jnp.pad(nrm((1, H)), ((0, 0), (0, Hp - H)))

    # fuse gate fc1 (2H -> H); fc2/fc3 exist in the reference but are never used.
    w1a = jnp.pad(nrm((H, H)), ((0, Hp - H), (0, Hp - H)))
    w1b = jnp.pad(nrm((H, H)), ((0, Hp - H), (0, Hp - H)))
    params["fuse_w1"] = jnp.concatenate([w1a, w1b], axis=0)            # (2Hp, Hp)
    params["fuse_b1"] = jnp.pad(nrm((H,), 0.01), (0, Hp - H))

    C0 = int(H * conf.dense_net_first_scale_down_ratio)
    assert conf.first_scale_down_kernel == 1
    params["icnn_w"] = jnp.pad(nrm((H, C0)), ((0, Hp - H), (0, 0)))    # (Hp, C0)
    params["icnn_b"] = nrm((C0,), 0.01)

    # DenseNet (all convs bias-free, matching the reference).
    k = conf.dense_net_kernel_size
    nCh = C0
    dense_stages, trans_stages = [], []
    for _ in range(3):
        blocks = []
        for _ in range(int(conf.dense_net_layers)):
            blocks.append(nrm((k * k * nCh, conf.dense_net_growth_rate)))
            nCh += conf.dense_net_growth_rate
        nOut = int(math.floor(nCh * conf.dense_net_transition_rate))
        trans_stages.append(nrm((nCh, nOut)))
        nCh = nOut
        dense_stages.append(blocks)
    params["densenet"] = {"dense": dense_stages, "trans": trans_stages}

    # TODO(synk): reference hard-codes Linear(21744, 3); in_features derived from the
    # synthetic shapes here.  Rows are stored in NHWC-flatten order (a row
    # permutation of the reference NCHW order), which removes the epilogue transpose.
    spatial = conf.seq_len // 2 // 2 // 2
    flat_dim = nCh * spatial * spatial
    params["fc1_w"] = nrm((flat_dim, 3))
    params["fc1_b"] = nrm((3,), 0.01)
    return params


def encode(tok, params, conf):
    Btot, S = tok.shape
    Hp = HID_PAD
    emb = params["embedding"][tok]                                     # gather (glue)
    x = pallas_linear(emb.reshape(Btot * S, EMB_PAD),
                      params["translate_w"], params["translate_b"])
    x = pallas_highway(x, params["highway_w"], params["highway_b"])
    x3 = x.reshape(Btot, S, Hp)
    x_att = pallas_self_attention(x3, params["attn_w_up"], params["attn_w_mid"],
                                  params["attn_w_prod"])
    enc = pallas_fuse_gate(x, x_att.reshape(Btot * S, Hp),
                           params["fuse_w1"], params["fuse_b1"])
    return enc.reshape(Btot, S, Hp)


def densenet_forward(x, dn_params, conf):
    for stage in range(3):
        for w in dn_params["dense"][stage]:
            ft = pallas_conv3x3_relu(x, w)
            x = jnp.concatenate([x, ft], axis=-1)                      # channel concat
        tw = dn_params["trans"][stage]
        B, Hs, Ws, Cin = x.shape
        zb = jnp.zeros((tw.shape[1],), jnp.float32)
        y = pallas_linear(x.reshape(B * Hs * Ws, Cin), tw, zb)         # 1x1 conv as GEMM
        x = max_pool_2x2(y.reshape(B, Hs, Ws, tw.shape[1]))
    return x


def diin_forward(params, conf, p_tok, h_tok):
    B = p_tok.shape[0]
    # encode premise + hypothesis in ONE stacked call (better row-tile utilization)
    tok = jnp.concatenate([p_tok, h_tok], axis=0)
    enc = encode(tok, params, conf)
    p_enc, h_enc = enc[:B], enc[B:]
    fm = pallas_interact_conv1x1(p_enc, h_enc, params["icnn_w"], params["icnn_b"])
    dense = densenet_forward(fm, params["densenet"], conf)             # (B, h, w, C)
    flat = dense.reshape(B, -1)                      # fc1 rows stored in NHWC order
    logits = pallas_linear(flat, params["fc1_w"], params["fc1_b"])
    return logits


# ----------------------------------- main ------------------------------------

if __name__ == "__main__":
    conf = Conf()
    key = jax.random.PRNGKey(0)
    k_param, k_p, k_h = jax.random.split(key, 3)
    params = _init_params(k_param, conf)

    p_tok = jax.random.randint(k_p, (conf.batch, conf.seq_len), 0, conf.vocab_size,
                               dtype=jnp.int32)
    h_tok = jax.random.randint(k_h, (conf.batch, conf.seq_len), 0, conf.vocab_size,
                               dtype=jnp.int32)

    fwd = jax.jit(functools.partial(diin_forward, params, conf))
    logits = fwd(p_tok, h_tok)
    logits = jax.block_until_ready(logits)
    assert logits.shape == (conf.batch, 3)
    assert bool(jnp.all(jnp.isfinite(logits)))
    print("KERNEL_OK")
</pallas_src>

<mosaic_0001>
module attributes {stable_mosaic.version = 11 : i64} {
  func.func @_highway_kernel(%arg0: i32, %arg1: memref<32x128xf32, #tpu.memory_space<vmem>>, %arg2: memref<2x128x384xbf16, #tpu.memory_space<vmem>>, %arg3: memref<2x1x384xf32, #tpu.memory_space<vmem>>, %arg4: memref<32x128xf32, #tpu.memory_space<vmem>>) attributes {dimension_semantics = [#tpu.dimension_semantics<parallel>], iteration_bounds = array<i64: 1>, scalar_prefetch = 0 : i64, scratch_operands = 0 : i64, tpu.core_type = #tpu.core_type<tc>, window_params = [{transform_indices = @transform_0, window_bounds = array<i64: 32, 128>}, {pipeline_mode = #tpu.pipeline_mode<synchronous>, transform_indices = @transform_1, window_bounds = array<i64: 2, 128, 384>}, {pipeline_mode = #tpu.pipeline_mode<synchronous>, transform_indices = @transform_2, window_bounds = array<i64: 2, 1, 384>}, {transform_indices = @transform_3, window_bounds = array<i64: 32, 128>}]} {
    %c0 = arith.constant 0 : index
    %c0_0 = arith.constant 0 : index
    %0 = vector.load %arg1[%c0, %c0_0] : memref<32x128xf32, #tpu.memory_space<vmem>>, vector<32x128xf32>
    %1 = arith.truncf %0 : vector<32x128xf32> to vector<32x128xbf16>
    %c0_1 = arith.constant 0 : index
    %c0_2 = arith.constant 0 : index
    %c0_3 = arith.constant 0 : index
    %2 = vector.load %arg2[%c0_1, %c0_2, %c0_3] : memref<2x128x384xbf16, #tpu.memory_space<vmem>>, vector<1x128x384xbf16>
    %3 = vector.shape_cast %2 : vector<1x128x384xbf16> to vector<128x384xbf16>
    %cst = arith.constant dense<0.000000e+00> : vector<32x384xf32>
    %4 = tpu.matmul %1, %3, %cst {dimension_numbers = #tpu.dot_dimension_numbers<[1], [0], [0], [1], [0, 0, 1, 1], [], []>} : vector<32x128xbf16>, vector<128x384xbf16>, vector<32x384xf32> -> vector<32x384xf32>
    %c0_4 = arith.constant 0 : index
    %c0_5 = arith.constant 0 : index
    %c0_6 = arith.constant 0 : index
    %5 = vector.load %arg3[%c0_4, %c0_5, %c0_6] : memref<2x1x384xf32, #tpu.memory_space<vmem>>, vector<1x1x384xf32>
    %6 = vector.shape_cast %5 : vector<1x1x384xf32> to vector<1x384xf32>
    %7 = vector.broadcast %6 : vector<1x384xf32> to vector<32x384xf32>
    %8 = arith.addf %4, %7 : vector<32x384xf32>
    %9 = vector.extract_strided_slice %8 {offsets = [0, 0], sizes = [32, 128], strides = [1, 1]} : vector<32x384xf32> to vector<32x128xf32>
    %10 = arith.negf %9 : vector<32x128xf32>
    %11 = math.exp %10 : vector<32x128xf32>
    %cst_7 = arith.constant 1.000000e+00 : f32
    %12 = vector.broadcast %cst_7 : f32 to vector<32x128xf32>
    %13 = arith.addf %12, %11 : vector<32x128xf32>
    %14 = arith.divf %12, %13 : vector<32x128xf32>
    %15 = vector.extract_strided_slice %8 {offsets = [0, 128], sizes = [32, 128], strides = [1, 1]} : vector<32x384xf32> to vector<32x128xf32>
    %16 = math.tanh %15 : vector<32x128xf32>
    %17 = vector.extract_strided_slice %8 {offsets = [0, 256], sizes = [32, 128], strides = [1, 1]} : vector<32x384xf32> to vector<32x128xf32>
    %18 = arith.mulf %14, %16 : vector<32x128xf32>
    %cst_8 = arith.constant 1.000000e+00 : f32
    %19 = vector.broadcast %cst_8 : f32 to vector<32x128xf32>
    %20 = arith.subf %19, %14 : vector<32x128xf32>
    %21 = arith.mulf %20, %17 : vector<32x128xf32>
    %22 = arith.addf %18, %21 : vector<32x128xf32>
    %23 = arith.truncf %22 : vector<32x128xf32> to vector<32x128xbf16>
    %c1 = arith.constant 1 : index
    %c0_9 = arith.constant 0 : index
    %c0_10 = arith.constant 0 : index
    %24 = vector.load %arg2[%c1, %c0_9, %c0_10] : memref<2x128x384xbf16, #tpu.memory_space<vmem>>, vector<1x128x384xbf16>
    %25 = vector.shape_cast %24 : vector<1x128x384xbf16> to vector<128x384xbf16>
    %cst_11 = arith.constant dense<0.000000e+00> : vector<32x384xf32>
    %26 = tpu.matmul %23, %25, %cst_11 {dimension_numbers = #tpu.dot_dimension_numbers<[1], [0], [0], [1], [0, 0, 1, 1], [], []>} : vector<32x128xbf16>, vector<128x384xbf16>, vector<32x384xf32> -> vector<32x384xf32>
    %c1_12 = arith.constant 1 : index
    %c0_13 = arith.constant 0 : index
    %c0_14 = arith.constant 0 : index
    %27 = vector.load %arg3[%c1_12, %c0_13, %c0_14] : memref<2x1x384xf32, #tpu.memory_space<vmem>>, vector<1x1x384xf32>
    %28 = vector.shape_cast %27 : vector<1x1x384xf32> to vector<1x384xf32>
    %29 = vector.broadcast %28 : vector<1x384xf32> to vector<32x384xf32>
    %30 = arith.addf %26, %29 : vector<32x384xf32>
    %31 = vector.extract_strided_slice %30 {offsets = [0, 0], sizes = [32, 128], strides = [1, 1]} : vector<32x384xf32> to vector<32x128xf32>
    %32 = arith.negf %31 : vector<32x128xf32>
    %33 = math.exp %32 : vector<32x128xf32>
    %cst_15 = arith.constant 1.000000e+00 : f32
    %34 = vector.broadcast %cst_15 : f32 to vector<32x128xf32>
    %35 = arith.addf %34, %33 : vector<32x128xf32>
    %36 = arith.divf %34, %35 : vector<32x128xf32>
    %37 = vector.extract_strided_slice %30 {offsets = [0, 128], sizes = [32, 128], strides = [1, 1]} : vector<32x384xf32> to vector<32x128xf32>
    %38 = math.tanh %37 : vector<32x128xf32>
    %39 = vector.extract_strided_slice %30 {offsets = [0, 256], sizes = [32, 128], strides = [1, 1]} : vector<32x384xf32> to vector<32x128xf32>
    %40 = arith.mulf %36, %38 : vector<32x128xf32>
    %cst_16 = arith.constant 1.000000e+00 : f32
    %41 = vector.broadcast %cst_16 : f32 to vector<32x128xf32>
    %42 = arith.subf %41, %36 : vector<32x128xf32>
    %43 = arith.mulf %42, %39 : vector<32x128xf32>
    %44 = arith.addf %40, %43 : vector<32x128xf32>
    %c0_17 = arith.constant 0 : index
    %c0_18 = arith.constant 0 : index
    %45 = vector.load %arg4[%c0_17, %c0_18] : memref<32x128xf32, #tpu.memory_space<vmem>>, vector<32x128xf32>
    tpu.vector_store %arg4[%c0_17, %c0_18], %44 {strides = array<i32>} : memref<32x128xf32, #tpu.memory_space<vmem>>, vector<32x128xf32>,
    return
  }
  func.func @transform_0(%arg0: i32) -> (i32, i32) {
    %c0_i32 = arith.constant 0 : i32
    %c0_i32_0 = arith.constant 0 : i32
    return %arg0, %c0_i32 : i32, i32
  }
  func.func @transform_1(%arg0: i32) -> (i32, i32, i32) {
    %c0_i32 = arith.constant 0 : i32
    %c0_i32_0 = arith.constant 0 : i32
    %c0_i32_1 = arith.constant 0 : i32
    %c0_i32_2 = arith.constant 0 : i32
    return %c0_i32, %c0_i32_0, %c0_i32_1 : i32, i32, i32
  }
  func.func @transform_2(%arg0: i32) -> (i32, i32, i32) {
    %c0_i32 = arith.constant 0 : i32
    %c0_i32_0 = arith.constant 0 : i32
    %c0_i32_1 = arith.constant 0 : i32
    %c0_i32_2 = arith.constant 0 : i32
    return %c0_i32, %c0_i32_0, %c0_i32_1 : i32, i32, i32
  }
  func.func @transform_3(%arg0: i32) -> (i32, i32) {
    %c0_i32 = arith.constant 0 : i32
    %c0_i32_0 = arith.constant 0 : i32
    return %arg0, %c0_i32 : i32, i32
  }
}

module attributes {stable_mosaic.version = 11 : i64} {
  func.func @_linear_kernel(%arg0: i32, %arg1: i32, %arg2: i32, %arg3: memref<32x384xf32, #tpu.memory_space<vmem>>, %arg4: memref<384x128xbf16, #tpu.memory_space<vmem>>, %arg5: memref<1x128xf32, #tpu.memory_space<vmem>>, %arg6: memref<32x128xf32, #tpu.memory_space<vmem>>, %arg7: memref<32x128xf32, #tpu.memory_space<vmem>>) attributes {dimension_semantics = [#tpu.dimension_semantics<parallel>, #tpu.dimension_semantics<parallel>, #tpu.dimension_semantics<arbitrary>], iteration_bounds = array<i64: 1, 1, 1>, scalar_prefetch = 0 : i64, scratch_operands = 1 : i64, tpu.core_type = #tpu.core_type<tc>, window_params = [{transform_indices = @transform_0, window_bounds = array<i64: 32, 384>}, {transform_indices = @transform_1, window_bounds = array<i64: 384, 128>}, {transform_indices = @transform_2, window_bounds = array<i64: 1, 128>}, {transform_indices = @transform_3, window_bounds = array<i64: 32, 128>}]} {
    %c0_i32 = arith.constant 0 : i32
    %0 = arith.cmpi eq, %arg2, %c0_i32 : i32
    %1 = arith.extui %0 : i1 to i32
    %c0_i32_0 = arith.constant 0 : i32
    %2 = arith.cmpi ne, %1, %c0_i32_0 : i32
    scf.if %2 {
      %cst_10 = arith.constant 0.000000e+00 : f32
      %13 = vector.broadcast %cst_10 : f32 to vector<32x128xf32>
      %c0_11 = arith.constant 0 : index
      %c0_12 = arith.constant 0 : index
      %14 = vector.load %arg7[%c0_11, %c0_12] : memref<32x128xf32, #tpu.memory_space<vmem>>, vector<32x128xf32>
      tpu.vector_store %arg7[%c0_11, %c0_12], %13 {strides = array<i32>} : memref<32x128xf32, #tpu.memory_space<vmem>>, vector<32x128xf32>,
    } else {
    }
    %c0 = arith.constant 0 : index
    %c0_1 = arith.constant 0 : index
    %3 = vector.load %arg7[%c0, %c0_1] : memref<32x128xf32, #tpu.memory_space<vmem>>, vector<32x128xf32>
    %c0_2 = arith.constant 0 : index
    %c0_3 = arith.constant 0 : index
    %4 = vector.load %arg3[%c0_2, %c0_3] : memref<32x384xf32, #tpu.memory_space<vmem>>, vector<32x384xf32>
    %5 = arith.truncf %4 : vector<32x384xf32> to vector<32x384xbf16>
    %c0_4 = arith.constant 0 : index
    %c0_5 = arith.constant 0 : index
    %6 = vector.load %arg4[%c0_4, %c0_5] : memref<384x128xbf16, #tpu.memory_space<vmem>>, vector<384x128xbf16>
    %cst = arith.constant dense<0.000000e+00> : vector<32x128xf32>
    %7 = tpu.matmul %5, %6, %cst {dimension_numbers = #tpu.dot_dimension_numbers<[1], [0], [0], [1], [0, 0, 1, 1], [], []>} : vector<32x384xbf16>, vector<384x128xbf16>, vector<32x128xf32> -> vector<32x128xf32>
    %8 = arith.addf %3, %7 : vector<32x128xf32>
    %c0_6 = arith.constant 0 : index
    %c0_7 = arith.constant 0 : index
    %9 = vector.load %arg7[%c0_6, %c0_7] : memref<32x128xf32, #tpu.memory_space<vmem>>, vector<32x128xf32>
    tpu.vector_store %arg7[%c0_6, %c0_7], %8 {strides = array<i32>} : memref<32x128xf32, #tpu.memory_space<vmem>>, vector<32x128xf32>,
    %c0_i32_8 = arith.constant 0 : i32
    %10 = arith.cmpi eq, %arg2, %c0_i32_8 : i32
    %11 = arith.extui %10 : i1 to i32
    %c0_i32_9 = arith.constant 0 : i32
    %12 = arith.cmpi ne, %11, %c0_i32_9 : i32
    scf.if %12 {
      %c0_10 = arith.constant 0 : index
      %c0_11 = arith.constant 0 : index
      %13 = vector.load %arg7[%c0_10, %c0_11] : memref<32x128xf32, #tpu.memory_space<vmem>>, vector<32x128xf32>
      %c0_12 = arith.constant 0 : index
      %c0_13 = arith.constant 0 : index
      %14 = vector.load %arg5[%c0_12, %c0_13] : memref<1x128xf32, #tpu.memory_space<vmem>>, vector<1x128xf32>
      %15 = vector.broadcast %14 : vector<1x128xf32> to vector<32x128xf32>
      %16 = arith.addf %13, %15 : vector<32x128xf32>
      %c0_14 = arith.constant 0 : index
      %c0_15 = arith.constant 0 : index
      %17 = vector.load %arg6[%c0_14, %c0_15] : memref<32x128xf32, #tpu.memory_space<vmem>>, vector<32x128xf32>
      tpu.vector_store %arg6[%c0_14, %c0_15], %16 {strides = array<i32>} : memref<32x128xf32, #tpu.memory_space<vmem>>, vector<32x128xf32>,
    } else {
    }
    return
  }
  func.func @transform_0(%arg0: i32, %arg1: i32, %arg2: i32) -> (i32, i32) {
    %c0_i32 = arith.constant 0 : i32
    return %arg0, %arg2 : i32, i32
  }
  func.func @transform_1(%arg0: i32, %arg1: i32, %arg2: i32) -> (i32, i32) {
    %c0_i32 = arith.constant 0 : i32
    return %arg2, %arg1 : i32, i32
  }
  func.func @transform_2(%arg0: i32, %arg1: i32, %arg2: i32) -> (i32, i32) {
    %c0_i32 = arith.constant 0 : i32
    %c0_i32_0 = arith.constant 0 : i32
    return %c0_i32, %arg1 : i32, i32
  }
  func.func @transform_3(%arg0: i32, %arg1: i32, %arg2: i32) -> (i32, i32) {
    %c0_i32 = arith.constant 0 : i32
    return %arg0, %arg1 : i32, i32
  }
}

module attributes {stable_mosaic.version = 11 : i64} {
  func.func @_fuse_gate_kernel(%arg0: i32, %arg1: memref<32x128xf32, #tpu.memory_space<vmem>>, %arg2: memref<32x128xf32, #tpu.memory_space<vmem>>, %arg3: memref<256x128xbf16, #tpu.memory_space<vmem>>, %arg4: memref<1x128xf32, #tpu.memory_space<vmem>>, %arg5: memref<32x128xf32, #tpu.memory_space<vmem>>) attributes {dimension_semantics = [#tpu.dimension_semantics<parallel>], iteration_bounds = array<i64: 1>, scalar_prefetch = 0 : i64, scratch_operands = 0 : i64, tpu.core_type = #tpu.core_type<tc>, window_params = [{transform_indices = @transform_0, window_bounds = array<i64: 32, 128>}, {transform_indices = @transform_1, window_bounds = array<i64: 32, 128>}, {pipeline_mode = #tpu.pipeline_mode<synchronous>, transform_indices = @transform_2, window_bounds = array<i64: 256, 128>}, {pipeline_mode = #tpu.pipeline_mode<synchronous>, transform_indices = @transform_3, window_bounds = array<i64: 1, 128>}, {transform_indices = @transform_4, window_bounds = array<i64: 32, 128>}]} {
    %c0 = arith.constant 0 : index
    %c0_0 = arith.constant 0 : index
    %0 = vector.load %arg1[%c0, %c0_0] : memref<32x128xf32, #tpu.memory_space<vmem>>, vector<32x128xf32>
    %c0_1 = arith.constant 0 : index
    %c0_2 = arith.constant 0 : index
    %1 = vector.load %arg2[%c0_1, %c0_2] : memref<32x128xf32, #tpu.memory_space<vmem>>, vector<32x128xf32>
    %2 = tpu.concatenate %0, %1 in 1 : vector<32x128xf32>, vector<32x128xf32> -> vector<32x256xf32>
    %3 = arith.truncf %2 : vector<32x256xf32> to vector<32x256xbf16>
    %c0_3 = arith.constant 0 : index
    %c0_4 = arith.constant 0 : index
    %4 = vector.load %arg3[%c0_3, %c0_4] : memref<256x128xbf16, #tpu.memory_space<vmem>>, vector<256x128xbf16>
    %cst = arith.constant dense<0.000000e+00> : vector<32x128xf32>
    %5 = tpu.matmul %3, %4, %cst {dimension_numbers = #tpu.dot_dimension_numbers<[1], [0], [0], [1], [0, 0, 1, 1], [], []>} : vector<32x256xbf16>, vector<256x128xbf16>, vector<32x128xf32> -> vector<32x128xf32>
    %c0_5 = arith.constant 0 : index
    %c0_6 = arith.constant 0 : index
    %6 = vector.load %arg4[%c0_5, %c0_6] : memref<1x128xf32, #tpu.memory_space<vmem>>, vector<1x128xf32>
    %7 = vector.broadcast %6 : vector<1x128xf32> to vector<32x128xf32>
    %8 = arith.addf %5, %7 : vector<32x128xf32>
    %9 = math.tanh %8 : vector<32x128xf32>
    %10 = arith.negf %8 : vector<32x128xf32>
    %11 = math.exp %10 : vector<32x128xf32>
    %cst_7 = arith.constant 1.000000e+00 : f32
    %12 = vector.broadcast %cst_7 : f32 to vector<32x128xf32>
    %13 = arith.addf %12, %11 : vector<32x128xf32>
    %14 = arith.divf %12, %13 : vector<32x128xf32>
    %15 = arith.mulf %14, %0 : vector<32x128xf32>
    %16 = arith.mulf %14, %9 : vector<32x128xf32>
    %17 = arith.addf %15, %16 : vector<32x128xf32>
    %c0_8 = arith.constant 0 : index
    %c0_9 = arith.constant 0 : index
    %18 = vector.load %arg5[%c0_8, %c0_9] : memref<32x128xf32, #tpu.memory_space<vmem>>, vector<32x128xf32>
    tpu.vector_store %arg5[%c0_8, %c0_9], %17 {strides = array<i32>} : memref<32x128xf32, #tpu.memory_space<vmem>>, vector<32x128xf32>,
    return
  }
  func.func @transform_0(%arg0: i32) -> (i32, i32) {
    %c0_i32 = arith.constant 0 : i32
    %c0_i32_0 = arith.constant 0 : i32
    return %arg0, %c0_i32 : i32, i32
  }
  func.func @transform_1(%arg0: i32) -> (i32, i32) {
    %c0_i32 = arith.constant 0 : i32
    %c0_i32_0 = arith.constant 0 : i32
    return %arg0, %c0_i32 : i32, i32
  }
  func.func @transform_2(%arg0: i32) -> (i32, i32) {
    %c0_i32 = arith.constant 0 : i32
    %c0_i32_0 = arith.constant 0 : i32
    %c0_i32_1 = arith.constant 0 : i32
    return %c0_i32, %c0_i32_0 : i32, i32
  }
  func.func @transform_3(%arg0: i32) -> (i32, i32) {
    %c0_i32 = arith.constant 0 : i32
    %c0_i32_0 = arith.constant 0 : i32
    %c0_i32_1 = arith.constant 0 : i32
    return %c0_i32, %c0_i32_0 : i32, i32
  }
  func.func @transform_4(%arg0: i32) -> (i32, i32) {
    %c0_i32 = arith.constant 0 : i32
    %c0_i32_0 = arith.constant 0 : i32
    return %arg0, %c0_i32 : i32, i32
  }
}

module attributes {stable_mosaic.version = 11 : i64} {
  func.func @_self_attn_kernel(%arg0: i32, %arg1: memref<1x8x128xf32, #tpu.memory_space<vmem>>, %arg2: memref<1x128xf32, #tpu.memory_space<vmem>>, %arg3: memref<1x128xf32, #tpu.memory_space<vmem>>, %arg4: memref<1x128xf32, #tpu.memory_space<vmem>>, %arg5: memref<1x8x128xf32, #tpu.memory_space<vmem>>) attributes {dimension_semantics = [#tpu.dimension_semantics<parallel>], iteration_bounds = array<i64: 4>, scalar_prefetch = 0 : i64, scratch_operands = 0 : i64, tpu.core_type = #tpu.core_type<tc>, window_params = [{transform_indices = @transform_0, window_bounds = array<i64: 1, 8, 128>}, {pipeline_mode = #tpu.pipeline_mode<synchronous>, transform_indices = @transform_1, window_bounds = array<i64: 1, 128>}, {pipeline_mode = #tpu.pipeline_mode<synchronous>, transform_indices = @transform_2, window_bounds = array<i64: 1, 128>}, {pipeline_mode = #tpu.pipeline_mode<synchronous>, transform_indices = @transform_3, window_bounds = array<i64: 1, 128>}, {transform_indices = @transform_4, window_bounds = array<i64: 1, 8, 128>}]} {
    %c0 = arith.constant 0 : index
    %c0_0 = arith.constant 0 : index
    %c0_1 = arith.constant 0 : index
    %0 = vector.load %arg1[%c0, %c0_0, %c0_1] : memref<1x8x128xf32, #tpu.memory_space<vmem>>, vector<1x8x128xf32>
    %1 = vector.shape_cast %0 : vector<1x8x128xf32> to vector<8x128xf32>
    %2 = arith.truncf %1 : vector<8x128xf32> to vector<8x128xbf16>
    %c0_2 = arith.constant 0 : index
    %c0_3 = arith.constant 0 : index
    %3 = vector.load %arg2[%c0_2, %c0_3] : memref<1x128xf32, #tpu.memory_space<vmem>>, vector<1x128xf32>
    %4 = arith.truncf %3 : vector<1x128xf32> to vector<1x128xbf16>
    %cst = arith.constant dense<0.000000e+00> : vector<1x8xf32>
    %5 = tpu.matmul %4, %2, %cst {dimension_numbers = #tpu.dot_dimension_numbers<[1], [1], [0], [0], [0, 0, 1, 0], [], []>} : vector<1x128xbf16>, vector<8x128xbf16>, vector<1x8xf32> -> vector<1x8xf32>
    %c0_4 = arith.constant 0 : index
    %c0_5 = arith.constant 0 : index
    %6 = vector.load %arg3[%c0_4, %c0_5] : memref<1x128xf32, #tpu.memory_space<vmem>>, vector<1x128xf32>
    %7 = vector.broadcast %6 : vector<1x128xf32> to vector<8x128xf32>
    %8 = arith.mulf %1, %7 : vector<8x128xf32>
    %cst_6 = arith.constant dense<0.000000e+00> : vector<8xf32>
    %9 = vector.multi_reduction <add>, %8, %cst_6 [1] : vector<8x128xf32> to vector<8xf32>
    %10 = vector.shape_cast %9 : vector<8xf32> to vector<8x1xf32>
    %c0_7 = arith.constant 0 : index
    %c0_8 = arith.constant 0 : index
    %11 = vector.load %arg4[%c0_7, %c0_8] : memref<1x128xf32, #tpu.memory_space<vmem>>, vector<1x128xf32>
    %12 = vector.broadcast %11 : vector<1x128xf32> to vector<8x128xf32>
    %13 = arith.mulf %1, %12 : vector<8x128xf32>
    %14 = arith.truncf %13 : vector<8x128xf32> to vector<8x128xbf16>
    %cst_9 = arith.constant dense<0.000000e+00> : vector<8x8xf32>
    %15 = tpu.matmul %14, %2, %cst_9 {dimension_numbers = #tpu.dot_dimension_numbers<[1], [1], [0], [0], [0, 0, 1, 0], [], []>} : vector<8x128xbf16>, vector<8x128xbf16>, vector<8x8xf32> -> vector<8x8xf32>
    %16 = vector.broadcast %5 : vector<1x8xf32> to vector<8x8xf32>
    %17 = arith.addf %15, %16 : vector<8x8xf32>
    %18 = vector.broadcast %10 : vector<8x1xf32> to vector<8x8xf32>
    %19 = arith.addf %17, %18 : vector<8x8xf32>
    %cst_10 = arith.constant dense<0xFF800000> : vector<8xf32>
    %20 = vector.multi_reduction <maximumf>, %19, %cst_10 [1] : vector<8x8xf32> to vector<8xf32>
    %21 = vector.shape_cast %20 : vector<8xf32> to vector<8x1xf32>
    %22 = vector.broadcast %21 : vector<8x1xf32> to vector<8x8xf32>
    %23 = arith.subf %19, %22 : vector<8x8xf32>
    %24 = math.exp %23 : vector<8x8xf32>
    %cst_11 = arith.constant dense<0.000000e+00> : vector<8xf32>
    %25 = vector.multi_reduction <add>, %24, %cst_11 [1] : vector<8x8xf32> to vector<8xf32>
    %26 = vector.shape_cast %25 : vector<8xf32> to vector<8x1xf32>
    %27 = vector.broadcast %26 : vector<8x1xf32> to vector<8x8xf32>
    %28 = arith.divf %24, %27 : vector<8x8xf32>
    %29 = arith.truncf %28 : vector<8x8xf32> to vector<8x8xbf16>
    %cst_12 = arith.constant dense<0.000000e+00> : vector<8x128xf32>
    %30 = tpu.matmul %29, %2, %cst_12 {dimension_numbers = #tpu.dot_dimension_numbers<[1], [0], [0], [1], [0, 0, 1, 1], [], []>} : vector<8x8xbf16>, vector<8x128xbf16>, vector<8x128xf32> -> vector<8x128xf32>
    %c0_13 = arith.constant 0 : index
    %c0_14 = arith.constant 0 : index
    %c0_15 = arith.constant 0 : index
    %31 = vector.load %arg5[%c0_13, %c0_14, %c0_15] : memref<1x8x128xf32, #tpu.memory_space<vmem>>, vector<1x8x128xf32>
    %32 = vector.shape_cast %31 : vector<1x8x128xf32> to vector<8x128xf32>
    %33 = vector.shape_cast %30 : vector<8x128xf32> to vector<1x8x128xf32>
    tpu.vector_store %arg5[%c0_13, %c0_14, %c0_15], %33 {strides = array<i32>} : memref<1x8x128xf32, #tpu.memory_space<vmem>>, vector<1x8x128xf32>,
    return
  }
  func.func @transform_0(%arg0: i32) -> (i32, i32, i32) {
    %c0_i32 = arith.constant 0 : i32
    %c0_i32_0 = arith.constant 0 : i32
    %c0_i32_1 = arith.constant 0 : i32
    return %arg0, %c0_i32, %c0_i32_0 : i32, i32, i32
  }
  func.func @transform_1(%arg0: i32) -> (i32, i32) {
    %c0_i32 = arith.constant 0 : i32
    %c0_i32_0 = arith.constant 0 : i32
    %c0_i32_1 = arith.constant 0 : i32
    return %c0_i32, %c0_i32_0 : i32, i32
  }
  func.func @transform_2(%arg0: i32) -> (i32, i32) {
    %c0_i32 = arith.constant 0 : i32
    %c0_i32_0 = arith.constant 0 : i32
    %c0_i32_1 = arith.constant 0 : i32
    return %c0_i32, %c0_i32_0 : i32, i32
  }
  func.func @transform_3(%arg0: i32) -> (i32, i32) {
    %c0_i32 = arith.constant 0 : i32
    %c0_i32_0 = arith.constant 0 : i32
    %c0_i32_1 = arith.constant 0 : i32
    return %c0_i32, %c0_i32_0 : i32, i32
  }
  func.func @transform_4(%arg0: i32) -> (i32, i32, i32) {
    %c0_i32 = arith.constant 0 : i32
    %c0_i32_0 = arith.constant 0 : i32
    %c0_i32_1 = arith.constant 0 : i32
    return %arg0, %c0_i32, %c0_i32_0 : i32, i32, i32
  }
}

module attributes {stable_mosaic.version = 11 : i64} {
  func.func @_interact_kernel(%arg0: i32, %arg1: i32, %arg2: memref<1x8x128xf32, #tpu.memory_space<vmem>>, %arg3: memref<1x8x128xf32, #tpu.memory_space<vmem>>, %arg4: memref<128x128xbf16, #tpu.memory_space<vmem>>, %arg5: memref<1x128xf32, #tpu.memory_space<vmem>>, %arg6: memref<1x8x8x128xf32, #tpu.memory_space<vmem>>) attributes {dimension_semantics = [#tpu.dimension_semantics<parallel>, #tpu.dimension_semantics<parallel>], iteration_bounds = array<i64: 2, 1>, scalar_prefetch = 0 : i64, scratch_operands = 0 : i64, tpu.core_type = #tpu.core_type<tc>, window_params = [{transform_indices = @transform_0, window_bounds = array<i64: 1, 8, 128>}, {transform_indices = @transform_1, window_bounds = array<i64: 1, 8, 128>}, {pipeline_mode = #tpu.pipeline_mode<synchronous>, transform_indices = @transform_2, window_bounds = array<i64: 128, 128>}, {pipeline_mode = #tpu.pipeline_mode<synchronous>, transform_indices = @transform_3, window_bounds = array<i64: 1, 128>}, {transform_indices = @transform_4, window_bounds = array<i64: 1, 8, 8, 128>}]} {
    %c0 = arith.constant 0 : index
    %c0_0 = arith.constant 0 : index
    %c0_1 = arith.constant 0 : index
    %0 = vector.load %arg2[%c0, %c0_0, %c0_1] : memref<1x8x128xf32, #tpu.memory_space<vmem>>, vector<1x8x128xf32>
    %1 = vector.shape_cast %0 : vector<1x8x128xf32> to vector<8x128xf32>
    %c0_2 = arith.constant 0 : index
    %c0_3 = arith.constant 0 : index
    %c0_4 = arith.constant 0 : index
    %2 = vector.load %arg3[%c0_2, %c0_3, %c0_4] : memref<1x8x128xf32, #tpu.memory_space<vmem>>, vector<1x8x128xf32>
    %3 = vector.shape_cast %2 : vector<1x8x128xf32> to vector<8x128xf32>
    %4 = vector.shape_cast %1 : vector<8x128xf32> to vector<8x1x128xf32>
    %5 = vector.shape_cast %3 : vector<8x128xf32> to vector<1x8x128xf32>
    %6 = vector.broadcast %4 : vector<8x1x128xf32> to vector<8x8x128xf32>
    %7 = vector.broadcast %5 : vector<1x8x128xf32> to vector<8x8x128xf32>
    %8 = arith.mulf %6, %7 : vector<8x8x128xf32>
    %9 = vector.shape_cast %8 : vector<8x8x128xf32> to vector<64x128xf32>
    %10 = arith.truncf %9 : vector<64x128xf32> to vector<64x128xbf16>
    %c0_5 = arith.constant 0 : index
    %c0_6 = arith.constant 0 : index
    %11 = vector.load %arg4[%c0_5, %c0_6] : memref<128x128xbf16, #tpu.memory_space<vmem>>, vector<128x128xbf16>
    %cst = arith.constant dense<0.000000e+00> : vector<64x128xf32>
    %12 = tpu.matmul %10, %11, %cst {dimension_numbers = #tpu.dot_dimension_numbers<[1], [0], [0], [1], [0, 0, 1, 1], [], []>} : vector<64x128xbf16>, vector<128x128xbf16>, vector<64x128xf32> -> vector<64x128xf32>
    %c0_7 = arith.constant 0 : index
    %c0_8 = arith.constant 0 : index
    %13 = vector.load %arg5[%c0_7, %c0_8] : memref<1x128xf32, #tpu.memory_space<vmem>>, vector<1x128xf32>
    %14 = vector.broadcast %13 : vector<1x128xf32> to vector<64x128xf32>
    %15 = arith.addf %12, %14 : vector<64x128xf32>
    %16 = vector.shape_cast %15 : vector<64x128xf32> to vector<8x8x128xf32>
    %c0_9 = arith.constant 0 : index
    %c0_10 = arith.constant 0 : index
    %c0_11 = arith.constant 0 : index
    %c0_12 = arith.constant 0 : index
    %17 = vector.load %arg6[%c0_9, %c0_10, %c0_11, %c0_12] : memref<1x8x8x128xf32, #tpu.memory_space<vmem>>, vector<1x8x8x128xf32>
    %18 = vector.shape_cast %17 : vector<1x8x8x128xf32> to vector<8x8x128xf32>
    %19 = vector.shape_cast %16 : vector<8x8x128xf32> to vector<1x8x8x128xf32>
    tpu.vector_store %arg6[%c0_9, %c0_10, %c0_11, %c0_12], %19 {strides = array<i32>} : memref<1x8x8x128xf32, #tpu.memory_space<vmem>>, vector<1x8x8x128xf32>,
    return
  }
  func.func @transform_0(%arg0: i32, %arg1: i32) -> (i32, i32, i32) {
    %c0_i32 = arith.constant 0 : i32
    %c0_i32_0 = arith.constant 0 : i32
    return %arg0, %arg1, %c0_i32 : i32, i32, i32
  }
  func.func @transform_1(%arg0: i32, %arg1: i32) -> (i32, i32, i32) {
    %c0_i32 = arith.constant 0 : i32
    %c0_i32_0 = arith.constant 0 : i32
    %c0_i32_1 = arith.constant 0 : i32
    return %arg0, %c0_i32, %c0_i32_0 : i32, i32, i32
  }
  func.func @transform_2(%arg0: i32, %arg1: i32) -> (i32, i32) {
    %c0_i32 = arith.constant 0 : i32
    %c0_i32_0 = arith.constant 0 : i32
    %c0_i32_1 = arith.constant 0 : i32
    return %c0_i32, %c0_i32_0 : i32, i32
  }
  func.func @transform_3(%arg0: i32, %arg1: i32) -> (i32, i32) {
    %c0_i32 = arith.constant 0 : i32
    %c0_i32_0 = arith.constant 0 : i32
    %c0_i32_1 = arith.constant 0 : i32
    return %c0_i32, %c0_i32_0 : i32, i32
  }
  func.func @transform_4(%arg0: i32, %arg1: i32) -> (i32, i32, i32, i32) {
    %c0_i32 = arith.constant 0 : i32
    %c0_i32_0 = arith.constant 0 : i32
    %c0_i32_1 = arith.constant 0 : i32
    return %arg0, %arg1, %c0_i32, %c0_i32_0 : i32, i32, i32, i32
  }
}

module attributes {stable_mosaic.version = 11 : i64} {
  func.func @_conv3x3_relu_kernel(%arg0: i32, %arg1: memref<1x102x16xf32, #tpu.memory_space<vmem>>, %arg2: memref<9x16x4xbf16, #tpu.memory_space<vmem>>, %arg3: memref<1x80x4xf32, #tpu.memory_space<vmem>>) attributes {dimension_semantics = [#tpu.dimension_semantics<parallel>], iteration_bounds = array<i64: 2>, scalar_prefetch = 0 : i64, scratch_operands = 0 : i64, tpu.core_type = #tpu.core_type<tc>, window_params = [{transform_indices = @transform_0, window_bounds = array<i64: 1, 102, 16>}, {pipeline_mode = #tpu.pipeline_mode<synchronous>, transform_indices = @transform_1, window_bounds = array<i64: 9, 16, 4>}, {transform_indices = @transform_2, window_bounds = array<i64: 1, 80, 4>}]} {
    %cst = arith.constant 0.000000e+00 : f32
    %0 = vector.broadcast %cst : f32 to vector<80x4xf32>
    %c0 = arith.constant 0 : index
    %c0_0 = arith.constant 0 : index
    %c0_1 = arith.constant 0 : index
    %1 = vector.load %arg1[%c0, %c0_0, %c0_1] : memref<1x102x16xf32, #tpu.memory_space<vmem>>, vector<1x80x16xf32>
    %2 = vector.shape_cast %1 : vector<1x80x16xf32> to vector<80x16xf32>
    %3 = arith.truncf %2 : vector<80x16xf32> to vector<80x16xbf16>
    %c0_2 = arith.constant 0 : index
    %c0_3 = arith.constant 0 : index
    %c0_4 = arith.constant 0 : index
    %4 = vector.load %arg2[%c0_2, %c0_3, %c0_4] : memref<9x16x4xbf16, #tpu.memory_space<vmem>>, vector<1x16x4xbf16>
    %5 = vector.shape_cast %4 : vector<1x16x4xbf16> to vector<16x4xbf16>
    %cst_5 = arith.constant dense<0.000000e+00> : vector<80x4xf32>
    %6 = tpu.matmul %3, %5, %cst_5 {dimension_numbers = #tpu.dot_dimension_numbers<[1], [0], [0], [1], [0, 0, 1, 1], [], []>} : vector<80x16xbf16>, vector<16x4xbf16>, vector<80x4xf32> -> vector<80x4xf32>
    %7 = arith.addf %0, %6 : vector<80x4xf32>
    %c0_6 = arith.constant 0 : index
    %c1 = arith.constant 1 : index
    %c0_7 = arith.constant 0 : index
    %8 = vector.load %arg1[%c0_6, %c1, %c0_7] : memref<1x102x16xf32, #tpu.memory_space<vmem>>, vector<1x80x16xf32>
    %9 = vector.shape_cast %8 : vector<1x80x16xf32> to vector<80x16xf32>
    %10 = arith.truncf %9 : vector<80x16xf32> to vector<80x16xbf16>
    %c1_8 = arith.constant 1 : index
    %c0_9 = arith.constant 0 : index
    %c0_10 = arith.constant 0 : index
    %11 = vector.load %arg2[%c1_8, %c0_9, %c0_10] : memref<9x16x4xbf16, #tpu.memory_space<vmem>>, vector<1x16x4xbf16>
    %12 = vector.shape_cast %11 : vector<1x16x4xbf16> to vector<16x4xbf16>
    %cst_11 = arith.constant dense<0.000000e+00> : vector<80x4xf32>
    %13 = tpu.matmul %10, %12, %cst_11 {dimension_numbers = #tpu.dot_dimension_numbers<[1], [0], [0], [1], [0, 0, 1, 1], [], []>} : vector<80x16xbf16>, vector<16x4xbf16>, vector<80x4xf32> -> vector<80x4xf32>
    %14 = arith.addf %7, %13 : vector<80x4xf32>
    %c0_12 = arith.constant 0 : index
    %c2 = arith.constant 2 : index
    %c0_13 = arith.constant 0 : index
    %15 = vector.load %arg1[%c0_12, %c2, %c0_13] : memref<1x102x16xf32, #tpu.memory_space<vmem>>, vector<1x80x16xf32>
    %16 = vector.shape_cast %15 : vector<1x80x16xf32> to vector<80x16xf32>
    %17 = arith.truncf %16 : vector<80x16xf32> to vector<80x16xbf16>
    %c2_14 = arith.constant 2 : index
    %c0_15 = arith.constant 0 : index
    %c0_16 = arith.constant 0 : index
    %18 = vector.load %arg2[%c2_14, %c0_15, %c0_16] : memref<9x16x4xbf16, #tpu.memory_space<vmem>>, vector<1x16x4xbf16>
    %19 = vector.shape_cast %18 : vector<1x16x4xbf16> to vector<16x4xbf16>
    %cst_17 = arith.constant dense<0.000000e+00> : vector<80x4xf32>
    %20 = tpu.matmul %17, %19, %cst_17 {dimension_numbers = #tpu.dot_dimension_numbers<[1], [0], [0], [1], [0, 0, 1, 1], [], []>} : vector<80x16xbf16>, vector<16x4xbf16>, vector<80x4xf32> -> vector<80x4xf32>
    %21 = arith.addf %14, %20 : vector<80x4xf32>
    %c0_18 = arith.constant 0 : index
    %c10 = arith.constant 10 : index
    %c0_19 = arith.constant 0 : index
    %22 = vector.load %arg1[%c0_18, %c10, %c0_19] : memref<1x102x16xf32, #tpu.memory_space<vmem>>, vector<1x80x16xf32>
    %23 = vector.shape_cast %22 : vector<1x80x16xf32> to vector<80x16xf32>
    %24 = arith.truncf %23 : vector<80x16xf32> to vector<80x16xbf16>
    %c3 = arith.constant 3 : index
    %c0_20 = arith.constant 0 : index
    %c0_21 = arith.constant 0 : index
    %25 = vector.load %arg2[%c3, %c0_20, %c0_21] : memref<9x16x4xbf16, #tpu.memory_space<vmem>>, vector<1x16x4xbf16>
    %26 = vector.shape_cast %25 : vector<1x16x4xbf16> to vector<16x4xbf16>
    %cst_22 = arith.constant dense<0.000000e+00> : vector<80x4xf32>
    %27 = tpu.matmul %24, %26, %cst_22 {dimension_numbers = #tpu.dot_dimension_numbers<[1], [0], [0], [1], [0, 0, 1, 1], [], []>} : vector<80x16xbf16>, vector<16x4xbf16>, vector<80x4xf32> -> vector<80x4xf32>
    %28 = arith.addf %21, %27 : vector<80x4xf32>
    %c0_23 = arith.constant 0 : index
    %c11 = arith.constant 11 : index
    %c0_24 = arith.constant 0 : index
    %29 = vector.load %arg1[%c0_23, %c11, %c0_24] : memref<1x102x16xf32, #tpu.memory_space<vmem>>, vector<1x80x16xf32>
    %30 = vector.shape_cast %29 : vector<1x80x16xf32> to vector<80x16xf32>
    %31 = arith.truncf %30 : vector<80x16xf32> to vector<80x16xbf16>
    %c4 = arith.constant 4 : index
    %c0_25 = arith.constant 0 : index
    %c0_26 = arith.constant 0 : index
    %32 = vector.load %arg2[%c4, %c0_25, %c0_26] : memref<9x16x4xbf16, #tpu.memory_space<vmem>>, vector<1x16x4xbf16>
    %33 = vector.shape_cast %32 : vector<1x16x4xbf16> to vector<16x4xbf16>
    %cst_27 = arith.constant dense<0.000000e+00> : vector<80x4xf32>
    %34 = tpu.matmul %31, %33, %cst_27 {dimension_numbers = #tpu.dot_dimension_numbers<[1], [0], [0], [1], [0, 0, 1, 1], [], []>} : vector<80x16xbf16>, vector<16x4xbf16>, vector<80x4xf32> -> vector<80x4xf32>
    %35 = arith.addf %28, %34 : vector<80x4xf32>
    %c0_28 = arith.constant 0 : index
    %c12 = arith.constant 12 : index
    %c0_29 = arith.constant 0 : index
    %36 = vector.load %arg1[%c0_28, %c12, %c0_29] : memref<1x102x16xf32, #tpu.memory_space<vmem>>, vector<1x80x16xf32>
    %37 = vector.shape_cast %36 : vector<1x80x16xf32> to vector<80x16xf32>
    %38 = arith.truncf %37 : vector<80x16xf32> to vector<80x16xbf16>
    %c5 = arith.constant 5 : index
    %c0_30 = arith.constant 0 : index
    %c0_31 = arith.constant 0 : index
    %39 = vector.load %arg2[%c5, %c0_30, %c0_31] : memref<9x16x4xbf16, #tpu.memory_space<vmem>>, vector<1x16x4xbf16>
    %40 = vector.shape_cast %39 : vector<1x16x4xbf16> to vector<16x4xbf16>
    %cst_32 = arith.constant dense<0.000000e+00> : vector<80x4xf32>
    %41 = tpu.matmul %38, %40, %cst_32 {dimension_numbers = #tpu.dot_dimension_numbers<[1], [0], [0], [1], [0, 0, 1, 1], [], []>} : vector<80x16xbf16>, vector<16x4xbf16>, vector<80x4xf32> -> vector<80x4xf32>
    %42 = arith.addf %35, %41 : vector<80x4xf32>
    %c0_33 = arith.constant 0 : index
    %c20 = arith.constant 20 : index
    %c0_34 = arith.constant 0 : index
    %43 = vector.load %arg1[%c0_33, %c20, %c0_34] : memref<1x102x16xf32, #tpu.memory_space<vmem>>, vector<1x80x16xf32>
    %44 = vector.shape_cast %43 : vector<1x80x16xf32> to vector<80x16xf32>
    %45 = arith.truncf %44 : vector<80x16xf32> to vector<80x16xbf16>
    %c6 = arith.constant 6 : index
    %c0_35 = arith.constant 0 : index
    %c0_36 = arith.constant 0 : index
    %46 = vector.load %arg2[%c6, %c0_35, %c0_36] : memref<9x16x4xbf16, #tpu.memory_space<vmem>>, vector<1x16x4xbf16>
    %47 = vector.shape_cast %46 : vector<1x16x4xbf16> to vector<16x4xbf16>
    %cst_37 = arith.constant dense<0.000000e+00> : vector<80x4xf32>
    %48 = tpu.matmul %45, %47, %cst_37 {dimension_numbers = #tpu.dot_dimension_numbers<[1], [0], [0], [1], [0, 0, 1, 1], [], []>} : vector<80x16xbf16>, vector<16x4xbf16>, vector<80x4xf32> -> vector<80x4xf32>
    %49 = arith.addf %42, %48 : vector<80x4xf32>
    %c0_38 = arith.constant 0 : index
    %c21 = arith.constant 21 : index
    %c0_39 = arith.constant 0 : index
    %50 = vector.load %arg1[%c0_38, %c21, %c0_39] : memref<1x102x16xf32, #tpu.memory_space<vmem>>, vector<1x80x16xf32>
    %51 = vector.shape_cast %50 : vector<1x80x16xf32> to vector<80x16xf32>
    %52 = arith.truncf %51 : vector<80x16xf32> to vector<80x16xbf16>
    %c7 = arith.constant 7 : index
    %c0_40 = arith.constant 0 : index
    %c0_41 = arith.constant 0 : index
    %53 = vector.load %arg2[%c7, %c0_40, %c0_41] : memref<9x16x4xbf16, #tpu.memory_space<vmem>>, vector<1x16x4xbf16>
    %54 = vector.shape_cast %53 : vector<1x16x4xbf16> to vector<16x4xbf16>
    %cst_42 = arith.constant dense<0.000000e+00> : vector<80x4xf32>
    %55 = tpu.matmul %52, %54, %cst_42 {dimension_numbers = #tpu.dot_dimension_numbers<[1], [0], [0], [1], [0, 0, 1, 1], [], []>} : vector<80x16xbf16>, vector<16x4xbf16>, vector<80x4xf32> -> vector<80x4xf32>
    %56 = arith.addf %49, %55 : vector<80x4xf32>
    %c0_43 = arith.constant 0 : index
    %c22 = arith.constant 22 : index
    %c0_44 = arith.constant 0 : index
    %57 = vector.load %arg1[%c0_43, %c22, %c0_44] : memref<1x102x16xf32, #tpu.memory_space<vmem>>, vector<1x80x16xf32>
    %58 = vector.shape_cast %57 : vector<1x80x16xf32> to vector<80x16xf32>
    %59 = arith.truncf %58 : vector<80x16xf32> to vector<80x16xbf16>
    %c8 = arith.constant 8 : index
    %c0_45 = arith.constant 0 : index
    %c0_46 = arith.constant 0 : index
    %60 = vector.load %arg2[%c8, %c0_45, %c0_46] : memref<9x16x4xbf16, #tpu.memory_space<vmem>>, vector<1x16x4xbf16>
    %61 = vector.shape_cast %60 : vector<1x16x4xbf16> to vector<16x4xbf16>
    %cst_47 = arith.constant dense<0.000000e+00> : vector<80x4xf32>
    %62 = tpu.matmul %59, %61, %cst_47 {dimension_numbers = #tpu.dot_dimension_numbers<[1], [0], [0], [1], [0, 0, 1, 1], [], []>} : vector<80x16xbf16>, vector<16x4xbf16>, vector<80x4xf32> -> vector<80x4xf32>
    %63 = arith.addf %56, %62 : vector<80x4xf32>
    %cst_48 = arith.constant 0.000000e+00 : f32
    %64 = vector.broadcast %cst_48 : f32 to vector<80x4xf32>
    %65 = arith.maximumf %63, %64 : vector<80x4xf32>
    %c0_49 = arith.constant 0 : index
    %c0_50 = arith.constant 0 : index
    %c0_51 = arith.constant 0 : index
    %66 = vector.load %arg3[%c0_49, %c0_50, %c0_51] : memref<1x80x4xf32, #tpu.memory_space<vmem>>, vector<1x80x4xf32>
    %67 = vector.shape_cast %66 : vector<1x80x4xf32> to vector<80x4xf32>
    %68 = vector.shape_cast %65 : vector<80x4xf32> to vector<1x80x4xf32>
    tpu.vector_store %arg3[%c0_49, %c0_50, %c0_51], %68 {strides = array<i32>} : memref<1x80x4xf32, #tpu.memory_space<vmem>>, vector<1x80x4xf32>,
    return
  }
  func.func @transform_0(%arg0: i32) -> (i32, i32, i32) {
    %c0_i32 = arith.constant 0 : i32
    %c0_i32_0 = arith.constant 0 : i32
    %c0_i32_1 = arith.constant 0 : i32
    return %arg0, %c0_i32, %c0_i32_0 : i32, i32, i32
  }
  func.func @transform_1(%arg0: i32) -> (i32, i32, i32) {
    %c0_i32 = arith.constant 0 : i32
    %c0_i32_0 = arith.constant 0 : i32
    %c0_i32_1 = arith.constant 0 : i32
    %c0_i32_2 = arith.constant 0 : i32
    return %c0_i32, %c0_i32_0, %c0_i32_1 : i32, i32, i32
  }
  func.func @transform_2(%arg0: i32) -> (i32, i32, i32) {
    %c0_i32 = arith.constant 0 : i32
    %c0_i32_0 = arith.constant 0 : i32
    %c0_i32_1 = arith.constant 0 : i32
    return %arg0, %c0_i32, %c0_i32_0 : i32, i32, i32
  }
}

module attributes {stable_mosaic.version = 11 : i64} {
  func.func @_conv3x3_relu_kernel(%arg0: i32, %arg1: memref<1x102x20xf32, #tpu.memory_space<vmem>>, %arg2: memref<9x20x4xbf16, #tpu.memory_space<vmem>>, %arg3: memref<1x80x4xf32, #tpu.memory_space<vmem>>) attributes {dimension_semantics = [#tpu.dimension_semantics<parallel>], iteration_bounds = array<i64: 2>, scalar_prefetch = 0 : i64, scratch_operands = 0 : i64, tpu.core_type = #tpu.core_type<tc>, window_params = [{transform_indices = @transform_0, window_bounds = array<i64: 1, 102, 20>}, {pipeline_mode = #tpu.pipeline_mode<synchronous>, transform_indices = @transform_1, window_bounds = array<i64: 9, 20, 4>}, {transform_indices = @transform_2, window_bounds = array<i64: 1, 80, 4>}]} {
    %cst = arith.constant 0.000000e+00 : f32
    %0 = vector.broadcast %cst : f32 to vector<80x4xf32>
    %c0 = arith.constant 0 : index
    %c0_0 = arith.constant 0 : index
    %c0_1 = arith.constant 0 : index
    %1 = vector.load %arg1[%c0, %c0_0, %c0_1] : memref<1x102x20xf32, #tpu.memory_space<vmem>>, vector<1x80x20xf32>
    %2 = vector.shape_cast %1 : vector<1x80x20xf32> to vector<80x20xf32>
    %3 = arith.truncf %2 : vector<80x20xf32> to vector<80x20xbf16>
    %c0_2 = arith.constant 0 : index
    %c0_3 = arith.constant 0 : index
    %c0_4 = arith.constant 0 : index
    %4 = vector.load %arg2[%c0_2, %c0_3, %c0_4] : memref<9x20x4xbf16, #tpu.memory_space<vmem>>, vector<1x20x4xbf16>
    %5 = vector.shape_cast %4 : vector<1x20x4xbf16> to vector<20x4xbf16>
    %cst_5 = arith.constant dense<0.000000e+00> : vector<80x4xf32>
    %6 = tpu.matmul %3, %5, %cst_5 {dimension_numbers = #tpu.dot_dimension_numbers<[1], [0], [0], [1], [0, 0, 1, 1], [], []>} : vector<80x20xbf16>, vector<20x4xbf16>, vector<80x4xf32> -> vector<80x4xf32>
    %7 = arith.addf %0, %6 : vector<80x4xf32>
    %c0_6 = arith.constant 0 : index
    %c1 = arith.constant 1 : index
    %c0_7 = arith.constant 0 : index
    %8 = vector.load %arg1[%c0_6, %c1, %c0_7] : memref<1x102x20xf32, #tpu.memory_space<vmem>>, vector<1x80x20xf32>
    %9 = vector.shape_cast %8 : vector<1x80x20xf32> to vector<80x20xf32>
    %10 = arith.truncf %9 : vector<80x20xf32> to vector<80x20xbf16>
    %c1_8 = arith.constant 1 : index
    %c0_9 = arith.constant 0 : index
    %c0_10 = arith.constant 0 : index
    %11 = vector.load %arg2[%c1_8, %c0_9, %c0_10] : memref<9x20x4xbf16, #tpu.memory_space<vmem>>, vector<1x20x4xbf16>
    %12 = vector.shape_cast %11 : vector<1x20x4xbf16> to vector<20x4xbf16>
    %cst_11 = arith.constant dense<0.000000e+00> : vector<80x4xf32>
    %13 = tpu.matmul %10, %12, %cst_11 {dimension_numbers = #tpu.dot_dimension_numbers<[1], [0], [0], [1], [0, 0, 1, 1], [], []>} : vector<80x20xbf16>, vector<20x4xbf16>, vector<80x4xf32> -> vector<80x4xf32>
    %14 = arith.addf %7, %13 : vector<80x4xf32>
    %c0_12 = arith.constant 0 : index
    %c2 = arith.constant 2 : index
    %c0_13 = arith.constant 0 : index
    %15 = vector.load %arg1[%c0_12, %c2, %c0_13] : memref<1x102x20xf32, #tpu.memory_space<vmem>>, vector<1x80x20xf32>
    %16 = vector.shape_cast %15 : vector<1x80x20xf32> to vector<80x20xf32>
    %17 = arith.truncf %16 : vector<80x20xf32> to vector<80x20xbf16>
    %c2_14 = arith.constant 2 : index
    %c0_15 = arith.constant 0 : index
    %c0_16 = arith.constant 0 : index
    %18 = vector.load %arg2[%c2_14, %c0_15, %c0_16] : memref<9x20x4xbf16, #tpu.memory_space<vmem>>, vector<1x20x4xbf16>
    %19 = vector.shape_cast %18 : vector<1x20x4xbf16> to vector<20x4xbf16>
    %cst_17 = arith.constant dense<0.000000e+00> : vector<80x4xf32>
    %20 = tpu.matmul %17, %19, %cst_17 {dimension_numbers = #tpu.dot_dimension_numbers<[1], [0], [0], [1], [0, 0, 1, 1], [], []>} : vector<80x20xbf16>, vector<20x4xbf16>, vector<80x4xf32> -> vector<80x4xf32>
    %21 = arith.addf %14, %20 : vector<80x4xf32>
    %c0_18 = arith.constant 0 : index
    %c10 = arith.constant 10 : index
    %c0_19 = arith.constant 0 : index
    %22 = vector.load %arg1[%c0_18, %c10, %c0_19] : memref<1x102x20xf32, #tpu.memory_space<vmem>>, vector<1x80x20xf32>
    %23 = vector.shape_cast %22 : vector<1x80x20xf32> to vector<80x20xf32>
    %24 = arith.truncf %23 : vector<80x20xf32> to vector<80x20xbf16>
    %c3 = arith.constant 3 : index
    %c0_20 = arith.constant 0 : index
    %c0_21 = arith.constant 0 : index
    %25 = vector.load %arg2[%c3, %c0_20, %c0_21] : memref<9x20x4xbf16, #tpu.memory_space<vmem>>, vector<1x20x4xbf16>
    %26 = vector.shape_cast %25 : vector<1x20x4xbf16> to vector<20x4xbf16>
    %cst_22 = arith.constant dense<0.000000e+00> : vector<80x4xf32>
    %27 = tpu.matmul %24, %26, %cst_22 {dimension_numbers = #tpu.dot_dimension_numbers<[1], [0], [0], [1], [0, 0, 1, 1], [], []>} : vector<80x20xbf16>, vector<20x4xbf16>, vector<80x4xf32> -> vector<80x4xf32>
    %28 = arith.addf %21, %27 : vector<80x4xf32>
    %c0_23 = arith.constant 0 : index
    %c11 = arith.constant 11 : index
    %c0_24 = arith.constant 0 : index
    %29 = vector.load %arg1[%c0_23, %c11, %c0_24] : memref<1x102x20xf32, #tpu.memory_space<vmem>>, vector<1x80x20xf32>
    %30 = vector.shape_cast %29 : vector<1x80x20xf32> to vector<80x20xf32>
    %31 = arith.truncf %30 : vector<80x20xf32> to vector<80x20xbf16>
    %c4 = arith.constant 4 : index
    %c0_25 = arith.constant 0 : index
    %c0_26 = arith.constant 0 : index
    %32 = vector.load %arg2[%c4, %c0_25, %c0_26] : memref<9x20x4xbf16, #tpu.memory_space<vmem>>, vector<1x20x4xbf16>
    %33 = vector.shape_cast %32 : vector<1x20x4xbf16> to vector<20x4xbf16>
    %cst_27 = arith.constant dense<0.000000e+00> : vector<80x4xf32>
    %34 = tpu.matmul %31, %33, %cst_27 {dimension_numbers = #tpu.dot_dimension_numbers<[1], [0], [0], [1], [0, 0, 1, 1], [], []>} : vector<80x20xbf16>, vector<20x4xbf16>, vector<80x4xf32> -> vector<80x4xf32>
    %35 = arith.addf %28, %34 : vector<80x4xf32>
    %c0_28 = arith.constant 0 : index
    %c12 = arith.constant 12 : index
    %c0_29 = arith.constant 0 : index
    %36 = vector.load %arg1[%c0_28, %c12, %c0_29] : memref<1x102x20xf32, #tpu.memory_space<vmem>>, vector<1x80x20xf32>
    %37 = vector.shape_cast %36 : vector<1x80x20xf32> to vector<80x20xf32>
    %38 = arith.truncf %37 : vector<80x20xf32> to vector<80x20xbf16>
    %c5 = arith.constant 5 : index
    %c0_30 = arith.constant 0 : index
    %c0_31 = arith.constant 0 : index
    %39 = vector.load %arg2[%c5, %c0_30, %c0_31] : memref<9x20x4xbf16, #tpu.memory_space<vmem>>, vector<1x20x4xbf16>
    %40 = vector.shape_cast %39 : vector<1x20x4xbf16> to vector<20x4xbf16>
    %cst_32 = arith.constant dense<0.000000e+00> : vector<80x4xf32>
    %41 = tpu.matmul %38, %40, %cst_32 {dimension_numbers = #tpu.dot_dimension_numbers<[1], [0], [0], [1], [0, 0, 1, 1], [], []>} : vector<80x20xbf16>, vector<20x4xbf16>, vector<80x4xf32> -> vector<80x4xf32>
    %42 = arith.addf %35, %41 : vector<80x4xf32>
    %c0_33 = arith.constant 0 : index
    %c20 = arith.constant 20 : index
    %c0_34 = arith.constant 0 : index
    %43 = vector.load %arg1[%c0_33, %c20, %c0_34] : memref<1x102x20xf32, #tpu.memory_space<vmem>>, vector<1x80x20xf32>
    %44 = vector.shape_cast %43 : vector<1x80x20xf32> to vector<80x20xf32>
    %45 = arith.truncf %44 : vector<80x20xf32> to vector<80x20xbf16>
    %c6 = arith.constant 6 : index
    %c0_35 = arith.constant 0 : index
    %c0_36 = arith.constant 0 : index
    %46 = vector.load %arg2[%c6, %c0_35, %c0_36] : memref<9x20x4xbf16, #tpu.memory_space<vmem>>, vector<1x20x4xbf16>
    %47 = vector.shape_cast %46 : vector<1x20x4xbf16> to vector<20x4xbf16>
    %cst_37 = arith.constant dense<0.000000e+00> : vector<80x4xf32>
    %48 = tpu.matmul %45, %47, %cst_37 {dimension_numbers = #tpu.dot_dimension_numbers<[1], [0], [0], [1], [0, 0, 1, 1], [], []>} : vector<80x20xbf16>, vector<20x4xbf16>, vector<80x4xf32> -> vector<80x4xf32>
    %49 = arith.addf %42, %48 : vector<80x4xf32>
    %c0_38 = arith.constant 0 : index
    %c21 = arith.constant 21 : index
    %c0_39 = arith.constant 0 : index
    %50 = vector.load %arg1[%c0_38, %c21, %c0_39] : memref<1x102x20xf32, #tpu.memory_space<vmem>>, vector<1x80x20xf32>
    %51 = vector.shape_cast %50 : vector<1x80x20xf32> to vector<80x20xf32>
    %52 = arith.truncf %51 : vector<80x20xf32> to vector<80x20xbf16>
    %c7 = arith.constant 7 : index
    %c0_40 = arith.constant 0 : index
    %c0_41 = arith.constant 0 : index
    %53 = vector.load %arg2[%c7, %c0_40, %c0_41] : memref<9x20x4xbf16, #tpu.memory_space<vmem>>, vector<1x20x4xbf16>
    %54 = vector.shape_cast %53 : vector<1x20x4xbf16> to vector<20x4xbf16>
    %cst_42 = arith.constant dense<0.000000e+00> : vector<80x4xf32>
    %55 = tpu.matmul %52, %54, %cst_42 {dimension_numbers = #tpu.dot_dimension_numbers<[1], [0], [0], [1], [0, 0, 1, 1], [], []>} : vector<80x20xbf16>, vector<20x4xbf16>, vector<80x4xf32> -> vector<80x4xf32>
    %56 = arith.addf %49, %55 : vector<80x4xf32>
    %c0_43 = arith.constant 0 : index
    %c22 = arith.constant 22 : index
    %c0_44 = arith.constant 0 : index
    %57 = vector.load %arg1[%c0_43, %c22, %c0_44] : memref<1x102x20xf32, #tpu.memory_space<vmem>>, vector<1x80x20xf32>
    %58 = vector.shape_cast %57 : vector<1x80x20xf32> to vector<80x20xf32>
    %59 = arith.truncf %58 : vector<80x20xf32> to vector<80x20xbf16>
    %c8 = arith.constant 8 : index
    %c0_45 = arith.constant 0 : index
    %c0_46 = arith.constant 0 : index
    %60 = vector.load %arg2[%c8, %c0_45, %c0_46] : memref<9x20x4xbf16, #tpu.memory_space<vmem>>, vector<1x20x4xbf16>
    %61 = vector.shape_cast %60 : vector<1x20x4xbf16> to vector<20x4xbf16>
    %cst_47 = arith.constant dense<0.000000e+00> : vector<80x4xf32>
    %62 = tpu.matmul %59, %61, %cst_47 {dimension_numbers = #tpu.dot_dimension_numbers<[1], [0], [0], [1], [0, 0, 1, 1], [], []>} : vector<80x20xbf16>, vector<20x4xbf16>, vector<80x4xf32> -> vector<80x4xf32>
    %63 = arith.addf %56, %62 : vector<80x4xf32>
    %cst_48 = arith.constant 0.000000e+00 : f32
    %64 = vector.broadcast %cst_48 : f32 to vector<80x4xf32>
    %65 = arith.maximumf %63, %64 : vector<80x4xf32>
    %c0_49 = arith.constant 0 : index
    %c0_50 = arith.constant 0 : index
    %c0_51 = arith.constant 0 : index
    %66 = vector.load %arg3[%c0_49, %c0_50, %c0_51] : memref<1x80x4xf32, #tpu.memory_space<vmem>>, vector<1x80x4xf32>
    %67 = vector.shape_cast %66 : vector<1x80x4xf32> to vector<80x4xf32>
    %68 = vector.shape_cast %65 : vector<80x4xf32> to vector<1x80x4xf32>
    tpu.vector_store %arg3[%c0_49, %c0_50, %c0_51], %68 {strides = array<i32>} : memref<1x80x4xf32, #tpu.memory_space<vmem>>, vector<1x80x4xf32>,
    return
  }
  func.func @transform_0(%arg0: i32) -> (i32, i32, i32) {
    %c0_i32 = arith.constant 0 : i32
    %c0_i32_0 = arith.constant 0 : i32
    %c0_i32_1 = arith.constant 0 : i32
    return %arg0, %c0_i32, %c0_i32_0 : i32, i32, i32
  }
  func.func @transform_1(%arg0: i32) -> (i32, i32, i32) {
    %c0_i32 = arith.constant 0 : i32
    %c0_i32_0 = arith.constant 0 : i32
    %c0_i32_1 = arith.constant 0 : i32
    %c0_i32_2 = arith.constant 0 : i32
    return %c0_i32, %c0_i32_0, %c0_i32_1 : i32, i32, i32
  }
  func.func @transform_2(%arg0: i32) -> (i32, i32, i32) {
    %c0_i32 = arith.constant 0 : i32
    %c0_i32_0 = arith.constant 0 : i32
    %c0_i32_1 = arith.constant 0 : i32
    return %arg0, %c0_i32, %c0_i32_0 : i32, i32, i32
  }
}

module attributes {stable_mosaic.version = 11 : i64} {
  func.func @_linear_kernel(%arg0: i32, %arg1: i32, %arg2: i32, %arg3: memref<128x24xf32, #tpu.memory_space<vmem>>, %arg4: memref<24x128xbf16, #tpu.memory_space<vmem>>, %arg5: memref<1x128xf32, #tpu.memory_space<vmem>>, %arg6: memref<128x128xf32, #tpu.memory_space<vmem>>, %arg7: memref<128x128xf32, #tpu.memory_space<vmem>>) attributes {dimension_semantics = [#tpu.dimension_semantics<parallel>, #tpu.dimension_semantics<parallel>, #tpu.dimension_semantics<arbitrary>], iteration_bounds = array<i64: 1, 1, 1>, scalar_prefetch = 0 : i64, scratch_operands = 1 : i64, tpu.core_type = #tpu.core_type<tc>, window_params = [{transform_indices = @transform_0, window_bounds = array<i64: 128, 24>}, {transform_indices = @transform_1, window_bounds = array<i64: 24, 128>}, {transform_indices = @transform_2, window_bounds = array<i64: 1, 128>}, {transform_indices = @transform_3, window_bounds = array<i64: 128, 128>}]} {
    %c0_i32 = arith.constant 0 : i32
    %0 = arith.cmpi eq, %arg2, %c0_i32 : i32
    %1 = arith.extui %0 : i1 to i32
    %c0_i32_0 = arith.constant 0 : i32
    %2 = arith.cmpi ne, %1, %c0_i32_0 : i32
    scf.if %2 {
      %cst_10 = arith.constant 0.000000e+00 : f32
      %13 = vector.broadcast %cst_10 : f32 to vector<128x128xf32>
      %c0_11 = arith.constant 0 : index
      %c0_12 = arith.constant 0 : index
      %14 = vector.load %arg7[%c0_11, %c0_12] : memref<128x128xf32, #tpu.memory_space<vmem>>, vector<128x128xf32>
      tpu.vector_store %arg7[%c0_11, %c0_12], %13 {strides = array<i32>} : memref<128x128xf32, #tpu.memory_space<vmem>>, vector<128x128xf32>,
    } else {
    }
    %c0 = arith.constant 0 : index
    %c0_1 = arith.constant 0 : index
    %3 = vector.load %arg7[%c0, %c0_1] : memref<128x128xf32, #tpu.memory_space<vmem>>, vector<128x128xf32>
    %c0_2 = arith.constant 0 : index
    %c0_3 = arith.constant 0 : index
    %4 = vector.load %arg3[%c0_2, %c0_3] : memref<128x24xf32, #tpu.memory_space<vmem>>, vector<128x24xf32>
    %5 = arith.truncf %4 : vector<128x24xf32> to vector<128x24xbf16>
    %c0_4 = arith.constant 0 : index
    %c0_5 = arith.constant 0 : index
    %6 = vector.load %arg4[%c0_4, %c0_5] : memref<24x128xbf16, #tpu.memory_space<vmem>>, vector<24x128xbf16>
    %cst = arith.constant dense<0.000000e+00> : vector<128x128xf32>
    %7 = tpu.matmul %5, %6, %cst {dimension_numbers = #tpu.dot_dimension_numbers<[1], [0], [0], [1], [0, 0, 1, 1], [], []>} : vector<128x24xbf16>, vector<24x128xbf16>, vector<128x128xf32> -> vector<128x128xf32>
    %8 = arith.addf %3, %7 : vector<128x128xf32>
    %c0_6 = arith.constant 0 : index
    %c0_7 = arith.constant 0 : index
    %9 = vector.load %arg7[%c0_6, %c0_7] : memref<128x128xf32, #tpu.memory_space<vmem>>, vector<128x128xf32>
    tpu.vector_store %arg7[%c0_6, %c0_7], %8 {strides = array<i32>} : memref<128x128xf32, #tpu.memory_space<vmem>>, vector<128x128xf32>,
    %c0_i32_8 = arith.constant 0 : i32
    %10 = arith.cmpi eq, %arg2, %c0_i32_8 : i32
    %11 = arith.extui %10 : i1 to i32
    %c0_i32_9 = arith.constant 0 : i32
    %12 = arith.cmpi ne, %11, %c0_i32_9 : i32
    scf.if %12 {
      %c0_10 = arith.constant 0 : index
      %c0_11 = arith.constant 0 : index
      %13 = vector.load %arg7[%c0_10, %c0_11] : memref<128x128xf32, #tpu.memory_space<vmem>>, vector<128x128xf32>
      %c0_12 = arith.constant 0 : index
      %c0_13 = arith.constant 0 : index
      %14 = vector.load %arg5[%c0_12, %c0_13] : memref<1x128xf32, #tpu.memory_space<vmem>>, vector<1x128xf32>
      %15 = vector.broadcast %14 : vector<1x128xf32> to vector<128x128xf32>
      %16 = arith.addf %13, %15 : vector<128x128xf32>
      %c0_14 = arith.constant 0 : index
      %c0_15 = arith.constant 0 : index
      %17 = vector.load %arg6[%c0_14, %c0_15] : memref<128x128xf32, #tpu.memory_space<vmem>>, vector<128x128xf32>
      tpu.vector_store %arg6[%c0_14, %c0_15], %16 {strides = array<i32>} : memref<128x128xf32, #tpu.memory_space<vmem>>, vector<128x128xf32>,
    } else {
    }
    return
  }
  func.func @transform_0(%arg0: i32, %arg1: i32, %arg2: i32) -> (i32, i32) {
    %c0_i32 = arith.constant 0 : i32
    return %arg0, %arg2 : i32, i32
  }
  func.func @transform_1(%arg0: i32, %arg1: i32, %arg2: i32) -> (i32, i32) {
    %c0_i32 = arith.constant 0 : i32
    return %arg2, %arg1 : i32, i32
  }
  func.func @transform_2(%arg0: i32, %arg1: i32, %arg2: i32) -> (i32, i32) {
    %c0_i32 = arith.constant 0 : i32
    %c0_i32_0 = arith.constant 0 : i32
    return %c0_i32, %arg1 : i32, i32
  }
  func.func @transform_3(%arg0: i32, %arg1: i32, %arg2: i32) -> (i32, i32) {
    %c0_i32 = arith.constant 0 : i32
    return %arg0, %arg1 : i32, i32
  }
}

module attributes {stable_mosaic.version = 11 : i64} {
  func.func @_conv3x3_relu_kernel(%arg0: i32, %arg1: memref<1x38x12xf32, #tpu.memory_space<vmem>>, %arg2: memref<9x12x4xbf16, #tpu.memory_space<vmem>>, %arg3: memref<1x24x4xf32, #tpu.memory_space<vmem>>) attributes {dimension_semantics = [#tpu.dimension_semantics<parallel>], iteration_bounds = array<i64: 2>, scalar_prefetch = 0 : i64, scratch_operands = 0 : i64, tpu.core_type = #tpu.core_type<tc>, window_params = [{transform_indices = @transform_0, window_bounds = array<i64: 1, 38, 12>}, {pipeline_mode = #tpu.pipeline_mode<synchronous>, transform_indices = @transform_1, window_bounds = array<i64: 9, 12, 4>}, {transform_indices = @transform_2, window_bounds = array<i64: 1, 24, 4>}]} {
    %cst = arith.constant 0.000000e+00 : f32
    %0 = vector.broadcast %cst : f32 to vector<24x4xf32>
    %c0 = arith.constant 0 : index
    %c0_0 = arith.constant 0 : index
    %c0_1 = arith.constant 0 : index
    %1 = vector.load %arg1[%c0, %c0_0, %c0_1] : memref<1x38x12xf32, #tpu.memory_space<vmem>>, vector<1x24x12xf32>
    %2 = vector.shape_cast %1 : vector<1x24x12xf32> to vector<24x12xf32>
    %3 = arith.truncf %2 : vector<24x12xf32> to vector<24x12xbf16>
    %c0_2 = arith.constant 0 : index
    %c0_3 = arith.constant 0 : index
    %c0_4 = arith.constant 0 : index
    %4 = vector.load %arg2[%c0_2, %c0_3, %c0_4] : memref<9x12x4xbf16, #tpu.memory_space<vmem>>, vector<1x12x4xbf16>
    %5 = vector.shape_cast %4 : vector<1x12x4xbf16> to vector<12x4xbf16>
    %cst_5 = arith.constant dense<0.000000e+00> : vector<24x4xf32>
    %6 = tpu.matmul %3, %5, %cst_5 {dimension_numbers = #tpu.dot_dimension_numbers<[1], [0], [0], [1], [0, 0, 1, 1], [], []>} : vector<24x12xbf16>, vector<12x4xbf16>, vector<24x4xf32> -> vector<24x4xf32>
    %7 = arith.addf %0, %6 : vector<24x4xf32>
    %c0_6 = arith.constant 0 : index
    %c1 = arith.constant 1 : index
    %c0_7 = arith.constant 0 : index
    %8 = vector.load %arg1[%c0_6, %c1, %c0_7] : memref<1x38x12xf32, #tpu.memory_space<vmem>>, vector<1x24x12xf32>
    %9 = vector.shape_cast %8 : vector<1x24x12xf32> to vector<24x12xf32>
    %10 = arith.truncf %9 : vector<24x12xf32> to vector<24x12xbf16>
    %c1_8 = arith.constant 1 : index
    %c0_9 = arith.constant 0 : index
    %c0_10 = arith.constant 0 : index
    %11 = vector.load %arg2[%c1_8, %c0_9, %c0_10] : memref<9x12x4xbf16, #tpu.memory_space<vmem>>, vector<1x12x4xbf16>
    %12 = vector.shape_cast %11 : vector<1x12x4xbf16> to vector<12x4xbf16>
    %cst_11 = arith.constant dense<0.000000e+00> : vector<24x4xf32>
    %13 = tpu.matmul %10, %12, %cst_11 {dimension_numbers = #tpu.dot_dimension_numbers<[1], [0], [0], [1], [0, 0, 1, 1], [], []>} : vector<24x12xbf16>, vector<12x4xbf16>, vector<24x4xf32> -> vector<24x4xf32>
    %14 = arith.addf %7, %13 : vector<24x4xf32>
    %c0_12 = arith.constant 0 : index
    %c2 = arith.constant 2 : index
    %c0_13 = arith.constant 0 : index
    %15 = vector.load %arg1[%c0_12, %c2, %c0_13] : memref<1x38x12xf32, #tpu.memory_space<vmem>>, vector<1x24x12xf32>
    %16 = vector.shape_cast %15 : vector<1x24x12xf32> to vector<24x12xf32>
    %17 = arith.truncf %16 : vector<24x12xf32> to vector<24x12xbf16>
    %c2_14 = arith.constant 2 : index
    %c0_15 = arith.constant 0 : index
    %c0_16 = arith.constant 0 : index
    %18 = vector.load %arg2[%c2_14, %c0_15, %c0_16] : memref<9x12x4xbf16, #tpu.memory_space<vmem>>, vector<1x12x4xbf16>
    %19 = vector.shape_cast %18 : vector<1x12x4xbf16> to vector<12x4xbf16>
    %cst_17 = arith.constant dense<0.000000e+00> : vector<24x4xf32>
    %20 = tpu.matmul %17, %19, %cst_17 {dimension_numbers = #tpu.dot_dimension_numbers<[1], [0], [0], [1], [0, 0, 1, 1], [], []>} : vector<24x12xbf16>, vector<12x4xbf16>, vector<24x4xf32> -> vector<24x4xf32>
    %21 = arith.addf %14, %20 : vector<24x4xf32>
    %c0_18 = arith.constant 0 : index
    %c6 = arith.constant 6 : index
    %c0_19 = arith.constant 0 : index
    %22 = vector.load %arg1[%c0_18, %c6, %c0_19] : memref<1x38x12xf32, #tpu.memory_space<vmem>>, vector<1x24x12xf32>
    %23 = vector.shape_cast %22 : vector<1x24x12xf32> to vector<24x12xf32>
    %24 = arith.truncf %23 : vector<24x12xf32> to vector<24x12xbf16>
    %c3 = arith.constant 3 : index
    %c0_20 = arith.constant 0 : index
    %c0_21 = arith.constant 0 : index
    %25 = vector.load %arg2[%c3, %c0_20, %c0_21] : memref<9x12x4xbf16, #tpu.memory_space<vmem>>, vector<1x12x4xbf16>
    %26 = vector.shape_cast %25 : vector<1x12x4xbf16> to vector<12x4xbf16>
    %cst_22 = arith.constant dense<0.000000e+00> : vector<24x4xf32>
    %27 = tpu.matmul %24, %26, %cst_22 {dimension_numbers = #tpu.dot_dimension_numbers<[1], [0], [0], [1], [0, 0, 1, 1], [], []>} : vector<24x12xbf16>, vector<12x4xbf16>, vector<24x4xf32> -> vector<24x4xf32>
    %28 = arith.addf %21, %27 : vector<24x4xf32>
    %c0_23 = arith.constant 0 : index
    %c7 = arith.constant 7 : index
    %c0_24 = arith.constant 0 : index
    %29 = vector.load %arg1[%c0_23, %c7, %c0_24] : memref<1x38x12xf32, #tpu.memory_space<vmem>>, vector<1x24x12xf32>
    %30 = vector.shape_cast %29 : vector<1x24x12xf32> to vector<24x12xf32>
    %31 = arith.truncf %30 : vector<24x12xf32> to vector<24x12xbf16>
    %c4 = arith.constant 4 : index
    %c0_25 = arith.constant 0 : index
    %c0_26 = arith.constant 0 : index
    %32 = vector.load %arg2[%c4, %c0_25, %c0_26] : memref<9x12x4xbf16, #tpu.memory_space<vmem>>, vector<1x12x4xbf16>
    %33 = vector.shape_cast %32 : vector<1x12x4xbf16> to vector<12x4xbf16>
    %cst_27 = arith.constant dense<0.000000e+00> : vector<24x4xf32>
    %34 = tpu.matmul %31, %33, %cst_27 {dimension_numbers = #tpu.dot_dimension_numbers<[1], [0], [0], [1], [0, 0, 1, 1], [], []>} : vector<24x12xbf16>, vector<12x4xbf16>, vector<24x4xf32> -> vector<24x4xf32>
    %35 = arith.addf %28, %34 : vector<24x4xf32>
    %c0_28 = arith.constant 0 : index
    %c8 = arith.constant 8 : index
    %c0_29 = arith.constant 0 : index
    %36 = vector.load %arg1[%c0_28, %c8, %c0_29] : memref<1x38x12xf32, #tpu.memory_space<vmem>>, vector<1x24x12xf32>
    %37 = vector.shape_cast %36 : vector<1x24x12xf32> to vector<24x12xf32>
    %38 = arith.truncf %37 : vector<24x12xf32> to vector<24x12xbf16>
    %c5 = arith.constant 5 : index
    %c0_30 = arith.constant 0 : index
    %c0_31 = arith.constant 0 : index
    %39 = vector.load %arg2[%c5, %c0_30, %c0_31] : memref<9x12x4xbf16, #tpu.memory_space<vmem>>, vector<1x12x4xbf16>
    %40 = vector.shape_cast %39 : vector<1x12x4xbf16> to vector<12x4xbf16>
    %cst_32 = arith.constant dense<0.000000e+00> : vector<24x4xf32>
    %41 = tpu.matmul %38, %40, %cst_32 {dimension_numbers = #tpu.dot_dimension_numbers<[1], [0], [0], [1], [0, 0, 1, 1], [], []>} : vector<24x12xbf16>, vector<12x4xbf16>, vector<24x4xf32> -> vector<24x4xf32>
    %42 = arith.addf %35, %41 : vector<24x4xf32>
    %c0_33 = arith.constant 0 : index
    %c12 = arith.constant 12 : index
    %c0_34 = arith.constant 0 : index
    %43 = vector.load %arg1[%c0_33, %c12, %c0_34] : memref<1x38x12xf32, #tpu.memory_space<vmem>>, vector<1x24x12xf32>
    %44 = vector.shape_cast %43 : vector<1x24x12xf32> to vector<24x12xf32>
    %45 = arith.truncf %44 : vector<24x12xf32> to vector<24x12xbf16>
    %c6_35 = arith.constant 6 : index
    %c0_36 = arith.constant 0 : index
    %c0_37 = arith.constant 0 : index
    %46 = vector.load %arg2[%c6_35, %c0_36, %c0_37] : memref<9x12x4xbf16, #tpu.memory_space<vmem>>, vector<1x12x4xbf16>
    %47 = vector.shape_cast %46 : vector<1x12x4xbf16> to vector<12x4xbf16>
    %cst_38 = arith.constant dense<0.000000e+00> : vector<24x4xf32>
    %48 = tpu.matmul %45, %47, %cst_38 {dimension_numbers = #tpu.dot_dimension_numbers<[1], [0], [0], [1], [0, 0, 1, 1], [], []>} : vector<24x12xbf16>, vector<12x4xbf16>, vector<24x4xf32> -> vector<24x4xf32>
    %49 = arith.addf %42, %48 : vector<24x4xf32>
    %c0_39 = arith.constant 0 : index
    %c13 = arith.constant 13 : index
    %c0_40 = arith.constant 0 : index
    %50 = vector.load %arg1[%c0_39, %c13, %c0_40] : memref<1x38x12xf32, #tpu.memory_space<vmem>>, vector<1x24x12xf32>
    %51 = vector.shape_cast %50 : vector<1x24x12xf32> to vector<24x12xf32>
    %52 = arith.truncf %51 : vector<24x12xf32> to vector<24x12xbf16>
    %c7_41 = arith.constant 7 : index
    %c0_42 = arith.constant 0 : index
    %c0_43 = arith.constant 0 : index
    %53 = vector.load %arg2[%c7_41, %c0_42, %c0_43] : memref<9x12x4xbf16, #tpu.memory_space<vmem>>, vector<1x12x4xbf16>
    %54 = vector.shape_cast %53 : vector<1x12x4xbf16> to vector<12x4xbf16>
    %cst_44 = arith.constant dense<0.000000e+00> : vector<24x4xf32>
    %55 = tpu.matmul %52, %54, %cst_44 {dimension_numbers = #tpu.dot_dimension_numbers<[1], [0], [0], [1], [0, 0, 1, 1], [], []>} : vector<24x12xbf16>, vector<12x4xbf16>, vector<24x4xf32> -> vector<24x4xf32>
    %56 = arith.addf %49, %55 : vector<24x4xf32>
    %c0_45 = arith.constant 0 : index
    %c14 = arith.constant 14 : index
    %c0_46 = arith.constant 0 : index
    %57 = vector.load %arg1[%c0_45, %c14, %c0_46] : memref<1x38x12xf32, #tpu.memory_space<vmem>>, vector<1x24x12xf32>
    %58 = vector.shape_cast %57 : vector<1x24x12xf32> to vector<24x12xf32>
    %59 = arith.truncf %58 : vector<24x12xf32> to vector<24x12xbf16>
    %c8_47 = arith.constant 8 : index
    %c0_48 = arith.constant 0 : index
    %c0_49 = arith.constant 0 : index
    %60 = vector.load %arg2[%c8_47, %c0_48, %c0_49] : memref<9x12x4xbf16, #tpu.memory_space<vmem>>, vector<1x12x4xbf16>
    %61 = vector.shape_cast %60 : vector<1x12x4xbf16> to vector<12x4xbf16>
    %cst_50 = arith.constant dense<0.000000e+00> : vector<24x4xf32>
    %62 = tpu.matmul %59, %61, %cst_50 {dimension_numbers = #tpu.dot_dimension_numbers<[1], [0], [0], [1], [0, 0, 1, 1], [], []>} : vector<24x12xbf16>, vector<12x4xbf16>, vector<24x4xf32> -> vector<24x4xf32>
    %63 = arith.addf %56, %62 : vector<24x4xf32>
    %cst_51 = arith.constant 0.000000e+00 : f32
    %64 = vector.broadcast %cst_51 : f32 to vector<24x4xf32>
    %65 = arith.maximumf %63, %64 : vector<24x4xf32>
    %c0_52 = arith.constant 0 : index
    %c0_53 = arith.constant 0 : index
    %c0_54 = arith.constant 0 : index
    %66 = vector.load %arg3[%c0_52, %c0_53, %c0_54] : memref<1x24x4xf32, #tpu.memory_space<vmem>>, vector<1x24x4xf32>
    %67 = vector.shape_cast %66 : vector<1x24x4xf32> to vector<24x4xf32>
    %68 = vector.shape_cast %65 : vector<24x4xf32> to vector<1x24x4xf32>
    tpu.vector_store %arg3[%c0_52, %c0_53, %c0_54], %68 {strides = array<i32>} : memref<1x24x4xf32, #tpu.memory_space<vmem>>, vector<1x24x4xf32>,
    return
  }
  func.func @transform_0(%arg0: i32) -> (i32, i32, i32) {
    %c0_i32 = arith.constant 0 : i32
    %c0_i32_0 = arith.constant 0 : i32
    %c0_i32_1 = arith.constant 0 : i32
    return %arg0, %c0_i32, %c0_i32_0 : i32, i32, i32
  }
  func.func @transform_1(%arg0: i32) -> (i32, i32, i32) {
    %c0_i32 = arith.constant 0 : i32
    %c0_i32_0 = arith.constant 0 : i32
    %c0_i32_1 = arith.constant 0 : i32
    %c0_i32_2 = arith.constant 0 : i32
    return %c0_i32, %c0_i32_0, %c0_i32_1 : i32, i32, i32
  }
  func.func @transform_2(%arg0: i32) -> (i32, i32, i32) {
    %c0_i32 = arith.constant 0 : i32
    %c0_i32_0 = arith.constant 0 : i32
    %c0_i32_1 = arith.constant 0 : i32
    return %arg0, %c0_i32, %c0_i32_0 : i32, i32, i32
  }
}

module attributes {stable_mosaic.version = 11 : i64} {
  func.func @_conv3x3_relu_kernel(%arg0: i32, %arg1: memref<1x38x16xf32, #tpu.memory_space<vmem>>, %arg2: memref<9x16x4xbf16, #tpu.memory_space<vmem>>, %arg3: memref<1x24x4xf32, #tpu.memory_space<vmem>>) attributes {dimension_semantics = [#tpu.dimension_semantics<parallel>], iteration_bounds = array<i64: 2>, scalar_prefetch = 0 : i64, scratch_operands = 0 : i64, tpu.core_type = #tpu.core_type<tc>, window_params = [{transform_indices = @transform_0, window_bounds = array<i64: 1, 38, 16>}, {pipeline_mode = #tpu.pipeline_mode<synchronous>, transform_indices = @transform_1, window_bounds = array<i64: 9, 16, 4>}, {transform_indices = @transform_2, window_bounds = array<i64: 1, 24, 4>}]} {
    %cst = arith.constant 0.000000e+00 : f32
    %0 = vector.broadcast %cst : f32 to vector<24x4xf32>
    %c0 = arith.constant 0 : index
    %c0_0 = arith.constant 0 : index
    %c0_1 = arith.constant 0 : index
    %1 = vector.load %arg1[%c0, %c0_0, %c0_1] : memref<1x38x16xf32, #tpu.memory_space<vmem>>, vector<1x24x16xf32>
    %2 = vector.shape_cast %1 : vector<1x24x16xf32> to vector<24x16xf32>
    %3 = arith.truncf %2 : vector<24x16xf32> to vector<24x16xbf16>
    %c0_2 = arith.constant 0 : index
    %c0_3 = arith.constant 0 : index
    %c0_4 = arith.constant 0 : index
    %4 = vector.load %arg2[%c0_2, %c0_3, %c0_4] : memref<9x16x4xbf16, #tpu.memory_space<vmem>>, vector<1x16x4xbf16>
    %5 = vector.shape_cast %4 : vector<1x16x4xbf16> to vector<16x4xbf16>
    %cst_5 = arith.constant dense<0.000000e+00> : vector<24x4xf32>
    %6 = tpu.matmul %3, %5, %cst_5 {dimension_numbers = #tpu.dot_dimension_numbers<[1], [0], [0], [1], [0, 0, 1, 1], [], []>} : vector<24x16xbf16>, vector<16x4xbf16>, vector<24x4xf32> -> vector<24x4xf32>
    %7 = arith.addf %0, %6 : vector<24x4xf32>
    %c0_6 = arith.constant 0 : index
    %c1 = arith.constant 1 : index
    %c0_7 = arith.constant 0 : index
    %8 = vector.load %arg1[%c0_6, %c1, %c0_7] : memref<1x38x16xf32, #tpu.memory_space<vmem>>, vector<1x24x16xf32>
    %9 = vector.shape_cast %8 : vector<1x24x16xf32> to vector<24x16xf32>
    %10 = arith.truncf %9 : vector<24x16xf32> to vector<24x16xbf16>
    %c1_8 = arith.constant 1 : index
    %c0_9 = arith.constant 0 : index
    %c0_10 = arith.constant 0 : index
    %11 = vector.load %arg2[%c1_8, %c0_9, %c0_10] : memref<9x16x4xbf16, #tpu.memory_space<vmem>>, vector<1x16x4xbf16>
    %12 = vector.shape_cast %11 : vector<1x16x4xbf16> to vector<16x4xbf16>
    %cst_11 = arith.constant dense<0.000000e+00> : vector<24x4xf32>
    %13 = tpu.matmul %10, %12, %cst_11 {dimension_numbers = #tpu.dot_dimension_numbers<[1], [0], [0], [1], [0, 0, 1, 1], [], []>} : vector<24x16xbf16>, vector<16x4xbf16>, vector<24x4xf32> -> vector<24x4xf32>
    %14 = arith.addf %7, %13 : vector<24x4xf32>
    %c0_12 = arith.constant 0 : index
    %c2 = arith.constant 2 : index
    %c0_13 = arith.constant 0 : index
    %15 = vector.load %arg1[%c0_12, %c2, %c0_13] : memref<1x38x16xf32, #tpu.memory_space<vmem>>, vector<1x24x16xf32>
    %16 = vector.shape_cast %15 : vector<1x24x16xf32> to vector<24x16xf32>
    %17 = arith.truncf %16 : vector<24x16xf32> to vector<24x16xbf16>
    %c2_14 = arith.constant 2 : index
    %c0_15 = arith.constant 0 : index
    %c0_16 = arith.constant 0 : index
    %18 = vector.load %arg2[%c2_14, %c0_15, %c0_16] : memref<9x16x4xbf16, #tpu.memory_space<vmem>>, vector<1x16x4xbf16>
    %19 = vector.shape_cast %18 : vector<1x16x4xbf16> to vector<16x4xbf16>
    %cst_17 = arith.constant dense<0.000000e+00> : vector<24x4xf32>
    %20 = tpu.matmul %17, %19, %cst_17 {dimension_numbers = #tpu.dot_dimension_numbers<[1], [0], [0], [1], [0, 0, 1, 1], [], []>} : vector<24x16xbf16>, vector<16x4xbf16>, vector<24x4xf32> -> vector<24x4xf32>
    %21 = arith.addf %14, %20 : vector<24x4xf32>
    %c0_18 = arith.constant 0 : index
    %c6 = arith.constant 6 : index
    %c0_19 = arith.constant 0 : index
    %22 = vector.load %arg1[%c0_18, %c6, %c0_19] : memref<1x38x16xf32, #tpu.memory_space<vmem>>, vector<1x24x16xf32>
    %23 = vector.shape_cast %22 : vector<1x24x16xf32> to vector<24x16xf32>
    %24 = arith.truncf %23 : vector<24x16xf32> to vector<24x16xbf16>
    %c3 = arith.constant 3 : index
    %c0_20 = arith.constant 0 : index
    %c0_21 = arith.constant 0 : index
    %25 = vector.load %arg2[%c3, %c0_20, %c0_21] : memref<9x16x4xbf16, #tpu.memory_space<vmem>>, vector<1x16x4xbf16>
    %26 = vector.shape_cast %25 : vector<1x16x4xbf16> to vector<16x4xbf16>
    %cst_22 = arith.constant dense<0.000000e+00> : vector<24x4xf32>
    %27 = tpu.matmul %24, %26, %cst_22 {dimension_numbers = #tpu.dot_dimension_numbers<[1], [0], [0], [1], [0, 0, 1, 1], [], []>} : vector<24x16xbf16>, vector<16x4xbf16>, vector<24x4xf32> -> vector<24x4xf32>
    %28 = arith.addf %21, %27 : vector<24x4xf32>
    %c0_23 = arith.constant 0 : index
    %c7 = arith.constant 7 : index
    %c0_24 = arith.constant 0 : index
    %29 = vector.load %arg1[%c0_23, %c7, %c0_24] : memref<1x38x16xf32, #tpu.memory_space<vmem>>, vector<1x24x16xf32>
    %30 = vector.shape_cast %29 : vector<1x24x16xf32> to vector<24x16xf32>
    %31 = arith.truncf %30 : vector<24x16xf32> to vector<24x16xbf16>
    %c4 = arith.constant 4 : index
    %c0_25 = arith.constant 0 : index
    %c0_26 = arith.constant 0 : index
    %32 = vector.load %arg2[%c4, %c0_25, %c0_26] : memref<9x16x4xbf16, #tpu.memory_space<vmem>>, vector<1x16x4xbf16>
    %33 = vector.shape_cast %32 : vector<1x16x4xbf16> to vector<16x4xbf16>
    %cst_27 = arith.constant dense<0.000000e+00> : vector<24x4xf32>
    %34 = tpu.matmul %31, %33, %cst_27 {dimension_numbers = #tpu.dot_dimension_numbers<[1], [0], [0], [1], [0, 0, 1, 1], [], []>} : vector<24x16xbf16>, vector<16x4xbf16>, vector<24x4xf32> -> vector<24x4xf32>
    %35 = arith.addf %28, %34 : vector<24x4xf32>
    %c0_28 = arith.constant 0 : index
    %c8 = arith.constant 8 : index
    %c0_29 = arith.constant 0 : index
    %36 = vector.load %arg1[%c0_28, %c8, %c0_29] : memref<1x38x16xf32, #tpu.memory_space<vmem>>, vector<1x24x16xf32>
    %37 = vector.shape_cast %36 : vector<1x24x16xf32> to vector<24x16xf32>
    %38 = arith.truncf %37 : vector<24x16xf32> to vector<24x16xbf16>
    %c5 = arith.constant 5 : index
    %c0_30 = arith.constant 0 : index
    %c0_31 = arith.constant 0 : index
    %39 = vector.load %arg2[%c5, %c0_30, %c0_31] : memref<9x16x4xbf16, #tpu.memory_space<vmem>>, vector<1x16x4xbf16>
    %40 = vector.shape_cast %39 : vector<1x16x4xbf16> to vector<16x4xbf16>
    %cst_32 = arith.constant dense<0.000000e+00> : vector<24x4xf32>
    %41 = tpu.matmul %38, %40, %cst_32 {dimension_numbers = #tpu.dot_dimension_numbers<[1], [0], [0], [1], [0, 0, 1, 1], [], []>} : vector<24x16xbf16>, vector<16x4xbf16>, vector<24x4xf32> -> vector<24x4xf32>
    %42 = arith.addf %35, %41 : vector<24x4xf32>
    %c0_33 = arith.constant 0 : index
    %c12 = arith.constant 12 : index
    %c0_34 = arith.constant 0 : index
    %43 = vector.load %arg1[%c0_33, %c12, %c0_34] : memref<1x38x16xf32, #tpu.memory_space<vmem>>, vector<1x24x16xf32>
    %44 = vector.shape_cast %43 : vector<1x24x16xf32> to vector<24x16xf32>
    %45 = arith.truncf %44 : vector<24x16xf32> to vector<24x16xbf16>
    %c6_35 = arith.constant 6 : index
    %c0_36 = arith.constant 0 : index
    %c0_37 = arith.constant 0 : index
    %46 = vector.load %arg2[%c6_35, %c0_36, %c0_37] : memref<9x16x4xbf16, #tpu.memory_space<vmem>>, vector<1x16x4xbf16>
    %47 = vector.shape_cast %46 : vector<1x16x4xbf16> to vector<16x4xbf16>
    %cst_38 = arith.constant dense<0.000000e+00> : vector<24x4xf32>
    %48 = tpu.matmul %45, %47, %cst_38 {dimension_numbers = #tpu.dot_dimension_numbers<[1], [0], [0], [1], [0, 0, 1, 1], [], []>} : vector<24x16xbf16>, vector<16x4xbf16>, vector<24x4xf32> -> vector<24x4xf32>
    %49 = arith.addf %42, %48 : vector<24x4xf32>
    %c0_39 = arith.constant 0 : index
    %c13 = arith.constant 13 : index
    %c0_40 = arith.constant 0 : index
    %50 = vector.load %arg1[%c0_39, %c13, %c0_40] : memref<1x38x16xf32, #tpu.memory_space<vmem>>, vector<1x24x16xf32>
    %51 = vector.shape_cast %50 : vector<1x24x16xf32> to vector<24x16xf32>
    %52 = arith.truncf %51 : vector<24x16xf32> to vector<24x16xbf16>
    %c7_41 = arith.constant 7 : index
    %c0_42 = arith.constant 0 : index
    %c0_43 = arith.constant 0 : index
    %53 = vector.load %arg2[%c7_41, %c0_42, %c0_43] : memref<9x16x4xbf16, #tpu.memory_space<vmem>>, vector<1x16x4xbf16>
    %54 = vector.shape_cast %53 : vector<1x16x4xbf16> to vector<16x4xbf16>
    %cst_44 = arith.constant dense<0.000000e+00> : vector<24x4xf32>
    %55 = tpu.matmul %52, %54, %cst_44 {dimension_numbers = #tpu.dot_dimension_numbers<[1], [0], [0], [1], [0, 0, 1, 1], [], []>} : vector<24x16xbf16>, vector<16x4xbf16>, vector<24x4xf32> -> vector<24x4xf32>
    %56 = arith.addf %49, %55 : vector<24x4xf32>
    %c0_45 = arith.constant 0 : index
    %c14 = arith.constant 14 : index
    %c0_46 = arith.constant 0 : index
    %57 = vector.load %arg1[%c0_45, %c14, %c0_46] : memref<1x38x16xf32, #tpu.memory_space<vmem>>, vector<1x24x16xf32>
    %58 = vector.shape_cast %57 : vector<1x24x16xf32> to vector<24x16xf32>
    %59 = arith.truncf %58 : vector<24x16xf32> to vector<24x16xbf16>
    %c8_47 = arith.constant 8 : index
    %c0_48 = arith.constant 0 : index
    %c0_49 = arith.constant 0 : index
    %60 = vector.load %arg2[%c8_47, %c0_48, %c0_49] : memref<9x16x4xbf16, #tpu.memory_space<vmem>>, vector<1x16x4xbf16>
    %61 = vector.shape_cast %60 : vector<1x16x4xbf16> to vector<16x4xbf16>
    %cst_50 = arith.constant dense<0.000000e+00> : vector<24x4xf32>
    %62 = tpu.matmul %59, %61, %cst_50 {dimension_numbers = #tpu.dot_dimension_numbers<[1], [0], [0], [1], [0, 0, 1, 1], [], []>} : vector<24x16xbf16>, vector<16x4xbf16>, vector<24x4xf32> -> vector<24x4xf32>
    %63 = arith.addf %56, %62 : vector<24x4xf32>
    %cst_51 = arith.constant 0.000000e+00 : f32
    %64 = vector.broadcast %cst_51 : f32 to vector<24x4xf32>
    %65 = arith.maximumf %63, %64 : vector<24x4xf32>
    %c0_52 = arith.constant 0 : index
    %c0_53 = arith.constant 0 : index
    %c0_54 = arith.constant 0 : index
    %66 = vector.load %arg3[%c0_52, %c0_53, %c0_54] : memref<1x24x4xf32, #tpu.memory_space<vmem>>, vector<1x24x4xf32>
    %67 = vector.shape_cast %66 : vector<1x24x4xf32> to vector<24x4xf32>
    %68 = vector.shape_cast %65 : vector<24x4xf32> to vector<1x24x4xf32>
    tpu.vector_store %arg3[%c0_52, %c0_53, %c0_54], %68 {strides = array<i32>} : memref<1x24x4xf32, #tpu.memory_space<vmem>>, vector<1x24x4xf32>,
    return
  }
  func.func @transform_0(%arg0: i32) -> (i32, i32, i32) {
    %c0_i32 = arith.constant 0 : i32
    %c0_i32_0 = arith.constant 0 : i32
    %c0_i32_1 = arith.constant 0 : i32
    return %arg0, %c0_i32, %c0_i32_0 : i32, i32, i32
  }
  func.func @transform_1(%arg0: i32) -> (i32, i32, i32) {
    %c0_i32 = arith.constant 0 : i32
    %c0_i32_0 = arith.constant 0 : i32
    %c0_i32_1 = arith.constant 0 : i32
    %c0_i32_2 = arith.constant 0 : i32
    return %c0_i32, %c0_i32_0, %c0_i32_1 : i32, i32, i32
  }
  func.func @transform_2(%arg0: i32) -> (i32, i32, i32) {
    %c0_i32 = arith.constant 0 : i32
    %c0_i32_0 = arith.constant 0 : i32
    %c0_i32_1 = arith.constant 0 : i32
    return %arg0, %c0_i32, %c0_i32_0 : i32, i32, i32
  }
}

module attributes {stable_mosaic.version = 11 : i64} {
  func.func @_linear_kernel(%arg0: i32, %arg1: i32, %arg2: i32, %arg3: memref<32x20xf32, #tpu.memory_space<vmem>>, %arg4: memref<20x128xbf16, #tpu.memory_space<vmem>>, %arg5: memref<1x128xf32, #tpu.memory_space<vmem>>, %arg6: memref<32x128xf32, #tpu.memory_space<vmem>>, %arg7: memref<32x128xf32, #tpu.memory_space<vmem>>) attributes {dimension_semantics = [#tpu.dimension_semantics<parallel>, #tpu.dimension_semantics<parallel>, #tpu.dimension_semantics<arbitrary>], iteration_bounds = array<i64: 1, 1, 1>, scalar_prefetch = 0 : i64, scratch_operands = 1 : i64, tpu.core_type = #tpu.core_type<tc>, window_params = [{transform_indices = @transform_0, window_bounds = array<i64: 32, 20>}, {transform_indices = @transform_1, window_bounds = array<i64: 20, 128>}, {transform_indices = @transform_2, window_bounds = array<i64: 1, 128>}, {transform_indices = @transform_3, window_bounds = array<i64: 32, 128>}]} {
    %c0_i32 = arith.constant 0 : i32
    %0 = arith.cmpi eq, %arg2, %c0_i32 : i32
    %1 = arith.extui %0 : i1 to i32
    %c0_i32_0 = arith.constant 0 : i32
    %2 = arith.cmpi ne, %1, %c0_i32_0 : i32
    scf.if %2 {
      %cst_10 = arith.constant 0.000000e+00 : f32
      %13 = vector.broadcast %cst_10 : f32 to vector<32x128xf32>
      %c0_11 = arith.constant 0 : index
      %c0_12 = arith.constant 0 : index
      %14 = vector.load %arg7[%c0_11, %c0_12] : memref<32x128xf32, #tpu.memory_space<vmem>>, vector<32x128xf32>
      tpu.vector_store %arg7[%c0_11, %c0_12], %13 {strides = array<i32>} : memref<32x128xf32, #tpu.memory_space<vmem>>, vector<32x128xf32>,
    } else {
    }
    %c0 = arith.constant 0 : index
    %c0_1 = arith.constant 0 : index
    %3 = vector.load %arg7[%c0, %c0_1] : memref<32x128xf32, #tpu.memory_space<vmem>>, vector<32x128xf32>
    %c0_2 = arith.constant 0 : index
    %c0_3 = arith.constant 0 : index
    %4 = vector.load %arg3[%c0_2, %c0_3] : memref<32x20xf32, #tpu.memory_space<vmem>>, vector<32x20xf32>
    %5 = arith.truncf %4 : vector<32x20xf32> to vector<32x20xbf16>
    %c0_4 = arith.constant 0 : index
    %c0_5 = arith.constant 0 : index
    %6 = vector.load %arg4[%c0_4, %c0_5] : memref<20x128xbf16, #tpu.memory_space<vmem>>, vector<20x128xbf16>
    %cst = arith.constant dense<0.000000e+00> : vector<32x128xf32>
    %7 = tpu.matmul %5, %6, %cst {dimension_numbers = #tpu.dot_dimension_numbers<[1], [0], [0], [1], [0, 0, 1, 1], [], []>} : vector<32x20xbf16>, vector<20x128xbf16>, vector<32x128xf32> -> vector<32x128xf32>
    %8 = arith.addf %3, %7 : vector<32x128xf32>
    %c0_6 = arith.constant 0 : index
    %c0_7 = arith.constant 0 : index
    %9 = vector.load %arg7[%c0_6, %c0_7] : memref<32x128xf32, #tpu.memory_space<vmem>>, vector<32x128xf32>
    tpu.vector_store %arg7[%c0_6, %c0_7], %8 {strides = array<i32>} : memref<32x128xf32, #tpu.memory_space<vmem>>, vector<32x128xf32>,
    %c0_i32_8 = arith.constant 0 : i32
    %10 = arith.cmpi eq, %arg2, %c0_i32_8 : i32
    %11 = arith.extui %10 : i1 to i32
    %c0_i32_9 = arith.constant 0 : i32
    %12 = arith.cmpi ne, %11, %c0_i32_9 : i32
    scf.if %12 {
      %c0_10 = arith.constant 0 : index
      %c0_11 = arith.constant 0 : index
      %13 = vector.load %arg7[%c0_10, %c0_11] : memref<32x128xf32, #tpu.memory_space<vmem>>, vector<32x128xf32>
      %c0_12 = arith.constant 0 : index
      %c0_13 = arith.constant 0 : index
      %14 = vector.load %arg5[%c0_12, %c0_13] : memref<1x128xf32, #tpu.memory_space<vmem>>, vector<1x128xf32>
      %15 = vector.broadcast %14 : vector<1x128xf32> to vector<32x128xf32>
      %16 = arith.addf %13, %15 : vector<32x128xf32>
      %c0_14 = arith.constant 0 : index
      %c0_15 = arith.constant 0 : index
      %17 = vector.load %arg6[%c0_14, %c0_15] : memref<32x128xf32, #tpu.memory_space<vmem>>, vector<32x128xf32>
      tpu.vector_store %arg6[%c0_14, %c0_15], %16 {strides = array<i32>} : memref<32x128xf32, #tpu.memory_space<vmem>>, vector<32x128xf32>,
    } else {
    }
    return
  }
  func.func @transform_0(%arg0: i32, %arg1: i32, %arg2: i32) -> (i32, i32) {
    %c0_i32 = arith.constant 0 : i32
    return %arg0, %arg2 : i32, i32
  }
  func.func @transform_1(%arg0: i32, %arg1: i32, %arg2: i32) -> (i32, i32) {
    %c0_i32 = arith.constant 0 : i32
    return %arg2, %arg1 : i32, i32
  }
  func.func @transform_2(%arg0: i32, %arg1: i32, %arg2: i32) -> (i32, i32) {
    %c0_i32 = arith.constant 0 : i32
    %c0_i32_0 = arith.constant 0 : i32
    return %c0_i32, %arg1 : i32, i32
  }
  func.func @transform_3(%arg0: i32, %arg1: i32, %arg2: i32) -> (i32, i32) {
    %c0_i32 = arith.constant 0 : i32
    return %arg0, %arg1 : i32, i32
  }
}

module attributes {stable_mosaic.version = 11 : i64} {
  func.func @_conv3x3_relu_kernel(%arg0: i32, %arg1: memref<1x18x10xf32, #tpu.memory_space<vmem>>, %arg2: memref<9x10x4xbf16, #tpu.memory_space<vmem>>, %arg3: memref<1x8x4xf32, #tpu.memory_space<vmem>>) attributes {dimension_semantics = [#tpu.dimension_semantics<parallel>], iteration_bounds = array<i64: 2>, scalar_prefetch = 0 : i64, scratch_operands = 0 : i64, tpu.core_type = #tpu.core_type<tc>, window_params = [{transform_indices = @transform_0, window_bounds = array<i64: 1, 18, 10>}, {pipeline_mode = #tpu.pipeline_mode<synchronous>, transform_indices = @transform_1, window_bounds = array<i64: 9, 10, 4>}, {transform_indices = @transform_2, window_bounds = array<i64: 1, 8, 4>}]} {
    %cst = arith.constant 0.000000e+00 : f32
    %0 = vector.broadcast %cst : f32 to vector<8x4xf32>
    %c0 = arith.constant 0 : index
    %c0_0 = arith.constant 0 : index
    %c0_1 = arith.constant 0 : index
    %1 = vector.load %arg1[%c0, %c0_0, %c0_1] : memref<1x18x10xf32, #tpu.memory_space<vmem>>, vector<1x8x10xf32>
    %2 = vector.shape_cast %1 : vector<1x8x10xf32> to vector<8x10xf32>
    %3 = arith.truncf %2 : vector<8x10xf32> to vector<8x10xbf16>
    %c0_2 = arith.constant 0 : index
    %c0_3 = arith.constant 0 : index
    %c0_4 = arith.constant 0 : index
    %4 = vector.load %arg2[%c0_2, %c0_3, %c0_4] : memref<9x10x4xbf16, #tpu.memory_space<vmem>>, vector<1x10x4xbf16>
    %5 = vector.shape_cast %4 : vector<1x10x4xbf16> to vector<10x4xbf16>
    %cst_5 = arith.constant dense<0.000000e+00> : vector<8x4xf32>
    %6 = tpu.matmul %3, %5, %cst_5 {dimension_numbers = #tpu.dot_dimension_numbers<[1], [0], [0], [1], [0, 0, 1, 1], [], []>} : vector<8x10xbf16>, vector<10x4xbf16>, vector<8x4xf32> -> vector<8x4xf32>
    %7 = arith.addf %0, %6 : vector<8x4xf32>
    %c0_6 = arith.constant 0 : index
    %c1 = arith.constant 1 : index
    %c0_7 = arith.constant 0 : index
    %8 = vector.load %arg1[%c0_6, %c1, %c0_7] : memref<1x18x10xf32, #tpu.memory_space<vmem>>, vector<1x8x10xf32>
    %9 = vector.shape_cast %8 : vector<1x8x10xf32> to vector<8x10xf32>
    %10 = arith.truncf %9 : vector<8x10xf32> to vector<8x10xbf16>
    %c1_8 = arith.constant 1 : index
    %c0_9 = arith.constant 0 : index
    %c0_10 = arith.constant 0 : index
    %11 = vector.load %arg2[%c1_8, %c0_9, %c0_10] : memref<9x10x4xbf16, #tpu.memory_space<vmem>>, vector<1x10x4xbf16>
    %12 = vector.shape_cast %11 : vector<1x10x4xbf16> to vector<10x4xbf16>
    %cst_11 = arith.constant dense<0.000000e+00> : vector<8x4xf32>
    %13 = tpu.matmul %10, %12, %cst_11 {dimension_numbers = #tpu.dot_dimension_numbers<[1], [0], [0], [1], [0, 0, 1, 1], [], []>} : vector<8x10xbf16>, vector<10x4xbf16>, vector<8x4xf32> -> vector<8x4xf32>
    %14 = arith.addf %7, %13 : vector<8x4xf32>
    %c0_12 = arith.constant 0 : index
    %c2 = arith.constant 2 : index
    %c0_13 = arith.constant 0 : index
    %15 = vector.load %arg1[%c0_12, %c2, %c0_13] : memref<1x18x10xf32, #tpu.memory_space<vmem>>, vector<1x8x10xf32>
    %16 = vector.shape_cast %15 : vector<1x8x10xf32> to vector<8x10xf32>
    %17 = arith.truncf %16 : vector<8x10xf32> to vector<8x10xbf16>
    %c2_14 = arith.constant 2 : index
    %c0_15 = arith.constant 0 : index
    %c0_16 = arith.constant 0 : index
    %18 = vector.load %arg2[%c2_14, %c0_15, %c0_16] : memref<9x10x4xbf16, #tpu.memory_space<vmem>>, vector<1x10x4xbf16>
    %19 = vector.shape_cast %18 : vector<1x10x4xbf16> to vector<10x4xbf16>
    %cst_17 = arith.constant dense<0.000000e+00> : vector<8x4xf32>
    %20 = tpu.matmul %17, %19, %cst_17 {dimension_numbers = #tpu.dot_dimension_numbers<[1], [0], [0], [1], [0, 0, 1, 1], [], []>} : vector<8x10xbf16>, vector<10x4xbf16>, vector<8x4xf32> -> vector<8x4xf32>
    %21 = arith.addf %14, %20 : vector<8x4xf32>
    %c0_18 = arith.constant 0 : index
    %c4 = arith.constant 4 : index
    %c0_19 = arith.constant 0 : index
    %22 = vector.load %arg1[%c0_18, %c4, %c0_19] : memref<1x18x10xf32, #tpu.memory_space<vmem>>, vector<1x8x10xf32>
    %23 = vector.shape_cast %22 : vector<1x8x10xf32> to vector<8x10xf32>
    %24 = arith.truncf %23 : vector<8x10xf32> to vector<8x10xbf16>
    %c3 = arith.constant 3 : index
    %c0_20 = arith.constant 0 : index
    %c0_21 = arith.constant 0 : index
    %25 = vector.load %arg2[%c3, %c0_20, %c0_21] : memref<9x10x4xbf16, #tpu.memory_space<vmem>>, vector<1x10x4xbf16>
    %26 = vector.shape_cast %25 : vector<1x10x4xbf16> to vector<10x4xbf16>
    %cst_22 = arith.constant dense<0.000000e+00> : vector<8x4xf32>
    %27 = tpu.matmul %24, %26, %cst_22 {dimension_numbers = #tpu.dot_dimension_numbers<[1], [0], [0], [1], [0, 0, 1, 1], [], []>} : vector<8x10xbf16>, vector<10x4xbf16>, vector<8x4xf32> -> vector<8x4xf32>
    %28 = arith.addf %21, %27 : vector<8x4xf32>
    %c0_23 = arith.constant 0 : index
    %c5 = arith.constant 5 : index
    %c0_24 = arith.constant 0 : index
    %29 = vector.load %arg1[%c0_23, %c5, %c0_24] : memref<1x18x10xf32, #tpu.memory_space<vmem>>, vector<1x8x10xf32>
    %30 = vector.shape_cast %29 : vector<1x8x10xf32> to vector<8x10xf32>
    %31 = arith.truncf %30 : vector<8x10xf32> to vector<8x10xbf16>
    %c4_25 = arith.constant 4 : index
    %c0_26 = arith.constant 0 : index
    %c0_27 = arith.constant 0 : index
    %32 = vector.load %arg2[%c4_25, %c0_26, %c0_27] : memref<9x10x4xbf16, #tpu.memory_space<vmem>>, vector<1x10x4xbf16>
    %33 = vector.shape_cast %32 : vector<1x10x4xbf16> to vector<10x4xbf16>
    %cst_28 = arith.constant dense<0.000000e+00> : vector<8x4xf32>
    %34 = tpu.matmul %31, %33, %cst_28 {dimension_numbers = #tpu.dot_dimension_numbers<[1], [0], [0], [1], [0, 0, 1, 1], [], []>} : vector<8x10xbf16>, vector<10x4xbf16>, vector<8x4xf32> -> vector<8x4xf32>
    %35 = arith.addf %28, %34 : vector<8x4xf32>
    %c0_29 = arith.constant 0 : index
    %c6 = arith.constant 6 : index
    %c0_30 = arith.constant 0 : index
    %36 = vector.load %arg1[%c0_29, %c6, %c0_30] : memref<1x18x10xf32, #tpu.memory_space<vmem>>, vector<1x8x10xf32>
    %37 = vector.shape_cast %36 : vector<1x8x10xf32> to vector<8x10xf32>
    %38 = arith.truncf %37 : vector<8x10xf32> to vector<8x10xbf16>
    %c5_31 = arith.constant 5 : index
    %c0_32 = arith.constant 0 : index
    %c0_33 = arith.constant 0 : index
    %39 = vector.load %arg2[%c5_31, %c0_32, %c0_33] : memref<9x10x4xbf16, #tpu.memory_space<vmem>>, vector<1x10x4xbf16>
    %40 = vector.shape_cast %39 : vector<1x10x4xbf16> to vector<10x4xbf16>
    %cst_34 = arith.constant dense<0.000000e+00> : vector<8x4xf32>
    %41 = tpu.matmul %38, %40, %cst_34 {dimension_numbers = #tpu.dot_dimension_numbers<[1], [0], [0], [1], [0, 0, 1, 1], [], []>} : vector<8x10xbf16>, vector<10x4xbf16>, vector<8x4xf32> -> vector<8x4xf32>
    %42 = arith.addf %35, %41 : vector<8x4xf32>
    %c0_35 = arith.constant 0 : index
    %c8 = arith.constant 8 : index
    %c0_36 = arith.constant 0 : index
    %43 = vector.load %arg1[%c0_35, %c8, %c0_36] : memref<1x18x10xf32, #tpu.memory_space<vmem>>, vector<1x8x10xf32>
    %44 = vector.shape_cast %43 : vector<1x8x10xf32> to vector<8x10xf32>
    %45 = arith.truncf %44 : vector<8x10xf32> to vector<8x10xbf16>
    %c6_37 = arith.constant 6 : index
    %c0_38 = arith.constant 0 : index
    %c0_39 = arith.constant 0 : index
    %46 = vector.load %arg2[%c6_37, %c0_38, %c0_39] : memref<9x10x4xbf16, #tpu.memory_space<vmem>>, vector<1x10x4xbf16>
    %47 = vector.shape_cast %46 : vector<1x10x4xbf16> to vector<10x4xbf16>
    %cst_40 = arith.constant dense<0.000000e+00> : vector<8x4xf32>
    %48 = tpu.matmul %45, %47, %cst_40 {dimension_numbers = #tpu.dot_dimension_numbers<[1], [0], [0], [1], [0, 0, 1, 1], [], []>} : vector<8x10xbf16>, vector<10x4xbf16>, vector<8x4xf32> -> vector<8x4xf32>
    %49 = arith.addf %42, %48 : vector<8x4xf32>
    %c0_41 = arith.constant 0 : index
    %c9 = arith.constant 9 : index
    %c0_42 = arith.constant 0 : index
    %50 = vector.load %arg1[%c0_41, %c9, %c0_42] : memref<1x18x10xf32, #tpu.memory_space<vmem>>, vector<1x8x10xf32>
    %51 = vector.shape_cast %50 : vector<1x8x10xf32> to vector<8x10xf32>
    %52 = arith.truncf %51 : vector<8x10xf32> to vector<8x10xbf16>
    %c7 = arith.constant 7 : index
    %c0_43 = arith.constant 0 : index
    %c0_44 = arith.constant 0 : index
    %53 = vector.load %arg2[%c7, %c0_43, %c0_44] : memref<9x10x4xbf16, #tpu.memory_space<vmem>>, vector<1x10x4xbf16>
    %54 = vector.shape_cast %53 : vector<1x10x4xbf16> to vector<10x4xbf16>
    %cst_45 = arith.constant dense<0.000000e+00> : vector<8x4xf32>
    %55 = tpu.matmul %52, %54, %cst_45 {dimension_numbers = #tpu.dot_dimension_numbers<[1], [0], [0], [1], [0, 0, 1, 1], [], []>} : vector<8x10xbf16>, vector<10x4xbf16>, vector<8x4xf32> -> vector<8x4xf32>
    %56 = arith.addf %49, %55 : vector<8x4xf32>
    %c0_46 = arith.constant 0 : index
    %c10 = arith.constant 10 : index
    %c0_47 = arith.constant 0 : index
    %57 = vector.load %arg1[%c0_46, %c10, %c0_47] : memref<1x18x10xf32, #tpu.memory_space<vmem>>, vector<1x8x10xf32>
    %58 = vector.shape_cast %57 : vector<1x8x10xf32> to vector<8x10xf32>
    %59 = arith.truncf %58 : vector<8x10xf32> to vector<8x10xbf16>
    %c8_48 = arith.constant 8 : index
    %c0_49 = arith.constant 0 : index
    %c0_50 = arith.constant 0 : index
    %60 = vector.load %arg2[%c8_48, %c0_49, %c0_50] : memref<9x10x4xbf16, #tpu.memory_space<vmem>>, vector<1x10x4xbf16>
    %61 = vector.shape_cast %60 : vector<1x10x4xbf16> to vector<10x4xbf16>
    %cst_51 = arith.constant dense<0.000000e+00> : vector<8x4xf32>
    %62 = tpu.matmul %59, %61, %cst_51 {dimension_numbers = #tpu.dot_dimension_numbers<[1], [0], [0], [1], [0, 0, 1, 1], [], []>} : vector<8x10xbf16>, vector<10x4xbf16>, vector<8x4xf32> -> vector<8x4xf32>
    %63 = arith.addf %56, %62 : vector<8x4xf32>
    %cst_52 = arith.constant 0.000000e+00 : f32
    %64 = vector.broadcast %cst_52 : f32 to vector<8x4xf32>
    %65 = arith.maximumf %63, %64 : vector<8x4xf32>
    %c0_53 = arith.constant 0 : index
    %c0_54 = arith.constant 0 : index
    %c0_55 = arith.constant 0 : index
    %66 = vector.load %arg3[%c0_53, %c0_54, %c0_55] : memref<1x8x4xf32, #tpu.memory_space<vmem>>, vector<1x8x4xf32>
    %67 = vector.shape_cast %66 : vector<1x8x4xf32> to vector<8x4xf32>
    %68 = vector.shape_cast %65 : vector<8x4xf32> to vector<1x8x4xf32>
    tpu.vector_store %arg3[%c0_53, %c0_54, %c0_55], %68 {strides = array<i32>} : memref<1x8x4xf32, #tpu.memory_space<vmem>>, vector<1x8x4xf32>,
    return
  }
  func.func @transform_0(%arg0: i32) -> (i32, i32, i32) {
    %c0_i32 = arith.constant 0 : i32
    %c0_i32_0 = arith.constant 0 : i32
    %c0_i32_1 = arith.constant 0 : i32
    return %arg0, %c0_i32, %c0_i32_0 : i32, i32, i32
  }
  func.func @transform_1(%arg0: i32) -> (i32, i32, i32) {
    %c0_i32 = arith.constant 0 : i32
    %c0_i32_0 = arith.constant 0 : i32
    %c0_i32_1 = arith.constant 0 : i32
    %c0_i32_2 = arith.constant 0 : i32
    return %c0_i32, %c0_i32_0, %c0_i32_1 : i32, i32, i32
  }
  func.func @transform_2(%arg0: i32) -> (i32, i32, i32) {
    %c0_i32 = arith.constant 0 : i32
    %c0_i32_0 = arith.constant 0 : i32
    %c0_i32_1 = arith.constant 0 : i32
    return %arg0, %c0_i32, %c0_i32_0 : i32, i32, i32
  }
}

module attributes {stable_mosaic.version = 11 : i64} {
  func.func @_linear_kernel(%arg0: i32, %arg1: i32, %arg2: i32, %arg3: memref<8x18xf32, #tpu.memory_space<vmem>>, %arg4: memref<18x128xbf16, #tpu.memory_space<vmem>>, %arg5: memref<1x128xf32, #tpu.memory_space<vmem>>, %arg6: memref<8x128xf32, #tpu.memory_space<vmem>>, %arg7: memref<8x128xf32, #tpu.memory_space<vmem>>) attributes {dimension_semantics = [#tpu.dimension_semantics<parallel>, #tpu.dimension_semantics<parallel>, #tpu.dimension_semantics<arbitrary>], iteration_bounds = array<i64: 1, 1, 1>, scalar_prefetch = 0 : i64, scratch_operands = 1 : i64, tpu.core_type = #tpu.core_type<tc>, window_params = [{transform_indices = @transform_0, window_bounds = array<i64: 8, 18>}, {transform_indices = @transform_1, window_bounds = array<i64: 18, 128>}, {transform_indices = @transform_2, window_bounds = array<i64: 1, 128>}, {transform_indices = @transform_3, window_bounds = array<i64: 8, 128>}]} {
    %c0_i32 = arith.constant 0 : i32
    %0 = arith.cmpi eq, %arg2, %c0_i32 : i32
    %1 = arith.extui %0 : i1 to i32
    %c0_i32_0 = arith.constant 0 : i32
    %2 = arith.cmpi ne, %1, %c0_i32_0 : i32
    scf.if %2 {
      %cst_10 = arith.constant 0.000000e+00 : f32
      %13 = vector.broadcast %cst_10 : f32 to vector<8x128xf32>
      %c0_11 = arith.constant 0 : index
      %c0_12 = arith.constant 0 : index
      %14 = vector.load %arg7[%c0_11, %c0_12] : memref<8x128xf32, #tpu.memory_space<vmem>>, vector<8x128xf32>
      tpu.vector_store %arg7[%c0_11, %c0_12], %13 {strides = array<i32>} : memref<8x128xf32, #tpu.memory_space<vmem>>, vector<8x128xf32>,
    } else {
    }
    %c0 = arith.constant 0 : index
    %c0_1 = arith.constant 0 : index
    %3 = vector.load %arg7[%c0, %c0_1] : memref<8x128xf32, #tpu.memory_space<vmem>>, vector<8x128xf32>
    %c0_2 = arith.constant 0 : index
    %c0_3 = arith.constant 0 : index
    %4 = vector.load %arg3[%c0_2, %c0_3] : memref<8x18xf32, #tpu.memory_space<vmem>>, vector<8x18xf32>
    %5 = arith.truncf %4 : vector<8x18xf32> to vector<8x18xbf16>
    %c0_4 = arith.constant 0 : index
    %c0_5 = arith.constant 0 : index
    %6 = vector.load %arg4[%c0_4, %c0_5] : memref<18x128xbf16, #tpu.memory_space<vmem>>, vector<18x128xbf16>
    %cst = arith.constant dense<0.000000e+00> : vector<8x128xf32>
    %7 = tpu.matmul %5, %6, %cst {dimension_numbers = #tpu.dot_dimension_numbers<[1], [0], [0], [1], [0, 0, 1, 1], [], []>} : vector<8x18xbf16>, vector<18x128xbf16>, vector<8x128xf32> -> vector<8x128xf32>
    %8 = arith.addf %3, %7 : vector<8x128xf32>
    %c0_6 = arith.constant 0 : index
    %c0_7 = arith.constant 0 : index
    %9 = vector.load %arg7[%c0_6, %c0_7] : memref<8x128xf32, #tpu.memory_space<vmem>>, vector<8x128xf32>
    tpu.vector_store %arg7[%c0_6, %c0_7], %8 {strides = array<i32>} : memref<8x128xf32, #tpu.memory_space<vmem>>, vector<8x128xf32>,
    %c0_i32_8 = arith.constant 0 : i32
    %10 = arith.cmpi eq, %arg2, %c0_i32_8 : i32
    %11 = arith.extui %10 : i1 to i32
    %c0_i32_9 = arith.constant 0 : i32
    %12 = arith.cmpi ne, %11, %c0_i32_9 : i32
    scf.if %12 {
      %c0_10 = arith.constant 0 : index
      %c0_11 = arith.constant 0 : index
      %13 = vector.load %arg7[%c0_10, %c0_11] : memref<8x128xf32, #tpu.memory_space<vmem>>, vector<8x128xf32>
      %c0_12 = arith.constant 0 : index
      %c0_13 = arith.constant 0 : index
      %14 = vector.load %arg5[%c0_12, %c0_13] : memref<1x128xf32, #tpu.memory_space<vmem>>, vector<1x128xf32>
      %15 = vector.broadcast %14 : vector<1x128xf32> to vector<8x128xf32>
      %16 = arith.addf %13, %15 : vector<8x128xf32>
      %c0_14 = arith.constant 0 : index
      %c0_15 = arith.constant 0 : index
      %17 = vector.load %arg6[%c0_14, %c0_15] : memref<8x128xf32, #tpu.memory_space<vmem>>, vector<8x128xf32>
      tpu.vector_store %arg6[%c0_14, %c0_15], %16 {strides = array<i32>} : memref<8x128xf32, #tpu.memory_space<vmem>>, vector<8x128xf32>,
    } else {
    }
    return
  }
  func.func @transform_0(%arg0: i32, %arg1: i32, %arg2: i32) -> (i32, i32) {
    %c0_i32 = arith.constant 0 : i32
    return %arg0, %arg2 : i32, i32
  }
  func.func @transform_1(%arg0: i32, %arg1: i32, %arg2: i32) -> (i32, i32) {
    %c0_i32 = arith.constant 0 : i32
    return %arg2, %arg1 : i32, i32
  }
  func.func @transform_2(%arg0: i32, %arg1: i32, %arg2: i32) -> (i32, i32) {
    %c0_i32 = arith.constant 0 : i32
    %c0_i32_0 = arith.constant 0 : i32
    return %c0_i32, %arg1 : i32, i32
  }
  func.func @transform_3(%arg0: i32, %arg1: i32, %arg2: i32) -> (i32, i32) {
    %c0_i32 = arith.constant 0 : i32
    return %arg0, %arg1 : i32, i32
  }
}

module attributes {stable_mosaic.version = 11 : i64} {
  func.func @_conv3x3_relu_kernel(%arg0: i32, %arg1: memref<1x18x14xf32, #tpu.memory_space<vmem>>, %arg2: memref<9x14x4xbf16, #tpu.memory_space<vmem>>, %arg3: memref<1x8x4xf32, #tpu.memory_space<vmem>>) attributes {dimension_semantics = [#tpu.dimension_semantics<parallel>], iteration_bounds = array<i64: 2>, scalar_prefetch = 0 : i64, scratch_operands = 0 : i64, tpu.core_type = #tpu.core_type<tc>, window_params = [{transform_indices = @transform_0, window_bounds = array<i64: 1, 18, 14>}, {pipeline_mode = #tpu.pipeline_mode<synchronous>, transform_indices = @transform_1, window_bounds = array<i64: 9, 14, 4>}, {transform_indices = @transform_2, window_bounds = array<i64: 1, 8, 4>}]} {
    %cst = arith.constant 0.000000e+00 : f32
    %0 = vector.broadcast %cst : f32 to vector<8x4xf32>
    %c0 = arith.constant 0 : index
    %c0_0 = arith.constant 0 : index
    %c0_1 = arith.constant 0 : index
    %1 = vector.load %arg1[%c0, %c0_0, %c0_1] : memref<1x18x14xf32, #tpu.memory_space<vmem>>, vector<1x8x14xf32>
    %2 = vector.shape_cast %1 : vector<1x8x14xf32> to vector<8x14xf32>
    %3 = arith.truncf %2 : vector<8x14xf32> to vector<8x14xbf16>
    %c0_2 = arith.constant 0 : index
    %c0_3 = arith.constant 0 : index
    %c0_4 = arith.constant 0 : index
    %4 = vector.load %arg2[%c0_2, %c0_3, %c0_4] : memref<9x14x4xbf16, #tpu.memory_space<vmem>>, vector<1x14x4xbf16>
    %5 = vector.shape_cast %4 : vector<1x14x4xbf16> to vector<14x4xbf16>
    %cst_5 = arith.constant dense<0.000000e+00> : vector<8x4xf32>
    %6 = tpu.matmul %3, %5, %cst_5 {dimension_numbers = #tpu.dot_dimension_numbers<[1], [0], [0], [1], [0, 0, 1, 1], [], []>} : vector<8x14xbf16>, vector<14x4xbf16>, vector<8x4xf32> -> vector<8x4xf32>
    %7 = arith.addf %0, %6 : vector<8x4xf32>
    %c0_6 = arith.constant 0 : index
    %c1 = arith.constant 1 : index
    %c0_7 = arith.constant 0 : index
    %8 = vector.load %arg1[%c0_6, %c1, %c0_7] : memref<1x18x14xf32, #tpu.memory_space<vmem>>, vector<1x8x14xf32>
    %9 = vector.shape_cast %8 : vector<1x8x14xf32> to vector<8x14xf32>
    %10 = arith.truncf %9 : vector<8x14xf32> to vector<8x14xbf16>
    %c1_8 = arith.constant 1 : index
    %c0_9 = arith.constant 0 : index
    %c0_10 = arith.constant 0 : index
    %11 = vector.load %arg2[%c1_8, %c0_9, %c0_10] : memref<9x14x4xbf16, #tpu.memory_space<vmem>>, vector<1x14x4xbf16>
    %12 = vector.shape_cast %11 : vector<1x14x4xbf16> to vector<14x4xbf16>
    %cst_11 = arith.constant dense<0.000000e+00> : vector<8x4xf32>
    %13 = tpu.matmul %10, %12, %cst_11 {dimension_numbers = #tpu.dot_dimension_numbers<[1], [0], [0], [1], [0, 0, 1, 1], [], []>} : vector<8x14xbf16>, vector<14x4xbf16>, vector<8x4xf32> -> vector<8x4xf32>
    %14 = arith.addf %7, %13 : vector<8x4xf32>
    %c0_12 = arith.constant 0 : index
    %c2 = arith.constant 2 : index
    %c0_13 = arith.constant 0 : index
    %15 = vector.load %arg1[%c0_12, %c2, %c0_13] : memref<1x18x14xf32, #tpu.memory_space<vmem>>, vector<1x8x14xf32>
    %16 = vector.shape_cast %15 : vector<1x8x14xf32> to vector<8x14xf32>
    %17 = arith.truncf %16 : vector<8x14xf32> to vector<8x14xbf16>
    %c2_14 = arith.constant 2 : index
    %c0_15 = arith.constant 0 : index
    %c0_16 = arith.constant 0 : index
    %18 = vector.load %arg2[%c2_14, %c0_15, %c0_16] : memref<9x14x4xbf16, #tpu.memory_space<vmem>>, vector<1x14x4xbf16>
    %19 = vector.shape_cast %18 : vector<1x14x4xbf16> to vector<14x4xbf16>
    %cst_17 = arith.constant dense<0.000000e+00> : vector<8x4xf32>
    %20 = tpu.matmul %17, %19, %cst_17 {dimension_numbers = #tpu.dot_dimension_numbers<[1], [0], [0], [1], [0, 0, 1, 1], [], []>} : vector<8x14xbf16>, vector<14x4xbf16>, vector<8x4xf32> -> vector<8x4xf32>
    %21 = arith.addf %14, %20 : vector<8x4xf32>
    %c0_18 = arith.constant 0 : index
    %c4 = arith.constant 4 : index
    %c0_19 = arith.constant 0 : index
    %22 = vector.load %arg1[%c0_18, %c4, %c0_19] : memref<1x18x14xf32, #tpu.memory_space<vmem>>, vector<1x8x14xf32>
    %23 = vector.shape_cast %22 : vector<1x8x14xf32> to vector<8x14xf32>
    %24 = arith.truncf %23 : vector<8x14xf32> to vector<8x14xbf16>
    %c3 = arith.constant 3 : index
    %c0_20 = arith.constant 0 : index
    %c0_21 = arith.constant 0 : index
    %25 = vector.load %arg2[%c3, %c0_20, %c0_21] : memref<9x14x4xbf16, #tpu.memory_space<vmem>>, vector<1x14x4xbf16>
    %26 = vector.shape_cast %25 : vector<1x14x4xbf16> to vector<14x4xbf16>
    %cst_22 = arith.constant dense<0.000000e+00> : vector<8x4xf32>
    %27 = tpu.matmul %24, %26, %cst_22 {dimension_numbers = #tpu.dot_dimension_numbers<[1], [0], [0], [1], [0, 0, 1, 1], [], []>} : vector<8x14xbf16>, vector<14x4xbf16>, vector<8x4xf32> -> vector<8x4xf32>
    %28 = arith.addf %21, %27 : vector<8x4xf32>
    %c0_23 = arith.constant 0 : index
    %c5 = arith.constant 5 : index
    %c0_24 = arith.constant 0 : index
    %29 = vector.load %arg1[%c0_23, %c5, %c0_24] : memref<1x18x14xf32, #tpu.memory_space<vmem>>, vector<1x8x14xf32>
    %30 = vector.shape_cast %29 : vector<1x8x14xf32> to vector<8x14xf32>
    %31 = arith.truncf %30 : vector<8x14xf32> to vector<8x14xbf16>
    %c4_25 = arith.constant 4 : index
    %c0_26 = arith.constant 0 : index
    %c0_27 = arith.constant 0 : index
    %32 = vector.load %arg2[%c4_25, %c0_26, %c0_27] : memref<9x14x4xbf16, #tpu.memory_space<vmem>>, vector<1x14x4xbf16>
    %33 = vector.shape_cast %32 : vector<1x14x4xbf16> to vector<14x4xbf16>
    %cst_28 = arith.constant dense<0.000000e+00> : vector<8x4xf32>
    %34 = tpu.matmul %31, %33, %cst_28 {dimension_numbers = #tpu.dot_dimension_numbers<[1], [0], [0], [1], [0, 0, 1, 1], [], []>} : vector<8x14xbf16>, vector<14x4xbf16>, vector<8x4xf32> -> vector<8x4xf32>
    %35 = arith.addf %28, %34 : vector<8x4xf32>
    %c0_29 = arith.constant 0 : index
    %c6 = arith.constant 6 : index
    %c0_30 = arith.constant 0 : index
    %36 = vector.load %arg1[%c0_29, %c6, %c0_30] : memref<1x18x14xf32, #tpu.memory_space<vmem>>, vector<1x8x14xf32>
    %37 = vector.shape_cast %36 : vector<1x8x14xf32> to vector<8x14xf32>
    %38 = arith.truncf %37 : vector<8x14xf32> to vector<8x14xbf16>
    %c5_31 = arith.constant 5 : index
    %c0_32 = arith.constant 0 : index
    %c0_33 = arith.constant 0 : index
    %39 = vector.load %arg2[%c5_31, %c0_32, %c0_33] : memref<9x14x4xbf16, #tpu.memory_space<vmem>>, vector<1x14x4xbf16>
    %40 = vector.shape_cast %39 : vector<1x14x4xbf16> to vector<14x4xbf16>
    %cst_34 = arith.constant dense<0.000000e+00> : vector<8x4xf32>
    %41 = tpu.matmul %38, %40, %cst_34 {dimension_numbers = #tpu.dot_dimension_numbers<[1], [0], [0], [1], [0, 0, 1, 1], [], []>} : vector<8x14xbf16>, vector<14x4xbf16>, vector<8x4xf32> -> vector<8x4xf32>
    %42 = arith.addf %35, %41 : vector<8x4xf32>
    %c0_35 = arith.constant 0 : index
    %c8 = arith.constant 8 : index
    %c0_36 = arith.constant 0 : index
    %43 = vector.load %arg1[%c0_35, %c8, %c0_36] : memref<1x18x14xf32, #tpu.memory_space<vmem>>, vector<1x8x14xf32>
    %44 = vector.shape_cast %43 : vector<1x8x14xf32> to vector<8x14xf32>
    %45 = arith.truncf %44 : vector<8x14xf32> to vector<8x14xbf16>
    %c6_37 = arith.constant 6 : index
    %c0_38 = arith.constant 0 : index
    %c0_39 = arith.constant 0 : index
    %46 = vector.load %arg2[%c6_37, %c0_38, %c0_39] : memref<9x14x4xbf16, #tpu.memory_space<vmem>>, vector<1x14x4xbf16>
    %47 = vector.shape_cast %46 : vector<1x14x4xbf16> to vector<14x4xbf16>
    %cst_40 = arith.constant dense<0.000000e+00> : vector<8x4xf32>
    %48 = tpu.matmul %45, %47, %cst_40 {dimension_numbers = #tpu.dot_dimension_numbers<[1], [0], [0], [1], [0, 0, 1, 1], [], []>} : vector<8x14xbf16>, vector<14x4xbf16>, vector<8x4xf32> -> vector<8x4xf32>
    %49 = arith.addf %42, %48 : vector<8x4xf32>
    %c0_41 = arith.constant 0 : index
    %c9 = arith.constant 9 : index
    %c0_42 = arith.constant 0 : index
    %50 = vector.load %arg1[%c0_41, %c9, %c0_42] : memref<1x18x14xf32, #tpu.memory_space<vmem>>, vector<1x8x14xf32>
    %51 = vector.shape_cast %50 : vector<1x8x14xf32> to vector<8x14xf32>
    %52 = arith.truncf %51 : vector<8x14xf32> to vector<8x14xbf16>
    %c7 = arith.constant 7 : index
    %c0_43 = arith.constant 0 : index
    %c0_44 = arith.constant 0 : index
    %53 = vector.load %arg2[%c7, %c0_43, %c0_44] : memref<9x14x4xbf16, #tpu.memory_space<vmem>>, vector<1x14x4xbf16>
    %54 = vector.shape_cast %53 : vector<1x14x4xbf16> to vector<14x4xbf16>
    %cst_45 = arith.constant dense<0.000000e+00> : vector<8x4xf32>
    %55 = tpu.matmul %52, %54, %cst_45 {dimension_numbers = #tpu.dot_dimension_numbers<[1], [0], [0], [1], [0, 0, 1, 1], [], []>} : vector<8x14xbf16>, vector<14x4xbf16>, vector<8x4xf32> -> vector<8x4xf32>
    %56 = arith.addf %49, %55 : vector<8x4xf32>
    %c0_46 = arith.constant 0 : index
    %c10 = arith.constant 10 : index
    %c0_47 = arith.constant 0 : index
    %57 = vector.load %arg1[%c0_46, %c10, %c0_47] : memref<1x18x14xf32, #tpu.memory_space<vmem>>, vector<1x8x14xf32>
    %58 = vector.shape_cast %57 : vector<1x8x14xf32> to vector<8x14xf32>
    %59 = arith.truncf %58 : vector<8x14xf32> to vector<8x14xbf16>
    %c8_48 = arith.constant 8 : index
    %c0_49 = arith.constant 0 : index
    %c0_50 = arith.constant 0 : index
    %60 = vector.load %arg2[%c8_48, %c0_49, %c0_50] : memref<9x14x4xbf16, #tpu.memory_space<vmem>>, vector<1x14x4xbf16>
    %61 = vector.shape_cast %60 : vector<1x14x4xbf16> to vector<14x4xbf16>
    %cst_51 = arith.constant dense<0.000000e+00> : vector<8x4xf32>
    %62 = tpu.matmul %59, %61, %cst_51 {dimension_numbers = #tpu.dot_dimension_numbers<[1], [0], [0], [1], [0, 0, 1, 1], [], []>} : vector<8x14xbf16>, vector<14x4xbf16>, vector<8x4xf32> -> vector<8x4xf32>
    %63 = arith.addf %56, %62 : vector<8x4xf32>
    %cst_52 = arith.constant 0.000000e+00 : f32
    %64 = vector.broadcast %cst_52 : f32 to vector<8x4xf32>
    %65 = arith.maximumf %63, %64 : vector<8x4xf32>
    %c0_53 = arith.constant 0 : index
    %c0_54 = arith.constant 0 : index
    %c0_55 = arith.constant 0 : index
    %66 = vector.load %arg3[%c0_53, %c0_54, %c0_55] : memref<1x8x4xf32, #tpu.memory_space<vmem>>, vector<1x8x4xf32>
    %67 = vector.shape_cast %66 : vector<1x8x4xf32> to vector<8x4xf32>
    %68 = vector.shape_cast %65 : vector<8x4xf32> to vector<1x8x4xf32>
    tpu.vector_store %arg3[%c0_53, %c0_54, %c0_55], %68 {strides = array<i32>} : memref<1x8x4xf32, #tpu.memory_space<vmem>>, vector<1x8x4xf32>,
    return
  }
  func.func @transform_0(%arg0: i32) -> (i32, i32, i32) {
    %c0_i32 = arith.constant 0 : i32
    %c0_i32_0 = arith.constant 0 : i32
    %c0_i32_1 = arith.constant 0 : i32
    return %arg0, %c0_i32, %c0_i32_0 : i32, i32, i32
  }
  func.func @transform_1(%arg0: i32) -> (i32, i32, i32) {
    %c0_i32 = arith.constant 0 : i32
    %c0_i32_0 = arith.constant 0 : i32
    %c0_i32_1 = arith.constant 0 : i32
    %c0_i32_2 = arith.constant 0 : i32
    return %c0_i32, %c0_i32_0, %c0_i32_1 : i32, i32, i32
  }
  func.func @transform_2(%arg0: i32) -> (i32, i32, i32) {
    %c0_i32 = arith.constant 0 : i32
    %c0_i32_0 = arith.constant 0 : i32
    %c0_i32_1 = arith.constant 0 : i32
    return %arg0, %c0_i32, %c0_i32_0 : i32, i32, i32
  }
}

module attributes {stable_mosaic.version = 11 : i64} {
  func.func @_linear_kernel(%arg0: i32, %arg1: i32, %arg2: i32, %arg3: memref<2x9xf32, #tpu.memory_space<vmem>>, %arg4: memref<9x128xbf16, #tpu.memory_space<vmem>>, %arg5: memref<1x128xf32, #tpu.memory_space<vmem>>, %arg6: memref<2x128xf32, #tpu.memory_space<vmem>>, %arg7: memref<2x128xf32, #tpu.memory_space<vmem>>) attributes {dimension_semantics = [#tpu.dimension_semantics<parallel>, #tpu.dimension_semantics<parallel>, #tpu.dimension_semantics<arbitrary>], iteration_bounds = array<i64: 1, 1, 1>, scalar_prefetch = 0 : i64, scratch_operands = 1 : i64, tpu.core_type = #tpu.core_type<tc>, window_params = [{transform_indices = @transform_0, window_bounds = array<i64: 2, 9>}, {transform_indices = @transform_1, window_bounds = array<i64: 9, 128>}, {transform_indices = @transform_2, window_bounds = array<i64: 1, 128>}, {transform_indices = @transform_3, window_bounds = array<i64: 2, 128>}]} {
    %c0_i32 = arith.constant 0 : i32
    %0 = arith.cmpi eq, %arg2, %c0_i32 : i32
    %1 = arith.extui %0 : i1 to i32
    %c0_i32_0 = arith.constant 0 : i32
    %2 = arith.cmpi ne, %1, %c0_i32_0 : i32
    scf.if %2 {
      %cst_10 = arith.constant 0.000000e+00 : f32
      %13 = vector.broadcast %cst_10 : f32 to vector<2x128xf32>
      %c0_11 = arith.constant 0 : index
      %c0_12 = arith.constant 0 : index
      %14 = vector.load %arg7[%c0_11, %c0_12] : memref<2x128xf32, #tpu.memory_space<vmem>>, vector<2x128xf32>
      tpu.vector_store %arg7[%c0_11, %c0_12], %13 {strides = array<i32>} : memref<2x128xf32, #tpu.memory_space<vmem>>, vector<2x128xf32>,
    } else {
    }
    %c0 = arith.constant 0 : index
    %c0_1 = arith.constant 0 : index
    %3 = vector.load %arg7[%c0, %c0_1] : memref<2x128xf32, #tpu.memory_space<vmem>>, vector<2x128xf32>
    %c0_2 = arith.constant 0 : index
    %c0_3 = arith.constant 0 : index
    %4 = vector.load %arg3[%c0_2, %c0_3] : memref<2x9xf32, #tpu.memory_space<vmem>>, vector<2x9xf32>
    %5 = arith.truncf %4 : vector<2x9xf32> to vector<2x9xbf16>
    %c0_4 = arith.constant 0 : index
    %c0_5 = arith.constant 0 : index
    %6 = vector.load %arg4[%c0_4, %c0_5] : memref<9x128xbf16, #tpu.memory_space<vmem>>, vector<9x128xbf16>
    %cst = arith.constant dense<0.000000e+00> : vector<2x128xf32>
    %7 = tpu.matmul %5, %6, %cst {dimension_numbers = #tpu.dot_dimension_numbers<[1], [0], [0], [1], [0, 0, 1, 1], [], []>} : vector<2x9xbf16>, vector<9x128xbf16>, vector<2x128xf32> -> vector<2x128xf32>
    %8 = arith.addf %3, %7 : vector<2x128xf32>
    %c0_6 = arith.constant 0 : index
    %c0_7 = arith.constant 0 : index
    %9 = vector.load %arg7[%c0_6, %c0_7] : memref<2x128xf32, #tpu.memory_space<vmem>>, vector<2x128xf32>
    tpu.vector_store %arg7[%c0_6, %c0_7], %8 {strides = array<i32>} : memref<2x128xf32, #tpu.memory_space<vmem>>, vector<2x128xf32>,
    %c0_i32_8 = arith.constant 0 : i32
    %10 = arith.cmpi eq, %arg2, %c0_i32_8 : i32
    %11 = arith.extui %10 : i1 to i32
    %c0_i32_9 = arith.constant 0 : i32
    %12 = arith.cmpi ne, %11, %c0_i32_9 : i32
    scf.if %12 {
      %c0_10 = arith.constant 0 : index
      %c0_11 = arith.constant 0 : index
      %13 = vector.load %arg7[%c0_10, %c0_11] : memref<2x128xf32, #tpu.memory_space<vmem>>, vector<2x128xf32>
      %c0_12 = arith.constant 0 : index
      %c0_13 = arith.constant 0 : index
      %14 = vector.load %arg5[%c0_12, %c0_13] : memref<1x128xf32, #tpu.memory_space<vmem>>, vector<1x128xf32>
      %15 = vector.broadcast %14 : vector<1x128xf32> to vector<2x128xf32>
      %16 = arith.addf %13, %15 : vector<2x128xf32>
      %c0_14 = arith.constant 0 : index
      %c0_15 = arith.constant 0 : index
      %17 = vector.load %arg6[%c0_14, %c0_15] : memref<2x128xf32, #tpu.memory_space<vmem>>, vector<2x128xf32>
      tpu.vector_store %arg6[%c0_14, %c0_15], %16 {strides = array<i32>} : memref<2x128xf32, #tpu.memory_space<vmem>>, vector<2x128xf32>,
    } else {
    }
    return
  }
  func.func @transform_0(%arg0: i32, %arg1: i32, %arg2: i32) -> (i32, i32) {
    %c0_i32 = arith.constant 0 : i32
    return %arg0, %arg2 : i32, i32
  }
  func.func @transform_1(%arg0: i32, %arg1: i32, %arg2: i32) -> (i32, i32) {
    %c0_i32 = arith.constant 0 : i32
    return %arg2, %arg1 : i32, i32
  }
  func.func @transform_2(%arg0: i32, %arg1: i32, %arg2: i32) -> (i32, i32) {
    %c0_i32 = arith.constant 0 : i32
    %c0_i32_0 = arith.constant 0 : i32
    return %c0_i32, %arg1 : i32, i32
  }
  func.func @transform_3(%arg0: i32, %arg1: i32, %arg2: i32) -> (i32, i32) {
    %c0_i32 = arith.constant 0 : i32
    return %arg0, %arg1 : i32, i32
  }
}

</mosaic_0001>

<llo_original>
// kernel: diin_forward.17
$region0: #{diin_forward.17}
  #allocation0 [shape = 'u32[]', space=smem, size = 0x4, offset = 0x4, fixed_abs, tag = 'smem constant byte address 0x4 - core index']
  #allocation1 [shape = 'u32[144,128]{1,0:T(1,128)}', space=vmem, size = 0x12000, scoped, tag = 'internal scratch']
  %s0 = inlined_call_operand.vmem [shape: f32[4,8,128], index: 0, kind: input, shape index: {}]
  %s1 = inlined_call_operand.vmem [shape: f32[1,128], index: 1, kind: input, shape index: {}]
  %s2 = inlined_call_operand.vmem [shape: f32[1,128], index: 2, kind: input, shape index: {}]
  %s3 = inlined_call_operand.vmem [shape: f32[1,128], index: 3, kind: input, shape index: {}]
  %s4 = inlined_call_operand.vmem [shape: f32[4,8,128], index: 4, kind: output, shape index: {}]
  %s5 = sld [smem:[#allocation0]]
  $region49: #{diin_forward.17} parent=0
    _
  %s7 = ssub.s32 1, %s5
  %s8 = scalar_select 0, %s7, %s5
  loop: start=0, step=1, limit=6
  $region2: #{diin_forward.17} parent=0 // loop_pre_header
    _
  $region3: #{diin_forward.17} parent=0 // loop_header
    %s10 = sphi 0, %s14
    %p11 = scmp.ge.s32.totalorder %s10, 6
    %s20 = sphi 0, %s22
    %s23 = sphi 0, %s20
    %s24 = sphi 0, %s23
    %s40 = sphi 0, %s24
    %s44 = sphi 0, %s44
    %s46 = sphi 0, %s44
    %s47 = sphi 0, %s46
    %s61 = sphi 0, %s47
    %s65 = sphi 0, %s65
    %s67 = sphi 0, %s65
    %s68 = sphi 0, %s67
    %s82 = sphi 0, %s68
    %s86 = sphi 0, %s86
    %s88 = sphi 0, %s86
    %s89 = sphi 0, %s88
    %s103 = sphi 0, %s89
    %s109 = sphi 0, %s111
    %s112 = sphi 0, %s109
    %s113 = sphi 0, %s112
    %s129 = sphi 0, %s113
  $region4: #{diin_forward.17} parent=0 // loop_header_branch
    %13 = sbr.rel (%p11) target = $region8
  $region5: #{diin_forward.17} parent=0 // loop_body
    %s15 = ssub.s32 %s10, 1
    %s16 = ssub.s32 %s10, 2
    %s17 = sadd.s32 %s10, 1
    %s18 = ssub.s32 %s10, %s17
    %p19 = scmp.eq.s32.totalorder %s18, 0
    %s21 = sadd.s32 %s20, 1
    %s22 = scalar_select %p19, %s20, %s21
    %p25 = pneg %p19
    %p26 = scmp.eq.s32.totalorder %s10, 3
    %p27 = por %p25, %p26
    %p28 = scmp.ne.s32.totalorder %s20, %s23
    %p29 = scmp.eq.s32.totalorder %s10, 0
    %p30 = por %p28, %p29
    %p31 = scmp.ne.s32.totalorder %s20, %s23
    %p32 = scmp.eq.s32.totalorder %s15, 3
    %p33 = por %p31, %p32
    %p34 = scmp.ne.s32.totalorder %s23, %s24
    %p35 = scmp.eq.s32.totalorder %s15, 0
    %p36 = por %p34, %p35
    %p37 = scmp.ne.s32.totalorder %s23, %s24
    %p38 = scmp.eq.s32.totalorder %s16, 3
    %p39 = por %p37, %p38
    %p41 = scmp.ne.s32.totalorder %s24, %s40
    %p42 = scmp.eq.s32.totalorder %s16, 0
    %p43 = por %p41, %p42
    %s45 = sadd.s32 %s44, 1
    %p48 = scmp.eq.s32.totalorder %s10, 3
    %p49 = scmp.ne.s32.totalorder %s44, %s46
    %p50 = scmp.eq.s32.totalorder %s10, 0
    %p51 = por %p49, %p50
    %p52 = scmp.ne.s32.totalorder %s44, %s46
    %p53 = scmp.eq.s32.totalorder %s15, 3
    %p54 = por %p52, %p53
    %p55 = scmp.ne.s32.totalorder %s46, %s47
    %p56 = scmp.eq.s32.totalorder %s15, 0
    %p57 = por %p55, %p56
    %p58 = scmp.ne.s32.totalorder %s46, %s47
    %p59 = scmp.eq.s32.totalorder %s16, 3
    %p60 = por %p58, %p59
    %p62 = scmp.ne.s32.totalorder %s47, %s61
    %p63 = scmp.eq.s32.totalorder %s16, 0
    %p64 = por %p62, %p63
    %s66 = sadd.s32 %s65, 1
    %p69 = scmp.eq.s32.totalorder %s10, 3
    %p70 = scmp.ne.s32.totalorder %s65, %s67
    %p71 = scmp.eq.s32.totalorder %s10, 0
    %p72 = por %p70, %p71
    %p73 = scmp.ne.s32.totalorder %s65, %s67
    %p74 = scmp.eq.s32.totalorder %s15, 3
    %p75 = por %p73, %p74
    %p76 = scmp.ne.s32.totalorder %s67, %s68
    %p77 = scmp.eq.s32.totalorder %s15, 0
    %p78 = por %p76, %p77
    %p79 = scmp.ne.s32.totalorder %s67, %s68
    %p80 = scmp.eq.s32.totalorder %s16, 3
    %p81 = por %p79, %p80
    %p83 = scmp.ne.s32.totalorder %s68, %s82
    %p84 = scmp.eq.s32.totalorder %s16, 0
    %p85 = por %p83, %p84
    %s87 = sadd.s32 %s86, 1
    %p90 = scmp.eq.s32.totalorder %s10, 3
    %p91 = scmp.ne.s32.totalorder %s86, %s88
    %p92 = scmp.eq.s32.totalorder %s10, 0
    %p93 = por %p91, %p92
    %p94 = scmp.ne.s32.totalorder %s86, %s88
    %p95 = scmp.eq.s32.totalorder %s15, 3
    %p96 = por %p94, %p95
    %p97 = scmp.ne.s32.totalorder %s88, %s89
    %p98 = scmp.eq.s32.totalorder %s15, 0
    %p99 = por %p97, %p98
    %p100 = scmp.ne.s32.totalorder %s88, %s89
    %p101 = scmp.eq.s32.totalorder %s16, 3
    %p102 = por %p100, %p101
    %p104 = scmp.ne.s32.totalorder %s89, %s103
    %p105 = scmp.eq.s32.totalorder %s16, 0
    %p106 = por %p104, %p105
    %s107 = ssub.s32 %s10, %s17
    %p108 = scmp.eq.s32.totalorder %s107, 0
    %s110 = sadd.s32 %s109, 1
    %s111 = scalar_select %p108, %s109, %s110
    %p114 = pneg %p108
    %p115 = scmp.eq.s32.totalorder %s10, 3
    %p116 = por %p114, %p115
    %p117 = scmp.ne.s32.totalorder %s109, %s112
    %p118 = scmp.eq.s32.totalorder %s10, 0
    %p119 = por %p117, %p118
    %p120 = scmp.ne.s32.totalorder %s109, %s112
    %p121 = scmp.eq.s32.totalorder %s15, 3
    %p122 = por %p120, %p121
    %p123 = scmp.ne.s32.totalorder %s112, %s113
    %p124 = scmp.eq.s32.totalorder %s15, 0
    %p125 = por %p123, %p124
    %p126 = scmp.ne.s32.totalorder %s112, %s113
    %p127 = scmp.eq.s32.totalorder %s16, 3
    %p128 = por %p126, %p127
    %p130 = scmp.ne.s32.totalorder %s113, %s129
    %p131 = scmp.eq.s32.totalorder %s16, 0
    %p132 = por %p130, %p131
    %p133 = scmp.le.s32.totalorder 1, %s10
    %p134 = scmp.lt.s32.totalorder %s10, 5
    %p135 = pnand %p133, %p134
    %p136 = pneg %p135
    // Predicated region
    $region9: #{diin_forward.17} parent=5 // pred_check
      _
    $region10: #{diin_forward.17} parent=5 // pred_check_branch
      %138 = sbr.rel (%p135) target = $region12
    $region11: #{diin_forward.17} parent=5 // pred_region
      %s139 = ssub.s32 %s10, 1
      // Predicated region
      $region13: #{diin_forward.17} parent=11 // pred_check
        %p140 = pneg %p57
      $region14: #{diin_forward.17} parent=11 // pred_check_branch
        %142 = sbr.rel (%p140) target = $region16
      $region15: #{diin_forward.17} parent=11 // pred_region
        _
      $region16: #{diin_forward.17} parent=11 // pred_fallthru
        _
      // Predicated region
      $region17: #{diin_forward.17} parent=11 // pred_check
        %p143 = pneg %p78
      $region18: #{diin_forward.17} parent=11 // pred_check_branch
        %145 = sbr.rel (%p143) target = $region20
      $region19: #{diin_forward.17} parent=11 // pred_region
        _
      $region20: #{diin_forward.17} parent=11 // pred_fallthru
        _
      // Predicated region
      $region21: #{diin_forward.17} parent=11 // pred_check
        %p146 = pneg %p99
      $region22: #{diin_forward.17} parent=11 // pred_check_branch
        %148 = sbr.rel (%p146) target = $region24
      $region23: #{diin_forward.17} parent=11 // pred_region
        _
      $region24: #{diin_forward.17} parent=11 // pred_fallthru
        _
    $region12: #{diin_forward.17} parent=5 // pred_fallthru
      _
    %p149 = scmp.lt.s32.totalorder %s10, 4
    // Predicated region
    $region25: #{diin_forward.17} parent=5 // pred_check
      %p150 = pneg %p149
    $region26: #{diin_forward.17} parent=5 // pred_check_branch
      %152 = sbr.rel (%p150) target = $region28
    $region27: #{diin_forward.17} parent=5 // pred_region
      // Predicated region
      $region29: #{diin_forward.17} parent=27 // pred_check
        %p153 = pneg %p30
      $region30: #{diin_forward.17} parent=27 // pred_check_branch
        %155 = sbr.rel (%p153) target = $region32
      $region31: #{diin_forward.17} parent=27 // pred_region
        %p156 = scmp.lt.s32.totalorder %s10, 3
        %s157 = scalar_select %p156, %s10, 3
        %s158 = smul.addr %s157, 8
        %s159 = scalar_lea.vmem %s0, %s158
      $region32: #{diin_forward.17} parent=27 // pred_fallthru
        _
    $region28: #{diin_forward.17} parent=5 // pred_fallthru
      _
    %p160 = scmp.le.s32.totalorder 1, %s10
    %p161 = scmp.lt.s32.totalorder %s10, 5
    %p162 = pnand %p160, %p161
    %p163 = pneg %p162
    // Predicated region
    $region33: #{diin_forward.17} parent=5 // pred_check
      _
    $region34: #{diin_forward.17} parent=5 // pred_check_branch
      %165 = sbr.rel (%p162) target = $region36
    $region35: #{diin_forward.17} parent=5 // pred_region
      %s166 = ssub.s32 %s10, 1
      %p167 = scmp.lt.s32.totalorder %s15, 3
      %s168 = scalar_select %p167, %s15, 3
      %s169 = smul.addr %s168, 8
      %s170 = scalar_lea.vmem %s0, %s169
      %p171 = pneg %p36
      %p172 = pneg %p33
      %p173 = pneg %p57
      %p174 = pneg %p54
      %p175 = pneg %p78
      %p176 = pneg %p75
      %p177 = pneg %p99
      %p178 = pneg %p96
      %p179 = pneg %p125
      %p180 = pneg %p122
      %p181 = scmp.lt.s32.totalorder %s15, 3
      %s182 = scalar_select %p181, %s15, 3
      %s183 = smul.addr %s182, 8
      %s184 = scalar_lea.vmem %s4, %s183
      %p185 = scmp.lt.s32.totalorder %s15, 3
      %s186 = scalar_select %p185, %s15, 3
      %s187 = smul.addr %s186, 8
      %s188 = scalar_lea.vmem %s0, %s187
      %p189 = scmp.lt.s32.totalorder %s15, 3
      %s190 = scalar_select %p189, %s15, 3
      %s191 = smul.addr %s190, 8
      %s192 = scalar_lea.vmem %s4, %s191
      %v194 = vld [vmem:[%s188] sm:$0xff]
      %v195 = vpack.c.bf16 %v194, %v194
      %v196 = vld [vmem:[%s1] sm:$0x1]
      %v197 = vpack.c.bf16 %v196, %v196
      %198 = vmatprep.subr.bf16.mxu0 0
      %199 = vmatpush1.bf16.xpose.msra.mxu0 0
      %200 = vmatprep.subr.bf16.mxu0 0
      %201 = vmatpush1.bf16.xpose.msra.mxu0 0
      %202 = vmatprep.subr.bf16.mxu0 0
      %203 = vmatpush1.bf16.xpose.msra.mxu0 0
      %204 = vmatprep.subr.bf16.mxu0 0
      %205 = vmatpush1.bf16.xpose.msra.mxu0 0
      %206 = vmatprep.subr.bf16.mxu0 0
      %207 = vmatpush1.bf16.xpose.msra.mxu0 0
      %208 = vmatprep.subr.bf16.mxu0 0
      %209 = vmatpush1.bf16.xpose.msra.mxu0 0
      %210 = vmatprep.subr.bf16.mxu0 0
      %211 = vmatpush1.bf16.xpose.msra.mxu0 0
      %212 = vmatprep.subr.bf16.mxu0 0
      %213 = vmatpush1.bf16.xpose.msra.mxu0 %v195
      %214 = vmatprep.subr.bf16.mxu0 0
      %215 = vmatpush2.bf16.xpose.msra.mxu0 0
      %216 = vmatprep.subr.bf16.mxu0 0
      %217 = vmatpush2.bf16.xpose.msra.mxu0 0
      %218 = vmatprep.subr.bf16.mxu0 0
      %219 = vmatpush2.bf16.xpose.msra.mxu0 0
      %220 = vmatprep.subr.bf16.mxu0 0
      %221 = vmatpush2.bf16.xpose.msra.mxu0 0
      %222 = vmatprep.subr.bf16.mxu0 0
      %223 = vmatpush2.bf16.xpose.msra.mxu0 0
      %224 = vmatprep.subr.bf16.mxu0 0
      %225 = vmatpush2.bf16.xpose.msra.mxu0 0
      %226 = vmatprep.subr.bf16.mxu0 0
      %227 = vmatpush2.bf16.xpose.msra.mxu0 0
      %228 = vmatprep.subr.bf16.mxu0 0
      %229 = vmatpush2.bf16.xpose.msra.mxu0 0
      %230 = vmatprep.mubr.bf16.mxu0 0
      %231 = vmatmul.mubr.bf16.gmra.mxu0 %v197
      %v232 = vpop.f32.mrf.mxu0
      %v233 = vadd.f32 0.0, %v232
      %v234 = vpop.f32.mrf.mxu0
      %v235 = vpop.f32.mrf.mxu0
      %v236 = vpop.f32.mrf.mxu0
      %237 = vdwg.mxu0
      %v238 = vld [vmem:[%s2] sm:$0x1]
      %v240 = vlaneseq
      %v241 = vshrl.u32 %v240, 7
      %v242 = vsub.s32 0, %v241
      %v243 = vrot.slane %v238, %v242
      %v245 = vmul.f32 %v194, %v243
      %246 = vadd.xlane.f32.xlu0 %v245
      %v247 = vpop.xlane.xlu0 %246
      %v248 = vld [vmem:[%s3] sm:$0x1]
      %v250 = vlaneseq
      %v251 = vshrl.u32 %v250, 7
      %v252 = vsub.s32 0, %v251
      %v253 = vrot.slane %v248, %v252
      %v255 = vmul.f32 %v194, %v253
      %v256 = vpack.c.bf16 %v255, %v255
      %v257 = vlaneseq
      %v258 = vshrl.u32 %v257, 7
      %v259 = vsub.s32 0, %v258
      %v260 = vrot.slane %v233, %v259
      %261 = vmatprep.subr.bf16.mxu0 0
      %262 = vmatpush1.bf16.xpose.msra.mxu0 0
      %263 = vmatprep.subr.bf16.mxu0 0
      %264 = vmatpush1.bf16.xpose.msra.mxu0 0
      %265 = vmatprep.subr.bf16.mxu0 0
      %266 = vmatpush1.bf16.xpose.msra.mxu0 0
      %267 = vmatprep.subr.bf16.mxu0 0
      %268 = vmatpush1.bf16.xpose.msra.mxu0 0
      %269 = vmatprep.subr.bf16.mxu0 0
      %270 = vmatpush1.bf16.xpose.msra.mxu0 0
      %271 = vmatprep.subr.bf16.mxu0 0
      %272 = vmatpush1.bf16.xpose.msra.mxu0 0
      %273 = vmatprep.subr.bf16.mxu0 0
      %274 = vmatpush1.bf16.xpose.msra.mxu0 0
      %275 = vmatprep.subr.bf16.mxu0 0
      %276 = vmatpush1.bf16.xpose.msra.mxu0 %v195
      %277 = vmatprep.subr.bf16.mxu0 0
      %278 = vmatpush2.bf16.xpose.msra.mxu0 0
      %279 = vmatprep.subr.bf16.mxu0 0
      %280 = vmatpush2.bf16.xpose.msra.mxu0 0
      %281 = vmatprep.subr.bf16.mxu0 0
      %282 = vmatpush2.bf16.xpose.msra.mxu0 0
      %283 = vmatprep.subr.bf16.mxu0 0
      %284 = vmatpush2.bf16.xpose.msra.mxu0 0
      %285 = vmatprep.subr.bf16.mxu0 0
      %286 = vmatpush2.bf16.xpose.msra.mxu0 0
      %287 = vmatprep.subr.bf16.mxu0 0
      %288 = vmatpush2.bf16.xpose.msra.mxu0 0
      %289 = vmatprep.subr.bf16.mxu0 0
      %290 = vmatpush2.bf16.xpose.msra.mxu0 0
      %291 = vmatprep.subr.bf16.mxu0 0
      %292 = vmatpush2.bf16.xpose.msra.mxu0 0
      %293 = vmatprep.mubr.bf16.mxu0 0
      %294 = vmatmul.mubr.bf16.gmra.mxu0 %v256
      %v295 = vpop.f32.mrf.mxu0
      %v296 = vadd.f32 %v260, %v295
      %v297 = vpop.f32.mrf.mxu0
      %v298 = vpop.f32.mrf.mxu0
      %v299 = vpop.f32.mrf.mxu0
      %300 = vdwg.mxu0
      %v301 = vadd.f32 %v296, %v247
      %vm302 = vcmask 64512
      %v303 = vsel %vm302, %v301, -inf
      %304 = vmax.xlane.f32.xlu0 %v303
      %v305 = vpop.xlane.xlu0 %304
      %v306 = vsub.f32 %v301, %v305
      %v307 = vmul.f32 %v306, 1.442695
      %v308 = vpow.pop %v307
      %v309 = vsel %vm302, %v308, 0.0
      %310 = vadd.xlane.f32.xlu0 %v309
      %v311 = vpop.xlane.xlu0 %310
      %v312 = vrcp.pop %v311
      %v313 = vmul.f32 %v308, %v312
      %v314 = vpack.c.bf16 %v313, %v313
      %v316 = vsel %vm302, %v314, 0
      %vm318 = vcmask 1043456
      %v320 = vsel %vm318, %v195, 0
      %322 = vmatprep.subr.bf16.mxu0 0
      %323 = vmatpush1.bf16.msra.mxu0 0
      %324 = vmatprep.subr.bf16.mxu0 0
      %325 = vmatpush1.bf16.msra.mxu0 0
      %326 = vmatprep.subr.bf16.mxu0 0
      %327 = vmatpush1.bf16.msra.mxu0 0
      %328 = vmatprep.subr.bf16.mxu0 0
      %329 = vmatpush1.bf16.msra.mxu0 0
      %330 = vmatprep.subr.bf16.mxu0 0
      %331 = vmatpush1.bf16.msra.mxu0 0
      %332 = vmatprep.subr.bf16.mxu0 0
      %333 = vmatpush1.bf16.msra.mxu0 0
      %334 = vmatprep.subr.bf16.mxu0 0
      %335 = vmatpush1.bf16.msra.mxu0 0
      %336 = vmatprep.subr.bf16.mxu0 0
      %337 = vmatpush1.bf16.msra.mxu0 %v320
      %338 = vmatprep.subr.bf16.mxu0 0
      %339 = vmatpush2.bf16.msra.mxu0 0
      %340 = vmatprep.subr.bf16.mxu0 0
      %341 = vmatpush2.bf16.msra.mxu0 0
      %342 = vmatprep.subr.bf16.mxu0 0
      %343 = vmatpush2.bf16.msra.mxu0 0
      %344 = vmatprep.subr.bf16.mxu0 0
      %345 = vmatpush2.bf16.msra.mxu0 0
      %346 = vmatprep.subr.bf16.mxu0 0
      %347 = vmatpush2.bf16.msra.mxu0 0
      %348 = vmatprep.subr.bf16.mxu0 0
      %349 = vmatpush2.bf16.msra.mxu0 0
      %350 = vmatprep.subr.bf16.mxu0 0
      %351 = vmatpush2.bf16.msra.mxu0 0
      %352 = vmatprep.subr.bf16.mxu0 0
      %353 = vmatpush2.bf16.msra.mxu0 0
      %354 = vmatprep.mubr.bf16.mxu0 0
      %355 = vmatmul.mubr.bf16.gmra.mxu0 %v316
      %v356 = vpop.f32.mrf.mxu0
      %v357 = vadd.f32 0.0, %v356
      %v358 = vpop.f32.mrf.mxu0
      %v359 = vpop.f32.mrf.mxu0
      %v360 = vpop.f32.mrf.mxu0
      %361 = vdwg.mxu0
      %362 = vst [vmem:[%s192] sm:$0xff] %v357
      %p363 = scmp.lt.s32.totalorder %s15, 3
      %s364 = scalar_select %p363, %s15, 3
      %s365 = smul.addr %s364, 8
      %s366 = scalar_lea.vmem %s4, %s365
      // Predicated region
      $region37: #{diin_forward.17} parent=35 // pred_check
        %p367 = pneg %p122
      $region38: #{diin_forward.17} parent=35 // pred_check_branch
        %369 = sbr.rel (%p367) target = $region40
      $region39: #{diin_forward.17} parent=35 // pred_region
        _
      $region40: #{diin_forward.17} parent=35 // pred_fallthru
        _
    $region36: #{diin_forward.17} parent=5 // pred_fallthru
      _
    %p370 = scmp.le.s32.totalorder 2, %s10
    // Predicated region
    $region41: #{diin_forward.17} parent=5 // pred_check
      %p371 = pneg %p370
    $region42: #{diin_forward.17} parent=5 // pred_check_branch
      %373 = sbr.rel (%p371) target = $region44
    $region43: #{diin_forward.17} parent=5 // pred_region
      %s374 = ssub.s32 %s10, 2
      // Predicated region
      $region45: #{diin_forward.17} parent=43 // pred_check
        %p375 = pneg %p128
      $region46: #{diin_forward.17} parent=43 // pred_check_branch
        %377 = sbr.rel (%p375) target = $region48
      $region47: #{diin_forward.17} parent=43 // pred_region
        %p378 = scmp.lt.s32.totalorder %s16, 3
        %s379 = scalar_select %p378, %s16, 3
        %s380 = smul.addr %s379, 8
        %s381 = scalar_lea.vmem %s4, %s380
      $region48: #{diin_forward.17} parent=43 // pred_fallthru
        _
    $region44: #{diin_forward.17} parent=5 // pred_fallthru
      _
  $region6: #{diin_forward.17} parent=0 // loop_footer
    %s14 = sadd.s32 1, %s10
  $region7: #{diin_forward.17} parent=0 // loop_footer_branch
    %9 = sbr.rel target = $region3
  $region8: #{diin_forward.17} parent=0 // loop_exit
    _

// kernel: diin_forward.18
$region0: #{diin_forward.18}
  #allocation0 [shape = 'u32[]', space=smem, size = 0x4, offset = 0x4, fixed_abs, tag = 'smem constant byte address 0x4 - core index']
  #allocation1 [shape = 'u32[144,128]{1,0:T(1,128)}', space=vmem, size = 0x12000, scoped, tag = 'internal scratch']
  %s0 = inlined_call_operand.vmem [shape: f32[32,128], index: 0, kind: input, shape index: {}]
  %s1 = inlined_call_operand.vmem [shape: f32[32,128], index: 1, kind: input, shape index: {}]
  %s2 = inlined_call_operand.vmem [shape: bf16[256,128], index: 2, kind: input, shape index: {}]
  %s3 = inlined_call_operand.vmem [shape: f32[1,128], index: 3, kind: input, shape index: {}]
  %s4 = inlined_call_operand.vmem [shape: f32[32,128], index: 4, kind: output, shape index: {}]
  %s5 = sld [smem:[#allocation0]]
  $region26: #{diin_forward.18} parent=0
    _
  %s7 = ssub.s32 1, %s5
  %s8 = scalar_select 0, %s7, %s5
  // Predicated region
  $region2: #{diin_forward.18} parent=0 // pred_check
    _
  $region3: #{diin_forward.18} parent=0 // pred_check_branch
    %10 = sbr.rel (0) target = $region5
  $region4: #{diin_forward.18} parent=0 // pred_region
    _
  $region5: #{diin_forward.18} parent=0 // pred_fallthru
    _
  // Predicated region
  $region6: #{diin_forward.18} parent=0 // pred_check
    _
  $region7: #{diin_forward.18} parent=0 // pred_check_branch
    %12 = sbr.rel (0) target = $region9
  $region8: #{diin_forward.18} parent=0 // pred_region
    _
  $region9: #{diin_forward.18} parent=0 // pred_fallthru
    _
  // Predicated region
  $region10: #{diin_forward.18} parent=0 // pred_check
    _
  $region11: #{diin_forward.18} parent=0 // pred_check_branch
    %14 = sbr.rel (0) target = $region13
  $region12: #{diin_forward.18} parent=0 // pred_region
    _
  $region13: #{diin_forward.18} parent=0 // pred_fallthru
    _
  // Predicated region
  $region14: #{diin_forward.18} parent=0 // pred_check
    _
  $region15: #{diin_forward.18} parent=0 // pred_check_branch
    %16 = sbr.rel (0) target = $region17
  $region16: #{diin_forward.18} parent=0 // pred_region
    _
  $region17: #{diin_forward.18} parent=0 // pred_fallthru
    _
  %v18 = vld [vmem:[%s0] sm:$0xff]
  %v19 = vld [vmem:[%s0 + $0x8] sm:$0xff]
  %v20 = vld [vmem:[%s0 + $0x10] sm:$0xff]
  %v21 = vld [vmem:[%s0 + $0x18] sm:$0xff]
  %v22 = vld [vmem:[%s1] sm:$0xff]
  %v23 = vld [vmem:[%s1 + $0x8] sm:$0xff]
  %v24 = vld [vmem:[%s1 + $0x10] sm:$0xff]
  %v25 = vld [vmem:[%s1 + $0x18] sm:$0xff]
  %v26 = vpack.c.bf16 %v19, %v18
  %v27 = vpack.c.bf16 %v23, %v22
  %v28 = vpack.c.bf16 %v21, %v20
  %v29 = vpack.c.bf16 %v25, %v24
  %v30 = vld [vmem:[%s2] sm:$0xf]
  %v31 = vld [vmem:[%s2 + $0x4] sm:$0xf]
  %v32 = vld [vmem:[%s2 + $0x8] sm:$0xf]
  %v33 = vld [vmem:[%s2 + $0xc] sm:$0xf]
  %v34 = vld [vmem:[%s2 + $0x10] sm:$0xf]
  %v35 = vld [vmem:[%s2 + $0x14] sm:$0xf]
  %v36 = vld [vmem:[%s2 + $0x18] sm:$0xf]
  %v37 = vld [vmem:[%s2 + $0x1c] sm:$0xf]
  %v38 = vld [vmem:[%s2 + $0x20] sm:$0xf]
  %v39 = vld [vmem:[%s2 + $0x24] sm:$0xf]
  %v40 = vld [vmem:[%s2 + $0x28] sm:$0xf]
  %v41 = vld [vmem:[%s2 + $0x2c] sm:$0xf]
  %v42 = vld [vmem:[%s2 + $0x30] sm:$0xf]
  %v43 = vld [vmem:[%s2 + $0x34] sm:$0xf]
  %v44 = vld [vmem:[%s2 + $0x38] sm:$0xf]
  %v45 = vld [vmem:[%s2 + $0x3c] sm:$0xf]
  %v46 = vld [vmem:[%s2 + $0x40] sm:$0xf]
  %v47 = vld [vmem:[%s2 + $0x44] sm:$0xf]
  %v48 = vld [vmem:[%s2 + $0x48] sm:$0xf]
  %v49 = vld [vmem:[%s2 + $0x4c] sm:$0xf]
  %v50 = vld [vmem:[%s2 + $0x50] sm:$0xf]
  %v51 = vld [vmem:[%s2 + $0x54] sm:$0xf]
  %v52 = vld [vmem:[%s2 + $0x58] sm:$0xf]
  %v53 = vld [vmem:[%s2 + $0x5c] sm:$0xf]
  %v54 = vld [vmem:[%s2 + $0x60] sm:$0xf]
  %v55 = vld [vmem:[%s2 + $0x64] sm:$0xf]
  %v56 = vld [vmem:[%s2 + $0x68] sm:$0xf]
  %v57 = vld [vmem:[%s2 + $0x6c] sm:$0xf]
  %v58 = vld [vmem:[%s2 + $0x70] sm:$0xf]
  %v59 = vld [vmem:[%s2 + $0x74] sm:$0xf]
  %v60 = vld [vmem:[%s2 + $0x78] sm:$0xf]
  %v61 = vld [vmem:[%s2 + $0x7c] sm:$0xf]
  %v62 = vld [vmem:[%s3] sm:$0x1]
  %v64 = vlaneseq
  %v65 = vshrl.u32 %v64, 7
  %v66 = vsub.s32 0, %v65
  %v67 = vrot.slane %v62, %v66
  %v101 = vunpack.c.l.b16 %v30
  %v102 = vunpack.c.l.b16 %v31
  %v103 = vunpack.c.l.b16 %v32
  %v104 = vunpack.c.l.b16 %v33
  %v105 = vunpack.c.l.b16 %v34
  %v106 = vunpack.c.l.b16 %v35
  %v107 = vunpack.c.l.b16 %v36
  %v108 = vunpack.c.l.b16 %v37
  %v109 = vunpack.c.l.b16 %v38
  %v110 = vunpack.c.l.b16 %v39
  %v111 = vunpack.c.l.b16 %v40
  %v112 = vunpack.c.l.b16 %v41
  %v113 = vunpack.c.l.b16 %v42
  %v114 = vunpack.c.l.b16 %v43
  %v115 = vunpack.c.l.b16 %v44
  %v116 = vunpack.c.l.b16 %v45
  %v117 = vunpack.c.l.b16 %v46
  %v118 = vunpack.c.l.b16 %v47
  %v119 = vunpack.c.l.b16 %v48
  %v120 = vunpack.c.l.b16 %v49
  %v121 = vunpack.c.l.b16 %v50
  %v122 = vunpack.c.l.b16 %v51
  %v123 = vunpack.c.l.b16 %v52
  %v124 = vunpack.c.l.b16 %v53
  %v125 = vunpack.c.l.b16 %v54
  %v126 = vunpack.c.l.b16 %v55
  %v127 = vunpack.c.l.b16 %v56
  %v128 = vunpack.c.l.b16 %v57
  %v129 = vunpack.c.l.b16 %v58
  %v130 = vunpack.c.l.b16 %v59
  %v131 = vunpack.c.l.b16 %v60
  %v132 = vunpack.c.l.b16 %v61
  %v133 = vpack.c.b16 %v102, %v101
  %v134 = vpack.c.b16 %v104, %v103
  %v135 = vpack.c.b16 %v106, %v105
  %v136 = vpack.c.b16 %v108, %v107
  %v137 = vpack.c.b16 %v110, %v109
  %v138 = vpack.c.b16 %v112, %v111
  %v139 = vpack.c.b16 %v114, %v113
  %v140 = vpack.c.b16 %v116, %v115
  %v141 = vpack.c.b16 %v118, %v117
  %v142 = vpack.c.b16 %v120, %v119
  %v143 = vpack.c.b16 %v122, %v121
  %v144 = vpack.c.b16 %v124, %v123
  %v145 = vpack.c.b16 %v126, %v125
  %v146 = vpack.c.b16 %v128, %v127
  %v147 = vpack.c.b16 %v130, %v129
  %v148 = vpack.c.b16 %v132, %v131
  %165 = vmatprep.subr.bf16.mxu0 0
  %166 = vmatpush1.bf16.msra.mxu0 %v140
  %167 = vmatprep.subr.bf16.mxu0 0
  %168 = vmatpush1.bf16.msra.mxu0 %v139
  %169 = vmatprep.subr.bf16.mxu0 0
  %170 = vmatpush1.bf16.msra.mxu0 %v138
  %171 = vmatprep.subr.bf16.mxu0 0
  %172 = vmatpush1.bf16.msra.mxu0 %v137
  %173 = vmatprep.subr.bf16.mxu0 0
  %174 = vmatpush1.bf16.msra.mxu0 %v136
  %175 = vmatprep.subr.bf16.mxu0 0
  %176 = vmatpush1.bf16.msra.mxu0 %v135
  %177 = vmatprep.subr.bf16.mxu0 0
  %178 = vmatpush1.bf16.msra.mxu0 %v134
  %179 = vmatprep.subr.bf16.mxu0 0
  %180 = vmatpush1.bf16.msra.mxu0 %v133
  %181 = vmatprep.subr.bf16.mxu0 0
  %182 = vmatpush2.bf16.msra.mxu0 %v148
  %183 = vmatprep.subr.bf16.mxu0 0
  %184 = vmatpush2.bf16.msra.mxu0 %v147
  %185 = vmatprep.subr.bf16.mxu0 0
  %186 = vmatpush2.bf16.msra.mxu0 %v146
  %187 = vmatprep.subr.bf16.mxu0 0
  %188 = vmatpush2.bf16.msra.mxu0 %v145
  %189 = vmatprep.subr.bf16.mxu0 0
  %190 = vmatpush2.bf16.msra.mxu0 %v144
  %191 = vmatprep.subr.bf16.mxu0 0
  %192 = vmatpush2.bf16.msra.mxu0 %v143
  %193 = vmatprep.subr.bf16.mxu0 0
  %194 = vmatpush2.bf16.msra.mxu0 %v142
  %195 = vmatprep.subr.bf16.mxu0 0
  %196 = vmatpush2.bf16.msra.mxu0 %v141
  %197 = vmatprep.mubr.bf16.mxu0 %v27
  %198 = vmatmul.mubr.bf16.gmra.mxu0 %v26
  %v199 = vpop.f32.mrf.mxu0
  %v200 = vadd.f32 %v67, %v199
  %v201 = vpop.f32.mrf.mxu0
  %v202 = vpop.f32.mrf.mxu0
  %v203 = vadd.f32 %v67, %v202
  %v204 = vpop.f32.mrf.mxu0
  %205 = vmatprep.mubr.bf16.mxu0 %v29
  %206 = vmatmul.mubr.bf16.gmra.mxu0 %v28
  %v207 = vpop.f32.mrf.mxu0
  %v208 = vadd.f32 %v67, %v207
  %v209 = vpop.f32.mrf.mxu0
  %v210 = vpop.f32.mrf.mxu0
  %v211 = vadd.f32 %v67, %v210
  %v212 = vpop.f32.mrf.mxu0
  %213 = vdwg.mxu0
  %v214 = vtanh.pop %v200
  %v215 = vtanh.pop %v203
  %v216 = vtanh.pop %v208
  %v217 = vtanh.pop %v211
  %v218 = vxor.u32 %v200, 2147483648
  %v219 = vxor.u32 %v203, 2147483648
  %v220 = vxor.u32 %v208, 2147483648
  %v221 = vxor.u32 %v211, 2147483648
  %v222 = vmul.f32 %v218, 1.442695
  %v223 = vpow.pop %v222
  %v224 = vmul.f32 %v219, 1.442695
  %v225 = vpow.pop %v224
  %v226 = vmul.f32 %v220, 1.442695
  %v227 = vpow.pop %v226
  %v228 = vmul.f32 %v221, 1.442695
  %v229 = vpow.pop %v228
  %v230 = vadd.f32 %v223, 1.0
  %v231 = vadd.f32 %v225, 1.0
  %v232 = vadd.f32 %v227, 1.0
  %v233 = vadd.f32 %v229, 1.0
  %v234 = vrcp.pop %v230
  %v235 = vmul.f32 1.0, %v234
  %v236 = vrcp.pop %v231
  %v237 = vmul.f32 1.0, %v236
  %v238 = vrcp.pop %v232
  %v239 = vmul.f32 1.0, %v238
  %v240 = vrcp.pop %v233
  %v241 = vmul.f32 1.0, %v240
  %v242 = vmul.f32 %v235, %v18
  %v243 = vmul.f32 %v237, %v19
  %v244 = vmul.f32 %v239, %v20
  %v245 = vmul.f32 %v241, %v21
  %v246 = vmul.f32 %v235, %v214
  %v247 = vmul.f32 %v237, %v215
  %v248 = vmul.f32 %v239, %v216
  %v249 = vmul.f32 %v241, %v217
  %v250 = vadd.f32 %v242, %v246
  %v251 = vadd.f32 %v243, %v247
  %v252 = vadd.f32 %v244, %v248
  %v253 = vadd.f32 %v245, %v249
  %254 = vst [vmem:[%s4] sm:$0xff] %v250
  %255 = vst [vmem:[%s4 + $0x8] sm:$0xff] %v251
  %256 = vst [vmem:[%s4 + $0x10] sm:$0xff] %v252
  %257 = vst [vmem:[%s4 + $0x18] sm:$0xff] %v253
  // Predicated region
  $region18: #{diin_forward.18} parent=0 // pred_check
    _
  $region19: #{diin_forward.18} parent=0 // pred_check_branch
    %259 = sbr.rel (0) target = $region21
  $region20: #{diin_forward.18} parent=0 // pred_region
    _
  $region21: #{diin_forward.18} parent=0 // pred_fallthru
    _
  // Predicated region
  $region22: #{diin_forward.18} parent=0 // pred_check
    _
  $region23: #{diin_forward.18} parent=0 // pred_check_branch
    %261 = sbr.rel (0) target = $region25
  $region24: #{diin_forward.18} parent=0 // pred_region
    _
  $region25: #{diin_forward.18} parent=0 // pred_fallthru
    _

// kernel: diin_forward.15
$region0: #{diin_forward.15}
  #allocation0 [shape = 'u32[]', space=smem, size = 0x4, offset = 0x4, fixed_abs, tag = 'smem constant byte address 0x4 - core index']
  #allocation1 [shape = 'u32[144,128]{1,0:T(1,128)}', space=vmem, size = 0x12000, scoped, tag = 'internal scratch']
  #allocation2 [shape = 'f32[32,128]{1,0:T(8,128)}', space=vmem, size = 0x4000, scoped, tag = 'scratch operand']
  %s0 = inlined_call_operand.vmem [shape: f32[32,384], index: 0, kind: input, shape index: {}]
  %s1 = inlined_call_operand.vmem [shape: bf16[384,128], index: 1, kind: input, shape index: {}]
  %s2 = inlined_call_operand.vmem [shape: f32[1,128], index: 2, kind: input, shape index: {}]
  %s3 = inlined_call_operand.vmem [shape: f32[32,128], index: 3, kind: output, shape index: {}]
  %s4 = sld [smem:[#allocation0]]
  $region30: #{diin_forward.15} parent=0
    _
  %s6 = ssub.s32 1, %s4
  %s7 = scalar_select 0, %s6, %s4
  // Predicated region
  $region2: #{diin_forward.15} parent=0 // pred_check
    _
  $region3: #{diin_forward.15} parent=0 // pred_check_branch
    %9 = sbr.rel (0) target = $region5
  $region4: #{diin_forward.15} parent=0 // pred_region
    _
  $region5: #{diin_forward.15} parent=0 // pred_fallthru
    _
  // Predicated region
  $region6: #{diin_forward.15} parent=0 // pred_check
    _
  $region7: #{diin_forward.15} parent=0 // pred_check_branch
    %11 = sbr.rel (0) target = $region9
  $region8: #{diin_forward.15} parent=0 // pred_region
    _
  $region9: #{diin_forward.15} parent=0 // pred_fallthru
    _
  // Predicated region
  $region10: #{diin_forward.15} parent=0 // pred_check
    _
  $region11: #{diin_forward.15} parent=0 // pred_check_branch
    %13 = sbr.rel (0) target = $region13
  $region12: #{diin_forward.15} parent=0 // pred_region
    _
  $region13: #{diin_forward.15} parent=0 // pred_fallthru
    _
  %p15 = scmp.eq.s32.totalorder 0, 0
  // Predicated region
  $region14: #{diin_forward.15} parent=0 // pred_check
    %p16 = pneg %p15
  $region15: #{diin_forward.15} parent=0 // pred_check_branch
    %18 = sbr.rel (%p16) target = $region17
  $region16: #{diin_forward.15} parent=0 // pred_region
    %19 = vst [vmem:[#allocation2] sm:$0xff] 0.0
    %20 = vst [vmem:[#allocation2 + $0x8] sm:$0xff] 0.0
    %21 = vst [vmem:[#allocation2 + $0x10] sm:$0xff] 0.0
    %22 = vst [vmem:[#allocation2 + $0x18] sm:$0xff] 0.0
  $region17: #{diin_forward.15} parent=0 // pred_fallthru
    _
  %v23 = vld [vmem:[#allocation2] sm:$0xff]
  %v24 = vld [vmem:[#allocation2 + $0x8] sm:$0xff]
  %v25 = vld [vmem:[#allocation2 + $0x10] sm:$0xff]
  %v26 = vld [vmem:[#allocation2 + $0x18] sm:$0xff]
  %v27 = vld [vmem:[%s0] sm:$0xff]
  %v28 = vld [vmem:[%s0 + $0x8] sm:$0xff]
  %v29 = vld [vmem:[%s0 + $0x10] sm:$0xff]
  %v30 = vld [vmem:[%s0 + $0x18] sm:$0xff]
  %v31 = vld [vmem:[%s0 + $0x20] sm:$0xff]
  %v32 = vld [vmem:[%s0 + $0x28] sm:$0xff]
  %v33 = vld [vmem:[%s0 + $0x30] sm:$0xff]
  %v34 = vld [vmem:[%s0 + $0x38] sm:$0xff]
  %v35 = vld [vmem:[%s0 + $0x40] sm:$0xff]
  %v36 = vld [vmem:[%s0 + $0x48] sm:$0xff]
  %v37 = vld [vmem:[%s0 + $0x50] sm:$0xff]
  %v38 = vld [vmem:[%s0 + $0x58] sm:$0xff]
  %v39 = vpack.c.bf16 %v30, %v27
  %v40 = vpack.c.bf16 %v31, %v28
  %v41 = vpack.c.bf16 %v32, %v29
  %v42 = vpack.c.bf16 %v36, %v33
  %v43 = vpack.c.bf16 %v37, %v34
  %v44 = vpack.c.bf16 %v38, %v35
  %v45 = vld [vmem:[%s1] sm:$0xf]
  %v46 = vld [vmem:[%s1 + $0x4] sm:$0xf]
  %v47 = vld [vmem:[%s1 + $0x8] sm:$0xf]
  %v48 = vld [vmem:[%s1 + $0xc] sm:$0xf]
  %v49 = vld [vmem:[%s1 + $0x10] sm:$0xf]
  %v50 = vld [vmem:[%s1 + $0x14] sm:$0xf]
  %v51 = vld [vmem:[%s1 + $0x18] sm:$0xf]
  %v52 = vld [vmem:[%s1 + $0x1c] sm:$0xf]
  %v53 = vld [vmem:[%s1 + $0x20] sm:$0xf]
  %v54 = vld [vmem:[%s1 + $0x24] sm:$0xf]
  %v55 = vld [vmem:[%s1 + $0x28] sm:$0xf]
  %v56 = vld [vmem:[%s1 + $0x2c] sm:$0xf]
  %v57 = vld [vmem:[%s1 + $0x30] sm:$0xf]
  %v58 = vld [vmem:[%s1 + $0x34] sm:$0xf]
  %v59 = vld [vmem:[%s1 + $0x38] sm:$0xf]
  %v60 = vld [vmem:[%s1 + $0x3c] sm:$0xf]
  %v61 = vld [vmem:[%s1 + $0x40] sm:$0xf]
  %v62 = vld [vmem:[%s1 + $0x44] sm:$0xf]
  %v63 = vld [vmem:[%s1 + $0x48] sm:$0xf]
  %v64 = vld [vmem:[%s1 + $0x4c] sm:$0xf]
  %v65 = vld [vmem:[%s1 + $0x50] sm:$0xf]
  %v66 = vld [vmem:[%s1 + $0x54] sm:$0xf]
  %v67 = vld [vmem:[%s1 + $0x58] sm:$0xf]
  %v68 = vld [vmem:[%s1 + $0x5c] sm:$0xf]
  %v69 = vld [vmem:[%s1 + $0x60] sm:$0xf]
  %v70 = vld [vmem:[%s1 + $0x64] sm:$0xf]
  %v71 = vld [vmem:[%s1 + $0x68] sm:$0xf]
  %v72 = vld [vmem:[%s1 + $0x6c] sm:$0xf]
  %v73 = vld [vmem:[%s1 + $0x70] sm:$0xf]
  %v74 = vld [vmem:[%s1 + $0x74] sm:$0xf]
  %v75 = vld [vmem:[%s1 + $0x78] sm:$0xf]
  %v76 = vld [vmem:[%s1 + $0x7c] sm:$0xf]
  %v77 = vld [vmem:[%s1 + $0x80] sm:$0xf]
  %v78 = vld [vmem:[%s1 + $0x84] sm:$0xf]
  %v79 = vld [vmem:[%s1 + $0x88] sm:$0xf]
  %v80 = vld [vmem:[%s1 + $0x8c] sm:$0xf]
  %v81 = vld [vmem:[%s1 + $0x90] sm:$0xf]
  %v82 = vld [vmem:[%s1 + $0x94] sm:$0xf]
  %v83 = vld [vmem:[%s1 + $0x98] sm:$0xf]
  %v84 = vld [vmem:[%s1 + $0x9c] sm:$0xf]
  %v85 = vld [vmem:[%s1 + $0xa0] sm:$0xf]
  %v86 = vld [vmem:[%s1 + $0xa4] sm:$0xf]
  %v87 = vld [vmem:[%s1 + $0xa8] sm:$0xf]
  %v88 = vld [vmem:[%s1 + $0xac] sm:$0xf]
  %v89 = vld [vmem:[%s1 + $0xb0] sm:$0xf]
  %v90 = vld [vmem:[%s1 + $0xb4] sm:$0xf]
  %v91 = vld [vmem:[%s1 + $0xb8] sm:$0xf]
  %v92 = vld [vmem:[%s1 + $0xbc] sm:$0xf]
  %v141 = vunpack.c.l.b16 %v45
  %v142 = vunpack.c.l.b16 %v46
  %v143 = vunpack.c.l.b16 %v47
  %v144 = vunpack.c.l.b16 %v48
  %v145 = vunpack.c.l.b16 %v49
  %v146 = vunpack.c.l.b16 %v50
  %v147 = vunpack.c.l.b16 %v51
  %v148 = vunpack.c.l.b16 %v52
  %v149 = vunpack.c.l.b16 %v53
  %v150 = vunpack.c.l.b16 %v54
  %v151 = vunpack.c.l.b16 %v55
  %v152 = vunpack.c.l.b16 %v56
  %v153 = vunpack.c.l.b16 %v57
  %v154 = vunpack.c.l.b16 %v58
  %v155 = vunpack.c.l.b16 %v59
  %v156 = vunpack.c.l.b16 %v60
  %v157 = vunpack.c.l.b16 %v61
  %v158 = vunpack.c.l.b16 %v62
  %v159 = vunpack.c.l.b16 %v63
  %v160 = vunpack.c.l.b16 %v64
  %v161 = vunpack.c.l.b16 %v65
  %v162 = vunpack.c.l.b16 %v66
  %v163 = vunpack.c.l.b16 %v67
  %v164 = vunpack.c.l.b16 %v68
  %v165 = vunpack.c.l.b16 %v69
  %v166 = vunpack.c.l.b16 %v70
  %v167 = vunpack.c.l.b16 %v71
  %v168 = vunpack.c.l.b16 %v72
  %v169 = vunpack.c.l.b16 %v73
  %v170 = vunpack.c.l.b16 %v74
  %v171 = vunpack.c.l.b16 %v75
  %v172 = vunpack.c.l.b16 %v76
  %v173 = vunpack.c.l.b16 %v77
  %v174 = vunpack.c.l.b16 %v78
  %v175 = vunpack.c.l.b16 %v79
  %v176 = vunpack.c.l.b16 %v80
  %v177 = vunpack.c.l.b16 %v81
  %v178 = vunpack.c.l.b16 %v82
  %v179 = vunpack.c.l.b16 %v83
  %v180 = vunpack.c.l.b16 %v84
  %v181 = vunpack.c.l.b16 %v85
  %v182 = vunpack.c.l.b16 %v86
  %v183 = vunpack.c.l.b16 %v87
  %v184 = vunpack.c.l.b16 %v88
  %v185 = vunpack.c.l.b16 %v89
  %v186 = vunpack.c.l.b16 %v90
  %v187 = vunpack.c.l.b16 %v91
  %v188 = vunpack.c.l.b16 %v92
  %v189 = vpack.c.b16 %v142, %v141
  %v190 = vpack.c.b16 %v144, %v143
  %v191 = vpack.c.b16 %v146, %v145
  %v192 = vpack.c.b16 %v148, %v147
  %v193 = vpack.c.b16 %v150, %v149
  %v194 = vpack.c.b16 %v152, %v151
  %v195 = vpack.c.b16 %v154, %v153
  %v196 = vpack.c.b16 %v156, %v155
  %v197 = vpack.c.b16 %v158, %v157
  %v198 = vpack.c.b16 %v160, %v159
  %v199 = vpack.c.b16 %v162, %v161
  %v200 = vpack.c.b16 %v164, %v163
  %v201 = vpack.c.b16 %v166, %v165
  %v202 = vpack.c.b16 %v168, %v167
  %v203 = vpack.c.b16 %v170, %v169
  %v204 = vpack.c.b16 %v172, %v171
  %v205 = vpack.c.b16 %v174, %v173
  %v206 = vpack.c.b16 %v176, %v175
  %v207 = vpack.c.b16 %v178, %v177
  %v208 = vpack.c.b16 %v180, %v179
  %v209 = vpack.c.b16 %v182, %v181
  %v210 = vpack.c.b16 %v184, %v183
  %v211 = vpack.c.b16 %v186, %v185
  %v212 = vpack.c.b16 %v188, %v187
  %237 = vmatprep.subr.bf16.mxu0 0
  %238 = vmatpush1.bf16.msra.mxu0 %v196
  %239 = vmatprep.subr.bf16.mxu0 0
  %240 = vmatpush1.bf16.msra.mxu0 %v195
  %241 = vmatprep.subr.bf16.mxu0 0
  %242 = vmatpush1.bf16.msra.mxu0 %v194
  %243 = vmatprep.subr.bf16.mxu0 0
  %244 = vmatpush1.bf16.msra.mxu0 %v193
  %245 = vmatprep.subr.bf16.mxu0 0
  %246 = vmatpush1.bf16.msra.mxu0 %v192
  %247 = vmatprep.subr.bf16.mxu0 0
  %248 = vmatpush1.bf16.msra.mxu0 %v191
  %249 = vmatprep.subr.bf16.mxu0 0
  %250 = vmatpush1.bf16.msra.mxu0 %v190
  %251 = vmatprep.subr.bf16.mxu0 0
  %252 = vmatpush1.bf16.msra.mxu0 %v189
  %253 = vmatprep.subr.bf16.mxu0 0
  %254 = vmatpush2.bf16.msra.mxu0 %v204
  %255 = vmatprep.subr.bf16.mxu0 0
  %256 = vmatpush2.bf16.msra.mxu0 %v203
  %257 = vmatprep.subr.bf16.mxu0 0
  %258 = vmatpush2.bf16.msra.mxu0 %v202
  %259 = vmatprep.subr.bf16.mxu0 0
  %260 = vmatpush2.bf16.msra.mxu0 %v201
  %261 = vmatprep.subr.bf16.mxu0 0
  %262 = vmatpush2.bf16.msra.mxu0 %v200
  %263 = vmatprep.subr.bf16.mxu0 0
  %264 = vmatpush2.bf16.msra.mxu0 %v199
  %265 = vmatprep.subr.bf16.mxu0 0
  %266 = vmatpush2.bf16.msra.mxu0 %v198
  %267 = vmatprep.subr.bf16.mxu0 0
  %268 = vmatpush2.bf16.msra.mxu0 %v197
  %269 = vmatprep.mubr.bf16.mxu0 %v40
  %270 = vmatmul.mubr.bf16.gmra.mxu0 %v39
  %v271 = vpop.f32.mrf.mxu0
  %v272 = vadd.f32 0.0, %v271
  %v273 = vpop.f32.mrf.mxu0
  %v274 = vpop.f32.mrf.mxu0
  %v275 = vadd.f32 0.0, %v274
  %v276 = vpop.f32.mrf.mxu0
  %277 = vmatprep.mubr.bf16.mxu0 %v43
  %278 = vmatmul.mubr.bf16.gmra.mxu0 %v42
  %v279 = vpop.f32.mrf.mxu0
  %v280 = vadd.f32 0.0, %v279
  %v281 = vpop.f32.mrf.mxu0
  %v282 = vpop.f32.mrf.mxu0
  %v283 = vadd.f32 0.0, %v282
  %v284 = vpop.f32.mrf.mxu0
  %285 = vdwg.mxu0
  %286 = vmatprep.subr.bf16.mxu0 0
  %287 = vmatpush1.bf16.msra.mxu0 %v212
  %288 = vmatprep.subr.bf16.mxu0 0
  %289 = vmatpush1.bf16.msra.mxu0 %v211
  %290 = vmatprep.subr.bf16.mxu0 0
  %291 = vmatpush1.bf16.msra.mxu0 %v210
  %292 = vmatprep.subr.bf16.mxu0 0
  %293 = vmatpush1.bf16.msra.mxu0 %v209
  %294 = vmatprep.subr.bf16.mxu0 0
  %295 = vmatpush1.bf16.msra.mxu0 %v208
  %296 = vmatprep.subr.bf16.mxu0 0
  %297 = vmatpush1.bf16.msra.mxu0 %v207
  %298 = vmatprep.subr.bf16.mxu0 0
  %299 = vmatpush1.bf16.msra.mxu0 %v206
  %300 = vmatprep.subr.bf16.mxu0 0
  %301 = vmatpush1.bf16.msra.mxu0 %v205
  %302 = vmatprep.subr.bf16.mxu0 0
  %303 = vmatpush2.bf16.msra.mxu0 0
  %304 = vmatprep.subr.bf16.mxu0 0
  %305 = vmatpush2.bf16.msra.mxu0 0
  %306 = vmatprep.subr.bf16.mxu0 0
  %307 = vmatpush2.bf16.msra.mxu0 0
  %308 = vmatprep.subr.bf16.mxu0 0
  %309 = vmatpush2.bf16.msra.mxu0 0
  %310 = vmatprep.subr.bf16.mxu0 0
  %311 = vmatpush2.bf16.msra.mxu0 0
  %312 = vmatprep.subr.bf16.mxu0 0
  %313 = vmatpush2.bf16.msra.mxu0 0
  %314 = vmatprep.subr.bf16.mxu0 0
  %315 = vmatpush2.bf16.msra.mxu0 0
  %316 = vmatprep.subr.bf16.mxu0 0
  %317 = vmatpush2.bf16.msra.mxu0 0
  %318 = vmatprep.mubr.bf16.mxu0 0
  %319 = vmatmul.mubr.bf16.gmra.mxu0 %v41
  %v320 = vpop.f32.mrf.mxu0
  %v321 = vadd.f32 %v272, %v320
  %v322 = vpop.f32.mrf.mxu0
  %v323 = vpop.f32.mrf.mxu0
  %v324 = vadd.f32 %v275, %v323
  %v325 = vpop.f32.mrf.mxu0
  %326 = vmatprep.mubr.bf16.mxu0 0
  %327 = vmatmul.mubr.bf16.gmra.mxu0 %v44
  %v328 = vpop.f32.mrf.mxu0
  %v329 = vadd.f32 %v280, %v328
  %v330 = vpop.f32.mrf.mxu0
  %v331 = vpop.f32.mrf.mxu0
  %v332 = vadd.f32 %v283, %v331
  %v333 = vpop.f32.mrf.mxu0
  %334 = vdwg.mxu0
  %v335 = vadd.f32 %v23, %v321
  %v336 = vadd.f32 %v24, %v324
  %v337 = vadd.f32 %v25, %v329
  %v338 = vadd.f32 %v26, %v332
  %339 = vst [vmem:[#allocation2] sm:$0xff] %v335
  %340 = vst [vmem:[#allocation2 + $0x8] sm:$0xff] %v336
  %341 = vst [vmem:[#allocation2 + $0x10] sm:$0xff] %v337
  %342 = vst [vmem:[#allocation2 + $0x18] sm:$0xff] %v338
  // Predicated region
  $region18: #{diin_forward.15} parent=0 // pred_check
    %p343 = pneg %p15
  $region19: #{diin_forward.15} parent=0 // pred_check_branch
    %345 = sbr.rel (%p343) target = $region21
  $region20: #{diin_forward.15} parent=0 // pred_region
    %v346 = vld [vmem:[#allocation2] sm:$0xff]
    %v347 = vld [vmem:[#allocation2 + $0x8] sm:$0xff]
    %v348 = vld [vmem:[#allocation2 + $0x10] sm:$0xff]
    %v349 = vld [vmem:[#allocation2 + $0x18] sm:$0xff]
    %v350 = vld [vmem:[%s2] sm:$0x1]
    %v352 = vlaneseq
    %v353 = vshrl.u32 %v352, 7
    %v354 = vsub.s32 0, %v353
    %v355 = vrot.slane %v350, %v354
    %v357 = vadd.f32 %v346, %v355
    %v358 = vadd.f32 %v347, %v355
    %v359 = vadd.f32 %v348, %v355
    %v360 = vadd.f32 %v349, %v355
    %361 = vst [vmem:[%s3] sm:$0xff] %v357
    %362 = vst [vmem:[%s3 + $0x8] sm:$0xff] %v358
    %363 = vst [vmem:[%s3 + $0x10] sm:$0xff] %v359
    %364 = vst [vmem:[%s3 + $0x18] sm:$0xff] %v360
  $region21: #{diin_forward.15} parent=0 // pred_fallthru
    _
  // Predicated region
  $region22: #{diin_forward.15} parent=0 // pred_check
    _
  $region23: #{diin_forward.15} parent=0 // pred_check_branch
    %366 = sbr.rel (0) target = $region25
  $region24: #{diin_forward.15} parent=0 // pred_region
    _
  $region25: #{diin_forward.15} parent=0 // pred_fallthru
    _
  // Predicated region
  $region26: #{diin_forward.15} parent=0 // pred_check
    _
  $region27: #{diin_forward.15} parent=0 // pred_check_branch
    %368 = sbr.rel (0) target = $region29
  $region28: #{diin_forward.15} parent=0 // pred_region
    _
  $region29: #{diin_forward.15} parent=0 // pred_fallthru
    _

// kernel: diin_forward.16
$region0: #{diin_forward.16}
  #allocation0 [shape = 'u32[]', space=smem, size = 0x4, offset = 0x4, fixed_abs, tag = 'smem constant byte address 0x4 - core index']
  #allocation1 [shape = 'u32[144,128]{1,0:T(1,128)}', space=vmem, size = 0x12000, scoped, tag = 'internal scratch']
  %s0 = inlined_call_operand.vmem [shape: f32[32,128], index: 0, kind: input, shape index: {}]
  %s1 = inlined_call_operand.vmem [shape: bf16[2,128,384], index: 1, kind: input, shape index: {}]
  %s2 = inlined_call_operand.vmem [shape: f32[2,1,384], index: 2, kind: input, shape index: {}]
  %s3 = inlined_call_operand.vmem [shape: f32[32,128], index: 3, kind: output, shape index: {}]
  %s4 = sld [smem:[#allocation0]]
  $region22: #{diin_forward.16} parent=0
    _
  %s6 = ssub.s32 1, %s4
  %s7 = scalar_select 0, %s6, %s4
  // Predicated region
  $region2: #{diin_forward.16} parent=0 // pred_check
    _
  $region3: #{diin_forward.16} parent=0 // pred_check_branch
    %9 = sbr.rel (0) target = $region5
  $region4: #{diin_forward.16} parent=0 // pred_region
    _
  $region5: #{diin_forward.16} parent=0 // pred_fallthru
    _
  // Predicated region
  $region6: #{diin_forward.16} parent=0 // pred_check
    _
  $region7: #{diin_forward.16} parent=0 // pred_check_branch
    %11 = sbr.rel (0) target = $region9
  $region8: #{diin_forward.16} parent=0 // pred_region
    _
  $region9: #{diin_forward.16} parent=0 // pred_fallthru
    _
  // Predicated region
  $region10: #{diin_forward.16} parent=0 // pred_check
    _
  $region11: #{diin_forward.16} parent=0 // pred_check_branch
    %13 = sbr.rel (0) target = $region13
  $region12: #{diin_forward.16} parent=0 // pred_region
    _
  $region13: #{diin_forward.16} parent=0 // pred_fallthru
    _
  %v15 = vld [vmem:[%s0] sm:$0xff]
  %v16 = vld [vmem:[%s0 + $0x8] sm:$0xff]
  %v17 = vld [vmem:[%s0 + $0x10] sm:$0xff]
  %v18 = vld [vmem:[%s0 + $0x18] sm:$0xff]
  %v19 = vpack.c.bf16 %v16, %v15
  %v20 = vpack.c.bf16 %v18, %v17
  %v21 = vld [vmem:[%s1] sm:$0xff]
  %v22 = vld [vmem:[%s1 + $0x8] sm:$0xf]
  %v23 = vld [vmem:[%s1 + $0xc] sm:$0xff]
  %v24 = vld [vmem:[%s1 + $0x14] sm:$0xf]
  %v25 = vld [vmem:[%s1 + $0x18] sm:$0xff]
  %v26 = vld [vmem:[%s1 + $0x20] sm:$0xf]
  %v27 = vld [vmem:[%s1 + $0x24] sm:$0xff]
  %v28 = vld [vmem:[%s1 + $0x2c] sm:$0xf]
  %v29 = vld [vmem:[%s1 + $0x30] sm:$0xff]
  %v30 = vld [vmem:[%s1 + $0x38] sm:$0xf]
  %v31 = vld [vmem:[%s1 + $0x3c] sm:$0xff]
  %v32 = vld [vmem:[%s1 + $0x44] sm:$0xf]
  %v33 = vld [vmem:[%s1 + $0x48] sm:$0xff]
  %v34 = vld [vmem:[%s1 + $0x50] sm:$0xf]
  %v35 = vld [vmem:[%s1 + $0x54] sm:$0xff]
  %v36 = vld [vmem:[%s1 + $0x5c] sm:$0xf]
  %v37 = vld [vmem:[%s1 + $0x60] sm:$0xff]
  %v38 = vld [vmem:[%s1 + $0x68] sm:$0xf]
  %v39 = vld [vmem:[%s1 + $0x6c] sm:$0xff]
  %v40 = vld [vmem:[%s1 + $0x74] sm:$0xf]
  %v41 = vld [vmem:[%s1 + $0x78] sm:$0xff]
  %v42 = vld [vmem:[%s1 + $0x80] sm:$0xf]
  %v43 = vld [vmem:[%s1 + $0x84] sm:$0xff]
  %v44 = vld [vmem:[%s1 + $0x8c] sm:$0xf]
  %v45 = vld [vmem:[%s1 + $0x90] sm:$0xff]
  %v46 = vld [vmem:[%s1 + $0x98] sm:$0xf]
  %v47 = vld [vmem:[%s1 + $0x9c] sm:$0xff]
  %v48 = vld [vmem:[%s1 + $0xa4] sm:$0xf]
  %v49 = vld [vmem:[%s1 + $0xa8] sm:$0xff]
  %v50 = vld [vmem:[%s1 + $0xb0] sm:$0xf]
  %v51 = vld [vmem:[%s1 + $0xb4] sm:$0xff]
  %v52 = vld [vmem:[%s1 + $0xbc] sm:$0xf]
  %v53 = vld [vmem:[%s2] sm:$0x7]
  %v55 = vlaneseq
  %v56 = vshrl.u32 %v55, 7
  %v57 = vsub.s32 0, %v56
  %v58 = vrot.slane %v53, %v57
  %v59 = vlaneseq
  %v60 = vshrl.u32 %v59, 7
  %v61 = vsub.s32 1, %v60
  %v62 = vrot.slane %v53, %v61
  %v63 = vlaneseq
  %v64 = vshrl.u32 %v63, 7
  %v65 = vsub.s32 2, %v64
  %v66 = vrot.slane %v53, %v65
  %v102 = vunpack.c.l.b16 %v21
  %v103 = vunpack.c.h.b16 %v21
  %v104 = vunpack.c.l.b16 %v22
  %v105 = vunpack.c.l.b16 %v23
  %v106 = vunpack.c.h.b16 %v23
  %v107 = vunpack.c.l.b16 %v24
  %v108 = vunpack.c.l.b16 %v25
  %v109 = vunpack.c.h.b16 %v25
  %v110 = vunpack.c.l.b16 %v26
  %v111 = vunpack.c.l.b16 %v27
  %v112 = vunpack.c.h.b16 %v27
  %v113 = vunpack.c.l.b16 %v28
  %v114 = vunpack.c.l.b16 %v29
  %v115 = vunpack.c.h.b16 %v29
  %v116 = vunpack.c.l.b16 %v30
  %v117 = vunpack.c.l.b16 %v31
  %v118 = vunpack.c.h.b16 %v31
  %v119 = vunpack.c.l.b16 %v32
  %v120 = vunpack.c.l.b16 %v33
  %v121 = vunpack.c.h.b16 %v33
  %v122 = vunpack.c.l.b16 %v34
  %v123 = vunpack.c.l.b16 %v35
  %v124 = vunpack.c.h.b16 %v35
  %v125 = vunpack.c.l.b16 %v36
  %v126 = vunpack.c.l.b16 %v37
  %v127 = vunpack.c.h.b16 %v37
  %v128 = vunpack.c.l.b16 %v38
  %v129 = vunpack.c.l.b16 %v39
  %v130 = vunpack.c.h.b16 %v39
  %v131 = vunpack.c.l.b16 %v40
  %v132 = vunpack.c.l.b16 %v41
  %v133 = vunpack.c.h.b16 %v41
  %v134 = vunpack.c.l.b16 %v42
  %v135 = vunpack.c.l.b16 %v43
  %v136 = vunpack.c.h.b16 %v43
  %v137 = vunpack.c.l.b16 %v44
  %v138 = vunpack.c.l.b16 %v45
  %v139 = vunpack.c.h.b16 %v45
  %v140 = vunpack.c.l.b16 %v46
  %v141 = vunpack.c.l.b16 %v47
  %v142 = vunpack.c.h.b16 %v47
  %v143 = vunpack.c.l.b16 %v48
  %v144 = vunpack.c.l.b16 %v49
  %v145 = vunpack.c.h.b16 %v49
  %v146 = vunpack.c.l.b16 %v50
  %v147 = vunpack.c.l.b16 %v51
  %v148 = vunpack.c.h.b16 %v51
  %v149 = vunpack.c.l.b16 %v52
  %v150 = vpack.c.b16 %v105, %v102
  %v151 = vpack.c.b16 %v106, %v103
  %v152 = vpack.c.b16 %v107, %v104
  %v153 = vpack.c.b16 %v111, %v108
  %v154 = vpack.c.b16 %v112, %v109
  %v155 = vpack.c.b16 %v113, %v110
  %v156 = vpack.c.b16 %v117, %v114
  %v157 = vpack.c.b16 %v118, %v115
  %v158 = vpack.c.b16 %v119, %v116
  %v159 = vpack.c.b16 %v123, %v120
  %v160 = vpack.c.b16 %v124, %v121
  %v161 = vpack.c.b16 %v125, %v122
  %v162 = vpack.c.b16 %v129, %v126
  %v163 = vpack.c.b16 %v130, %v127
  %v164 = vpack.c.b16 %v131, %v128
  %v165 = vpack.c.b16 %v135, %v132
  %v166 = vpack.c.b16 %v136, %v133
  %v167 = vpack.c.b16 %v137, %v134
  %v168 = vpack.c.b16 %v141, %v138
  %v169 = vpack.c.b16 %v142, %v139
  %v170 = vpack.c.b16 %v143, %v140
  %v171 = vpack.c.b16 %v147, %v144
  %v172 = vpack.c.b16 %v148, %v145
  %v173 = vpack.c.b16 %v149, %v146
  %198 = vmatprep.subr.bf16.mxu0 %v172
  %199 = vmatpush1.bf16.msra.mxu0 %v171
  %200 = vmatprep.subr.bf16.mxu0 %v169
  %201 = vmatpush1.bf16.msra.mxu0 %v168
  %202 = vmatprep.subr.bf16.mxu0 %v166
  %203 = vmatpush1.bf16.msra.mxu0 %v165
  %204 = vmatprep.subr.bf16.mxu0 %v163
  %205 = vmatpush1.bf16.msra.mxu0 %v162
  %206 = vmatprep.subr.bf16.mxu0 %v160
  %207 = vmatpush1.bf16.msra.mxu0 %v159
  %208 = vmatprep.subr.bf16.mxu0 %v157
  %209 = vmatpush1.bf16.msra.mxu0 %v156
  %210 = vmatprep.subr.bf16.mxu0 %v154
  %211 = vmatpush1.bf16.msra.mxu0 %v153
  %212 = vmatprep.subr.bf16.mxu0 %v151
  %213 = vmatpush1.bf16.msra.mxu0 %v150
  %214 = vmatprep.subr.bf16.mxu0 0
  %215 = vmatpush2.bf16.msra.mxu0 0
  %216 = vmatprep.subr.bf16.mxu0 0
  %217 = vmatpush2.bf16.msra.mxu0 0
  %218 = vmatprep.subr.bf16.mxu0 0
  %219 = vmatpush2.bf16.msra.mxu0 0
  %220 = vmatprep.subr.bf16.mxu0 0
  %221 = vmatpush2.bf16.msra.mxu0 0
  %222 = vmatprep.subr.bf16.mxu0 0
  %223 = vmatpush2.bf16.msra.mxu0 0
  %224 = vmatprep.subr.bf16.mxu0 0
  %225 = vmatpush2.bf16.msra.mxu0 0
  %226 = vmatprep.subr.bf16.mxu0 0
  %227 = vmatpush2.bf16.msra.mxu0 0
  %228 = vmatprep.subr.bf16.mxu0 0
  %229 = vmatpush2.bf16.msra.mxu0 0
  %230 = vmatprep.mubr.bf16.mxu0 0
  %231 = vmatmul.mubr.bf16.gmra.mxu0 %v19
  %v232 = vpop.f32.mrf.mxu0
  %v233 = vadd.f32 %v58, %v232
  %v234 = vpop.f32.mrf.mxu0
  %v235 = vadd.f32 %v62, %v234
  %v236 = vpop.f32.mrf.mxu0
  %v237 = vadd.f32 %v58, %v236
  %v238 = vpop.f32.mrf.mxu0
  %v239 = vadd.f32 %v62, %v238
  %240 = vmatprep.mubr.bf16.mxu0 0
  %241 = vmatmul.mubr.bf16.gmra.mxu0 %v20
  %v242 = vpop.f32.mrf.mxu0
  %v243 = vadd.f32 %v58, %v242
  %v244 = vpop.f32.mrf.mxu0
  %v245 = vadd.f32 %v62, %v244
  %v246 = vpop.f32.mrf.mxu0
  %v247 = vadd.f32 %v58, %v246
  %v248 = vpop.f32.mrf.mxu0
  %v249 = vadd.f32 %v62, %v248
  %250 = vdwg.mxu0
  %251 = vmatprep.subr.bf16.mxu0 0
  %252 = vmatpush1.bf16.msra.mxu0 %v173
  %253 = vmatprep.subr.bf16.mxu0 0
  %254 = vmatpush1.bf16.msra.mxu0 %v170
  %255 = vmatprep.subr.bf16.mxu0 0
  %256 = vmatpush1.bf16.msra.mxu0 %v167
  %257 = vmatprep.subr.bf16.mxu0 0
  %258 = vmatpush1.bf16.msra.mxu0 %v164
  %259 = vmatprep.subr.bf16.mxu0 0
  %260 = vmatpush1.bf16.msra.mxu0 %v161
  %261 = vmatprep.subr.bf16.mxu0 0
  %262 = vmatpush1.bf16.msra.mxu0 %v158
  %263 = vmatprep.subr.bf16.mxu0 0
  %264 = vmatpush1.bf16.msra.mxu0 %v155
  %265 = vmatprep.subr.bf16.mxu0 0
  %266 = vmatpush1.bf16.msra.mxu0 %v152
  %267 = vmatprep.subr.bf16.mxu0 0
  %268 = vmatpush2.bf16.msra.mxu0 0
  %269 = vmatprep.subr.bf16.mxu0 0
  %270 = vmatpush2.bf16.msra.mxu0 0
  %271 = vmatprep.subr.bf16.mxu0 0
  %272 = vmatpush2.bf16.msra.mxu0 0
  %273 = vmatprep.subr.bf16.mxu0 0
  %274 = vmatpush2.bf16.msra.mxu0 0
  %275 = vmatprep.subr.bf16.mxu0 0
  %276 = vmatpush2.bf16.msra.mxu0 0
  %277 = vmatprep.subr.bf16.mxu0 0
  %278 = vmatpush2.bf16.msra.mxu0 0
  %279 = vmatprep.subr.bf16.mxu0 0
  %280 = vmatpush2.bf16.msra.mxu0 0
  %281 = vmatprep.subr.bf16.mxu0 0
  %282 = vmatpush2.bf16.msra.mxu0 0
  %283 = vmatprep.mubr.bf16.mxu0 0
  %284 = vmatmul.mubr.bf16.gmra.mxu0 %v19
  %v285 = vpop.f32.mrf.mxu0
  %v286 = vadd.f32 %v66, %v285
  %v287 = vpop.f32.mrf.mxu0
  %v288 = vpop.f32.mrf.mxu0
  %v289 = vadd.f32 %v66, %v288
  %v290 = vpop.f32.mrf.mxu0
  %291 = vmatprep.mubr.bf16.mxu0 0
  %292 = vmatmul.mubr.bf16.gmra.mxu0 %v20
  %v293 = vpop.f32.mrf.mxu0
  %v294 = vadd.f32 %v66, %v293
  %v295 = vpop.f32.mrf.mxu0
  %v296 = vpop.f32.mrf.mxu0
  %v297 = vadd.f32 %v66, %v296
  %v298 = vpop.f32.mrf.mxu0
  %299 = vdwg.mxu0
  %v300 = vxor.u32 %v233, 2147483648
  %v301 = vxor.u32 %v237, 2147483648
  %v302 = vxor.u32 %v243, 2147483648
  %v303 = vxor.u32 %v247, 2147483648
  %v304 = vmul.f32 %v300, 1.442695
  %v305 = vpow.pop %v304
  %v306 = vmul.f32 %v301, 1.442695
  %v307 = vpow.pop %v306
  %v308 = vmul.f32 %v302, 1.442695
  %v309 = vpow.pop %v308
  %v310 = vmul.f32 %v303, 1.442695
  %v311 = vpow.pop %v310
  %v312 = vadd.f32 %v305, 1.0
  %v313 = vadd.f32 %v307, 1.0
  %v314 = vadd.f32 %v309, 1.0
  %v315 = vadd.f32 %v311, 1.0
  %v316 = vrcp.pop %v312
  %v317 = vmul.f32 1.0, %v316
  %v318 = vrcp.pop %v313
  %v319 = vmul.f32 1.0, %v318
  %v320 = vrcp.pop %v314
  %v321 = vmul.f32 1.0, %v320
  %v322 = vrcp.pop %v315
  %v323 = vmul.f32 1.0, %v322
  %v324 = vtanh.pop %v235
  %v325 = vtanh.pop %v239
  %v326 = vtanh.pop %v245
  %v327 = vtanh.pop %v249
  %v328 = vmul.f32 %v317, %v324
  %v329 = vmul.f32 %v319, %v325
  %v330 = vmul.f32 %v321, %v326
  %v331 = vmul.f32 %v323, %v327
  %v332 = vsub.f32 1.0, %v317
  %v333 = vsub.f32 1.0, %v319
  %v334 = vsub.f32 1.0, %v321
  %v335 = vsub.f32 1.0, %v323
  %v336 = vmul.f32 %v332, %v286
  %v337 = vmul.f32 %v333, %v289
  %v338 = vmul.f32 %v334, %v294
  %v339 = vmul.f32 %v335, %v297
  %v340 = vadd.f32 %v328, %v336
  %v341 = vadd.f32 %v329, %v337
  %v342 = vadd.f32 %v330, %v338
  %v343 = vadd.f32 %v331, %v339
  %v344 = vpack.c.bf16 %v341, %v340
  %v345 = vpack.c.bf16 %v343, %v342
  %s346 = scalar_lea.vmem %s1, 192
  %v347 = vld [vmem:[%s346] sm:$0xff]
  %v348 = vld [vmem:[%s346 + $0x8] sm:$0xf]
  %v349 = vld [vmem:[%s346 + $0xc] sm:$0xff]
  %v350 = vld [vmem:[%s346 + $0x14] sm:$0xf]
  %v351 = vld [vmem:[%s346 + $0x18] sm:$0xff]
  %v352 = vld [vmem:[%s346 + $0x20] sm:$0xf]
  %v353 = vld [vmem:[%s346 + $0x24] sm:$0xff]
  %v354 = vld [vmem:[%s346 + $0x2c] sm:$0xf]
  %v355 = vld [vmem:[%s346 + $0x30] sm:$0xff]
  %v356 = vld [vmem:[%s346 + $0x38] sm:$0xf]
  %v357 = vld [vmem:[%s346 + $0x3c] sm:$0xff]
  %v358 = vld [vmem:[%s346 + $0x44] sm:$0xf]
  %v359 = vld [vmem:[%s346 + $0x48] sm:$0xff]
  %v360 = vld [vmem:[%s346 + $0x50] sm:$0xf]
  %v361 = vld [vmem:[%s346 + $0x54] sm:$0xff]
  %v362 = vld [vmem:[%s346 + $0x5c] sm:$0xf]
  %v363 = vld [vmem:[%s346 + $0x60] sm:$0xff]
  %v364 = vld [vmem:[%s346 + $0x68] sm:$0xf]
  %v365 = vld [vmem:[%s346 + $0x6c] sm:$0xff]
  %v366 = vld [vmem:[%s346 + $0x74] sm:$0xf]
  %v367 = vld [vmem:[%s346 + $0x78] sm:$0xff]
  %v368 = vld [vmem:[%s346 + $0x80] sm:$0xf]
  %v369 = vld [vmem:[%s346 + $0x84] sm:$0xff]
  %v370 = vld [vmem:[%s346 + $0x8c] sm:$0xf]
  %v371 = vld [vmem:[%s346 + $0x90] sm:$0xff]
  %v372 = vld [vmem:[%s346 + $0x98] sm:$0xf]
  %v373 = vld [vmem:[%s346 + $0x9c] sm:$0xff]
  %v374 = vld [vmem:[%s346 + $0xa4] sm:$0xf]
  %v375 = vld [vmem:[%s346 + $0xa8] sm:$0xff]
  %v376 = vld [vmem:[%s346 + $0xb0] sm:$0xf]
  %v377 = vld [vmem:[%s346 + $0xb4] sm:$0xff]
  %v378 = vld [vmem:[%s346 + $0xbc] sm:$0xf]
  %s379 = scalar_lea.vmem %s2, 3
  %v380 = vld [vmem:[%s379] sm:$0x7]
  %v382 = vlaneseq
  %v383 = vshrl.u32 %v382, 7
  %v384 = vsub.s32 0, %v383
  %v385 = vrot.slane %v380, %v384
  %v386 = vlaneseq
  %v387 = vshrl.u32 %v386, 7
  %v388 = vsub.s32 1, %v387
  %v389 = vrot.slane %v380, %v388
  %v390 = vlaneseq
  %v391 = vshrl.u32 %v390, 7
  %v392 = vsub.s32 2, %v391
  %v393 = vrot.slane %v380, %v392
  %v429 = vunpack.c.l.b16 %v347
  %v430 = vunpack.c.h.b16 %v347
  %v431 = vunpack.c.l.b16 %v348
  %v432 = vunpack.c.l.b16 %v349
  %v433 = vunpack.c.h.b16 %v349
  %v434 = vunpack.c.l.b16 %v350
  %v435 = vunpack.c.l.b16 %v351
  %v436 = vunpack.c.h.b16 %v351
  %v437 = vunpack.c.l.b16 %v352
  %v438 = vunpack.c.l.b16 %v353
  %v439 = vunpack.c.h.b16 %v353
  %v440 = vunpack.c.l.b16 %v354
  %v441 = vunpack.c.l.b16 %v355
  %v442 = vunpack.c.h.b16 %v355
  %v443 = vunpack.c.l.b16 %v356
  %v444 = vunpack.c.l.b16 %v357
  %v445 = vunpack.c.h.b16 %v357
  %v446 = vunpack.c.l.b16 %v358
  %v447 = vunpack.c.l.b16 %v359
  %v448 = vunpack.c.h.b16 %v359
  %v449 = vunpack.c.l.b16 %v360
  %v450 = vunpack.c.l.b16 %v361
  %v451 = vunpack.c.h.b16 %v361
  %v452 = vunpack.c.l.b16 %v362
  %v453 = vunpack.c.l.b16 %v363
  %v454 = vunpack.c.h.b16 %v363
  %v455 = vunpack.c.l.b16 %v364
  %v456 = vunpack.c.l.b16 %v365
  %v457 = vunpack.c.h.b16 %v365
  %v458 = vunpack.c.l.b16 %v366
  %v459 = vunpack.c.l.b16 %v367
  %v460 = vunpack.c.h.b16 %v367
  %v461 = vunpack.c.l.b16 %v368
  %v462 = vunpack.c.l.b16 %v369
  %v463 = vunpack.c.h.b16 %v369
  %v464 = vunpack.c.l.b16 %v370
  %v465 = vunpack.c.l.b16 %v371
  %v466 = vunpack.c.h.b16 %v371
  %v467 = vunpack.c.l.b16 %v372
  %v468 = vunpack.c.l.b16 %v373
  %v469 = vunpack.c.h.b16 %v373
  %v470 = vunpack.c.l.b16 %v374
  %v471 = vunpack.c.l.b16 %v375
  %v472 = vunpack.c.h.b16 %v375
  %v473 = vunpack.c.l.b16 %v376
  %v474 = vunpack.c.l.b16 %v377
  %v475 = vunpack.c.h.b16 %v377
  %v476 = vunpack.c.l.b16 %v378
  %v477 = vpack.c.b16 %v432, %v429
  %v478 = vpack.c.b16 %v433, %v430
  %v479 = vpack.c.b16 %v434, %v431
  %v480 = vpack.c.b16 %v438, %v435
  %v481 = vpack.c.b16 %v439, %v436
  %v482 = vpack.c.b16 %v440, %v437
  %v483 = vpack.c.b16 %v444, %v441
  %v484 = vpack.c.b16 %v445, %v442
  %v485 = vpack.c.b16 %v446, %v443
  %v486 = vpack.c.b16 %v450, %v447
  %v487 = vpack.c.b16 %v451, %v448
  %v488 = vpack.c.b16 %v452, %v449
  %v489 = vpack.c.b16 %v456, %v453
  %v490 = vpack.c.b16 %v457, %v454
  %v491 = vpack.c.b16 %v458, %v455
  %v492 = vpack.c.b16 %v462, %v459
  %v493 = vpack.c.b16 %v463, %v460
  %v494 = vpack.c.b16 %v464, %v461
  %v495 = vpack.c.b16 %v468, %v465
  %v496 = vpack.c.b16 %v469, %v466
  %v497 = vpack.c.b16 %v470, %v467
  %v498 = vpack.c.b16 %v474, %v471
  %v499 = vpack.c.b16 %v475, %v472
  %v500 = vpack.c.b16 %v476, %v473
  %525 = vmatprep.subr.bf16.mxu0 %v499
  %526 = vmatpush1.bf16.msra.mxu0 %v498
  %527 = vmatprep.subr.bf16.mxu0 %v496
  %528 = vmatpush1.bf16.msra.mxu0 %v495
  %529 = vmatprep.subr.bf16.mxu0 %v493
  %530 = vmatpush1.bf16.msra.mxu0 %v492
  %531 = vmatprep.subr.bf16.mxu0 %v490
  %532 = vmatpush1.bf16.msra.mxu0 %v489
  %533 = vmatprep.subr.bf16.mxu0 %v487
  %534 = vmatpush1.bf16.msra.mxu0 %v486
  %535 = vmatprep.subr.bf16.mxu0 %v484
  %536 = vmatpush1.bf16.msra.mxu0 %v483
  %537 = vmatprep.subr.bf16.mxu0 %v481
  %538 = vmatpush1.bf16.msra.mxu0 %v480
  %539 = vmatprep.subr.bf16.mxu0 %v478
  %540 = vmatpush1.bf16.msra.mxu0 %v477
  %541 = vmatprep.subr.bf16.mxu0 0
  %542 = vmatpush2.bf16.msra.mxu0 0
  %543 = vmatprep.subr.bf16.mxu0 0
  %544 = vmatpush2.bf16.msra.mxu0 0
  %545 = vmatprep.subr.bf16.mxu0 0
  %546 = vmatpush2.bf16.msra.mxu0 0
  %547 = vmatprep.subr.bf16.mxu0 0
  %548 = vmatpush2.bf16.msra.mxu0 0
  %549 = vmatprep.subr.bf16.mxu0 0
  %550 = vmatpush2.bf16.msra.mxu0 0
  %551 = vmatprep.subr.bf16.mxu0 0
  %552 = vmatpush2.bf16.msra.mxu0 0
  %553 = vmatprep.subr.bf16.mxu0 0
  %554 = vmatpush2.bf16.msra.mxu0 0
  %555 = vmatprep.subr.bf16.mxu0 0
  %556 = vmatpush2.bf16.msra.mxu0 0
  %557 = vmatprep.mubr.bf16.mxu0 0
  %558 = vmatmul.mubr.bf16.gmra.mxu0 %v344
  %v559 = vpop.f32.mrf.mxu0
  %v560 = vadd.f32 %v385, %v559
  %v561 = vpop.f32.mrf.mxu0
  %v562 = vadd.f32 %v389, %v561
  %v563 = vpop.f32.mrf.mxu0
  %v564 = vadd.f32 %v385, %v563
  %v565 = vpop.f32.mrf.mxu0
  %v566 = vadd.f32 %v389, %v565
  %567 = vmatprep.mubr.bf16.mxu0 0
  %568 = vmatmul.mubr.bf16.gmra.mxu0 %v345
  %v569 = vpop.f32.mrf.mxu0
  %v570 = vadd.f32 %v385, %v569
  %v571 = vpop.f32.mrf.mxu0
  %v572 = vadd.f32 %v389, %v571
  %v573 = vpop.f32.mrf.mxu0
  %v574 = vadd.f32 %v385, %v573
  %v575 = vpop.f32.mrf.mxu0
  %v576 = vadd.f32 %v389, %v575
  %577 = vdwg.mxu0
  %578 = vmatprep.subr.bf16.mxu0 0
  %579 = vmatpush1.bf16.msra.mxu0 %v500
  %580 = vmatprep.subr.bf16.mxu0 0
  %581 = vmatpush1.bf16.msra.mxu0 %v497
  %582 = vmatprep.subr.bf16.mxu0 0
  %583 = vmatpush1.bf16.msra.mxu0 %v494
  %584 = vmatprep.subr.bf16.mxu0 0
  %585 = vmatpush1.bf16.msra.mxu0 %v491
  %586 = vmatprep.subr.bf16.mxu0 0
  %587 = vmatpush1.bf16.msra.mxu0 %v488
  %588 = vmatprep.subr.bf16.mxu0 0
  %589 = vmatpush1.bf16.msra.mxu0 %v485
  %590 = vmatprep.subr.bf16.mxu0 0
  %591 = vmatpush1.bf16.msra.mxu0 %v482
  %592 = vmatprep.subr.bf16.mxu0 0
  %593 = vmatpush1.bf16.msra.mxu0 %v479
  %594 = vmatprep.subr.bf16.mxu0 0
  %595 = vmatpush2.bf16.msra.mxu0 0
  %596 = vmatprep.subr.bf16.mxu0 0
  %597 = vmatpush2.bf16.msra.mxu0 0
  %598 = vmatprep.subr.bf16.mxu0 0
  %599 = vmatpush2.bf16.msra.mxu0 0
  %600 = vmatprep.subr.bf16.mxu0 0
  %601 = vmatpush2.bf16.msra.mxu0 0
  %602 = vmatprep.subr.bf16.mxu0 0
  %603 = vmatpush2.bf16.msra.mxu0 0
  %604 = vmatprep.subr.bf16.mxu0 0
  %605 = vmatpush2.bf16.msra.mxu0 0
  %606 = vmatprep.subr.bf16.mxu0 0
  %607 = vmatpush2.bf16.msra.mxu0 0
  %608 = vmatprep.subr.bf16.mxu0 0
  %609 = vmatpush2.bf16.msra.mxu0 0
  %610 = vmatprep.mubr.bf16.mxu0 0
  %611 = vmatmul.mubr.bf16.gmra.mxu0 %v344
  %v612 = vpop.f32.mrf.mxu0
  %v613 = vadd.f32 %v393, %v612
  %v614 = vpop.f32.mrf.mxu0
  %v615 = vpop.f32.mrf.mxu0
  %v616 = vadd.f32 %v393, %v615
  %v617 = vpop.f32.mrf.mxu0
  %618 = vmatprep.mubr.bf16.mxu0 0
  %619 = vmatmul.mubr.bf16.gmra.mxu0 %v345
  %v620 = vpop.f32.mrf.mxu0
  %v621 = vadd.f32 %v393, %v620
  %v622 = vpop.f32.mrf.mxu0
  %v623 = vpop.f32.mrf.mxu0
  %v624 = vadd.f32 %v393, %v623
  %v625 = vpop.f32.mrf.mxu0
  %626 = vdwg.mxu0
  %v627 = vxor.u32 %v560, 2147483648
  %v628 = vxor.u32 %v564, 2147483648
  %v629 = vxor.u32 %v570, 2147483648
  %v630 = vxor.u32 %v574, 2147483648
  %v631 = vmul.f32 %v627, 1.442695
  %v632 = vpow.pop %v631
  %v633 = vmul.f32 %v628, 1.442695
  %v634 = vpow.pop %v633
  %v635 = vmul.f32 %v629, 1.442695
  %v636 = vpow.pop %v635
  %v637 = vmul.f32 %v630, 1.442695
  %v638 = vpow.pop %v637
  %v639 = vadd.f32 %v632, 1.0
  %v640 = vadd.f32 %v634, 1.0
  %v641 = vadd.f32 %v636, 1.0
  %v642 = vadd.f32 %v638, 1.0
  %v643 = vrcp.pop %v639
  %v644 = vmul.f32 1.0, %v643
  %v645 = vrcp.pop %v640
  %v646 = vmul.f32 1.0, %v645
  %v647 = vrcp.pop %v641
  %v648 = vmul.f32 1.0, %v647
  %v649 = vrcp.pop %v642
  %v650 = vmul.f32 1.0, %v649
  %v651 = vtanh.pop %v562
  %v652 = vtanh.pop %v566
  %v653 = vtanh.pop %v572
  %v654 = vtanh.pop %v576
  %v655 = vmul.f32 %v644, %v651
  %v656 = vmul.f32 %v646, %v652
  %v657 = vmul.f32 %v648, %v653
  %v658 = vmul.f32 %v650, %v654
  %v659 = vsub.f32 1.0, %v644
  %v660 = vsub.f32 1.0, %v646
  %v661 = vsub.f32 1.0, %v648
  %v662 = vsub.f32 1.0, %v650
  %v663 = vmul.f32 %v659, %v613
  %v664 = vmul.f32 %v660, %v616
  %v665 = vmul.f32 %v661, %v621
  %v666 = vmul.f32 %v662, %v624
  %v667 = vadd.f32 %v655, %v663
  %v668 = vadd.f32 %v656, %v664
  %v669 = vadd.f32 %v657, %v665
  %v670 = vadd.f32 %v658, %v666
  %671 = vst [vmem:[%s3] sm:$0xff] %v667
  %672 = vst [vmem:[%s3 + $0x8] sm:$0xff] %v668
  %673 = vst [vmem:[%s3 + $0x10] sm:$0xff] %v669
  %674 = vst [vmem:[%s3 + $0x18] sm:$0xff] %v670
  // Predicated region
  $region14: #{diin_forward.16} parent=0 // pred_check
    _
  $region15: #{diin_forward.16} parent=0 // pred_check_branch
    %676 = sbr.rel (0) target = $region17
  $region16: #{diin_forward.16} parent=0 // pred_region
    _
  $region17: #{diin_forward.16} parent=0 // pred_fallthru
    _
  // Predicated region
  $region18: #{diin_forward.16} parent=0 // pred_check
    _
  $region19: #{diin_forward.16} parent=0 // pred_check_branch
    %678 = sbr.rel (0) target = $region21
  $region20: #{diin_forward.16} parent=0 // pred_region
    _
  $region21: #{diin_forward.16} parent=0 // pred_fallthru
    _

// kernel: diin_forward.19
$region0: #{diin_forward.19}
  #allocation0 [shape = 'u32[]', space=smem, size = 0x4, offset = 0x4, fixed_abs, tag = 'smem constant byte address 0x4 - core index']
  #allocation1 [shape = 'u32[144,128]{1,0:T(1,128)}', space=vmem, size = 0x12000, scoped, tag = 'internal scratch']
  %s0 = inlined_call_operand.vmem [shape: f32[2,8,128], index: 0, kind: input, shape index: {}]
  %s1 = inlined_call_operand.vmem [shape: f32[2,8,128], index: 1, kind: input, shape index: {}]
  %s2 = inlined_call_operand.vmem [shape: bf16[128,128], index: 2, kind: input, shape index: {}]
  %s3 = inlined_call_operand.vmem [shape: f32[1,128], index: 3, kind: input, shape index: {}]
  %s4 = inlined_call_operand.vmem [shape: f32[2,8,8,128], index: 4, kind: output, shape index: {}]
  %s5 = sld [smem:[#allocation0]]
  $region49: #{diin_forward.19} parent=0
    _
  %s7 = ssub.s32 1, %s5
  %s8 = scalar_select 0, %s7, %s5
  loop: start=0, step=1, limit=4
  $region2: #{diin_forward.19} parent=0 // loop_pre_header
    _
  $region3: #{diin_forward.19} parent=0 // loop_header
    %s10 = sphi 0, %s14
    %p11 = scmp.ge.s32.totalorder %s10, 4
    %s17 = sphi 0, %s29
    %s18 = sphi 0, %s25
    %s19 = sphi 0, %s17
    %s20 = sphi 0, %s18
    %s21 = sphi 0, %s19
    %s22 = sphi 0, %s20
    %s34 = sphi 0, %s36
    %s37 = sphi 0, %s34
    %s38 = sphi 0, %s37
    %s54 = sphi 0, %s38
    %s60 = sphi 0, %s62
    %s63 = sphi 0, %s60
    %s64 = sphi 0, %s63
    %s80 = sphi 0, %s64
    %s84 = sphi 0, %s84
    %s86 = sphi 0, %s84
    %s87 = sphi 0, %s86
    %s101 = sphi 0, %s87
    %s105 = sphi 0, %s105
    %s107 = sphi 0, %s105
    %s108 = sphi 0, %s107
    %s122 = sphi 0, %s108
    %s130 = sphi 0, %s132
    %s133 = sphi 0, %s130
    %s134 = sphi 0, %s133
    %s150 = sphi 0, %s134
  $region4: #{diin_forward.19} parent=0 // loop_header_branch
    %13 = sbr.rel (%p11) target = $region8
  $region5: #{diin_forward.19} parent=0 // loop_body
    %s15 = ssub.s32 %s10, 1
    %s16 = ssub.s32 %s10, 2
    %s23 = sadd.s32 1, %s18
    %p24 = scmp.ge.s32.totalorder %s23, 1
    %s25 = scalar_select %p24, 0, %s23
    %s26 = sadd.s32 1, %s17
    %s27 = scalar_select %p24, %s26, %s17
    %p28 = scmp.ge.s32.totalorder %s27, 2
    %s29 = scalar_select %p28, 0, %s27
    %s30 = ssub.s32 %s17, %s29
    %s31 = ssub.s32 %s18, %s25
    %s32 = sor.u32 %s30, %s31
    %p33 = scmp.eq.s32.totalorder %s32, 0
    %s35 = sadd.s32 %s34, 1
    %s36 = scalar_select %p33, %s34, %s35
    %p39 = pneg %p33
    %p40 = scmp.eq.s32.totalorder %s10, 1
    %p41 = por %p39, %p40
    %p42 = scmp.ne.s32.totalorder %s34, %s37
    %p43 = scmp.eq.s32.totalorder %s10, 0
    %p44 = por %p42, %p43
    %p45 = scmp.ne.s32.totalorder %s34, %s37
    %p46 = scmp.eq.s32.totalorder %s15, 1
    %p47 = por %p45, %p46
    %p48 = scmp.ne.s32.totalorder %s37, %s38
    %p49 = scmp.eq.s32.totalorder %s15, 0
    %p50 = por %p48, %p49
    %p51 = scmp.ne.s32.totalorder %s37, %s38
    %p52 = scmp.eq.s32.totalorder %s16, 1
    %p53 = por %p51, %p52
    %p55 = scmp.ne.s32.totalorder %s38, %s54
    %p56 = scmp.eq.s32.totalorder %s16, 0
    %p57 = por %p55, %p56
    %s58 = ssub.s32 %s17, %s29
    %p59 = scmp.eq.s32.totalorder %s58, 0
    %s61 = sadd.s32 %s60, 1
    %s62 = scalar_select %p59, %s60, %s61
    %p65 = pneg %p59
    %p66 = scmp.eq.s32.totalorder %s10, 1
    %p67 = por %p65, %p66
    %p68 = scmp.ne.s32.totalorder %s60, %s63
    %p69 = scmp.eq.s32.totalorder %s10, 0
    %p70 = por %p68, %p69
    %p71 = scmp.ne.s32.totalorder %s60, %s63
    %p72 = scmp.eq.s32.totalorder %s15, 1
    %p73 = por %p71, %p72
    %p74 = scmp.ne.s32.totalorder %s63, %s64
    %p75 = scmp.eq.s32.totalorder %s15, 0
    %p76 = por %p74, %p75
    %p77 = scmp.ne.s32.totalorder %s63, %s64
    %p78 = scmp.eq.s32.totalorder %s16, 1
    %p79 = por %p77, %p78
    %p81 = scmp.ne.s32.totalorder %s64, %s80
    %p82 = scmp.eq.s32.totalorder %s16, 0
    %p83 = por %p81, %p82
    %s85 = sadd.s32 %s84, 1
    %p88 = scmp.eq.s32.totalorder %s10, 1
    %p89 = scmp.ne.s32.totalorder %s84, %s86
    %p90 = scmp.eq.s32.totalorder %s10, 0
    %p91 = por %p89, %p90
    %p92 = scmp.ne.s32.totalorder %s84, %s86
    %p93 = scmp.eq.s32.totalorder %s15, 1
    %p94 = por %p92, %p93
    %p95 = scmp.ne.s32.totalorder %s86, %s87
    %p96 = scmp.eq.s32.totalorder %s15, 0
    %p97 = por %p95, %p96
    %p98 = scmp.ne.s32.totalorder %s86, %s87
    %p99 = scmp.eq.s32.totalorder %s16, 1
    %p100 = por %p98, %p99
    %p102 = scmp.ne.s32.totalorder %s87, %s101
    %p103 = scmp.eq.s32.totalorder %s16, 0
    %p104 = por %p102, %p103
    %s106 = sadd.s32 %s105, 1
    %p109 = scmp.eq.s32.totalorder %s10, 1
    %p110 = scmp.ne.s32.totalorder %s105, %s107
    %p111 = scmp.eq.s32.totalorder %s10, 0
    %p112 = por %p110, %p111
    %p113 = scmp.ne.s32.totalorder %s105, %s107
    %p114 = scmp.eq.s32.totalorder %s15, 1
    %p115 = por %p113, %p114
    %p116 = scmp.ne.s32.totalorder %s107, %s108
    %p117 = scmp.eq.s32.totalorder %s15, 0
    %p118 = por %p116, %p117
    %p119 = scmp.ne.s32.totalorder %s107, %s108
    %p120 = scmp.eq.s32.totalorder %s16, 1
    %p121 = por %p119, %p120
    %p123 = scmp.ne.s32.totalorder %s108, %s122
    %p124 = scmp.eq.s32.totalorder %s16, 0
    %p125 = por %p123, %p124
    %s126 = ssub.s32 %s17, %s29
    %s127 = ssub.s32 %s18, %s25
    %s128 = sor.u32 %s126, %s127
    %p129 = scmp.eq.s32.totalorder %s128, 0
    %s131 = sadd.s32 %s130, 1
    %s132 = scalar_select %p129, %s130, %s131
    %p135 = pneg %p129
    %p136 = scmp.eq.s32.totalorder %s10, 1
    %p137 = por %p135, %p136
    %p138 = scmp.ne.s32.totalorder %s130, %s133
    %p139 = scmp.eq.s32.totalorder %s10, 0
    %p140 = por %p138, %p139
    %p141 = scmp.ne.s32.totalorder %s130, %s133
    %p142 = scmp.eq.s32.totalorder %s15, 1
    %p143 = por %p141, %p142
    %p144 = scmp.ne.s32.totalorder %s133, %s134
    %p145 = scmp.eq.s32.totalorder %s15, 0
    %p146 = por %p144, %p145
    %p147 = scmp.ne.s32.totalorder %s133, %s134
    %p148 = scmp.eq.s32.totalorder %s16, 1
    %p149 = por %p147, %p148
    %p151 = scmp.ne.s32.totalorder %s134, %s150
    %p152 = scmp.eq.s32.totalorder %s16, 0
    %p153 = por %p151, %p152
    %p154 = scmp.le.s32.totalorder 1, %s10
    %p155 = scmp.lt.s32.totalorder %s10, 3
    %p156 = pnand %p154, %p155
    %p157 = pneg %p156
    // Predicated region
    $region9: #{diin_forward.19} parent=5 // pred_check
      _
    $region10: #{diin_forward.19} parent=5 // pred_check_branch
      %159 = sbr.rel (%p156) target = $region12
    $region11: #{diin_forward.19} parent=5 // pred_region
      %s160 = ssub.s32 %s10, 1
      // Predicated region
      $region13: #{diin_forward.19} parent=11 // pred_check
        %p161 = pneg %p97
      $region14: #{diin_forward.19} parent=11 // pred_check_branch
        %163 = sbr.rel (%p161) target = $region16
      $region15: #{diin_forward.19} parent=11 // pred_region
        _
      $region16: #{diin_forward.19} parent=11 // pred_fallthru
        _
      // Predicated region
      $region17: #{diin_forward.19} parent=11 // pred_check
        %p164 = pneg %p118
      $region18: #{diin_forward.19} parent=11 // pred_check_branch
        %166 = sbr.rel (%p164) target = $region20
      $region19: #{diin_forward.19} parent=11 // pred_region
        _
      $region20: #{diin_forward.19} parent=11 // pred_fallthru
        _
    $region12: #{diin_forward.19} parent=5 // pred_fallthru
      _
    %p167 = scmp.lt.s32.totalorder %s10, 2
    // Predicated region
    $region21: #{diin_forward.19} parent=5 // pred_check
      %p168 = pneg %p167
    $region22: #{diin_forward.19} parent=5 // pred_check_branch
      %170 = sbr.rel (%p168) target = $region24
    $region23: #{diin_forward.19} parent=5 // pred_region
      // Predicated region
      $region25: #{diin_forward.19} parent=23 // pred_check
        %p171 = pneg %p44
      $region26: #{diin_forward.19} parent=23 // pred_check_branch
        %173 = sbr.rel (%p171) target = $region28
      $region27: #{diin_forward.19} parent=23 // pred_region
        %p174 = scmp.lt.s32.totalorder %s17, 1
        %s175 = scalar_select %p174, %s17, 1
        %p176 = scmp.lt.s32.totalorder %s18, 0
        %s177 = scalar_select %p176, %s18, 0
        %s178 = sadd.s32 %s177, %s175
        %s179 = smul.addr %s178, 8
        %s180 = scalar_lea.vmem %s0, %s179
      $region28: #{diin_forward.19} parent=23 // pred_fallthru
        _
      // Predicated region
      $region29: #{diin_forward.19} parent=23 // pred_check
        %p181 = pneg %p70
      $region30: #{diin_forward.19} parent=23 // pred_check_branch
        %183 = sbr.rel (%p181) target = $region32
      $region31: #{diin_forward.19} parent=23 // pred_region
        %p184 = scmp.lt.s32.totalorder %s17, 1
        %s185 = scalar_select %p184, %s17, 1
        %s186 = smul.addr %s185, 8
        %s187 = scalar_lea.vmem %s1, %s186
      $region32: #{diin_forward.19} parent=23 // pred_fallthru
        _
    $region24: #{diin_forward.19} parent=5 // pred_fallthru
      _
    %p188 = scmp.le.s32.totalorder 1, %s10
    %p189 = scmp.lt.s32.totalorder %s10, 3
    %p190 = pnand %p188, %p189
    %p191 = pneg %p190
    // Predicated region
    $region33: #{diin_forward.19} parent=5 // pred_check
      _
    $region34: #{diin_forward.19} parent=5 // pred_check_branch
      %193 = sbr.rel (%p190) target = $region36
    $region35: #{diin_forward.19} parent=5 // pred_region
      %s194 = ssub.s32 %s10, 1
      %p195 = scmp.lt.s32.totalorder %s19, 1
      %s196 = scalar_select %p195, %s19, 1
      %p197 = scmp.lt.s32.totalorder %s20, 0
      %s198 = scalar_select %p197, %s20, 0
      %s199 = sadd.s32 %s198, %s196
      %s200 = smul.addr %s199, 8
      %s201 = scalar_lea.vmem %s0, %s200
      %p202 = pneg %p50
      %p203 = pneg %p47
      %p204 = scmp.lt.s32.totalorder %s19, 1
      %s205 = scalar_select %p204, %s19, 1
      %s206 = smul.addr %s205, 8
      %s207 = scalar_lea.vmem %s1, %s206
      %p208 = pneg %p76
      %p209 = pneg %p73
      %p210 = pneg %p97
      %p211 = pneg %p94
      %p212 = pneg %p118
      %p213 = pneg %p115
      %p214 = pneg %p146
      %p215 = pneg %p143
      %s216 = smul.u32 8, %s20
      %p217 = scmp.lt.s32.totalorder %s19, 1
      %s218 = scalar_select %p217, %s19, 1
      %p219 = scmp.lt.s32.totalorder %s216, 7
      %s220 = scalar_select %p219, %s216, 7
      %s221 = smul.addr %s218, 8
      %s222 = sadd.s32 %s220, %s221
      %s223 = smul.addr %s222, 8
      %s224 = scalar_lea.vmem %s4, %s223
      %p225 = scmp.lt.s32.totalorder %s19, 1
      %s226 = scalar_select %p225, %s19, 1
      %p227 = scmp.lt.s32.totalorder %s20, 0
      %s228 = scalar_select %p227, %s20, 0
      %s229 = sadd.s32 %s228, %s226
      %s230 = smul.addr %s229, 8
      %s231 = scalar_lea.vmem %s0, %s230
      %p232 = scmp.lt.s32.totalorder %s19, 1
      %s233 = scalar_select %p232, %s19, 1
      %s234 = smul.addr %s233, 8
      %s235 = scalar_lea.vmem %s1, %s234
      %s236 = smul.u32 8, %s20
      %p237 = scmp.lt.s32.totalorder %s19, 1
      %s238 = scalar_select %p237, %s19, 1
      %p239 = scmp.lt.s32.totalorder %s236, 7
      %s240 = scalar_select %p239, %s236, 7
      %s241 = smul.addr %s238, 8
      %s242 = sadd.s32 %s240, %s241
      %s243 = smul.addr %s242, 8
      %s244 = scalar_lea.vmem %s4, %s243
      %s245 = smul.u32 8, %s20
      %v247 = vld [vmem:[%s231] sm:$0xff]
      %v248 = vld [vmem:[%s235] sm:$0xff]
      %v250 = vcombine.high %v247, %v247
      %v252 = vunpack.c.l.s4 1966171168
      %v253 = vunpack.c.0.s8 %v252
      %v254 = vlaneseq
      %v255 = vshrl.u32 %v254, 7
      %v256 = vsub.s32 %v253, %v255
      %v257 = vrot.slane %v247, %v256
      %v259 = vunpack.c.l.s4 1966171168
      %v260 = vunpack.c.0.s8 %v259
      %v261 = vlaneseq
      %v262 = vshrl.u32 %v261, 7
      %v263 = vsub.s32 %v260, %v262
      %v264 = vrot.slane %v250, %v263
      %v265 = vcombine.high %v257, %v257
      %v266 = vcombine.high %v264, %v264
      %v268 = vunpack.c.l.s4 1966171168
      %v269 = vunpack.c.0.s8 %v268
      %v270 = vlaneseq
      %v271 = vshrl.u32 %v270, 7
      %v272 = vsub.s32 %v269, %v271
      %v273 = vrot.slane %v257, %v272
      %v275 = vunpack.c.l.s4 1966171168
      %v276 = vunpack.c.0.s8 %v275
      %v277 = vlaneseq
      %v278 = vshrl.u32 %v277, 7
      %v279 = vsub.s32 %v276, %v278
      %v280 = vrot.slane %v264, %v279
      %v282 = vunpack.c.l.s4 1966171168
      %v283 = vunpack.c.0.s8 %v282
      %v284 = vlaneseq
      %v285 = vshrl.u32 %v284, 7
      %v286 = vsub.s32 %v283, %v285
      %v287 = vrot.slane %v265, %v286
      %v289 = vunpack.c.l.s4 1966171168
      %v290 = vunpack.c.0.s8 %v289
      %v291 = vlaneseq
      %v292 = vshrl.u32 %v291, 7
      %v293 = vsub.s32 %v290, %v292
      %v294 = vrot.slane %v266, %v293
      %v295 = vcombine.high %v273, %v273
      %v296 = vcombine.high %v280, %v280
      %v297 = vcombine.high %v287, %v287
      %v298 = vcombine.high %v294, %v294
      %v299 = vlaneseq
      %v300 = vshrl.u32 %v299, 7
      %v301 = vsub.s32 0, %v300
      %v302 = vrot.slane %v273, %v301
      %v303 = vlaneseq
      %v304 = vshrl.u32 %v303, 7
      %v305 = vsub.s32 0, %v304
      %v306 = vrot.slane %v287, %v305
      %v307 = vlaneseq
      %v308 = vshrl.u32 %v307, 7
      %v309 = vsub.s32 0, %v308
      %v310 = vrot.slane %v295, %v309
      %v311 = vlaneseq
      %v312 = vshrl.u32 %v311, 7
      %v313 = vsub.s32 0, %v312
      %v314 = vrot.slane %v297, %v313
      %v315 = vlaneseq
      %v316 = vshrl.u32 %v315, 7
      %v317 = vsub.s32 0, %v316
      %v318 = vrot.slane %v280, %v317
      %v319 = vlaneseq
      %v320 = vshrl.u32 %v319, 7
      %v321 = vsub.s32 0, %v320
      %v322 = vrot.slane %v294, %v321
      %v323 = vlaneseq
      %v324 = vshrl.u32 %v323, 7
      %v325 = vsub.s32 0, %v324
      %v326 = vrot.slane %v296, %v325
      %v327 = vlaneseq
      %v328 = vshrl.u32 %v327, 7
      %v329 = vsub.s32 0, %v328
      %v330 = vrot.slane %v298, %v329
      %v339 = vmul.f32 %v302, %v248
      %v340 = vmul.f32 %v306, %v248
      %v341 = vmul.f32 %v310, %v248
      %v342 = vmul.f32 %v314, %v248
      %v343 = vmul.f32 %v318, %v248
      %v344 = vmul.f32 %v322, %v248
      %v345 = vmul.f32 %v326, %v248
      %v346 = vmul.f32 %v330, %v248
      %v347 = vpack.c.bf16 %v340, %v339
      %v348 = vpack.c.bf16 %v342, %v341
      %v349 = vpack.c.bf16 %v344, %v343
      %v350 = vpack.c.bf16 %v346, %v345
      %v351 = vld [vmem:[%s2] sm:$0xf]
      %v352 = vld [vmem:[%s2 + $0x4] sm:$0xf]
      %v353 = vld [vmem:[%s2 + $0x8] sm:$0xf]
      %v354 = vld [vmem:[%s2 + $0xc] sm:$0xf]
      %v355 = vld [vmem:[%s2 + $0x10] sm:$0xf]
      %v356 = vld [vmem:[%s2 + $0x14] sm:$0xf]
      %v357 = vld [vmem:[%s2 + $0x18] sm:$0xf]
      %v358 = vld [vmem:[%s2 + $0x1c] sm:$0xf]
      %v359 = vld [vmem:[%s2 + $0x20] sm:$0xf]
      %v360 = vld [vmem:[%s2 + $0x24] sm:$0xf]
      %v361 = vld [vmem:[%s2 + $0x28] sm:$0xf]
      %v362 = vld [vmem:[%s2 + $0x2c] sm:$0xf]
      %v363 = vld [vmem:[%s2 + $0x30] sm:$0xf]
      %v364 = vld [vmem:[%s2 + $0x34] sm:$0xf]
      %v365 = vld [vmem:[%s2 + $0x38] sm:$0xf]
      %v366 = vld [vmem:[%s2 + $0x3c] sm:$0xf]
      %v367 = vld [vmem:[%s3] sm:$0x1]
      %v369 = vlaneseq
      %v370 = vshrl.u32 %v369, 7
      %v371 = vsub.s32 0, %v370
      %v372 = vrot.slane %v367, %v371
      %v390 = vunpack.c.l.b16 %v351
      %v391 = vunpack.c.l.b16 %v352
      %v392 = vunpack.c.l.b16 %v353
      %v393 = vunpack.c.l.b16 %v354
      %v394 = vunpack.c.l.b16 %v355
      %v395 = vunpack.c.l.b16 %v356
      %v396 = vunpack.c.l.b16 %v357
      %v397 = vunpack.c.l.b16 %v358
      %v398 = vunpack.c.l.b16 %v359
      %v399 = vunpack.c.l.b16 %v360
      %v400 = vunpack.c.l.b16 %v361
      %v401 = vunpack.c.l.b16 %v362
      %v402 = vunpack.c.l.b16 %v363
      %v403 = vunpack.c.l.b16 %v364
      %v404 = vunpack.c.l.b16 %v365
      %v405 = vunpack.c.l.b16 %v366
      %v406 = vpack.c.b16 %v391, %v390
      %v407 = vpack.c.b16 %v393, %v392
      %v408 = vpack.c.b16 %v395, %v394
      %v409 = vpack.c.b16 %v397, %v396
      %v410 = vpack.c.b16 %v399, %v398
      %v411 = vpack.c.b16 %v401, %v400
      %v412 = vpack.c.b16 %v403, %v402
      %v413 = vpack.c.b16 %v405, %v404
      %422 = vmatprep.subr.bf16.mxu0 0
      %423 = vmatpush1.bf16.msra.mxu0 %v413
      %424 = vmatprep.subr.bf16.mxu0 0
      %425 = vmatpush1.bf16.msra.mxu0 %v412
      %426 = vmatprep.subr.bf16.mxu0 0
      %427 = vmatpush1.bf16.msra.mxu0 %v411
      %428 = vmatprep.subr.bf16.mxu0 0
      %429 = vmatpush1.bf16.msra.mxu0 %v410
      %430 = vmatprep.subr.bf16.mxu0 0
      %431 = vmatpush1.bf16.msra.mxu0 %v409
      %432 = vmatprep.subr.bf16.mxu0 0
      %433 = vmatpush1.bf16.msra.mxu0 %v408
      %434 = vmatprep.subr.bf16.mxu0 0
      %435 = vmatpush1.bf16.msra.mxu0 %v407
      %436 = vmatprep.subr.bf16.mxu0 0
      %437 = vmatpush1.bf16.msra.mxu0 %v406
      %438 = vmatprep.subr.bf16.mxu0 0
      %439 = vmatpush2.bf16.msra.mxu0 0
      %440 = vmatprep.subr.bf16.mxu0 0
      %441 = vmatpush2.bf16.msra.mxu0 0
      %442 = vmatprep.subr.bf16.mxu0 0
      %443 = vmatpush2.bf16.msra.mxu0 0
      %444 = vmatprep.subr.bf16.mxu0 0
      %445 = vmatpush2.bf16.msra.mxu0 0
      %446 = vmatprep.subr.bf16.mxu0 0
      %447 = vmatpush2.bf16.msra.mxu0 0
      %448 = vmatprep.subr.bf16.mxu0 0
      %449 = vmatpush2.bf16.msra.mxu0 0
      %450 = vmatprep.subr.bf16.mxu0 0
      %451 = vmatpush2.bf16.msra.mxu0 0
      %452 = vmatprep.subr.bf16.mxu0 0
      %453 = vmatpush2.bf16.msra.mxu0 0
      %454 = vmatprep.mubr.bf16.mxu0 0
      %455 = vmatmul.mubr.bf16.gmra.mxu0 %v347
      %v456 = vpop.f32.mrf.mxu0
      %v457 = vadd.f32 %v372, %v456
      %v458 = vpop.f32.mrf.mxu0
      %v459 = vpop.f32.mrf.mxu0
      %v460 = vadd.f32 %v372, %v459
      %v461 = vpop.f32.mrf.mxu0
      %462 = vmatprep.mubr.bf16.mxu0 0
      %463 = vmatmul.mubr.bf16.gmra.mxu0 %v348
      %v464 = vpop.f32.mrf.mxu0
      %v465 = vadd.f32 %v372, %v464
      %v466 = vpop.f32.mrf.mxu0
      %v467 = vpop.f32.mrf.mxu0
      %v468 = vadd.f32 %v372, %v467
      %v469 = vpop.f32.mrf.mxu0
      %470 = vmatprep.mubr.bf16.mxu0 0
      %471 = vmatmul.mubr.bf16.gmra.mxu0 %v349
      %v472 = vpop.f32.mrf.mxu0
      %v473 = vadd.f32 %v372, %v472
      %v474 = vpop.f32.mrf.mxu0
      %v475 = vpop.f32.mrf.mxu0
      %v476 = vadd.f32 %v372, %v475
      %v477 = vpop.f32.mrf.mxu0
      %478 = vmatprep.mubr.bf16.mxu0 0
      %479 = vmatmul.mubr.bf16.gmra.mxu0 %v350
      %v480 = vpop.f32.mrf.mxu0
      %v481 = vadd.f32 %v372, %v480
      %v482 = vpop.f32.mrf.mxu0
      %v483 = vpop.f32.mrf.mxu0
      %v484 = vadd.f32 %v372, %v483
      %v485 = vpop.f32.mrf.mxu0
      %486 = vdwg.mxu0
      %487 = vst [vmem:[%s244] sm:$0xff] %v457
      %488 = vst [vmem:[%s244 + $0x8] sm:$0xff] %v460
      %489 = vst [vmem:[%s244 + $0x10] sm:$0xff] %v465
      %490 = vst [vmem:[%s244 + $0x18] sm:$0xff] %v468
      %491 = vst [vmem:[%s244 + $0x20] sm:$0xff] %v473
      %492 = vst [vmem:[%s244 + $0x28] sm:$0xff] %v476
      %493 = vst [vmem:[%s244 + $0x30] sm:$0xff] %v481
      %494 = vst [vmem:[%s244 + $0x38] sm:$0xff] %v484
      %s495 = smul.u32 8, %s20
      %p496 = scmp.lt.s32.totalorder %s19, 1
      %s497 = scalar_select %p496, %s19, 1
      %p498 = scmp.lt.s32.totalorder %s495, 7
      %s499 = scalar_select %p498, %s495, 7
      %s500 = smul.addr %s497, 8
      %s501 = sadd.s32 %s499, %s500
      %s502 = smul.addr %s501, 8
      %s503 = scalar_lea.vmem %s4, %s502
      // Predicated region
      $region37: #{diin_forward.19} parent=35 // pred_check
        %p504 = pneg %p143
      $region38: #{diin_forward.19} parent=35 // pred_check_branch
        %506 = sbr.rel (%p504) target = $region40
      $region39: #{diin_forward.19} parent=35 // pred_region
        %s507 = smul.u32 8, %s20
      $region40: #{diin_forward.19} parent=35 // pred_fallthru
        _
    $region36: #{diin_forward.19} parent=5 // pred_fallthru
      _
    %p508 = scmp.le.s32.totalorder 2, %s10
    // Predicated region
    $region41: #{diin_forward.19} parent=5 // pred_check
      %p509 = pneg %p508
    $region42: #{diin_forward.19} parent=5 // pred_check_branch
      %511 = sbr.rel (%p509) target = $region44
    $region43: #{diin_forward.19} parent=5 // pred_region
      %s512 = ssub.s32 %s10, 2
      // Predicated region
      $region45: #{diin_forward.19} parent=43 // pred_check
        %p513 = pneg %p149
      $region46: #{diin_forward.19} parent=43 // pred_check_branch
        %515 = sbr.rel (%p513) target = $region48
      $region47: #{diin_forward.19} parent=43 // pred_region
        %s516 = smul.u32 8, %s22
        %p517 = scmp.lt.s32.totalorder %s21, 1
        %s518 = scalar_select %p517, %s21, 1
        %p519 = scmp.lt.s32.totalorder %s516, 7
        %s520 = scalar_select %p519, %s516, 7
        %s521 = smul.addr %s518, 8
        %s522 = sadd.s32 %s520, %s521
        %s523 = smul.addr %s522, 8
        %s524 = scalar_lea.vmem %s4, %s523
      $region48: #{diin_forward.19} parent=43 // pred_fallthru
        _
    $region44: #{diin_forward.19} parent=5 // pred_fallthru
      _
  $region6: #{diin_forward.19} parent=0 // loop_footer
    %s14 = sadd.s32 1, %s10
  $region7: #{diin_forward.19} parent=0 // loop_footer_branch
    %9 = sbr.rel target = $region3
  $region8: #{diin_forward.19} parent=0 // loop_exit
    _

// kernel: diin_forward.20
$region0: #{diin_forward.20}
  #allocation0 [shape = 'u32[]', space=smem, size = 0x4, offset = 0x4, fixed_abs, tag = 'smem constant byte address 0x4 - core index']
  #allocation1 [shape = 'u32[144,128]{1,0:T(1,128)}', space=vmem, size = 0x12000, scoped, tag = 'internal scratch']
  %s0 = inlined_call_operand.vmem [shape: f32[2,102,16], index: 0, kind: input, shape index: {}]
  %s1 = inlined_call_operand.vmem [shape: bf16[9,16,4], index: 1, kind: input, shape index: {}]
  %s2 = inlined_call_operand.vmem [shape: f32[2,80,4], index: 2, kind: output, shape index: {}]
  %s3 = sld [smem:[#allocation0]]
  $region41: #{diin_forward.20} parent=0
    _
  %s5 = ssub.s32 1, %s3
  %s6 = scalar_select 0, %s5, %s3
  loop: start=0, step=1, limit=4
  $region2: #{diin_forward.20} parent=0 // loop_pre_header
    _
  $region3: #{diin_forward.20} parent=0 // loop_header
    %s8 = sphi 0, %s12
    %p9 = scmp.ge.s32.totalorder %s8, 4
    %s18 = sphi 0, %s20
    %s21 = sphi 0, %s18
    %s22 = sphi 0, %s21
    %s38 = sphi 0, %s22
    %s42 = sphi 0, %s42
    %s44 = sphi 0, %s42
    %s45 = sphi 0, %s44
    %s59 = sphi 0, %s45
    %s65 = sphi 0, %s67
    %s68 = sphi 0, %s65
    %s69 = sphi 0, %s68
    %s85 = sphi 0, %s69
  $region4: #{diin_forward.20} parent=0 // loop_header_branch
    %11 = sbr.rel (%p9) target = $region8
  $region5: #{diin_forward.20} parent=0 // loop_body
    %s13 = ssub.s32 %s8, 1
    %s14 = ssub.s32 %s8, 2
    %s15 = sadd.s32 %s8, 1
    %s16 = ssub.s32 %s8, %s15
    %p17 = scmp.eq.s32.totalorder %s16, 0
    %s19 = sadd.s32 %s18, 1
    %s20 = scalar_select %p17, %s18, %s19
    %p23 = pneg %p17
    %p24 = scmp.eq.s32.totalorder %s8, 1
    %p25 = por %p23, %p24
    %p26 = scmp.ne.s32.totalorder %s18, %s21
    %p27 = scmp.eq.s32.totalorder %s8, 0
    %p28 = por %p26, %p27
    %p29 = scmp.ne.s32.totalorder %s18, %s21
    %p30 = scmp.eq.s32.totalorder %s13, 1
    %p31 = por %p29, %p30
    %p32 = scmp.ne.s32.totalorder %s21, %s22
    %p33 = scmp.eq.s32.totalorder %s13, 0
    %p34 = por %p32, %p33
    %p35 = scmp.ne.s32.totalorder %s21, %s22
    %p36 = scmp.eq.s32.totalorder %s14, 1
    %p37 = por %p35, %p36
    %p39 = scmp.ne.s32.totalorder %s22, %s38
    %p40 = scmp.eq.s32.totalorder %s14, 0
    %p41 = por %p39, %p40
    %s43 = sadd.s32 %s42, 1
    %p46 = scmp.eq.s32.totalorder %s8, 1
    %p47 = scmp.ne.s32.totalorder %s42, %s44
    %p48 = scmp.eq.s32.totalorder %s8, 0
    %p49 = por %p47, %p48
    %p50 = scmp.ne.s32.totalorder %s42, %s44
    %p51 = scmp.eq.s32.totalorder %s13, 1
    %p52 = por %p50, %p51
    %p53 = scmp.ne.s32.totalorder %s44, %s45
    %p54 = scmp.eq.s32.totalorder %s13, 0
    %p55 = por %p53, %p54
    %p56 = scmp.ne.s32.totalorder %s44, %s45
    %p57 = scmp.eq.s32.totalorder %s14, 1
    %p58 = por %p56, %p57
    %p60 = scmp.ne.s32.totalorder %s45, %s59
    %p61 = scmp.eq.s32.totalorder %s14, 0
    %p62 = por %p60, %p61
    %s63 = ssub.s32 %s8, %s15
    %p64 = scmp.eq.s32.totalorder %s63, 0
    %s66 = sadd.s32 %s65, 1
    %s67 = scalar_select %p64, %s65, %s66
    %p70 = pneg %p64
    %p71 = scmp.eq.s32.totalorder %s8, 1
    %p72 = por %p70, %p71
    %p73 = scmp.ne.s32.totalorder %s65, %s68
    %p74 = scmp.eq.s32.totalorder %s8, 0
    %p75 = por %p73, %p74
    %p76 = scmp.ne.s32.totalorder %s65, %s68
    %p77 = scmp.eq.s32.totalorder %s13, 1
    %p78 = por %p76, %p77
    %p79 = scmp.ne.s32.totalorder %s68, %s69
    %p80 = scmp.eq.s32.totalorder %s13, 0
    %p81 = por %p79, %p80
    %p82 = scmp.ne.s32.totalorder %s68, %s69
    %p83 = scmp.eq.s32.totalorder %s14, 1
    %p84 = por %p82, %p83
    %p86 = scmp.ne.s32.totalorder %s69, %s85
    %p87 = scmp.eq.s32.totalorder %s14, 0
    %p88 = por %p86, %p87
    %p89 = scmp.le.s32.totalorder 1, %s8
    %p90 = scmp.lt.s32.totalorder %s8, 3
    %p91 = pnand %p89, %p90
    %p92 = pneg %p91
    // Predicated region
    $region9: #{diin_forward.20} parent=5 // pred_check
      _
    $region10: #{diin_forward.20} parent=5 // pred_check_branch
      %94 = sbr.rel (%p91) target = $region12
    $region11: #{diin_forward.20} parent=5 // pred_region
      %s95 = ssub.s32 %s8, 1
      // Predicated region
      $region13: #{diin_forward.20} parent=11 // pred_check
        %p96 = pneg %p55
      $region14: #{diin_forward.20} parent=11 // pred_check_branch
        %98 = sbr.rel (%p96) target = $region16
      $region15: #{diin_forward.20} parent=11 // pred_region
        _
      $region16: #{diin_forward.20} parent=11 // pred_fallthru
        _
    $region12: #{diin_forward.20} parent=5 // pred_fallthru
      _
    %p99 = scmp.lt.s32.totalorder %s8, 2
    // Predicated region
    $region17: #{diin_forward.20} parent=5 // pred_check
      %p100 = pneg %p99
    $region18: #{diin_forward.20} parent=5 // pred_check_branch
      %102 = sbr.rel (%p100) target = $region20
    $region19: #{diin_forward.20} parent=5 // pred_region
      // Predicated region
      $region21: #{diin_forward.20} parent=19 // pred_check
        %p103 = pneg %p28
      $region22: #{diin_forward.20} parent=19 // pred_check_branch
        %105 = sbr.rel (%p103) target = $region24
      $region23: #{diin_forward.20} parent=19 // pred_region
        %p106 = scmp.lt.s32.totalorder %s8, 1
        %s107 = scalar_select %p106, %s8, 1
        %s108 = smul.addr %s107, 13
        %s109 = smul.addr %s108, 8
        %s110 = scalar_lea.vmem %s0, %s109
      $region24: #{diin_forward.20} parent=19 // pred_fallthru
        _
    $region20: #{diin_forward.20} parent=5 // pred_fallthru
      _
    %p111 = scmp.le.s32.totalorder 1, %s8
    %p112 = scmp.lt.s32.totalorder %s8, 3
    %p113 = pnand %p111, %p112
    %p114 = pneg %p113
    // Predicated region
    $region25: #{diin_forward.20} parent=5 // pred_check
      _
    $region26: #{diin_forward.20} parent=5 // pred_check_branch
      %116 = sbr.rel (%p113) target = $region28
    $region27: #{diin_forward.20} parent=5 // pred_region
      %s117 = ssub.s32 %s8, 1
      %p118 = scmp.lt.s32.totalorder %s13, 1
      %s119 = scalar_select %p118, %s13, 1
      %s120 = smul.addr %s119, 13
      %s121 = smul.addr %s120, 8
      %s122 = scalar_lea.vmem %s0, %s121
      %p123 = pneg %p34
      %p124 = pneg %p31
      %p125 = pneg %p55
      %p126 = pneg %p52
      %p127 = pneg %p81
      %p128 = pneg %p78
      %p129 = scmp.lt.s32.totalorder %s13, 1
      %s130 = scalar_select %p129, %s13, 1
      %s131 = smul.addr %s130, 10
      %s132 = smul.addr %s131, 8
      %s133 = scalar_lea.vmem %s2, %s132
      %p134 = scmp.lt.s32.totalorder %s13, 1
      %s135 = scalar_select %p134, %s13, 1
      %s136 = smul.addr %s135, 13
      %s137 = smul.addr %s136, 8
      %s138 = scalar_lea.vmem %s0, %s137
      %p139 = scmp.lt.s32.totalorder %s13, 1
      %s140 = scalar_select %p139, %s13, 1
      %s141 = smul.addr %s140, 10
      %s142 = smul.addr %s141, 8
      %s143 = scalar_lea.vmem %s2, %s142
      %v145 = vld [vmem:[%s138] sm:$0xff]
      %v146 = vld [vmem:[%s138 + $0x8] sm:$0xff]
      %v147 = vld [vmem:[%s138 + $0x10] sm:$0xff]
      %v148 = vld [vmem:[%s138 + $0x18] sm:$0xff]
      %v149 = vld [vmem:[%s138 + $0x20] sm:$0xff]
      %v150 = vld [vmem:[%s138 + $0x28] sm:$0xff]
      %v151 = vld [vmem:[%s138 + $0x30] sm:$0xff]
      %v152 = vld [vmem:[%s138 + $0x38] sm:$0xff]
      %v153 = vld [vmem:[%s138 + $0x40] sm:$0xff]
      %v154 = vld [vmem:[%s138 + $0x48] sm:$0xff]
      %v155 = vpack.c.bf16 %v146, %v145
      %v156 = vpack.c.bf16 %v148, %v147
      %v157 = vpack.c.bf16 %v150, %v149
      %v158 = vpack.c.bf16 %v152, %v151
      %v159 = vpack.c.bf16 %v154, %v153
      %v160 = vld [vmem:[%s1] sm:$0xf]
      %v161 = vld [vmem:[%s1 + $0x4] sm:$0xf]
      %v162 = vld [vmem:[%s138 + $0x1] sm:$0xff]
      %v163 = vld [vmem:[%s138 + $0x9] sm:$0xff]
      %v164 = vld [vmem:[%s138 + $0x11] sm:$0xff]
      %v165 = vld [vmem:[%s138 + $0x19] sm:$0xff]
      %v166 = vld [vmem:[%s138 + $0x21] sm:$0xff]
      %v167 = vld [vmem:[%s138 + $0x29] sm:$0xff]
      %v168 = vld [vmem:[%s138 + $0x31] sm:$0xff]
      %v169 = vld [vmem:[%s138 + $0x39] sm:$0xff]
      %v170 = vld [vmem:[%s138 + $0x41] sm:$0xff]
      %v171 = vld [vmem:[%s138 + $0x49] sm:$0xff]
      %v172 = vpack.c.bf16 %v163, %v162
      %v173 = vpack.c.bf16 %v165, %v164
      %v174 = vpack.c.bf16 %v167, %v166
      %v175 = vpack.c.bf16 %v169, %v168
      %v176 = vpack.c.bf16 %v171, %v170
      %s177 = scalar_lea.vmem %s1, 8
      %v178 = vld [vmem:[%s177] sm:$0xf]
      %v179 = vld [vmem:[%s177 + $0x4] sm:$0xf]
      %v182 = vunpack.c.l.b16 %v178
      %v183 = vunpack.c.l.b16 %v179
      %v184 = vpack.c.b16 %v183, %v182
      %vm186 = vcmask 130048
      %v188 = vsel %vm186, %v172, 0
      %v191 = vsel %vm186, %v173, 0
      %v194 = vsel %vm186, %v174, 0
      %v197 = vsel %vm186, %v175, 0
      %v200 = vsel %vm186, %v176, 0
      %202 = vmatprep.subr.bf16.mxu0 0
      %203 = vmatpush1.bf16.msra.mxu0 0
      %204 = vmatprep.subr.bf16.mxu0 0
      %205 = vmatpush1.bf16.msra.mxu0 0
      %206 = vmatprep.subr.bf16.mxu0 0
      %207 = vmatpush1.bf16.msra.mxu0 0
      %208 = vmatprep.subr.bf16.mxu0 0
      %209 = vmatpush1.bf16.msra.mxu0 0
      %210 = vmatprep.subr.bf16.mxu0 0
      %211 = vmatpush1.bf16.msra.mxu0 0
      %212 = vmatprep.subr.bf16.mxu0 0
      %213 = vmatpush1.bf16.msra.mxu0 0
      %214 = vmatprep.subr.bf16.mxu0 0
      %215 = vmatpush1.bf16.msra.mxu0 0
      %216 = vmatprep.subr.bf16.mxu0 0
      %217 = vmatpush1.bf16.msra.mxu0 %v184
      %218 = vmatprep.subr.bf16.mxu0 0
      %219 = vmatpush2.bf16.msra.mxu0 0
      %220 = vmatprep.subr.bf16.mxu0 0
      %221 = vmatpush2.bf16.msra.mxu0 0
      %222 = vmatprep.subr.bf16.mxu0 0
      %223 = vmatpush2.bf16.msra.mxu0 0
      %224 = vmatprep.subr.bf16.mxu0 0
      %225 = vmatpush2.bf16.msra.mxu0 0
      %226 = vmatprep.subr.bf16.mxu0 0
      %227 = vmatpush2.bf16.msra.mxu0 0
      %228 = vmatprep.subr.bf16.mxu0 0
      %229 = vmatpush2.bf16.msra.mxu0 0
      %230 = vmatprep.subr.bf16.mxu0 0
      %231 = vmatpush2.bf16.msra.mxu0 0
      %232 = vmatprep.subr.bf16.mxu0 0
      %233 = vmatpush2.bf16.msra.mxu0 0
      %234 = vmatprep.mubr.bf16.mxu0 0
      %235 = vmatmul.mubr.bf16.gmra.mxu0 %v188
      %v236 = vpop.f32.mrf.mxu0
      %v237 = vadd.f32 0.0, %v236
      %v238 = vpop.f32.mrf.mxu0
      %v239 = vpop.f32.mrf.mxu0
      %v240 = vadd.f32 0.0, %v239
      %v241 = vpop.f32.mrf.mxu0
      %242 = vmatprep.mubr.bf16.mxu0 0
      %243 = vmatmul.mubr.bf16.gmra.mxu0 %v191
      %v244 = vpop.f32.mrf.mxu0
      %v245 = vadd.f32 0.0, %v244
      %v246 = vpop.f32.mrf.mxu0
      %v247 = vpop.f32.mrf.mxu0
      %v248 = vadd.f32 0.0, %v247
      %v249 = vpop.f32.mrf.mxu0
      %250 = vmatprep.mubr.bf16.mxu0 0
      %251 = vmatmul.mubr.bf16.gmra.mxu0 %v194
      %v252 = vpop.f32.mrf.mxu0
      %v253 = vadd.f32 0.0, %v252
      %v254 = vpop.f32.mrf.mxu0
      %v255 = vpop.f32.mrf.mxu0
      %v256 = vadd.f32 0.0, %v255
      %v257 = vpop.f32.mrf.mxu0
      %258 = vmatprep.mubr.bf16.mxu0 0
      %259 = vmatmul.mubr.bf16.gmra.mxu0 %v197
      %v260 = vpop.f32.mrf.mxu0
      %v261 = vadd.f32 0.0, %v260
      %v262 = vpop.f32.mrf.mxu0
      %v263 = vpop.f32.mrf.mxu0
      %v264 = vadd.f32 0.0, %v263
      %v265 = vpop.f32.mrf.mxu0
      %266 = vmatprep.mubr.bf16.mxu0 0
      %267 = vmatmul.mubr.bf16.gmra.mxu0 %v200
      %v268 = vpop.f32.mrf.mxu0
      %v269 = vadd.f32 0.0, %v268
      %v270 = vpop.f32.mrf.mxu0
      %v271 = vpop.f32.mrf.mxu0
      %v272 = vadd.f32 0.0, %v271
      %v273 = vpop.f32.mrf.mxu0
      %274 = vdwg.mxu0
      %v277 = vunpack.c.l.b16 %v160
      %v278 = vunpack.c.l.b16 %v161
      %v279 = vpack.c.b16 %v278, %v277
      %v282 = vsel %vm186, %v155, 0
      %v285 = vsel %vm186, %v156, 0
      %v288 = vsel %vm186, %v157, 0
      %v291 = vsel %vm186, %v158, 0
      %v294 = vsel %vm186, %v159, 0
      %296 = vmatprep.subr.bf16.mxu0 0
      %297 = vmatpush1.bf16.msra.mxu0 0
      %298 = vmatprep.subr.bf16.mxu0 0
      %299 = vmatpush1.bf16.msra.mxu0 0
      %300 = vmatprep.subr.bf16.mxu0 0
      %301 = vmatpush1.bf16.msra.mxu0 0
      %302 = vmatprep.subr.bf16.mxu0 0
      %303 = vmatpush1.bf16.msra.mxu0 0
      %304 = vmatprep.subr.bf16.mxu0 0
      %305 = vmatpush1.bf16.msra.mxu0 0
      %306 = vmatprep.subr.bf16.mxu0 0
      %307 = vmatpush1.bf16.msra.mxu0 0
      %308 = vmatprep.subr.bf16.mxu0 0
      %309 = vmatpush1.bf16.msra.mxu0 0
      %310 = vmatprep.subr.bf16.mxu0 0
      %311 = vmatpush1.bf16.msra.mxu0 %v279
      %312 = vmatprep.subr.bf16.mxu0 0
      %313 = vmatpush2.bf16.msra.mxu0 0
      %314 = vmatprep.subr.bf16.mxu0 0
      %315 = vmatpush2.bf16.msra.mxu0 0
      %316 = vmatprep.subr.bf16.mxu0 0
      %317 = vmatpush2.bf16.msra.mxu0 0
      %318 = vmatprep.subr.bf16.mxu0 0
      %319 = vmatpush2.bf16.msra.mxu0 0
      %320 = vmatprep.subr.bf16.mxu0 0
      %321 = vmatpush2.bf16.msra.mxu0 0
      %322 = vmatprep.subr.bf16.mxu0 0
      %323 = vmatpush2.bf16.msra.mxu0 0
      %324 = vmatprep.subr.bf16.mxu0 0
      %325 = vmatpush2.bf16.msra.mxu0 0
      %326 = vmatprep.subr.bf16.mxu0 0
      %327 = vmatpush2.bf16.msra.mxu0 0
      %328 = vmatprep.mubr.bf16.mxu0 0
      %329 = vmatmul.mubr.bf16.gmra.mxu0 %v282
      %v330 = vpop.f32.mrf.mxu0
      %v331 = vadd.f32 %v237, %v330
      %v332 = vpop.f32.mrf.mxu0
      %v333 = vpop.f32.mrf.mxu0
      %v334 = vadd.f32 %v240, %v333
      %v335 = vpop.f32.mrf.mxu0
      %336 = vmatprep.mubr.bf16.mxu0 0
      %337 = vmatmul.mubr.bf16.gmra.mxu0 %v285
      %v338 = vpop.f32.mrf.mxu0
      %v339 = vadd.f32 %v245, %v338
      %v340 = vpop.f32.mrf.mxu0
      %v341 = vpop.f32.mrf.mxu0
      %v342 = vadd.f32 %v248, %v341
      %v343 = vpop.f32.mrf.mxu0
      %344 = vmatprep.mubr.bf16.mxu0 0
      %345 = vmatmul.mubr.bf16.gmra.mxu0 %v288
      %v346 = vpop.f32.mrf.mxu0
      %v347 = vadd.f32 %v253, %v346
      %v348 = vpop.f32.mrf.mxu0
      %v349 = vpop.f32.mrf.mxu0
      %v350 = vadd.f32 %v256, %v349
      %v351 = vpop.f32.mrf.mxu0
      %352 = vmatprep.mubr.bf16.mxu0 0
      %353 = vmatmul.mubr.bf16.gmra.mxu0 %v291
      %v354 = vpop.f32.mrf.mxu0
      %v355 = vadd.f32 %v261, %v354
      %v356 = vpop.f32.mrf.mxu0
      %v357 = vpop.f32.mrf.mxu0
      %v358 = vadd.f32 %v264, %v357
      %v359 = vpop.f32.mrf.mxu0
      %360 = vmatprep.mubr.bf16.mxu0 0
      %361 = vmatmul.mubr.bf16.gmra.mxu0 %v294
      %v362 = vpop.f32.mrf.mxu0
      %v363 = vadd.f32 %v269, %v362
      %v364 = vpop.f32.mrf.mxu0
      %v365 = vpop.f32.mrf.mxu0
      %v366 = vadd.f32 %v272, %v365
      %v367 = vpop.f32.mrf.mxu0
      %368 = vdwg.mxu0
      %v369 = vld [vmem:[%s138 + $0x2] sm:$0xff]
      %v370 = vld [vmem:[%s138 + $0xa] sm:$0xff]
      %v371 = vld [vmem:[%s138 + $0x12] sm:$0xff]
      %v372 = vld [vmem:[%s138 + $0x1a] sm:$0xff]
      %v373 = vld [vmem:[%s138 + $0x22] sm:$0xff]
      %v374 = vld [vmem:[%s138 + $0x2a] sm:$0xff]
      %v375 = vld [vmem:[%s138 + $0x32] sm:$0xff]
      %v376 = vld [vmem:[%s138 + $0x3a] sm:$0xff]
      %v377 = vld [vmem:[%s138 + $0x42] sm:$0xff]
      %v378 = vld [vmem:[%s138 + $0x4a] sm:$0xff]
      %v379 = vpack.c.bf16 %v370, %v369
      %v380 = vpack.c.bf16 %v372, %v371
      %v381 = vpack.c.bf16 %v374, %v373
      %v382 = vpack.c.bf16 %v376, %v375
      %v383 = vpack.c.bf16 %v378, %v377
      %s384 = scalar_lea.vmem %s1, 16
      %v385 = vld [vmem:[%s384] sm:$0xf]
      %v386 = vld [vmem:[%s384 + $0x4] sm:$0xf]
      %v389 = vunpack.c.l.b16 %v385
      %v390 = vunpack.c.l.b16 %v386
      %v391 = vpack.c.b16 %v390, %v389
      %v394 = vsel %vm186, %v379, 0
      %v397 = vsel %vm186, %v380, 0
      %v400 = vsel %vm186, %v381, 0
      %v403 = vsel %vm186, %v382, 0
      %v406 = vsel %vm186, %v383, 0
      %408 = vmatprep.subr.bf16.mxu0 0
      %409 = vmatpush1.bf16.msra.mxu0 0
      %410 = vmatprep.subr.bf16.mxu0 0
      %411 = vmatpush1.bf16.msra.mxu0 0
      %412 = vmatprep.subr.bf16.mxu0 0
      %413 = vmatpush1.bf16.msra.mxu0 0
      %414 = vmatprep.subr.bf16.mxu0 0
      %415 = vmatpush1.bf16.msra.mxu0 0
      %416 = vmatprep.subr.bf16.mxu0 0
      %417 = vmatpush1.bf16.msra.mxu0 0
      %418 = vmatprep.subr.bf16.mxu0 0
      %419 = vmatpush1.bf16.msra.mxu0 0
      %420 = vmatprep.subr.bf16.mxu0 0
      %421 = vmatpush1.bf16.msra.mxu0 0
      %422 = vmatprep.subr.bf16.mxu0 0
      %423 = vmatpush1.bf16.msra.mxu0 %v391
      %424 = vmatprep.subr.bf16.mxu0 0
      %425 = vmatpush2.bf16.msra.mxu0 0
      %426 = vmatprep.subr.bf16.mxu0 0
      %427 = vmatpush2.bf16.msra.mxu0 0
      %428 = vmatprep.subr.bf16.mxu0 0
      %429 = vmatpush2.bf16.msra.mxu0 0
      %430 = vmatprep.subr.bf16.mxu0 0
      %431 = vmatpush2.bf16.msra.mxu0 0
      %432 = vmatprep.subr.bf16.mxu0 0
      %433 = vmatpush2.bf16.msra.mxu0 0
      %434 = vmatprep.subr.bf16.mxu0 0
      %435 = vmatpush2.bf16.msra.mxu0 0
      %436 = vmatprep.subr.bf16.mxu0 0
      %437 = vmatpush2.bf16.msra.mxu0 0
      %438 = vmatprep.subr.bf16.mxu0 0
      %439 = vmatpush2.bf16.msra.mxu0 0
      %440 = vmatprep.mubr.bf16.mxu0 0
      %441 = vmatmul.mubr.bf16.gmra.mxu0 %v394
      %v442 = vpop.f32.mrf.mxu0
      %v443 = vadd.f32 0.0, %v442
      %v444 = vpop.f32.mrf.mxu0
      %v445 = vpop.f32.mrf.mxu0
      %v446 = vadd.f32 0.0, %v445
      %v447 = vpop.f32.mrf.mxu0
      %448 = vmatprep.mubr.bf16.mxu0 0
      %449 = vmatmul.mubr.bf16.gmra.mxu0 %v397
      %v450 = vpop.f32.mrf.mxu0
      %v451 = vadd.f32 0.0, %v450
      %v452 = vpop.f32.mrf.mxu0
      %v453 = vpop.f32.mrf.mxu0
      %v454 = vadd.f32 0.0, %v453
      %v455 = vpop.f32.mrf.mxu0
      %456 = vmatprep.mubr.bf16.mxu0 0
      %457 = vmatmul.mubr.bf16.gmra.mxu0 %v400
      %v458 = vpop.f32.mrf.mxu0
      %v459 = vadd.f32 0.0, %v458
      %v460 = vpop.f32.mrf.mxu0
      %v461 = vpop.f32.mrf.mxu0
      %v462 = vadd.f32 0.0, %v461
      %v463 = vpop.f32.mrf.mxu0
      %464 = vmatprep.mubr.bf16.mxu0 0
      %465 = vmatmul.mubr.bf16.gmra.mxu0 %v403
      %v466 = vpop.f32.mrf.mxu0
      %v467 = vadd.f32 0.0, %v466
      %v468 = vpop.f32.mrf.mxu0
      %v469 = vpop.f32.mrf.mxu0
      %v470 = vadd.f32 0.0, %v469
      %v471 = vpop.f32.mrf.mxu0
      %472 = vmatprep.mubr.bf16.mxu0 0
      %473 = vmatmul.mubr.bf16.gmra.mxu0 %v406
      %v474 = vpop.f32.mrf.mxu0
      %v475 = vadd.f32 0.0, %v474
      %v476 = vpop.f32.mrf.mxu0
      %v477 = vpop.f32.mrf.mxu0
      %v478 = vadd.f32 0.0, %v477
      %v479 = vpop.f32.mrf.mxu0
      %480 = vdwg.mxu0
      %v481 = vadd.f32 %v331, %v443
      %v482 = vadd.f32 %v334, %v446
      %v483 = vadd.f32 %v339, %v451
      %v484 = vadd.f32 %v342, %v454
      %v485 = vadd.f32 %v347, %v459
      %v486 = vadd.f32 %v350, %v462
      %v487 = vadd.f32 %v355, %v467
      %v488 = vadd.f32 %v358, %v470
      %v489 = vadd.f32 %v363, %v475
      %v490 = vadd.f32 %v366, %v478
      %v491 = vld [vmem:[%s138 + $0xa] sm:$0xff]
      %v492 = vld [vmem:[%s138 + $0x12] sm:$0xff]
      %v493 = vld [vmem:[%s138 + $0x1a] sm:$0xff]
      %v494 = vld [vmem:[%s138 + $0x22] sm:$0xff]
      %v495 = vld [vmem:[%s138 + $0x2a] sm:$0xff]
      %v496 = vld [vmem:[%s138 + $0x32] sm:$0xff]
      %v497 = vld [vmem:[%s138 + $0x3a] sm:$0xff]
      %v498 = vld [vmem:[%s138 + $0x42] sm:$0xff]
      %v499 = vld [vmem:[%s138 + $0x4a] sm:$0xff]
      %v500 = vld [vmem:[%s138 + $0x52] sm:$0xff]
      %v501 = vpack.c.bf16 %v492, %v491
      %v502 = vpack.c.bf16 %v494, %v493
      %v503 = vpack.c.bf16 %v496, %v495
      %v504 = vpack.c.bf16 %v498, %v497
      %v505 = vpack.c.bf16 %v500, %v499
      %s506 = scalar_lea.vmem %s1, 24
      %v507 = vld [vmem:[%s506] sm:$0xf]
      %v508 = vld [vmem:[%s506 + $0x4] sm:$0xf]
      %v511 = vunpack.c.l.b16 %v507
      %v512 = vunpack.c.l.b16 %v508
      %v513 = vpack.c.b16 %v512, %v511
      %v516 = vsel %vm186, %v501, 0
      %v519 = vsel %vm186, %v502, 0
      %v522 = vsel %vm186, %v503, 0
      %v525 = vsel %vm186, %v504, 0
      %v528 = vsel %vm186, %v505, 0
      %530 = vmatprep.subr.bf16.mxu0 0
      %531 = vmatpush1.bf16.msra.mxu0 0
      %532 = vmatprep.subr.bf16.mxu0 0
      %533 = vmatpush1.bf16.msra.mxu0 0
      %534 = vmatprep.subr.bf16.mxu0 0
      %535 = vmatpush1.bf16.msra.mxu0 0
      %536 = vmatprep.subr.bf16.mxu0 0
      %537 = vmatpush1.bf16.msra.mxu0 0
      %538 = vmatprep.subr.bf16.mxu0 0
      %539 = vmatpush1.bf16.msra.mxu0 0
      %540 = vmatprep.subr.bf16.mxu0 0
      %541 = vmatpush1.bf16.msra.mxu0 0
      %542 = vmatprep.subr.bf16.mxu0 0
      %543 = vmatpush1.bf16.msra.mxu0 0
      %544 = vmatprep.subr.bf16.mxu0 0
      %545 = vmatpush1.bf16.msra.mxu0 %v513
      %546 = vmatprep.subr.bf16.mxu0 0
      %547 = vmatpush2.bf16.msra.mxu0 0
      %548 = vmatprep.subr.bf16.mxu0 0
      %549 = vmatpush2.bf16.msra.mxu0 0
      %550 = vmatprep.subr.bf16.mxu0 0
      %551 = vmatpush2.bf16.msra.mxu0 0
      %552 = vmatprep.subr.bf16.mxu0 0
      %553 = vmatpush2.bf16.msra.mxu0 0
      %554 = vmatprep.subr.bf16.mxu0 0
      %555 = vmatpush2.bf16.msra.mxu0 0
      %556 = vmatprep.subr.bf16.mxu0 0
      %557 = vmatpush2.bf16.msra.mxu0 0
      %558 = vmatprep.subr.bf16.mxu0 0
      %559 = vmatpush2.bf16.msra.mxu0 0
      %560 = vmatprep.subr.bf16.mxu0 0
      %561 = vmatpush2.bf16.msra.mxu0 0
      %562 = vmatprep.mubr.bf16.mxu0 0
      %563 = vmatmul.mubr.bf16.gmra.mxu0 %v516
      %v564 = vpop.f32.mrf.mxu0
      %v565 = vadd.f32 0.0, %v564
      %v566 = vpop.f32.mrf.mxu0
      %v567 = vpop.f32.mrf.mxu0
      %v568 = vadd.f32 0.0, %v567
      %v569 = vpop.f32.mrf.mxu0
      %570 = vmatprep.mubr.bf16.mxu0 0
      %571 = vmatmul.mubr.bf16.gmra.mxu0 %v519
      %v572 = vpop.f32.mrf.mxu0
      %v573 = vadd.f32 0.0, %v572
      %v574 = vpop.f32.mrf.mxu0
      %v575 = vpop.f32.mrf.mxu0
      %v576 = vadd.f32 0.0, %v575
      %v577 = vpop.f32.mrf.mxu0
      %578 = vmatprep.mubr.bf16.mxu0 0
      %579 = vmatmul.mubr.bf16.gmra.mxu0 %v522
      %v580 = vpop.f32.mrf.mxu0
      %v581 = vadd.f32 0.0, %v580
      %v582 = vpop.f32.mrf.mxu0
      %v583 = vpop.f32.mrf.mxu0
      %v584 = vadd.f32 0.0, %v583
      %v585 = vpop.f32.mrf.mxu0
      %586 = vmatprep.mubr.bf16.mxu0 0
      %587 = vmatmul.mubr.bf16.gmra.mxu0 %v525
      %v588 = vpop.f32.mrf.mxu0
      %v589 = vadd.f32 0.0, %v588
      %v590 = vpop.f32.mrf.mxu0
      %v591 = vpop.f32.mrf.mxu0
      %v592 = vadd.f32 0.0, %v591
      %v593 = vpop.f32.mrf.mxu0
      %594 = vmatprep.mubr.bf16.mxu0 0
      %595 = vmatmul.mubr.bf16.gmra.mxu0 %v528
      %v596 = vpop.f32.mrf.mxu0
      %v597 = vadd.f32 0.0, %v596
      %v598 = vpop.f32.mrf.mxu0
      %v599 = vpop.f32.mrf.mxu0
      %v600 = vadd.f32 0.0, %v599
      %v601 = vpop.f32.mrf.mxu0
      %602 = vdwg.mxu0
      %v603 = vadd.f32 %v481, %v565
      %v604 = vadd.f32 %v482, %v568
      %v605 = vadd.f32 %v483, %v573
      %v606 = vadd.f32 %v484, %v576
      %v607 = vadd.f32 %v485, %v581
      %v608 = vadd.f32 %v486, %v584
      %v609 = vadd.f32 %v487, %v589
      %v610 = vadd.f32 %v488, %v592
      %v611 = vadd.f32 %v489, %v597
      %v612 = vadd.f32 %v490, %v600
      %v613 = vld [vmem:[%s138 + $0xb] sm:$0xff]
      %v614 = vld [vmem:[%s138 + $0x13] sm:$0xff]
      %v615 = vld [vmem:[%s138 + $0x1b] sm:$0xff]
      %v616 = vld [vmem:[%s138 + $0x23] sm:$0xff]
      %v617 = vld [vmem:[%s138 + $0x2b] sm:$0xff]
      %v618 = vld [vmem:[%s138 + $0x33] sm:$0xff]
      %v619 = vld [vmem:[%s138 + $0x3b] sm:$0xff]
      %v620 = vld [vmem:[%s138 + $0x43] sm:$0xff]
      %v621 = vld [vmem:[%s138 + $0x4b] sm:$0xff]
      %v622 = vld [vmem:[%s138 + $0x53] sm:$0xff]
      %v623 = vpack.c.bf16 %v614, %v613
      %v624 = vpack.c.bf16 %v616, %v615
      %v625 = vpack.c.bf16 %v618, %v617
      %v626 = vpack.c.bf16 %v620, %v619
      %v627 = vpack.c.bf16 %v622, %v621
      %s628 = scalar_lea.vmem %s1, 32
      %v629 = vld [vmem:[%s628] sm:$0xf]
      %v630 = vld [vmem:[%s628 + $0x4] sm:$0xf]
      %v633 = vunpack.c.l.b16 %v629
      %v634 = vunpack.c.l.b16 %v630
      %v635 = vpack.c.b16 %v634, %v633
      %v638 = vsel %vm186, %v623, 0
      %v641 = vsel %vm186, %v624, 0
      %v644 = vsel %vm186, %v625, 0
      %v647 = vsel %vm186, %v626, 0
      %v650 = vsel %vm186, %v627, 0
      %652 = vmatprep.subr.bf16.mxu0 0
      %653 = vmatpush1.bf16.msra.mxu0 0
      %654 = vmatprep.subr.bf16.mxu0 0
      %655 = vmatpush1.bf16.msra.mxu0 0
      %656 = vmatprep.subr.bf16.mxu0 0
      %657 = vmatpush1.bf16.msra.mxu0 0
      %658 = vmatprep.subr.bf16.mxu0 0
      %659 = vmatpush1.bf16.msra.mxu0 0
      %660 = vmatprep.subr.bf16.mxu0 0
      %661 = vmatpush1.bf16.msra.mxu0 0
      %662 = vmatprep.subr.bf16.mxu0 0
      %663 = vmatpush1.bf16.msra.mxu0 0
      %664 = vmatprep.subr.bf16.mxu0 0
      %665 = vmatpush1.bf16.msra.mxu0 0
      %666 = vmatprep.subr.bf16.mxu0 0
      %667 = vmatpush1.bf16.msra.mxu0 %v635
      %668 = vmatprep.subr.bf16.mxu0 0
      %669 = vmatpush2.bf16.msra.mxu0 0
      %670 = vmatprep.subr.bf16.mxu0 0
      %671 = vmatpush2.bf16.msra.mxu0 0
      %672 = vmatprep.subr.bf16.mxu0 0
      %673 = vmatpush2.bf16.msra.mxu0 0
      %674 = vmatprep.subr.bf16.mxu0 0
      %675 = vmatpush2.bf16.msra.mxu0 0
      %676 = vmatprep.subr.bf16.mxu0 0
      %677 = vmatpush2.bf16.msra.mxu0 0
      %678 = vmatprep.subr.bf16.mxu0 0
      %679 = vmatpush2.bf16.msra.mxu0 0
      %680 = vmatprep.subr.bf16.mxu0 0
      %681 = vmatpush2.bf16.msra.mxu0 0
      %682 = vmatprep.subr.bf16.mxu0 0
      %683 = vmatpush2.bf16.msra.mxu0 0
      %684 = vmatprep.mubr.bf16.mxu0 0
      %685 = vmatmul.mubr.bf16.gmra.mxu0 %v638
      %v686 = vpop.f32.mrf.mxu0
      %v687 = vadd.f32 0.0, %v686
      %v688 = vpop.f32.mrf.mxu0
      %v689 = vpop.f32.mrf.mxu0
      %v690 = vadd.f32 0.0, %v689
      %v691 = vpop.f32.mrf.mxu0
      %692 = vmatprep.mubr.bf16.mxu0 0
      %693 = vmatmul.mubr.bf16.gmra.mxu0 %v641
      %v694 = vpop.f32.mrf.mxu0
      %v695 = vadd.f32 0.0, %v694
      %v696 = vpop.f32.mrf.mxu0
      %v697 = vpop.f32.mrf.mxu0
      %v698 = vadd.f32 0.0, %v697
      %v699 = vpop.f32.mrf.mxu0
      %700 = vmatprep.mubr.bf16.mxu0 0
      %701 = vmatmul.mubr.bf16.gmra.mxu0 %v644
      %v702 = vpop.f32.mrf.mxu0
      %v703 = vadd.f32 0.0, %v702
      %v704 = vpop.f32.mrf.mxu0
      %v705 = vpop.f32.mrf.mxu0
      %v706 = vadd.f32 0.0, %v705
      %v707 = vpop.f32.mrf.mxu0
      %708 = vmatprep.mubr.bf16.mxu0 0
      %709 = vmatmul.mubr.bf16.gmra.mxu0 %v647
      %v710 = vpop.f32.mrf.mxu0
      %v711 = vadd.f32 0.0, %v710
      %v712 = vpop.f32.mrf.mxu0
      %v713 = vpop.f32.mrf.mxu0
      %v714 = vadd.f32 0.0, %v713
      %v715 = vpop.f32.mrf.mxu0
      %716 = vmatprep.mubr.bf16.mxu0 0
      %717 = vmatmul.mubr.bf16.gmra.mxu0 %v650
      %v718 = vpop.f32.mrf.mxu0
      %v719 = vadd.f32 0.0, %v718
      %v720 = vpop.f32.mrf.mxu0
      %v721 = vpop.f32.mrf.mxu0
      %v722 = vadd.f32 0.0, %v721
      %v723 = vpop.f32.mrf.mxu0
      %724 = vdwg.mxu0
      %v725 = vadd.f32 %v603, %v687
      %v726 = vadd.f32 %v604, %v690
      %v727 = vadd.f32 %v605, %v695
      %v728 = vadd.f32 %v606, %v698
      %v729 = vadd.f32 %v607, %v703
      %v730 = vadd.f32 %v608, %v706
      %v731 = vadd.f32 %v609, %v711
      %v732 = vadd.f32 %v610, %v714
      %v733 = vadd.f32 %v611, %v719
      %v734 = vadd.f32 %v612, %v722
      %v735 = vld [vmem:[%s138 + $0xc] sm:$0xff]
      %v736 = vld [vmem:[%s138 + $0x14] sm:$0xff]
      %v737 = vld [vmem:[%s138 + $0x1c] sm:$0xff]
      %v738 = vld [vmem:[%s138 + $0x24] sm:$0xff]
      %v739 = vld [vmem:[%s138 + $0x2c] sm:$0xff]
      %v740 = vld [vmem:[%s138 + $0x34] sm:$0xff]
      %v741 = vld [vmem:[%s138 + $0x3c] sm:$0xff]
      %v742 = vld [vmem:[%s138 + $0x44] sm:$0xff]
      %v743 = vld [vmem:[%s138 + $0x4c] sm:$0xff]
      %v744 = vld [vmem:[%s138 + $0x54] sm:$0xff]
      %v745 = vpack.c.bf16 %v736, %v735
      %v746 = vpack.c.bf16 %v738, %v737
      %v747 = vpack.c.bf16 %v740, %v739
      %v748 = vpack.c.bf16 %v742, %v741
      %v749 = vpack.c.bf16 %v744, %v743
      %s750 = scalar_lea.vmem %s1, 40
      %v751 = vld [vmem:[%s750] sm:$0xf]
      %v752 = vld [vmem:[%s750 + $0x4] sm:$0xf]
      %v755 = vunpack.c.l.b16 %v751
      %v756 = vunpack.c.l.b16 %v752
      %v757 = vpack.c.b16 %v756, %v755
      %v760 = vsel %vm186, %v745, 0
      %v763 = vsel %vm186, %v746, 0
      %v766 = vsel %vm186, %v747, 0
      %v769 = vsel %vm186, %v748, 0
      %v772 = vsel %vm186, %v749, 0
      %774 = vmatprep.subr.bf16.mxu0 0
      %775 = vmatpush1.bf16.msra.mxu0 0
      %776 = vmatprep.subr.bf16.mxu0 0
      %777 = vmatpush1.bf16.msra.mxu0 0
      %778 = vmatprep.subr.bf16.mxu0 0
      %779 = vmatpush1.bf16.msra.mxu0 0
      %780 = vmatprep.subr.bf16.mxu0 0
      %781 = vmatpush1.bf16.msra.mxu0 0
      %782 = vmatprep.subr.bf16.mxu0 0
      %783 = vmatpush1.bf16.msra.mxu0 0
      %784 = vmatprep.subr.bf16.mxu0 0
      %785 = vmatpush1.bf16.msra.mxu0 0
      %786 = vmatprep.subr.bf16.mxu0 0
      %787 = vmatpush1.bf16.msra.mxu0 0
      %788 = vmatprep.subr.bf16.mxu0 0
      %789 = vmatpush1.bf16.msra.mxu0 %v757
      %790 = vmatprep.subr.bf16.mxu0 0
      %791 = vmatpush2.bf16.msra.mxu0 0
      %792 = vmatprep.subr.bf16.mxu0 0
      %793 = vmatpush2.bf16.msra.mxu0 0
      %794 = vmatprep.subr.bf16.mxu0 0
      %795 = vmatpush2.bf16.msra.mxu0 0
      %796 = vmatprep.subr.bf16.mxu0 0
      %797 = vmatpush2.bf16.msra.mxu0 0
      %798 = vmatprep.subr.bf16.mxu0 0
      %799 = vmatpush2.bf16.msra.mxu0 0
      %800 = vmatprep.subr.bf16.mxu0 0
      %801 = vmatpush2.bf16.msra.mxu0 0
      %802 = vmatprep.subr.bf16.mxu0 0
      %803 = vmatpush2.bf16.msra.mxu0 0
      %804 = vmatprep.subr.bf16.mxu0 0
      %805 = vmatpush2.bf16.msra.mxu0 0
      %806 = vmatprep.mubr.bf16.mxu0 0
      %807 = vmatmul.mubr.bf16.gmra.mxu0 %v760
      %v808 = vpop.f32.mrf.mxu0
      %v809 = vadd.f32 0.0, %v808
      %v810 = vpop.f32.mrf.mxu0
      %v811 = vpop.f32.mrf.mxu0
      %v812 = vadd.f32 0.0, %v811
      %v813 = vpop.f32.mrf.mxu0
      %814 = vmatprep.mubr.bf16.mxu0 0
      %815 = vmatmul.mubr.bf16.gmra.mxu0 %v763
      %v816 = vpop.f32.mrf.mxu0
      %v817 = vadd.f32 0.0, %v816
      %v818 = vpop.f32.mrf.mxu0
      %v819 = vpop.f32.mrf.mxu0
      %v820 = vadd.f32 0.0, %v819
      %v821 = vpop.f32.mrf.mxu0
      %822 = vmatprep.mubr.bf16.mxu0 0
      %823 = vmatmul.mubr.bf16.gmra.mxu0 %v766
      %v824 = vpop.f32.mrf.mxu0
      %v825 = vadd.f32 0.0, %v824
      %v826 = vpop.f32.mrf.mxu0
      %v827 = vpop.f32.mrf.mxu0
      %v828 = vadd.f32 0.0, %v827
      %v829 = vpop.f32.mrf.mxu0
      %830 = vmatprep.mubr.bf16.mxu0 0
      %831 = vmatmul.mubr.bf16.gmra.mxu0 %v769
      %v832 = vpop.f32.mrf.mxu0
      %v833 = vadd.f32 0.0, %v832
      %v834 = vpop.f32.mrf.mxu0
      %v835 = vpop.f32.mrf.mxu0
      %v836 = vadd.f32 0.0, %v835
      %v837 = vpop.f32.mrf.mxu0
      %838 = vmatprep.mubr.bf16.mxu0 0
      %839 = vmatmul.mubr.bf16.gmra.mxu0 %v772
      %v840 = vpop.f32.mrf.mxu0
      %v841 = vadd.f32 0.0, %v840
      %v842 = vpop.f32.mrf.mxu0
      %v843 = vpop.f32.mrf.mxu0
      %v844 = vadd.f32 0.0, %v843
      %v845 = vpop.f32.mrf.mxu0
      %846 = vdwg.mxu0
      %v847 = vadd.f32 %v725, %v809
      %v848 = vadd.f32 %v726, %v812
      %v849 = vadd.f32 %v727, %v817
      %v850 = vadd.f32 %v728, %v820
      %v851 = vadd.f32 %v729, %v825
      %v852 = vadd.f32 %v730, %v828
      %v853 = vadd.f32 %v731, %v833
      %v854 = vadd.f32 %v732, %v836
      %v855 = vadd.f32 %v733, %v841
      %v856 = vadd.f32 %v734, %v844
      %v857 = vld [vmem:[%s138 + $0x14] sm:$0xff]
      %v858 = vld [vmem:[%s138 + $0x1c] sm:$0xff]
      %v859 = vld [vmem:[%s138 + $0x24] sm:$0xff]
      %v860 = vld [vmem:[%s138 + $0x2c] sm:$0xff]
      %v861 = vld [vmem:[%s138 + $0x34] sm:$0xff]
      %v862 = vld [vmem:[%s138 + $0x3c] sm:$0xff]
      %v863 = vld [vmem:[%s138 + $0x44] sm:$0xff]
      %v864 = vld [vmem:[%s138 + $0x4c] sm:$0xff]
      %v865 = vld [vmem:[%s138 + $0x54] sm:$0xff]
      %v866 = vld [vmem:[%s138 + $0x5c] sm:$0xff]
      %v867 = vpack.c.bf16 %v858, %v857
      %v868 = vpack.c.bf16 %v860, %v859
      %v869 = vpack.c.bf16 %v862, %v861
      %v870 = vpack.c.bf16 %v864, %v863
      %v871 = vpack.c.bf16 %v866, %v865
      %s872 = scalar_lea.vmem %s1, 48
      %v873 = vld [vmem:[%s872] sm:$0xf]
      %v874 = vld [vmem:[%s872 + $0x4] sm:$0xf]
      %v877 = vunpack.c.l.b16 %v873
      %v878 = vunpack.c.l.b16 %v874
      %v879 = vpack.c.b16 %v878, %v877
      %v882 = vsel %vm186, %v867, 0
      %v885 = vsel %vm186, %v868, 0
      %v888 = vsel %vm186, %v869, 0
      %v891 = vsel %vm186, %v870, 0
      %v894 = vsel %vm186, %v871, 0
      %896 = vmatprep.subr.bf16.mxu0 0
      %897 = vmatpush1.bf16.msra.mxu0 0
      %898 = vmatprep.subr.bf16.mxu0 0
      %899 = vmatpush1.bf16.msra.mxu0 0
      %900 = vmatprep.subr.bf16.mxu0 0
      %901 = vmatpush1.bf16.msra.mxu0 0
      %902 = vmatprep.subr.bf16.mxu0 0
      %903 = vmatpush1.bf16.msra.mxu0 0
      %904 = vmatprep.subr.bf16.mxu0 0
      %905 = vmatpush1.bf16.msra.mxu0 0
      %906 = vmatprep.subr.bf16.mxu0 0
      %907 = vmatpush1.bf16.msra.mxu0 0
      %908 = vmatprep.subr.bf16.mxu0 0
      %909 = vmatpush1.bf16.msra.mxu0 0
      %910 = vmatprep.subr.bf16.mxu0 0
      %911 = vmatpush1.bf16.msra.mxu0 %v879
      %912 = vmatprep.subr.bf16.mxu0 0
      %913 = vmatpush2.bf16.msra.mxu0 0
      %914 = vmatprep.subr.bf16.mxu0 0
      %915 = vmatpush2.bf16.msra.mxu0 0
      %916 = vmatprep.subr.bf16.mxu0 0
      %917 = vmatpush2.bf16.msra.mxu0 0
      %918 = vmatprep.subr.bf16.mxu0 0
      %919 = vmatpush2.bf16.msra.mxu0 0
      %920 = vmatprep.subr.bf16.mxu0 0
      %921 = vmatpush2.bf16.msra.mxu0 0
      %922 = vmatprep.subr.bf16.mxu0 0
      %923 = vmatpush2.bf16.msra.mxu0 0
      %924 = vmatprep.subr.bf16.mxu0 0
      %925 = vmatpush2.bf16.msra.mxu0 0
      %926 = vmatprep.subr.bf16.mxu0 0
      %927 = vmatpush2.bf16.msra.mxu0 0
      %928 = vmatprep.mubr.bf16.mxu0 0
      %929 = vmatmul.mubr.bf16.gmra.mxu0 %v882
      %v930 = vpop.f32.mrf.mxu0
      %v931 = vadd.f32 0.0, %v930
      %v932 = vpop.f32.mrf.mxu0
      %v933 = vpop.f32.mrf.mxu0
      %v934 = vadd.f32 0.0, %v933
      %v935 = vpop.f32.mrf.mxu0
      %936 = vmatprep.mubr.bf16.mxu0 0
      %937 = vmatmul.mubr.bf16.gmra.mxu0 %v885
      %v938 = vpop.f32.mrf.mxu0
      %v939 = vadd.f32 0.0, %v938
      %v940 = vpop.f32.mrf.mxu0
      %v941 = vpop.f32.mrf.mxu0
      %v942 = vadd.f32 0.0, %v941
      %v943 = vpop.f32.mrf.mxu0
      %944 = vmatprep.mubr.bf16.mxu0 0
      %945 = vmatmul.mubr.bf16.gmra.mxu0 %v888
      %v946 = vpop.f32.mrf.mxu0
      %v947 = vadd.f32 0.0, %v946
      %v948 = vpop.f32.mrf.mxu0
      %v949 = vpop.f32.mrf.mxu0
      %v950 = vadd.f32 0.0, %v949
      %v951 = vpop.f32.mrf.mxu0
      %952 = vmatprep.mubr.bf16.mxu0 0
      %953 = vmatmul.mubr.bf16.gmra.mxu0 %v891
      %v954 = vpop.f32.mrf.mxu0
      %v955 = vadd.f32 0.0, %v954
      %v956 = vpop.f32.mrf.mxu0
      %v957 = vpop.f32.mrf.mxu0
      %v958 = vadd.f32 0.0, %v957
      %v959 = vpop.f32.mrf.mxu0
      %960 = vmatprep.mubr.bf16.mxu0 0
      %961 = vmatmul.mubr.bf16.gmra.mxu0 %v894
      %v962 = vpop.f32.mrf.mxu0
      %v963 = vadd.f32 0.0, %v962
      %v964 = vpop.f32.mrf.mxu0
      %v965 = vpop.f32.mrf.mxu0
      %v966 = vadd.f32 0.0, %v965
      %v967 = vpop.f32.mrf.mxu0
      %968 = vdwg.mxu0
      %v969 = vadd.f32 %v847, %v931
      %v970 = vadd.f32 %v848, %v934
      %v971 = vadd.f32 %v849, %v939
      %v972 = vadd.f32 %v850, %v942
      %v973 = vadd.f32 %v851, %v947
      %v974 = vadd.f32 %v852, %v950
      %v975 = vadd.f32 %v853, %v955
      %v976 = vadd.f32 %v854, %v958
      %v977 = vadd.f32 %v855, %v963
      %v978 = vadd.f32 %v856, %v966
      %v979 = vld [vmem:[%s138 + $0x15] sm:$0xff]
      %v980 = vld [vmem:[%s138 + $0x1d] sm:$0xff]
      %v981 = vld [vmem:[%s138 + $0x25] sm:$0xff]
      %v982 = vld [vmem:[%s138 + $0x2d] sm:$0xff]
      %v983 = vld [vmem:[%s138 + $0x35] sm:$0xff]
      %v984 = vld [vmem:[%s138 + $0x3d] sm:$0xff]
      %v985 = vld [vmem:[%s138 + $0x45] sm:$0xff]
      %v986 = vld [vmem:[%s138 + $0x4d] sm:$0xff]
      %v987 = vld [vmem:[%s138 + $0x55] sm:$0xff]
      %v988 = vld [vmem:[%s138 + $0x5d] sm:$0xff]
      %v989 = vpack.c.bf16 %v980, %v979
      %v990 = vpack.c.bf16 %v982, %v981
      %v991 = vpack.c.bf16 %v984, %v983
      %v992 = vpack.c.bf16 %v986, %v985
      %v993 = vpack.c.bf16 %v988, %v987
      %s994 = scalar_lea.vmem %s1, 56
      %v995 = vld [vmem:[%s994] sm:$0xf]
      %v996 = vld [vmem:[%s994 + $0x4] sm:$0xf]
      %v999 = vunpack.c.l.b16 %v995
      %v1000 = vunpack.c.l.b16 %v996
      %v1001 = vpack.c.b16 %v1000, %v999
      %v1004 = vsel %vm186, %v989, 0
      %v1007 = vsel %vm186, %v990, 0
      %v1010 = vsel %vm186, %v991, 0
      %v1013 = vsel %vm186, %v992, 0
      %v1016 = vsel %vm186, %v993, 0
      %1018 = vmatprep.subr.bf16.mxu0 0
      %1019 = vmatpush1.bf16.msra.mxu0 0
      %1020 = vmatprep.subr.bf16.mxu0 0
      %1021 = vmatpush1.bf16.msra.mxu0 0
      %1022 = vmatprep.subr.bf16.mxu0 0
      %1023 = vmatpush1.bf16.msra.mxu0 0
      %1024 = vmatprep.subr.bf16.mxu0 0
      %1025 = vmatpush1.bf16.msra.mxu0 0
      %1026 = vmatprep.subr.bf16.mxu0 0
      %1027 = vmatpush1.bf16.msra.mxu0 0
      %1028 = vmatprep.subr.bf16.mxu0 0
      %1029 = vmatpush1.bf16.msra.mxu0 0
      %1030 = vmatprep.subr.bf16.mxu0 0
      %1031 = vmatpush1.bf16.msra.mxu0 0
      %1032 = vmatprep.subr.bf16.mxu0 0
      %1033 = vmatpush1.bf16.msra.mxu0 %v1001
      %1034 = vmatprep.subr.bf16.mxu0 0
      %1035 = vmatpush2.bf16.msra.mxu0 0
      %1036 = vmatprep.subr.bf16.mxu0 0
      %1037 = vmatpush2.bf16.msra.mxu0 0
      %1038 = vmatprep.subr.bf16.mxu0 0
      %1039 = vmatpush2.bf16.msra.mxu0 0
      %1040 = vmatprep.subr.bf16.mxu0 0
      %1041 = vmatpush2.bf16.msra.mxu0 0
      %1042 = vmatprep.subr.bf16.mxu0 0
      %1043 = vmatpush2.bf16.msra.mxu0 0
      %1044 = vmatprep.subr.bf16.mxu0 0
      %1045 = vmatpush2.bf16.msra.mxu0 0
      %1046 = vmatprep.subr.bf16.mxu0 0
      %1047 = vmatpush2.bf16.msra.mxu0 0
      %1048 = vmatprep.subr.bf16.mxu0 0
      %1049 = vmatpush2.bf16.msra.mxu0 0
      %1050 = vmatprep.mubr.bf16.mxu0 0
      %1051 = vmatmul.mubr.bf16.gmra.mxu0 %v1004
      %v1052 = vpop.f32.mrf.mxu0
      %v1053 = vadd.f32 0.0, %v1052
      %v1054 = vpop.f32.mrf.mxu0
      %v1055 = vpop.f32.mrf.mxu0
      %v1056 = vadd.f32 0.0, %v1055
      %v1057 = vpop.f32.mrf.mxu0
      %1058 = vmatprep.mubr.bf16.mxu0 0
      %1059 = vmatmul.mubr.bf16.gmra.mxu0 %v1007
      %v1060 = vpop.f32.mrf.mxu0
      %v1061 = vadd.f32 0.0, %v1060
      %v1062 = vpop.f32.mrf.mxu0
      %v1063 = vpop.f32.mrf.mxu0
      %v1064 = vadd.f32 0.0, %v1063
      %v1065 = vpop.f32.mrf.mxu0
      %1066 = vmatprep.mubr.bf16.mxu0 0
      %1067 = vmatmul.mubr.bf16.gmra.mxu0 %v1010
      %v1068 = vpop.f32.mrf.mxu0
      %v1069 = vadd.f32 0.0, %v1068
      %v1070 = vpop.f32.mrf.mxu0
      %v1071 = vpop.f32.mrf.mxu0
      %v1072 = vadd.f32 0.0, %v1071
      %v1073 = vpop.f32.mrf.mxu0
      %1074 = vmatprep.mubr.bf16.mxu0 0
      %1075 = vmatmul.mubr.bf16.gmra.mxu0 %v1013
      %v1076 = vpop.f32.mrf.mxu0
      %v1077 = vadd.f32 0.0, %v1076
      %v1078 = vpop.f32.mrf.mxu0
      %v1079 = vpop.f32.mrf.mxu0
      %v1080 = vadd.f32 0.0, %v1079
      %v1081 = vpop.f32.mrf.mxu0
      %1082 = vmatprep.mubr.bf16.mxu0 0
      %1083 = vmatmul.mubr.bf16.gmra.mxu0 %v1016
      %v1084 = vpop.f32.mrf.mxu0
      %v1085 = vadd.f32 0.0, %v1084
      %v1086 = vpop.f32.mrf.mxu0
      %v1087 = vpop.f32.mrf.mxu0
      %v1088 = vadd.f32 0.0, %v1087
      %v1089 = vpop.f32.mrf.mxu0
      %1090 = vdwg.mxu0
      %v1091 = vadd.f32 %v969, %v1053
      %v1092 = vadd.f32 %v970, %v1056
      %v1093 = vadd.f32 %v971, %v1061
      %v1094 = vadd.f32 %v972, %v1064
      %v1095 = vadd.f32 %v973, %v1069
      %v1096 = vadd.f32 %v974, %v1072
      %v1097 = vadd.f32 %v975, %v1077
      %v1098 = vadd.f32 %v976, %v1080
      %v1099 = vadd.f32 %v977, %v1085
      %v1100 = vadd.f32 %v978, %v1088
      %v1101 = vld [vmem:[%s138 + $0x16] sm:$0xff]
      %v1102 = vld [vmem:[%s138 + $0x1e] sm:$0xff]
      %v1103 = vld [vmem:[%s138 + $0x26] sm:$0xff]
      %v1104 = vld [vmem:[%s138 + $0x2e] sm:$0xff]
      %v1105 = vld [vmem:[%s138 + $0x36] sm:$0xff]
      %v1106 = vld [vmem:[%s138 + $0x3e] sm:$0xff]
      %v1107 = vld [vmem:[%s138 + $0x46] sm:$0xff]
      %v1108 = vld [vmem:[%s138 + $0x4e] sm:$0xff]
      %v1109 = vld [vmem:[%s138 + $0x56] sm:$0xff]
      %v1110 = vld [vmem:[%s138 + $0x5e] sm:$0xff]
      %v1111 = vpack.c.bf16 %v1102, %v1101
      %v1112 = vpack.c.bf16 %v1104, %v1103
      %v1113 = vpack.c.bf16 %v1106, %v1105
      %v1114 = vpack.c.bf16 %v1108, %v1107
      %v1115 = vpack.c.bf16 %v1110, %v1109
      %s1116 = scalar_lea.vmem %s1, 64
      %v1117 = vld [vmem:[%s1116] sm:$0xf]
      %v1118 = vld [vmem:[%s1116 + $0x4] sm:$0xf]
      %v1121 = vunpack.c.l.b16 %v1117
      %v1122 = vunpack.c.l.b16 %v1118
      %v1123 = vpack.c.b16 %v1122, %v1121
      %v1126 = vsel %vm186, %v1111, 0
      %v1129 = vsel %vm186, %v1112, 0
      %v1132 = vsel %vm186, %v1113, 0
      %v1135 = vsel %vm186, %v1114, 0
      %v1138 = vsel %vm186, %v1115, 0
      %1140 = vmatprep.subr.bf16.mxu0 0
      %1141 = vmatpush1.bf16.msra.mxu0 0
      %1142 = vmatprep.subr.bf16.mxu0 0
      %1143 = vmatpush1.bf16.msra.mxu0 0
      %1144 = vmatprep.subr.bf16.mxu0 0
      %1145 = vmatpush1.bf16.msra.mxu0 0
      %1146 = vmatprep.subr.bf16.mxu0 0
      %1147 = vmatpush1.bf16.msra.mxu0 0
      %1148 = vmatprep.subr.bf16.mxu0 0
      %1149 = vmatpush1.bf16.msra.mxu0 0
      %1150 = vmatprep.subr.bf16.mxu0 0
      %1151 = vmatpush1.bf16.msra.mxu0 0
      %1152 = vmatprep.subr.bf16.mxu0 0
      %1153 = vmatpush1.bf16.msra.mxu0 0
      %1154 = vmatprep.subr.bf16.mxu0 0
      %1155 = vmatpush1.bf16.msra.mxu0 %v1123
      %1156 = vmatprep.subr.bf16.mxu0 0
      %1157 = vmatpush2.bf16.msra.mxu0 0
      %1158 = vmatprep.subr.bf16.mxu0 0
      %1159 = vmatpush2.bf16.msra.mxu0 0
      %1160 = vmatprep.subr.bf16.mxu0 0
      %1161 = vmatpush2.bf16.msra.mxu0 0
      %1162 = vmatprep.subr.bf16.mxu0 0
      %1163 = vmatpush2.bf16.msra.mxu0 0
      %1164 = vmatprep.subr.bf16.mxu0 0
      %1165 = vmatpush2.bf16.msra.mxu0 0
      %1166 = vmatprep.subr.bf16.mxu0 0
      %1167 = vmatpush2.bf16.msra.mxu0 0
      %1168 = vmatprep.subr.bf16.mxu0 0
      %1169 = vmatpush2.bf16.msra.mxu0 0
      %1170 = vmatprep.subr.bf16.mxu0 0
      %1171 = vmatpush2.bf16.msra.mxu0 0
      %1172 = vmatprep.mubr.bf16.mxu0 0
      %1173 = vmatmul.mubr.bf16.gmra.mxu0 %v1126
      %v1174 = vpop.f32.mrf.mxu0
      %v1175 = vadd.f32 0.0, %v1174
      %v1176 = vpop.f32.mrf.mxu0
      %v1177 = vpop.f32.mrf.mxu0
      %v1178 = vadd.f32 0.0, %v1177
      %v1179 = vpop.f32.mrf.mxu0
      %1180 = vmatprep.mubr.bf16.mxu0 0
      %1181 = vmatmul.mubr.bf16.gmra.mxu0 %v1129
      %v1182 = vpop.f32.mrf.mxu0
      %v1183 = vadd.f32 0.0, %v1182
      %v1184 = vpop.f32.mrf.mxu0
      %v1185 = vpop.f32.mrf.mxu0
      %v1186 = vadd.f32 0.0, %v1185
      %v1187 = vpop.f32.mrf.mxu0
      %1188 = vmatprep.mubr.bf16.mxu0 0
      %1189 = vmatmul.mubr.bf16.gmra.mxu0 %v1132
      %v1190 = vpop.f32.mrf.mxu0
      %v1191 = vadd.f32 0.0, %v1190
      %v1192 = vpop.f32.mrf.mxu0
      %v1193 = vpop.f32.mrf.mxu0
      %v1194 = vadd.f32 0.0, %v1193
      %v1195 = vpop.f32.mrf.mxu0
      %1196 = vmatprep.mubr.bf16.mxu0 0
      %1197 = vmatmul.mubr.bf16.gmra.mxu0 %v1135
      %v1198 = vpop.f32.mrf.mxu0
      %v1199 = vadd.f32 0.0, %v1198
      %v1200 = vpop.f32.mrf.mxu0
      %v1201 = vpop.f32.mrf.mxu0
      %v1202 = vadd.f32 0.0, %v1201
      %v1203 = vpop.f32.mrf.mxu0
      %1204 = vmatprep.mubr.bf16.mxu0 0
      %1205 = vmatmul.mubr.bf16.gmra.mxu0 %v1138
      %v1206 = vpop.f32.mrf.mxu0
      %v1207 = vadd.f32 0.0, %v1206
      %v1208 = vpop.f32.mrf.mxu0
      %v1209 = vpop.f32.mrf.mxu0
      %v1210 = vadd.f32 0.0, %v1209
      %v1211 = vpop.f32.mrf.mxu0
      %1212 = vdwg.mxu0
      %v1213 = vadd.f32 %v1091, %v1175
      %v1214 = vadd.f32 %v1092, %v1178
      %v1215 = vadd.f32 %v1093, %v1183
      %v1216 = vadd.f32 %v1094, %v1186
      %v1217 = vadd.f32 %v1095, %v1191
      %v1218 = vadd.f32 %v1096, %v1194
      %v1219 = vadd.f32 %v1097, %v1199
      %v1220 = vadd.f32 %v1098, %v1202
      %v1221 = vadd.f32 %v1099, %v1207
      %v1222 = vadd.f32 %v1100, %v1210
      %v1223 = vmax.f32 %v1213, 0.0
      %v1224 = vmax.f32 %v1214, 0.0
      %v1225 = vmax.f32 %v1215, 0.0
      %v1226 = vmax.f32 %v1216, 0.0
      %v1227 = vmax.f32 %v1217, 0.0
      %v1228 = vmax.f32 %v1218, 0.0
      %v1229 = vmax.f32 %v1219, 0.0
      %v1230 = vmax.f32 %v1220, 0.0
      %v1231 = vmax.f32 %v1221, 0.0
      %v1232 = vmax.f32 %v1222, 0.0
      %vm1233 = vcmask 31744
      %1234 = vst.msk [vmem:[%s143] sm:$0xff] %vm1233, %v1223
      %1235 = vst.msk [vmem:[%s143 + $0x8] sm:$0xff] %vm1233, %v1224
      %1236 = vst.msk [vmem:[%s143 + $0x10] sm:$0xff] %vm1233, %v1225
      %1237 = vst.msk [vmem:[%s143 + $0x18] sm:$0xff] %vm1233, %v1226
      %1238 = vst.msk [vmem:[%s143 + $0x20] sm:$0xff] %vm1233, %v1227
      %1239 = vst.msk [vmem:[%s143 + $0x28] sm:$0xff] %vm1233, %v1228
      %1240 = vst.msk [vmem:[%s143 + $0x30] sm:$0xff] %vm1233, %v1229
      %1241 = vst.msk [vmem:[%s143 + $0x38] sm:$0xff] %vm1233, %v1230
      %1242 = vst.msk [vmem:[%s143 + $0x40] sm:$0xff] %vm1233, %v1231
      %1243 = vst.msk [vmem:[%s143 + $0x48] sm:$0xff] %vm1233, %v1232
      %p1244 = scmp.lt.s32.totalorder %s13, 1
      %s1245 = scalar_select %p1244, %s13, 1
      %s1246 = smul.addr %s1245, 10
      %s1247 = smul.addr %s1246, 8
      %s1248 = scalar_lea.vmem %s2, %s1247
      // Predicated region
      $region29: #{diin_forward.20} parent=27 // pred_check
        %p1249 = pneg %p78
      $region30: #{diin_forward.20} parent=27 // pred_check_branch
        %1251 = sbr.rel (%p1249) target = $region32
      $region31: #{diin_forward.20} parent=27 // pred_region
        _
      $region32: #{diin_forward.20} parent=27 // pred_fallthru
        _
    $region28: #{diin_forward.20} parent=5 // pred_fallthru
      _
    %p1252 = scmp.le.s32.totalorder 2, %s8
    // Predicated region
    $region33: #{diin_forward.20} parent=5 // pred_check
      %p1253 = pneg %p1252
    $region34: #{diin_forward.20} parent=5 // pred_check_branch
      %1255 = sbr.rel (%p1253) target = $region36
    $region35: #{diin_forward.20} parent=5 // pred_region
      %s1256 = ssub.s32 %s8, 2
      // Predicated region
      $region37: #{diin_forward.20} parent=35 // pred_check
        %p1257 = pneg %p84
      $region38: #{diin_forward.20} parent=35 // pred_check_branch
        %1259 = sbr.rel (%p1257) target = $region40
      $region39: #{diin_forward.20} parent=35 // pred_region
        %p1260 = scmp.lt.s32.totalorder %s14, 1
        %s1261 = scalar_select %p1260, %s14, 1
        %s1262 = smul.addr %s1261, 10
        %s1263 = smul.addr %s1262, 8
        %s1264 = scalar_lea.vmem %s2, %s1263
      $region40: #{diin_forward.20} parent=35 // pred_fallthru
        _
    $region36: #{diin_forward.20} parent=5 // pred_fallthru
      _
  $region6: #{diin_forward.20} parent=0 // loop_footer
    %s12 = sadd.s32 1, %s8
  $region7: #{diin_forward.20} parent=0 // loop_footer_branch
    %7 = sbr.rel target = $region3
  $region8: #{diin_forward.20} parent=0 // loop_exit
    _

// kernel: diin_forward.22
$region0: #{diin_forward.22}
  #allocation0 [shape = 'u32[]', space=smem, size = 0x4, offset = 0x4, fixed_abs, tag = 'smem constant byte address 0x4 - core index']
  #allocation1 [shape = 'u32[144,128]{1,0:T(1,128)}', space=vmem, size = 0x12000, scoped, tag = 'internal scratch']
  #allocation2 [shape = 'f32[128,128]{1,0:T(8,128)}', space=vmem, size = 0x10000, scoped, tag = 'scratch operand']
  %s0 = inlined_call_operand.vmem [shape: f32[128,24], index: 0, kind: input, shape index: {}]
  %s1 = inlined_call_operand.vmem [shape: bf16[24,128], index: 1, kind: input, shape index: {}]
  %s2 = inlined_call_operand.vmem [shape: f32[1,128], index: 2, kind: input, shape index: {}]
  %s3 = inlined_call_operand.vmem [shape: f32[128,128], index: 3, kind: output, shape index: {}]
  %s4 = sld [smem:[#allocation0]]
  $region30: #{diin_forward.22} parent=0
    _
  %s6 = ssub.s32 1, %s4
  %s7 = scalar_select 0, %s6, %s4
  // Predicated region
  $region2: #{diin_forward.22} parent=0 // pred_check
    _
  $region3: #{diin_forward.22} parent=0 // pred_check_branch
    %9 = sbr.rel (0) target = $region5
  $region4: #{diin_forward.22} parent=0 // pred_region
    _
  $region5: #{diin_forward.22} parent=0 // pred_fallthru
    _
  // Predicated region
  $region6: #{diin_forward.22} parent=0 // pred_check
    _
  $region7: #{diin_forward.22} parent=0 // pred_check_branch
    %11 = sbr.rel (0) target = $region9
  $region8: #{diin_forward.22} parent=0 // pred_region
    _
  $region9: #{diin_forward.22} parent=0 // pred_fallthru
    _
  // Predicated region
  $region10: #{diin_forward.22} parent=0 // pred_check
    _
  $region11: #{diin_forward.22} parent=0 // pred_check_branch
    %13 = sbr.rel (0) target = $region13
  $region12: #{diin_forward.22} parent=0 // pred_region
    _
  $region13: #{diin_forward.22} parent=0 // pred_fallthru
    _
  %p15 = scmp.eq.s32.totalorder 0, 0
  // Predicated region
  $region14: #{diin_forward.22} parent=0 // pred_check
    %p16 = pneg %p15
  $region15: #{diin_forward.22} parent=0 // pred_check_branch
    %18 = sbr.rel (%p16) target = $region17
  $region16: #{diin_forward.22} parent=0 // pred_region
    %19 = vst [vmem:[#allocation2] sm:$0xff] 0.0
    %20 = vst [vmem:[#allocation2 + $0x8] sm:$0xff] 0.0
    %21 = vst [vmem:[#allocation2 + $0x10] sm:$0xff] 0.0
    %22 = vst [vmem:[#allocation2 + $0x18] sm:$0xff] 0.0
    %23 = vst [vmem:[#allocation2 + $0x20] sm:$0xff] 0.0
    %24 = vst [vmem:[#allocation2 + $0x28] sm:$0xff] 0.0
    %25 = vst [vmem:[#allocation2 + $0x30] sm:$0xff] 0.0
    %26 = vst [vmem:[#allocation2 + $0x38] sm:$0xff] 0.0
    %27 = vst [vmem:[#allocation2 + $0x40] sm:$0xff] 0.0
    %28 = vst [vmem:[#allocation2 + $0x48] sm:$0xff] 0.0
    %29 = vst [vmem:[#allocation2 + $0x50] sm:$0xff] 0.0
    %30 = vst [vmem:[#allocation2 + $0x58] sm:$0xff] 0.0
    %31 = vst [vmem:[#allocation2 + $0x60] sm:$0xff] 0.0
    %32 = vst [vmem:[#allocation2 + $0x68] sm:$0xff] 0.0
    %33 = vst [vmem:[#allocation2 + $0x70] sm:$0xff] 0.0
    %34 = vst [vmem:[#allocation2 + $0x78] sm:$0xff] 0.0
  $region17: #{diin_forward.22} parent=0 // pred_fallthru
    _
  %v35 = vld [vmem:[#allocation2] sm:$0xff]
  %v36 = vld [vmem:[#allocation2 + $0x8] sm:$0xff]
  %v37 = vld [vmem:[#allocation2 + $0x10] sm:$0xff]
  %v38 = vld [vmem:[#allocation2 + $0x18] sm:$0xff]
  %v39 = vld [vmem:[#allocation2 + $0x20] sm:$0xff]
  %v40 = vld [vmem:[#allocation2 + $0x28] sm:$0xff]
  %v41 = vld [vmem:[#allocation2 + $0x30] sm:$0xff]
  %v42 = vld [vmem:[#allocation2 + $0x38] sm:$0xff]
  %v43 = vld [vmem:[#allocation2 + $0x40] sm:$0xff]
  %v44 = vld [vmem:[#allocation2 + $0x48] sm:$0xff]
  %v45 = vld [vmem:[#allocation2 + $0x50] sm:$0xff]
  %v46 = vld [vmem:[#allocation2 + $0x58] sm:$0xff]
  %v47 = vld [vmem:[#allocation2 + $0x60] sm:$0xff]
  %v48 = vld [vmem:[#allocation2 + $0x68] sm:$0xff]
  %v49 = vld [vmem:[#allocation2 + $0x70] sm:$0xff]
  %v50 = vld [vmem:[#allocation2 + $0x78] sm:$0xff]
  %v51 = vld [vmem:[%s0] sm:$0xff]
  %v52 = vld [vmem:[%s0 + $0x8] sm:$0xff]
  %v53 = vld [vmem:[%s0 + $0x10] sm:$0xff]
  %v54 = vld [vmem:[%s0 + $0x18] sm:$0xff]
  %v55 = vld [vmem:[%s0 + $0x20] sm:$0xff]
  %v56 = vld [vmem:[%s0 + $0x28] sm:$0xff]
  %v57 = vld [vmem:[%s0 + $0x30] sm:$0xff]
  %v58 = vld [vmem:[%s0 + $0x38] sm:$0xff]
  %v59 = vld [vmem:[%s0 + $0x40] sm:$0xff]
  %v60 = vld [vmem:[%s0 + $0x48] sm:$0xff]
  %v61 = vld [vmem:[%s0 + $0x50] sm:$0xff]
  %v62 = vld [vmem:[%s0 + $0x58] sm:$0xff]
  %v63 = vld [vmem:[%s0 + $0x60] sm:$0xff]
  %v64 = vld [vmem:[%s0 + $0x68] sm:$0xff]
  %v65 = vld [vmem:[%s0 + $0x70] sm:$0xff]
  %v66 = vld [vmem:[%s0 + $0x78] sm:$0xff]
  %v67 = vpack.c.bf16 %v52, %v51
  %v68 = vpack.c.bf16 %v54, %v53
  %v69 = vpack.c.bf16 %v56, %v55
  %v70 = vpack.c.bf16 %v58, %v57
  %v71 = vpack.c.bf16 %v60, %v59
  %v72 = vpack.c.bf16 %v62, %v61
  %v73 = vpack.c.bf16 %v64, %v63
  %v74 = vpack.c.bf16 %v66, %v65
  %v75 = vld [vmem:[%s1] sm:$0xf]
  %v76 = vld [vmem:[%s1 + $0x4] sm:$0xf]
  %v77 = vld [vmem:[%s1 + $0x8] sm:$0xf]
  %v81 = vunpack.c.l.b16 %v75
  %v82 = vunpack.c.l.b16 %v76
  %v83 = vunpack.c.l.b16 %v77
  %v84 = vpack.c.b16 %v82, %v81
  %v85 = vpack.c.b16 %v83, %v83
  %vm87 = vcmask 195584
  %v89 = vsel %vm87, %v67, 0
  %v92 = vsel %vm87, %v68, 0
  %v95 = vsel %vm87, %v69, 0
  %v98 = vsel %vm87, %v70, 0
  %v101 = vsel %vm87, %v71, 0
  %v104 = vsel %vm87, %v72, 0
  %v107 = vsel %vm87, %v73, 0
  %v110 = vsel %vm87, %v74, 0
  %vm112 = vcmask 1043456
  %v114 = vsel %vm112, %v85, 0
  %116 = vmatprep.subr.bf16.mxu0 0
  %117 = vmatpush1.bf16.msra.mxu0 0
  %118 = vmatprep.subr.bf16.mxu0 0
  %119 = vmatpush1.bf16.msra.mxu0 0
  %120 = vmatprep.subr.bf16.mxu0 0
  %121 = vmatpush1.bf16.msra.mxu0 0
  %122 = vmatprep.subr.bf16.mxu0 0
  %123 = vmatpush1.bf16.msra.mxu0 0
  %124 = vmatprep.subr.bf16.mxu0 0
  %125 = vmatpush1.bf16.msra.mxu0 0
  %126 = vmatprep.subr.bf16.mxu0 0
  %127 = vmatpush1.bf16.msra.mxu0 0
  %128 = vmatprep.subr.bf16.mxu0 0
  %129 = vmatpush1.bf16.msra.mxu0 %v114
  %130 = vmatprep.subr.bf16.mxu0 0
  %131 = vmatpush1.bf16.msra.mxu0 %v84
  %132 = vmatprep.subr.bf16.mxu0 0
  %133 = vmatpush2.bf16.msra.mxu0 0
  %134 = vmatprep.subr.bf16.mxu0 0
  %135 = vmatpush2.bf16.msra.mxu0 0
  %136 = vmatprep.subr.bf16.mxu0 0
  %137 = vmatpush2.bf16.msra.mxu0 0
  %138 = vmatprep.subr.bf16.mxu0 0
  %139 = vmatpush2.bf16.msra.mxu0 0
  %140 = vmatprep.subr.bf16.mxu0 0
  %141 = vmatpush2.bf16.msra.mxu0 0
  %142 = vmatprep.subr.bf16.mxu0 0
  %143 = vmatpush2.bf16.msra.mxu0 0
  %144 = vmatprep.subr.bf16.mxu0 0
  %145 = vmatpush2.bf16.msra.mxu0 0
  %146 = vmatprep.subr.bf16.mxu0 0
  %147 = vmatpush2.bf16.msra.mxu0 0
  %148 = vmatprep.mubr.bf16.mxu0 0
  %149 = vmatmul.mubr.bf16.gmra.mxu0 %v89
  %v150 = vpop.f32.mrf.mxu0
  %v151 = vadd.f32 0.0, %v150
  %v152 = vpop.f32.mrf.mxu0
  %v153 = vpop.f32.mrf.mxu0
  %v154 = vadd.f32 0.0, %v153
  %v155 = vpop.f32.mrf.mxu0
  %156 = vmatprep.mubr.bf16.mxu0 0
  %157 = vmatmul.mubr.bf16.gmra.mxu0 %v92
  %v158 = vpop.f32.mrf.mxu0
  %v159 = vadd.f32 0.0, %v158
  %v160 = vpop.f32.mrf.mxu0
  %v161 = vpop.f32.mrf.mxu0
  %v162 = vadd.f32 0.0, %v161
  %v163 = vpop.f32.mrf.mxu0
  %164 = vmatprep.mubr.bf16.mxu0 0
  %165 = vmatmul.mubr.bf16.gmra.mxu0 %v95
  %v166 = vpop.f32.mrf.mxu0
  %v167 = vadd.f32 0.0, %v166
  %v168 = vpop.f32.mrf.mxu0
  %v169 = vpop.f32.mrf.mxu0
  %v170 = vadd.f32 0.0, %v169
  %v171 = vpop.f32.mrf.mxu0
  %172 = vmatprep.mubr.bf16.mxu0 0
  %173 = vmatmul.mubr.bf16.gmra.mxu0 %v98
  %v174 = vpop.f32.mrf.mxu0
  %v175 = vadd.f32 0.0, %v174
  %v176 = vpop.f32.mrf.mxu0
  %v177 = vpop.f32.mrf.mxu0
  %v178 = vadd.f32 0.0, %v177
  %v179 = vpop.f32.mrf.mxu0
  %180 = vmatprep.mubr.bf16.mxu0 0
  %181 = vmatmul.mubr.bf16.gmra.mxu0 %v101
  %v182 = vpop.f32.mrf.mxu0
  %v183 = vadd.f32 0.0, %v182
  %v184 = vpop.f32.mrf.mxu0
  %v185 = vpop.f32.mrf.mxu0
  %v186 = vadd.f32 0.0, %v185
  %v187 = vpop.f32.mrf.mxu0
  %188 = vmatprep.mubr.bf16.mxu0 0
  %189 = vmatmul.mubr.bf16.gmra.mxu0 %v104
  %v190 = vpop.f32.mrf.mxu0
  %v191 = vadd.f32 0.0, %v190
  %v192 = vpop.f32.mrf.mxu0
  %v193 = vpop.f32.mrf.mxu0
  %v194 = vadd.f32 0.0, %v193
  %v195 = vpop.f32.mrf.mxu0
  %196 = vmatprep.mubr.bf16.mxu0 0
  %197 = vmatmul.mubr.bf16.gmra.mxu0 %v107
  %v198 = vpop.f32.mrf.mxu0
  %v199 = vadd.f32 0.0, %v198
  %v200 = vpop.f32.mrf.mxu0
  %v201 = vpop.f32.mrf.mxu0
  %v202 = vadd.f32 0.0, %v201
  %v203 = vpop.f32.mrf.mxu0
  %204 = vmatprep.mubr.bf16.mxu0 0
  %205 = vmatmul.mubr.bf16.gmra.mxu0 %v110
  %v206 = vpop.f32.mrf.mxu0
  %v207 = vadd.f32 0.0, %v206
  %v208 = vpop.f32.mrf.mxu0
  %v209 = vpop.f32.mrf.mxu0
  %v210 = vadd.f32 0.0, %v209
  %v211 = vpop.f32.mrf.mxu0
  %212 = vdwg.mxu0
  %v213 = vadd.f32 %v35, %v151
  %v214 = vadd.f32 %v36, %v154
  %v215 = vadd.f32 %v37, %v159
  %v216 = vadd.f32 %v38, %v162
  %v217 = vadd.f32 %v39, %v167
  %v218 = vadd.f32 %v40, %v170
  %v219 = vadd.f32 %v41, %v175
  %v220 = vadd.f32 %v42, %v178
  %v221 = vadd.f32 %v43, %v183
  %v222 = vadd.f32 %v44, %v186
  %v223 = vadd.f32 %v45, %v191
  %v224 = vadd.f32 %v46, %v194
  %v225 = vadd.f32 %v47, %v199
  %v226 = vadd.f32 %v48, %v202
  %v227 = vadd.f32 %v49, %v207
  %v228 = vadd.f32 %v50, %v210
  %229 = vst [vmem:[#allocation2] sm:$0xff] %v213
  %230 = vst [vmem:[#allocation2 + $0x8] sm:$0xff] %v214
  %231 = vst [vmem:[#allocation2 + $0x10] sm:$0xff] %v215
  %232 = vst [vmem:[#allocation2 + $0x18] sm:$0xff] %v216
  %233 = vst [vmem:[#allocation2 + $0x20] sm:$0xff] %v217
  %234 = vst [vmem:[#allocation2 + $0x28] sm:$0xff] %v218
  %235 = vst [vmem:[#allocation2 + $0x30] sm:$0xff] %v219
  %236 = vst [vmem:[#allocation2 + $0x38] sm:$0xff] %v220
  %237 = vst [vmem:[#allocation2 + $0x40] sm:$0xff] %v221
  %238 = vst [vmem:[#allocation2 + $0x48] sm:$0xff] %v222
  %239 = vst [vmem:[#allocation2 + $0x50] sm:$0xff] %v223
  %240 = vst [vmem:[#allocation2 + $0x58] sm:$0xff] %v224
  %241 = vst [vmem:[#allocation2 + $0x60] sm:$0xff] %v225
  %242 = vst [vmem:[#allocation2 + $0x68] sm:$0xff] %v226
  %243 = vst [vmem:[#allocation2 + $0x70] sm:$0xff] %v227
  %244 = vst [vmem:[#allocation2 + $0x78] sm:$0xff] %v228
  // Predicated region
  $region18: #{diin_forward.22} parent=0 // pred_check
    %p245 = pneg %p15
  $region19: #{diin_forward.22} parent=0 // pred_check_branch
    %247 = sbr.rel (%p245) target = $region21
  $region20: #{diin_forward.22} parent=0 // pred_region
    %v248 = vld [vmem:[#allocation2] sm:$0xff]
    %v249 = vld [vmem:[#allocation2 + $0x8] sm:$0xff]
    %v250 = vld [vmem:[#allocation2 + $0x10] sm:$0xff]
    %v251 = vld [vmem:[#allocation2 + $0x18] sm:$0xff]
    %v252 = vld [vmem:[#allocation2 + $0x20] sm:$0xff]
    %v253 = vld [vmem:[#allocation2 + $0x28] sm:$0xff]
    %v254 = vld [vmem:[#allocation2 + $0x30] sm:$0xff]
    %v255 = vld [vmem:[#allocation2 + $0x38] sm:$0xff]
    %v256 = vld [vmem:[#allocation2 + $0x40] sm:$0xff]
    %v257 = vld [vmem:[#allocation2 + $0x48] sm:$0xff]
    %v258 = vld [vmem:[#allocation2 + $0x50] sm:$0xff]
    %v259 = vld [vmem:[#allocation2 + $0x58] sm:$0xff]
    %v260 = vld [vmem:[#allocation2 + $0x60] sm:$0xff]
    %v261 = vld [vmem:[#allocation2 + $0x68] sm:$0xff]
    %v262 = vld [vmem:[#allocation2 + $0x70] sm:$0xff]
    %v263 = vld [vmem:[#allocation2 + $0x78] sm:$0xff]
    %v264 = vld [vmem:[%s2] sm:$0x1]
    %v266 = vlaneseq
    %v267 = vshrl.u32 %v266, 7
    %v268 = vsub.s32 0, %v267
    %v269 = vrot.slane %v264, %v268
    %v271 = vadd.f32 %v248, %v269
    %v272 = vadd.f32 %v249, %v269
    %v273 = vadd.f32 %v250, %v269
    %v274 = vadd.f32 %v251, %v269
    %v275 = vadd.f32 %v252, %v269
    %v276 = vadd.f32 %v253, %v269
    %v277 = vadd.f32 %v254, %v269
    %v278 = vadd.f32 %v255, %v269
    %v279 = vadd.f32 %v256, %v269
    %v280 = vadd.f32 %v257, %v269
    %v281 = vadd.f32 %v258, %v269
    %v282 = vadd.f32 %v259, %v269
    %v283 = vadd.f32 %v260, %v269
    %v284 = vadd.f32 %v261, %v269
    %v285 = vadd.f32 %v262, %v269
    %v286 = vadd.f32 %v263, %v269
    %287 = vst [vmem:[%s3] sm:$0xff] %v271
    %288 = vst [vmem:[%s3 + $0x8] sm:$0xff] %v272
    %289 = vst [vmem:[%s3 + $0x10] sm:$0xff] %v273
    %290 = vst [vmem:[%s3 + $0x18] sm:$0xff] %v274
    %291 = vst [vmem:[%s3 + $0x20] sm:$0xff] %v275
    %292 = vst [vmem:[%s3 + $0x28] sm:$0xff] %v276
    %293 = vst [vmem:[%s3 + $0x30] sm:$0xff] %v277
    %294 = vst [vmem:[%s3 + $0x38] sm:$0xff] %v278
    %295 = vst [vmem:[%s3 + $0x40] sm:$0xff] %v279
    %296 = vst [vmem:[%s3 + $0x48] sm:$0xff] %v280
    %297 = vst [vmem:[%s3 + $0x50] sm:$0xff] %v281
    %298 = vst [vmem:[%s3 + $0x58] sm:$0xff] %v282
    %299 = vst [vmem:[%s3 + $0x60] sm:$0xff] %v283
    %300 = vst [vmem:[%s3 + $0x68] sm:$0xff] %v284
    %301 = vst [vmem:[%s3 + $0x70] sm:$0xff] %v285
    %302 = vst [vmem:[%s3 + $0x78] sm:$0xff] %v286
  $region21: #{diin_forward.22} parent=0 // pred_fallthru
    _
  // Predicated region
  $region22: #{diin_forward.22} parent=0 // pred_check
    _
  $region23: #{diin_forward.22} parent=0 // pred_check_branch
    %304 = sbr.rel (0) target = $region25
  $region24: #{diin_forward.22} parent=0 // pred_region
    _
  $region25: #{diin_forward.22} parent=0 // pred_fallthru
    _
  // Predicated region
  $region26: #{diin_forward.22} parent=0 // pred_check
    _
  $region27: #{diin_forward.22} parent=0 // pred_check_branch
    %306 = sbr.rel (0) target = $region29
  $region28: #{diin_forward.22} parent=0 // pred_region
    _
  $region29: #{diin_forward.22} parent=0 // pred_fallthru
    _

// kernel: diin_forward.21
$region0: #{diin_forward.21}
  #allocation0 [shape = 'u32[]', space=smem, size = 0x4, offset = 0x4, fixed_abs, tag = 'smem constant byte address 0x4 - core index']
  #allocation1 [shape = 'u32[144,128]{1,0:T(1,128)}', space=vmem, size = 0x12000, scoped, tag = 'internal scratch']
  %s0 = inlined_call_operand.vmem [shape: f32[2,102,20], index: 0, kind: input, shape index: {}]
  %s1 = inlined_call_operand.vmem [shape: bf16[9,20,4], index: 1, kind: input, shape index: {}]
  %s2 = inlined_call_operand.vmem [shape: f32[2,80,4], index: 2, kind: output, shape index: {}]
  %s3 = sld [smem:[#allocation0]]
  $region41: #{diin_forward.21} parent=0
    _
  %s5 = ssub.s32 1, %s3
  %s6 = scalar_select 0, %s5, %s3
  loop: start=0, step=1, limit=4
  $region2: #{diin_forward.21} parent=0 // loop_pre_header
    _
  $region3: #{diin_forward.21} parent=0 // loop_header
    %s8 = sphi 0, %s12
    %p9 = scmp.ge.s32.totalorder %s8, 4
    %s18 = sphi 0, %s20
    %s21 = sphi 0, %s18
    %s22 = sphi 0, %s21
    %s38 = sphi 0, %s22
    %s42 = sphi 0, %s42
    %s44 = sphi 0, %s42
    %s45 = sphi 0, %s44
    %s59 = sphi 0, %s45
    %s65 = sphi 0, %s67
    %s68 = sphi 0, %s65
    %s69 = sphi 0, %s68
    %s85 = sphi 0, %s69
  $region4: #{diin_forward.21} parent=0 // loop_header_branch
    %11 = sbr.rel (%p9) target = $region8
  $region5: #{diin_forward.21} parent=0 // loop_body
    %s13 = ssub.s32 %s8, 1
    %s14 = ssub.s32 %s8, 2
    %s15 = sadd.s32 %s8, 1
    %s16 = ssub.s32 %s8, %s15
    %p17 = scmp.eq.s32.totalorder %s16, 0
    %s19 = sadd.s32 %s18, 1
    %s20 = scalar_select %p17, %s18, %s19
    %p23 = pneg %p17
    %p24 = scmp.eq.s32.totalorder %s8, 1
    %p25 = por %p23, %p24
    %p26 = scmp.ne.s32.totalorder %s18, %s21
    %p27 = scmp.eq.s32.totalorder %s8, 0
    %p28 = por %p26, %p27
    %p29 = scmp.ne.s32.totalorder %s18, %s21
    %p30 = scmp.eq.s32.totalorder %s13, 1
    %p31 = por %p29, %p30
    %p32 = scmp.ne.s32.totalorder %s21, %s22
    %p33 = scmp.eq.s32.totalorder %s13, 0
    %p34 = por %p32, %p33
    %p35 = scmp.ne.s32.totalorder %s21, %s22
    %p36 = scmp.eq.s32.totalorder %s14, 1
    %p37 = por %p35, %p36
    %p39 = scmp.ne.s32.totalorder %s22, %s38
    %p40 = scmp.eq.s32.totalorder %s14, 0
    %p41 = por %p39, %p40
    %s43 = sadd.s32 %s42, 1
    %p46 = scmp.eq.s32.totalorder %s8, 1
    %p47 = scmp.ne.s32.totalorder %s42, %s44
    %p48 = scmp.eq.s32.totalorder %s8, 0
    %p49 = por %p47, %p48
    %p50 = scmp.ne.s32.totalorder %s42, %s44
    %p51 = scmp.eq.s32.totalorder %s13, 1
    %p52 = por %p50, %p51
    %p53 = scmp.ne.s32.totalorder %s44, %s45
    %p54 = scmp.eq.s32.totalorder %s13, 0
    %p55 = por %p53, %p54
    %p56 = scmp.ne.s32.totalorder %s44, %s45
    %p57 = scmp.eq.s32.totalorder %s14, 1
    %p58 = por %p56, %p57
    %p60 = scmp.ne.s32.totalorder %s45, %s59
    %p61 = scmp.eq.s32.totalorder %s14, 0
    %p62 = por %p60, %p61
    %s63 = ssub.s32 %s8, %s15
    %p64 = scmp.eq.s32.totalorder %s63, 0
    %s66 = sadd.s32 %s65, 1
    %s67 = scalar_select %p64, %s65, %s66
    %p70 = pneg %p64
    %p71 = scmp.eq.s32.totalorder %s8, 1
    %p72 = por %p70, %p71
    %p73 = scmp.ne.s32.totalorder %s65, %s68
    %p74 = scmp.eq.s32.totalorder %s8, 0
    %p75 = por %p73, %p74
    %p76 = scmp.ne.s32.totalorder %s65, %s68
    %p77 = scmp.eq.s32.totalorder %s13, 1
    %p78 = por %p76, %p77
    %p79 = scmp.ne.s32.totalorder %s68, %s69
    %p80 = scmp.eq.s32.totalorder %s13, 0
    %p81 = por %p79, %p80
    %p82 = scmp.ne.s32.totalorder %s68, %s69
    %p83 = scmp.eq.s32.totalorder %s14, 1
    %p84 = por %p82, %p83
    %p86 = scmp.ne.s32.totalorder %s69, %s85
    %p87 = scmp.eq.s32.totalorder %s14, 0
    %p88 = por %p86, %p87
    %p89 = scmp.le.s32.totalorder 1, %s8
    %p90 = scmp.lt.s32.totalorder %s8, 3
    %p91 = pnand %p89, %p90
    %p92 = pneg %p91
    // Predicated region
    $region9: #{diin_forward.21} parent=5 // pred_check
      _
    $region10: #{diin_forward.21} parent=5 // pred_check_branch
      %94 = sbr.rel (%p91) target = $region12
    $region11: #{diin_forward.21} parent=5 // pred_region
      %s95 = ssub.s32 %s8, 1
      // Predicated region
      $region13: #{diin_forward.21} parent=11 // pred_check
        %p96 = pneg %p55
      $region14: #{diin_forward.21} parent=11 // pred_check_branch
        %98 = sbr.rel (%p96) target = $region16
      $region15: #{diin_forward.21} parent=11 // pred_region
        _
      $region16: #{diin_forward.21} parent=11 // pred_fallthru
        _
    $region12: #{diin_forward.21} parent=5 // pred_fallthru
      _
    %p99 = scmp.lt.s32.totalorder %s8, 2
    // Predicated region
    $region17: #{diin_forward.21} parent=5 // pred_check
      %p100 = pneg %p99
    $region18: #{diin_forward.21} parent=5 // pred_check_branch
      %102 = sbr.rel (%p100) target = $region20
    $region19: #{diin_forward.21} parent=5 // pred_region
      // Predicated region
      $region21: #{diin_forward.21} parent=19 // pred_check
        %p103 = pneg %p28
      $region22: #{diin_forward.21} parent=19 // pred_check_branch
        %105 = sbr.rel (%p103) target = $region24
      $region23: #{diin_forward.21} parent=19 // pred_region
        %p106 = scmp.lt.s32.totalorder %s8, 1
        %s107 = scalar_select %p106, %s8, 1
        %s108 = smul.addr %s107, 13
        %s109 = smul.addr %s108, 8
        %s110 = scalar_lea.vmem %s0, %s109
      $region24: #{diin_forward.21} parent=19 // pred_fallthru
        _
    $region20: #{diin_forward.21} parent=5 // pred_fallthru
      _
    %p111 = scmp.le.s32.totalorder 1, %s8
    %p112 = scmp.lt.s32.totalorder %s8, 3
    %p113 = pnand %p111, %p112
    %p114 = pneg %p113
    // Predicated region
    $region25: #{diin_forward.21} parent=5 // pred_check
      _
    $region26: #{diin_forward.21} parent=5 // pred_check_branch
      %116 = sbr.rel (%p113) target = $region28
    $region27: #{diin_forward.21} parent=5 // pred_region
      %s117 = ssub.s32 %s8, 1
      %p118 = scmp.lt.s32.totalorder %s13, 1
      %s119 = scalar_select %p118, %s13, 1
      %s120 = smul.addr %s119, 13
      %s121 = smul.addr %s120, 8
      %s122 = scalar_lea.vmem %s0, %s121
      %p123 = pneg %p34
      %p124 = pneg %p31
      %p125 = pneg %p55
      %p126 = pneg %p52
      %p127 = pneg %p81
      %p128 = pneg %p78
      %p129 = scmp.lt.s32.totalorder %s13, 1
      %s130 = scalar_select %p129, %s13, 1
      %s131 = smul.addr %s130, 10
      %s132 = smul.addr %s131, 8
      %s133 = scalar_lea.vmem %s2, %s132
      %p134 = scmp.lt.s32.totalorder %s13, 1
      %s135 = scalar_select %p134, %s13, 1
      %s136 = smul.addr %s135, 13
      %s137 = smul.addr %s136, 8
      %s138 = scalar_lea.vmem %s0, %s137
      %p139 = scmp.lt.s32.totalorder %s13, 1
      %s140 = scalar_select %p139, %s13, 1
      %s141 = smul.addr %s140, 10
      %s142 = smul.addr %s141, 8
      %s143 = scalar_lea.vmem %s2, %s142
      %v145 = vld [vmem:[%s138] sm:$0xff]
      %v146 = vld [vmem:[%s138 + $0x8] sm:$0xff]
      %v147 = vld [vmem:[%s138 + $0x10] sm:$0xff]
      %v148 = vld [vmem:[%s138 + $0x18] sm:$0xff]
      %v149 = vld [vmem:[%s138 + $0x20] sm:$0xff]
      %v150 = vld [vmem:[%s138 + $0x28] sm:$0xff]
      %v151 = vld [vmem:[%s138 + $0x30] sm:$0xff]
      %v152 = vld [vmem:[%s138 + $0x38] sm:$0xff]
      %v153 = vld [vmem:[%s138 + $0x40] sm:$0xff]
      %v154 = vld [vmem:[%s138 + $0x48] sm:$0xff]
      %v155 = vpack.c.bf16 %v146, %v145
      %v156 = vpack.c.bf16 %v148, %v147
      %v157 = vpack.c.bf16 %v150, %v149
      %v158 = vpack.c.bf16 %v152, %v151
      %v159 = vpack.c.bf16 %v154, %v153
      %v160 = vld [vmem:[%s1] sm:$0xf]
      %v161 = vld [vmem:[%s1 + $0x4] sm:$0xf]
      %v162 = vld [vmem:[%s1 + $0x8] sm:$0x3]
      %v163 = vld [vmem:[%s138 + $0x1] sm:$0xff]
      %v164 = vld [vmem:[%s138 + $0x9] sm:$0xff]
      %v165 = vld [vmem:[%s138 + $0x11] sm:$0xff]
      %v166 = vld [vmem:[%s138 + $0x19] sm:$0xff]
      %v167 = vld [vmem:[%s138 + $0x21] sm:$0xff]
      %v168 = vld [vmem:[%s138 + $0x29] sm:$0xff]
      %v169 = vld [vmem:[%s138 + $0x31] sm:$0xff]
      %v170 = vld [vmem:[%s138 + $0x39] sm:$0xff]
      %v171 = vld [vmem:[%s138 + $0x41] sm:$0xff]
      %v172 = vld [vmem:[%s138 + $0x49] sm:$0xff]
      %v173 = vpack.c.bf16 %v164, %v163
      %v174 = vpack.c.bf16 %v166, %v165
      %v175 = vpack.c.bf16 %v168, %v167
      %v176 = vpack.c.bf16 %v170, %v169
      %v177 = vpack.c.bf16 %v172, %v171
      %s178 = scalar_lea.vmem %s1, 12
      %v179 = vld [vmem:[%s178] sm:$0xf]
      %v180 = vld [vmem:[%s178 + $0x4] sm:$0xf]
      %v181 = vld [vmem:[%s178 + $0x8] sm:$0x3]
      %v185 = vunpack.c.l.b16 %v179
      %v186 = vunpack.c.l.b16 %v180
      %v187 = vunpack.c.l.b16 %v181
      %v188 = vpack.c.b16 %v186, %v185
      %v189 = vpack.c.b16 %v187, %v187
      %vm191 = vcmask 162816
      %v193 = vsel %vm191, %v173, 0
      %v196 = vsel %vm191, %v174, 0
      %v199 = vsel %vm191, %v175, 0
      %v202 = vsel %vm191, %v176, 0
      %v205 = vsel %vm191, %v177, 0
      %vm207 = vcmask 1041408
      %v209 = vsel %vm207, %v189, 0
      %211 = vmatprep.subr.bf16.mxu0 0
      %212 = vmatpush1.bf16.msra.mxu0 0
      %213 = vmatprep.subr.bf16.mxu0 0
      %214 = vmatpush1.bf16.msra.mxu0 0
      %215 = vmatprep.subr.bf16.mxu0 0
      %216 = vmatpush1.bf16.msra.mxu0 0
      %217 = vmatprep.subr.bf16.mxu0 0
      %218 = vmatpush1.bf16.msra.mxu0 0
      %219 = vmatprep.subr.bf16.mxu0 0
      %220 = vmatpush1.bf16.msra.mxu0 0
      %221 = vmatprep.subr.bf16.mxu0 0
      %222 = vmatpush1.bf16.msra.mxu0 0
      %223 = vmatprep.subr.bf16.mxu0 0
      %224 = vmatpush1.bf16.msra.mxu0 %v209
      %225 = vmatprep.subr.bf16.mxu0 0
      %226 = vmatpush1.bf16.msra.mxu0 %v188
      %227 = vmatprep.subr.bf16.mxu0 0
      %228 = vmatpush2.bf16.msra.mxu0 0
      %229 = vmatprep.subr.bf16.mxu0 0
      %230 = vmatpush2.bf16.msra.mxu0 0
      %231 = vmatprep.subr.bf16.mxu0 0
      %232 = vmatpush2.bf16.msra.mxu0 0
      %233 = vmatprep.subr.bf16.mxu0 0
      %234 = vmatpush2.bf16.msra.mxu0 0
      %235 = vmatprep.subr.bf16.mxu0 0
      %236 = vmatpush2.bf16.msra.mxu0 0
      %237 = vmatprep.subr.bf16.mxu0 0
      %238 = vmatpush2.bf16.msra.mxu0 0
      %239 = vmatprep.subr.bf16.mxu0 0
      %240 = vmatpush2.bf16.msra.mxu0 0
      %241 = vmatprep.subr.bf16.mxu0 0
      %242 = vmatpush2.bf16.msra.mxu0 0
      %243 = vmatprep.mubr.bf16.mxu0 0
      %244 = vmatmul.mubr.bf16.gmra.mxu0 %v193
      %v245 = vpop.f32.mrf.mxu0
      %v246 = vadd.f32 0.0, %v245
      %v247 = vpop.f32.mrf.mxu0
      %v248 = vpop.f32.mrf.mxu0
      %v249 = vadd.f32 0.0, %v248
      %v250 = vpop.f32.mrf.mxu0
      %251 = vmatprep.mubr.bf16.mxu0 0
      %252 = vmatmul.mubr.bf16.gmra.mxu0 %v196
      %v253 = vpop.f32.mrf.mxu0
      %v254 = vadd.f32 0.0, %v253
      %v255 = vpop.f32.mrf.mxu0
      %v256 = vpop.f32.mrf.mxu0
      %v257 = vadd.f32 0.0, %v256
      %v258 = vpop.f32.mrf.mxu0
      %259 = vmatprep.mubr.bf16.mxu0 0
      %260 = vmatmul.mubr.bf16.gmra.mxu0 %v199
      %v261 = vpop.f32.mrf.mxu0
      %v262 = vadd.f32 0.0, %v261
      %v263 = vpop.f32.mrf.mxu0
      %v264 = vpop.f32.mrf.mxu0
      %v265 = vadd.f32 0.0, %v264
      %v266 = vpop.f32.mrf.mxu0
      %267 = vmatprep.mubr.bf16.mxu0 0
      %268 = vmatmul.mubr.bf16.gmra.mxu0 %v202
      %v269 = vpop.f32.mrf.mxu0
      %v270 = vadd.f32 0.0, %v269
      %v271 = vpop.f32.mrf.mxu0
      %v272 = vpop.f32.mrf.mxu0
      %v273 = vadd.f32 0.0, %v272
      %v274 = vpop.f32.mrf.mxu0
      %275 = vmatprep.mubr.bf16.mxu0 0
      %276 = vmatmul.mubr.bf16.gmra.mxu0 %v205
      %v277 = vpop.f32.mrf.mxu0
      %v278 = vadd.f32 0.0, %v277
      %v279 = vpop.f32.mrf.mxu0
      %v280 = vpop.f32.mrf.mxu0
      %v281 = vadd.f32 0.0, %v280
      %v282 = vpop.f32.mrf.mxu0
      %283 = vdwg.mxu0
      %v287 = vunpack.c.l.b16 %v160
      %v288 = vunpack.c.l.b16 %v161
      %v289 = vunpack.c.l.b16 %v162
      %v290 = vpack.c.b16 %v288, %v287
      %v291 = vpack.c.b16 %v289, %v289
      %v294 = vsel %vm191, %v155, 0
      %v297 = vsel %vm191, %v156, 0
      %v300 = vsel %vm191, %v157, 0
      %v303 = vsel %vm191, %v158, 0
      %v306 = vsel %vm191, %v159, 0
      %v309 = vsel %vm207, %v291, 0
      %311 = vmatprep.subr.bf16.mxu0 0
      %312 = vmatpush1.bf16.msra.mxu0 0
      %313 = vmatprep.subr.bf16.mxu0 0
      %314 = vmatpush1.bf16.msra.mxu0 0
      %315 = vmatprep.subr.bf16.mxu0 0
      %316 = vmatpush1.bf16.msra.mxu0 0
      %317 = vmatprep.subr.bf16.mxu0 0
      %318 = vmatpush1.bf16.msra.mxu0 0
      %319 = vmatprep.subr.bf16.mxu0 0
      %320 = vmatpush1.bf16.msra.mxu0 0
      %321 = vmatprep.subr.bf16.mxu0 0
      %322 = vmatpush1.bf16.msra.mxu0 0
      %323 = vmatprep.subr.bf16.mxu0 0
      %324 = vmatpush1.bf16.msra.mxu0 %v309
      %325 = vmatprep.subr.bf16.mxu0 0
      %326 = vmatpush1.bf16.msra.mxu0 %v290
      %327 = vmatprep.subr.bf16.mxu0 0
      %328 = vmatpush2.bf16.msra.mxu0 0
      %329 = vmatprep.subr.bf16.mxu0 0
      %330 = vmatpush2.bf16.msra.mxu0 0
      %331 = vmatprep.subr.bf16.mxu0 0
      %332 = vmatpush2.bf16.msra.mxu0 0
      %333 = vmatprep.subr.bf16.mxu0 0
      %334 = vmatpush2.bf16.msra.mxu0 0
      %335 = vmatprep.subr.bf16.mxu0 0
      %336 = vmatpush2.bf16.msra.mxu0 0
      %337 = vmatprep.subr.bf16.mxu0 0
      %338 = vmatpush2.bf16.msra.mxu0 0
      %339 = vmatprep.subr.bf16.mxu0 0
      %340 = vmatpush2.bf16.msra.mxu0 0
      %341 = vmatprep.subr.bf16.mxu0 0
      %342 = vmatpush2.bf16.msra.mxu0 0
      %343 = vmatprep.mubr.bf16.mxu0 0
      %344 = vmatmul.mubr.bf16.gmra.mxu0 %v294
      %v345 = vpop.f32.mrf.mxu0
      %v346 = vadd.f32 %v246, %v345
      %v347 = vpop.f32.mrf.mxu0
      %v348 = vpop.f32.mrf.mxu0
      %v349 = vadd.f32 %v249, %v348
      %v350 = vpop.f32.mrf.mxu0
      %351 = vmatprep.mubr.bf16.mxu0 0
      %352 = vmatmul.mubr.bf16.gmra.mxu0 %v297
      %v353 = vpop.f32.mrf.mxu0
      %v354 = vadd.f32 %v254, %v353
      %v355 = vpop.f32.mrf.mxu0
      %v356 = vpop.f32.mrf.mxu0
      %v357 = vadd.f32 %v257, %v356
      %v358 = vpop.f32.mrf.mxu0
      %359 = vmatprep.mubr.bf16.mxu0 0
      %360 = vmatmul.mubr.bf16.gmra.mxu0 %v300
      %v361 = vpop.f32.mrf.mxu0
      %v362 = vadd.f32 %v262, %v361
      %v363 = vpop.f32.mrf.mxu0
      %v364 = vpop.f32.mrf.mxu0
      %v365 = vadd.f32 %v265, %v364
      %v366 = vpop.f32.mrf.mxu0
      %367 = vmatprep.mubr.bf16.mxu0 0
      %368 = vmatmul.mubr.bf16.gmra.mxu0 %v303
      %v369 = vpop.f32.mrf.mxu0
      %v370 = vadd.f32 %v270, %v369
      %v371 = vpop.f32.mrf.mxu0
      %v372 = vpop.f32.mrf.mxu0
      %v373 = vadd.f32 %v273, %v372
      %v374 = vpop.f32.mrf.mxu0
      %375 = vmatprep.mubr.bf16.mxu0 0
      %376 = vmatmul.mubr.bf16.gmra.mxu0 %v306
      %v377 = vpop.f32.mrf.mxu0
      %v378 = vadd.f32 %v278, %v377
      %v379 = vpop.f32.mrf.mxu0
      %v380 = vpop.f32.mrf.mxu0
      %v381 = vadd.f32 %v281, %v380
      %v382 = vpop.f32.mrf.mxu0
      %383 = vdwg.mxu0
      %v384 = vld [vmem:[%s138 + $0x2] sm:$0xff]
      %v385 = vld [vmem:[%s138 + $0xa] sm:$0xff]
      %v386 = vld [vmem:[%s138 + $0x12] sm:$0xff]
      %v387 = vld [vmem:[%s138 + $0x1a] sm:$0xff]
      %v388 = vld [vmem:[%s138 + $0x22] sm:$0xff]
      %v389 = vld [vmem:[%s138 + $0x2a] sm:$0xff]
      %v390 = vld [vmem:[%s138 + $0x32] sm:$0xff]
      %v391 = vld [vmem:[%s138 + $0x3a] sm:$0xff]
      %v392 = vld [vmem:[%s138 + $0x42] sm:$0xff]
      %v393 = vld [vmem:[%s138 + $0x4a] sm:$0xff]
      %v394 = vpack.c.bf16 %v385, %v384
      %v395 = vpack.c.bf16 %v387, %v386
      %v396 = vpack.c.bf16 %v389, %v388
      %v397 = vpack.c.bf16 %v391, %v390
      %v398 = vpack.c.bf16 %v393, %v392
      %s399 = scalar_lea.vmem %s1, 24
      %v400 = vld [vmem:[%s399] sm:$0xf]
      %v401 = vld [vmem:[%s399 + $0x4] sm:$0xf]
      %v402 = vld [vmem:[%s399 + $0x8] sm:$0x3]
      %v406 = vunpack.c.l.b16 %v400
      %v407 = vunpack.c.l.b16 %v401
      %v408 = vunpack.c.l.b16 %v402
      %v409 = vpack.c.b16 %v407, %v406
      %v410 = vpack.c.b16 %v408, %v408
      %v413 = vsel %vm191, %v394, 0
      %v416 = vsel %vm191, %v395, 0
      %v419 = vsel %vm191, %v396, 0
      %v422 = vsel %vm191, %v397, 0
      %v425 = vsel %vm191, %v398, 0
      %v428 = vsel %vm207, %v410, 0
      %430 = vmatprep.subr.bf16.mxu0 0
      %431 = vmatpush1.bf16.msra.mxu0 0
      %432 = vmatprep.subr.bf16.mxu0 0
      %433 = vmatpush1.bf16.msra.mxu0 0
      %434 = vmatprep.subr.bf16.mxu0 0
      %435 = vmatpush1.bf16.msra.mxu0 0
      %436 = vmatprep.subr.bf16.mxu0 0
      %437 = vmatpush1.bf16.msra.mxu0 0
      %438 = vmatprep.subr.bf16.mxu0 0
      %439 = vmatpush1.bf16.msra.mxu0 0
      %440 = vmatprep.subr.bf16.mxu0 0
      %441 = vmatpush1.bf16.msra.mxu0 0
      %442 = vmatprep.subr.bf16.mxu0 0
      %443 = vmatpush1.bf16.msra.mxu0 %v428
      %444 = vmatprep.subr.bf16.mxu0 0
      %445 = vmatpush1.bf16.msra.mxu0 %v409
      %446 = vmatprep.subr.bf16.mxu0 0
      %447 = vmatpush2.bf16.msra.mxu0 0
      %448 = vmatprep.subr.bf16.mxu0 0
      %449 = vmatpush2.bf16.msra.mxu0 0
      %450 = vmatprep.subr.bf16.mxu0 0
      %451 = vmatpush2.bf16.msra.mxu0 0
      %452 = vmatprep.subr.bf16.mxu0 0
      %453 = vmatpush2.bf16.msra.mxu0 0
      %454 = vmatprep.subr.bf16.mxu0 0
      %455 = vmatpush2.bf16.msra.mxu0 0
      %456 = vmatprep.subr.bf16.mxu0 0
      %457 = vmatpush2.bf16.msra.mxu0 0
      %458 = vmatprep.subr.bf16.mxu0 0
      %459 = vmatpush2.bf16.msra.mxu0 0
      %460 = vmatprep.subr.bf16.mxu0 0
      %461 = vmatpush2.bf16.msra.mxu0 0
      %462 = vmatprep.mubr.bf16.mxu0 0
      %463 = vmatmul.mubr.bf16.gmra.mxu0 %v413
      %v464 = vpop.f32.mrf.mxu0
      %v465 = vadd.f32 0.0, %v464
      %v466 = vpop.f32.mrf.mxu0
      %v467 = vpop.f32.mrf.mxu0
      %v468 = vadd.f32 0.0, %v467
      %v469 = vpop.f32.mrf.mxu0
      %470 = vmatprep.mubr.bf16.mxu0 0
      %471 = vmatmul.mubr.bf16.gmra.mxu0 %v416
      %v472 = vpop.f32.mrf.mxu0
      %v473 = vadd.f32 0.0, %v472
      %v474 = vpop.f32.mrf.mxu0
      %v475 = vpop.f32.mrf.mxu0
      %v476 = vadd.f32 0.0, %v475
      %v477 = vpop.f32.mrf.mxu0
      %478 = vmatprep.mubr.bf16.mxu0 0
      %479 = vmatmul.mubr.bf16.gmra.mxu0 %v419
      %v480 = vpop.f32.mrf.mxu0
      %v481 = vadd.f32 0.0, %v480
      %v482 = vpop.f32.mrf.mxu0
      %v483 = vpop.f32.mrf.mxu0
      %v484 = vadd.f32 0.0, %v483
      %v485 = vpop.f32.mrf.mxu0
      %486 = vmatprep.mubr.bf16.mxu0 0
      %487 = vmatmul.mubr.bf16.gmra.mxu0 %v422
      %v488 = vpop.f32.mrf.mxu0
      %v489 = vadd.f32 0.0, %v488
      %v490 = vpop.f32.mrf.mxu0
      %v491 = vpop.f32.mrf.mxu0
      %v492 = vadd.f32 0.0, %v491
      %v493 = vpop.f32.mrf.mxu0
      %494 = vmatprep.mubr.bf16.mxu0 0
      %495 = vmatmul.mubr.bf16.gmra.mxu0 %v425
      %v496 = vpop.f32.mrf.mxu0
      %v497 = vadd.f32 0.0, %v496
      %v498 = vpop.f32.mrf.mxu0
      %v499 = vpop.f32.mrf.mxu0
      %v500 = vadd.f32 0.0, %v499
      %v501 = vpop.f32.mrf.mxu0
      %502 = vdwg.mxu0
      %v503 = vadd.f32 %v346, %v465
      %v504 = vadd.f32 %v349, %v468
      %v505 = vadd.f32 %v354, %v473
      %v506 = vadd.f32 %v357, %v476
      %v507 = vadd.f32 %v362, %v481
      %v508 = vadd.f32 %v365, %v484
      %v509 = vadd.f32 %v370, %v489
      %v510 = vadd.f32 %v373, %v492
      %v511 = vadd.f32 %v378, %v497
      %v512 = vadd.f32 %v381, %v500
      %v513 = vld [vmem:[%s138 + $0xa] sm:$0xff]
      %v514 = vld [vmem:[%s138 + $0x12] sm:$0xff]
      %v515 = vld [vmem:[%s138 + $0x1a] sm:$0xff]
      %v516 = vld [vmem:[%s138 + $0x22] sm:$0xff]
      %v517 = vld [vmem:[%s138 + $0x2a] sm:$0xff]
      %v518 = vld [vmem:[%s138 + $0x32] sm:$0xff]
      %v519 = vld [vmem:[%s138 + $0x3a] sm:$0xff]
      %v520 = vld [vmem:[%s138 + $0x42] sm:$0xff]
      %v521 = vld [vmem:[%s138 + $0x4a] sm:$0xff]
      %v522 = vld [vmem:[%s138 + $0x52] sm:$0xff]
      %v523 = vpack.c.bf16 %v514, %v513
      %v524 = vpack.c.bf16 %v516, %v515
      %v525 = vpack.c.bf16 %v518, %v517
      %v526 = vpack.c.bf16 %v520, %v519
      %v527 = vpack.c.bf16 %v522, %v521
      %s528 = scalar_lea.vmem %s1, 36
      %v529 = vld [vmem:[%s528] sm:$0xf]
      %v530 = vld [vmem:[%s528 + $0x4] sm:$0xf]
      %v531 = vld [vmem:[%s528 + $0x8] sm:$0x3]
      %v535 = vunpack.c.l.b16 %v529
      %v536 = vunpack.c.l.b16 %v530
      %v537 = vunpack.c.l.b16 %v531
      %v538 = vpack.c.b16 %v536, %v535
      %v539 = vpack.c.b16 %v537, %v537
      %v542 = vsel %vm191, %v523, 0
      %v545 = vsel %vm191, %v524, 0
      %v548 = vsel %vm191, %v525, 0
      %v551 = vsel %vm191, %v526, 0
      %v554 = vsel %vm191, %v527, 0
      %v557 = vsel %vm207, %v539, 0
      %559 = vmatprep.subr.bf16.mxu0 0
      %560 = vmatpush1.bf16.msra.mxu0 0
      %561 = vmatprep.subr.bf16.mxu0 0
      %562 = vmatpush1.bf16.msra.mxu0 0
      %563 = vmatprep.subr.bf16.mxu0 0
      %564 = vmatpush1.bf16.msra.mxu0 0
      %565 = vmatprep.subr.bf16.mxu0 0
      %566 = vmatpush1.bf16.msra.mxu0 0
      %567 = vmatprep.subr.bf16.mxu0 0
      %568 = vmatpush1.bf16.msra.mxu0 0
      %569 = vmatprep.subr.bf16.mxu0 0
      %570 = vmatpush1.bf16.msra.mxu0 0
      %571 = vmatprep.subr.bf16.mxu0 0
      %572 = vmatpush1.bf16.msra.mxu0 %v557
      %573 = vmatprep.subr.bf16.mxu0 0
      %574 = vmatpush1.bf16.msra.mxu0 %v538
      %575 = vmatprep.subr.bf16.mxu0 0
      %576 = vmatpush2.bf16.msra.mxu0 0
      %577 = vmatprep.subr.bf16.mxu0 0
      %578 = vmatpush2.bf16.msra.mxu0 0
      %579 = vmatprep.subr.bf16.mxu0 0
      %580 = vmatpush2.bf16.msra.mxu0 0
      %581 = vmatprep.subr.bf16.mxu0 0
      %582 = vmatpush2.bf16.msra.mxu0 0
      %583 = vmatprep.subr.bf16.mxu0 0
      %584 = vmatpush2.bf16.msra.mxu0 0
      %585 = vmatprep.subr.bf16.mxu0 0
      %586 = vmatpush2.bf16.msra.mxu0 0
      %587 = vmatprep.subr.bf16.mxu0 0
      %588 = vmatpush2.bf16.msra.mxu0 0
      %589 = vmatprep.subr.bf16.mxu0 0
      %590 = vmatpush2.bf16.msra.mxu0 0
      %591 = vmatprep.mubr.bf16.mxu0 0
      %592 = vmatmul.mubr.bf16.gmra.mxu0 %v542
      %v593 = vpop.f32.mrf.mxu0
      %v594 = vadd.f32 0.0, %v593
      %v595 = vpop.f32.mrf.mxu0
      %v596 = vpop.f32.mrf.mxu0
      %v597 = vadd.f32 0.0, %v596
      %v598 = vpop.f32.mrf.mxu0
      %599 = vmatprep.mubr.bf16.mxu0 0
      %600 = vmatmul.mubr.bf16.gmra.mxu0 %v545
      %v601 = vpop.f32.mrf.mxu0
      %v602 = vadd.f32 0.0, %v601
      %v603 = vpop.f32.mrf.mxu0
      %v604 = vpop.f32.mrf.mxu0
      %v605 = vadd.f32 0.0, %v604
      %v606 = vpop.f32.mrf.mxu0
      %607 = vmatprep.mubr.bf16.mxu0 0
      %608 = vmatmul.mubr.bf16.gmra.mxu0 %v548
      %v609 = vpop.f32.mrf.mxu0
      %v610 = vadd.f32 0.0, %v609
      %v611 = vpop.f32.mrf.mxu0
      %v612 = vpop.f32.mrf.mxu0
      %v613 = vadd.f32 0.0, %v612
      %v614 = vpop.f32.mrf.mxu0
      %615 = vmatprep.mubr.bf16.mxu0 0
      %616 = vmatmul.mubr.bf16.gmra.mxu0 %v551
      %v617 = vpop.f32.mrf.mxu0
      %v618 = vadd.f32 0.0, %v617
      %v619 = vpop.f32.mrf.mxu0
      %v620 = vpop.f32.mrf.mxu0
      %v621 = vadd.f32 0.0, %v620
      %v622 = vpop.f32.mrf.mxu0
      %623 = vmatprep.mubr.bf16.mxu0 0
      %624 = vmatmul.mubr.bf16.gmra.mxu0 %v554
      %v625 = vpop.f32.mrf.mxu0
      %v626 = vadd.f32 0.0, %v625
      %v627 = vpop.f32.mrf.mxu0
      %v628 = vpop.f32.mrf.mxu0
      %v629 = vadd.f32 0.0, %v628
      %v630 = vpop.f32.mrf.mxu0
      %631 = vdwg.mxu0
      %v632 = vadd.f32 %v503, %v594
      %v633 = vadd.f32 %v504, %v597
      %v634 = vadd.f32 %v505, %v602
      %v635 = vadd.f32 %v506, %v605
      %v636 = vadd.f32 %v507, %v610
      %v637 = vadd.f32 %v508, %v613
      %v638 = vadd.f32 %v509, %v618
      %v639 = vadd.f32 %v510, %v621
      %v640 = vadd.f32 %v511, %v626
      %v641 = vadd.f32 %v512, %v629
      %v642 = vld [vmem:[%s138 + $0xb] sm:$0xff]
      %v643 = vld [vmem:[%s138 + $0x13] sm:$0xff]
      %v644 = vld [vmem:[%s138 + $0x1b] sm:$0xff]
      %v645 = vld [vmem:[%s138 + $0x23] sm:$0xff]
      %v646 = vld [vmem:[%s138 + $0x2b] sm:$0xff]
      %v647 = vld [vmem:[%s138 + $0x33] sm:$0xff]
      %v648 = vld [vmem:[%s138 + $0x3b] sm:$0xff]
      %v649 = vld [vmem:[%s138 + $0x43] sm:$0xff]
      %v650 = vld [vmem:[%s138 + $0x4b] sm:$0xff]
      %v651 = vld [vmem:[%s138 + $0x53] sm:$0xff]
      %v652 = vpack.c.bf16 %v643, %v642
      %v653 = vpack.c.bf16 %v645, %v644
      %v654 = vpack.c.bf16 %v647, %v646
      %v655 = vpack.c.bf16 %v649, %v648
      %v656 = vpack.c.bf16 %v651, %v650
      %s657 = scalar_lea.vmem %s1, 48
      %v658 = vld [vmem:[%s657] sm:$0xf]
      %v659 = vld [vmem:[%s657 + $0x4] sm:$0xf]
      %v660 = vld [vmem:[%s657 + $0x8] sm:$0x3]
      %v664 = vunpack.c.l.b16 %v658
      %v665 = vunpack.c.l.b16 %v659
      %v666 = vunpack.c.l.b16 %v660
      %v667 = vpack.c.b16 %v665, %v664
      %v668 = vpack.c.b16 %v666, %v666
      %v671 = vsel %vm191, %v652, 0
      %v674 = vsel %vm191, %v653, 0
      %v677 = vsel %vm191, %v654, 0
      %v680 = vsel %vm191, %v655, 0
      %v683 = vsel %vm191, %v656, 0
      %v686 = vsel %vm207, %v668, 0
      %688 = vmatprep.subr.bf16.mxu0 0
      %689 = vmatpush1.bf16.msra.mxu0 0
      %690 = vmatprep.subr.bf16.mxu0 0
      %691 = vmatpush1.bf16.msra.mxu0 0
      %692 = vmatprep.subr.bf16.mxu0 0
      %693 = vmatpush1.bf16.msra.mxu0 0
      %694 = vmatprep.subr.bf16.mxu0 0
      %695 = vmatpush1.bf16.msra.mxu0 0
      %696 = vmatprep.subr.bf16.mxu0 0
      %697 = vmatpush1.bf16.msra.mxu0 0
      %698 = vmatprep.subr.bf16.mxu0 0
      %699 = vmatpush1.bf16.msra.mxu0 0
      %700 = vmatprep.subr.bf16.mxu0 0
      %701 = vmatpush1.bf16.msra.mxu0 %v686
      %702 = vmatprep.subr.bf16.mxu0 0
      %703 = vmatpush1.bf16.msra.mxu0 %v667
      %704 = vmatprep.subr.bf16.mxu0 0
      %705 = vmatpush2.bf16.msra.mxu0 0
      %706 = vmatprep.subr.bf16.mxu0 0
      %707 = vmatpush2.bf16.msra.mxu0 0
      %708 = vmatprep.subr.bf16.mxu0 0
      %709 = vmatpush2.bf16.msra.mxu0 0
      %710 = vmatprep.subr.bf16.mxu0 0
      %711 = vmatpush2.bf16.msra.mxu0 0
      %712 = vmatprep.subr.bf16.mxu0 0
      %713 = vmatpush2.bf16.msra.mxu0 0
      %714 = vmatprep.subr.bf16.mxu0 0
      %715 = vmatpush2.bf16.msra.mxu0 0
      %716 = vmatprep.subr.bf16.mxu0 0
      %717 = vmatpush2.bf16.msra.mxu0 0
      %718 = vmatprep.subr.bf16.mxu0 0
      %719 = vmatpush2.bf16.msra.mxu0 0
      %720 = vmatprep.mubr.bf16.mxu0 0
      %721 = vmatmul.mubr.bf16.gmra.mxu0 %v671
      %v722 = vpop.f32.mrf.mxu0
      %v723 = vadd.f32 0.0, %v722
      %v724 = vpop.f32.mrf.mxu0
      %v725 = vpop.f32.mrf.mxu0
      %v726 = vadd.f32 0.0, %v725
      %v727 = vpop.f32.mrf.mxu0
      %728 = vmatprep.mubr.bf16.mxu0 0
      %729 = vmatmul.mubr.bf16.gmra.mxu0 %v674
      %v730 = vpop.f32.mrf.mxu0
      %v731 = vadd.f32 0.0, %v730
      %v732 = vpop.f32.mrf.mxu0
      %v733 = vpop.f32.mrf.mxu0
      %v734 = vadd.f32 0.0, %v733
      %v735 = vpop.f32.mrf.mxu0
      %736 = vmatprep.mubr.bf16.mxu0 0
      %737 = vmatmul.mubr.bf16.gmra.mxu0 %v677
      %v738 = vpop.f32.mrf.mxu0
      %v739 = vadd.f32 0.0, %v738
      %v740 = vpop.f32.mrf.mxu0
      %v741 = vpop.f32.mrf.mxu0
      %v742 = vadd.f32 0.0, %v741
      %v743 = vpop.f32.mrf.mxu0
      %744 = vmatprep.mubr.bf16.mxu0 0
      %745 = vmatmul.mubr.bf16.gmra.mxu0 %v680
      %v746 = vpop.f32.mrf.mxu0
      %v747 = vadd.f32 0.0, %v746
      %v748 = vpop.f32.mrf.mxu0
      %v749 = vpop.f32.mrf.mxu0
      %v750 = vadd.f32 0.0, %v749
      %v751 = vpop.f32.mrf.mxu0
      %752 = vmatprep.mubr.bf16.mxu0 0
      %753 = vmatmul.mubr.bf16.gmra.mxu0 %v683
      %v754 = vpop.f32.mrf.mxu0
      %v755 = vadd.f32 0.0, %v754
      %v756 = vpop.f32.mrf.mxu0
      %v757 = vpop.f32.mrf.mxu0
      %v758 = vadd.f32 0.0, %v757
      %v759 = vpop.f32.mrf.mxu0
      %760 = vdwg.mxu0
      %v761 = vadd.f32 %v632, %v723
      %v762 = vadd.f32 %v633, %v726
      %v763 = vadd.f32 %v634, %v731
      %v764 = vadd.f32 %v635, %v734
      %v765 = vadd.f32 %v636, %v739
      %v766 = vadd.f32 %v637, %v742
      %v767 = vadd.f32 %v638, %v747
      %v768 = vadd.f32 %v639, %v750
      %v769 = vadd.f32 %v640, %v755
      %v770 = vadd.f32 %v641, %v758
      %v771 = vld [vmem:[%s138 + $0xc] sm:$0xff]
      %v772 = vld [vmem:[%s138 + $0x14] sm:$0xff]
      %v773 = vld [vmem:[%s138 + $0x1c] sm:$0xff]
      %v774 = vld [vmem:[%s138 + $0x24] sm:$0xff]
      %v775 = vld [vmem:[%s138 + $0x2c] sm:$0xff]
      %v776 = vld [vmem:[%s138 + $0x34] sm:$0xff]
      %v777 = vld [vmem:[%s138 + $0x3c] sm:$0xff]
      %v778 = vld [vmem:[%s138 + $0x44] sm:$0xff]
      %v779 = vld [vmem:[%s138 + $0x4c] sm:$0xff]
      %v780 = vld [vmem:[%s138 + $0x54] sm:$0xff]
      %v781 = vpack.c.bf16 %v772, %v771
      %v782 = vpack.c.bf16 %v774, %v773
      %v783 = vpack.c.bf16 %v776, %v775
      %v784 = vpack.c.bf16 %v778, %v777
      %v785 = vpack.c.bf16 %v780, %v779
      %s786 = scalar_lea.vmem %s1, 60
      %v787 = vld [vmem:[%s786] sm:$0xf]
      %v788 = vld [vmem:[%s786 + $0x4] sm:$0xf]
      %v789 = vld [vmem:[%s786 + $0x8] sm:$0x3]
      %v793 = vunpack.c.l.b16 %v787
      %v794 = vunpack.c.l.b16 %v788
      %v795 = vunpack.c.l.b16 %v789
      %v796 = vpack.c.b16 %v794, %v793
      %v797 = vpack.c.b16 %v795, %v795
      %v800 = vsel %vm191, %v781, 0
      %v803 = vsel %vm191, %v782, 0
      %v806 = vsel %vm191, %v783, 0
      %v809 = vsel %vm191, %v784, 0
      %v812 = vsel %vm191, %v785, 0
      %v815 = vsel %vm207, %v797, 0
      %817 = vmatprep.subr.bf16.mxu0 0
      %818 = vmatpush1.bf16.msra.mxu0 0
      %819 = vmatprep.subr.bf16.mxu0 0
      %820 = vmatpush1.bf16.msra.mxu0 0
      %821 = vmatprep.subr.bf16.mxu0 0
      %822 = vmatpush1.bf16.msra.mxu0 0
      %823 = vmatprep.subr.bf16.mxu0 0
      %824 = vmatpush1.bf16.msra.mxu0 0
      %825 = vmatprep.subr.bf16.mxu0 0
      %826 = vmatpush1.bf16.msra.mxu0 0
      %827 = vmatprep.subr.bf16.mxu0 0
      %828 = vmatpush1.bf16.msra.mxu0 0
      %829 = vmatprep.subr.bf16.mxu0 0
      %830 = vmatpush1.bf16.msra.mxu0 %v815
      %831 = vmatprep.subr.bf16.mxu0 0
      %832 = vmatpush1.bf16.msra.mxu0 %v796
      %833 = vmatprep.subr.bf16.mxu0 0
      %834 = vmatpush2.bf16.msra.mxu0 0
      %835 = vmatprep.subr.bf16.mxu0 0
      %836 = vmatpush2.bf16.msra.mxu0 0
      %837 = vmatprep.subr.bf16.mxu0 0
      %838 = vmatpush2.bf16.msra.mxu0 0
      %839 = vmatprep.subr.bf16.mxu0 0
      %840 = vmatpush2.bf16.msra.mxu0 0
      %841 = vmatprep.subr.bf16.mxu0 0
      %842 = vmatpush2.bf16.msra.mxu0 0
      %843 = vmatprep.subr.bf16.mxu0 0
      %844 = vmatpush2.bf16.msra.mxu0 0
      %845 = vmatprep.subr.bf16.mxu0 0
      %846 = vmatpush2.bf16.msra.mxu0 0
      %847 = vmatprep.subr.bf16.mxu0 0
      %848 = vmatpush2.bf16.msra.mxu0 0
      %849 = vmatprep.mubr.bf16.mxu0 0
      %850 = vmatmul.mubr.bf16.gmra.mxu0 %v800
      %v851 = vpop.f32.mrf.mxu0
      %v852 = vadd.f32 0.0, %v851
      %v853 = vpop.f32.mrf.mxu0
      %v854 = vpop.f32.mrf.mxu0
      %v855 = vadd.f32 0.0, %v854
      %v856 = vpop.f32.mrf.mxu0
      %857 = vmatprep.mubr.bf16.mxu0 0
      %858 = vmatmul.mubr.bf16.gmra.mxu0 %v803
      %v859 = vpop.f32.mrf.mxu0
      %v860 = vadd.f32 0.0, %v859
      %v861 = vpop.f32.mrf.mxu0
      %v862 = vpop.f32.mrf.mxu0
      %v863 = vadd.f32 0.0, %v862
      %v864 = vpop.f32.mrf.mxu0
      %865 = vmatprep.mubr.bf16.mxu0 0
      %866 = vmatmul.mubr.bf16.gmra.mxu0 %v806
      %v867 = vpop.f32.mrf.mxu0
      %v868 = vadd.f32 0.0, %v867
      %v869 = vpop.f32.mrf.mxu0
      %v870 = vpop.f32.mrf.mxu0
      %v871 = vadd.f32 0.0, %v870
      %v872 = vpop.f32.mrf.mxu0
      %873 = vmatprep.mubr.bf16.mxu0 0
      %874 = vmatmul.mubr.bf16.gmra.mxu0 %v809
      %v875 = vpop.f32.mrf.mxu0
      %v876 = vadd.f32 0.0, %v875
      %v877 = vpop.f32.mrf.mxu0
      %v878 = vpop.f32.mrf.mxu0
      %v879 = vadd.f32 0.0, %v878
      %v880 = vpop.f32.mrf.mxu0
      %881 = vmatprep.mubr.bf16.mxu0 0
      %882 = vmatmul.mubr.bf16.gmra.mxu0 %v812
      %v883 = vpop.f32.mrf.mxu0
      %v884 = vadd.f32 0.0, %v883
      %v885 = vpop.f32.mrf.mxu0
      %v886 = vpop.f32.mrf.mxu0
      %v887 = vadd.f32 0.0, %v886
      %v888 = vpop.f32.mrf.mxu0
      %889 = vdwg.mxu0
      %v890 = vadd.f32 %v761, %v852
      %v891 = vadd.f32 %v762, %v855
      %v892 = vadd.f32 %v763, %v860
      %v893 = vadd.f32 %v764, %v863
      %v894 = vadd.f32 %v765, %v868
      %v895 = vadd.f32 %v766, %v871
      %v896 = vadd.f32 %v767, %v876
      %v897 = vadd.f32 %v768, %v879
      %v898 = vadd.f32 %v769, %v884
      %v899 = vadd.f32 %v770, %v887
      %v900 = vld [vmem:[%s138 + $0x14] sm:$0xff]
      %v901 = vld [vmem:[%s138 + $0x1c] sm:$0xff]
      %v902 = vld [vmem:[%s138 + $0x24] sm:$0xff]
      %v903 = vld [vmem:[%s138 + $0x2c] sm:$0xff]
      %v904 = vld [vmem:[%s138 + $0x34] sm:$0xff]
      %v905 = vld [vmem:[%s138 + $0x3c] sm:$0xff]
      %v906 = vld [vmem:[%s138 + $0x44] sm:$0xff]
      %v907 = vld [vmem:[%s138 + $0x4c] sm:$0xff]
      %v908 = vld [vmem:[%s138 + $0x54] sm:$0xff]
      %v909 = vld [vmem:[%s138 + $0x5c] sm:$0xff]
      %v910 = vpack.c.bf16 %v901, %v900
      %v911 = vpack.c.bf16 %v903, %v902
      %v912 = vpack.c.bf16 %v905, %v904
      %v913 = vpack.c.bf16 %v907, %v906
      %v914 = vpack.c.bf16 %v909, %v908
      %s915 = scalar_lea.vmem %s1, 72
      %v916 = vld [vmem:[%s915] sm:$0xf]
      %v917 = vld [vmem:[%s915 + $0x4] sm:$0xf]
      %v918 = vld [vmem:[%s915 + $0x8] sm:$0x3]
      %v922 = vunpack.c.l.b16 %v916
      %v923 = vunpack.c.l.b16 %v917
      %v924 = vunpack.c.l.b16 %v918
      %v925 = vpack.c.b16 %v923, %v922
      %v926 = vpack.c.b16 %v924, %v924
      %v929 = vsel %vm191, %v910, 0
      %v932 = vsel %vm191, %v911, 0
      %v935 = vsel %vm191, %v912, 0
      %v938 = vsel %vm191, %v913, 0
      %v941 = vsel %vm191, %v914, 0
      %v944 = vsel %vm207, %v926, 0
      %946 = vmatprep.subr.bf16.mxu0 0
      %947 = vmatpush1.bf16.msra.mxu0 0
      %948 = vmatprep.subr.bf16.mxu0 0
      %949 = vmatpush1.bf16.msra.mxu0 0
      %950 = vmatprep.subr.bf16.mxu0 0
      %951 = vmatpush1.bf16.msra.mxu0 0
      %952 = vmatprep.subr.bf16.mxu0 0
      %953 = vmatpush1.bf16.msra.mxu0 0
      %954 = vmatprep.subr.bf16.mxu0 0
      %955 = vmatpush1.bf16.msra.mxu0 0
      %956 = vmatprep.subr.bf16.mxu0 0
      %957 = vmatpush1.bf16.msra.mxu0 0
      %958 = vmatprep.subr.bf16.mxu0 0
      %959 = vmatpush1.bf16.msra.mxu0 %v944
      %960 = vmatprep.subr.bf16.mxu0 0
      %961 = vmatpush1.bf16.msra.mxu0 %v925
      %962 = vmatprep.subr.bf16.mxu0 0
      %963 = vmatpush2.bf16.msra.mxu0 0
      %964 = vmatprep.subr.bf16.mxu0 0
      %965 = vmatpush2.bf16.msra.mxu0 0
      %966 = vmatprep.subr.bf16.mxu0 0
      %967 = vmatpush2.bf16.msra.mxu0 0
      %968 = vmatprep.subr.bf16.mxu0 0
      %969 = vmatpush2.bf16.msra.mxu0 0
      %970 = vmatprep.subr.bf16.mxu0 0
      %971 = vmatpush2.bf16.msra.mxu0 0
      %972 = vmatprep.subr.bf16.mxu0 0
      %973 = vmatpush2.bf16.msra.mxu0 0
      %974 = vmatprep.subr.bf16.mxu0 0
      %975 = vmatpush2.bf16.msra.mxu0 0
      %976 = vmatprep.subr.bf16.mxu0 0
      %977 = vmatpush2.bf16.msra.mxu0 0
      %978 = vmatprep.mubr.bf16.mxu0 0
      %979 = vmatmul.mubr.bf16.gmra.mxu0 %v929
      %v980 = vpop.f32.mrf.mxu0
      %v981 = vadd.f32 0.0, %v980
      %v982 = vpop.f32.mrf.mxu0
      %v983 = vpop.f32.mrf.mxu0
      %v984 = vadd.f32 0.0, %v983
      %v985 = vpop.f32.mrf.mxu0
      %986 = vmatprep.mubr.bf16.mxu0 0
      %987 = vmatmul.mubr.bf16.gmra.mxu0 %v932
      %v988 = vpop.f32.mrf.mxu0
      %v989 = vadd.f32 0.0, %v988
      %v990 = vpop.f32.mrf.mxu0
      %v991 = vpop.f32.mrf.mxu0
      %v992 = vadd.f32 0.0, %v991
      %v993 = vpop.f32.mrf.mxu0
      %994 = vmatprep.mubr.bf16.mxu0 0
      %995 = vmatmul.mubr.bf16.gmra.mxu0 %v935
      %v996 = vpop.f32.mrf.mxu0
      %v997 = vadd.f32 0.0, %v996
      %v998 = vpop.f32.mrf.mxu0
      %v999 = vpop.f32.mrf.mxu0
      %v1000 = vadd.f32 0.0, %v999
      %v1001 = vpop.f32.mrf.mxu0
      %1002 = vmatprep.mubr.bf16.mxu0 0
      %1003 = vmatmul.mubr.bf16.gmra.mxu0 %v938
      %v1004 = vpop.f32.mrf.mxu0
      %v1005 = vadd.f32 0.0, %v1004
      %v1006 = vpop.f32.mrf.mxu0
      %v1007 = vpop.f32.mrf.mxu0
      %v1008 = vadd.f32 0.0, %v1007
      %v1009 = vpop.f32.mrf.mxu0
      %1010 = vmatprep.mubr.bf16.mxu0 0
      %1011 = vmatmul.mubr.bf16.gmra.mxu0 %v941
      %v1012 = vpop.f32.mrf.mxu0
      %v1013 = vadd.f32 0.0, %v1012
      %v1014 = vpop.f32.mrf.mxu0
      %v1015 = vpop.f32.mrf.mxu0
      %v1016 = vadd.f32 0.0, %v1015
      %v1017 = vpop.f32.mrf.mxu0
      %1018 = vdwg.mxu0
      %v1019 = vadd.f32 %v890, %v981
      %v1020 = vadd.f32 %v891, %v984
      %v1021 = vadd.f32 %v892, %v989
      %v1022 = vadd.f32 %v893, %v992
      %v1023 = vadd.f32 %v894, %v997
      %v1024 = vadd.f32 %v895, %v1000
      %v1025 = vadd.f32 %v896, %v1005
      %v1026 = vadd.f32 %v897, %v1008
      %v1027 = vadd.f32 %v898, %v1013
      %v1028 = vadd.f32 %v899, %v1016
      %v1029 = vld [vmem:[%s138 + $0x15] sm:$0xff]
      %v1030 = vld [vmem:[%s138 + $0x1d] sm:$0xff]
      %v1031 = vld [vmem:[%s138 + $0x25] sm:$0xff]
      %v1032 = vld [vmem:[%s138 + $0x2d] sm:$0xff]
      %v1033 = vld [vmem:[%s138 + $0x35] sm:$0xff]
      %v1034 = vld [vmem:[%s138 + $0x3d] sm:$0xff]
      %v1035 = vld [vmem:[%s138 + $0x45] sm:$0xff]
      %v1036 = vld [vmem:[%s138 + $0x4d] sm:$0xff]
      %v1037 = vld [vmem:[%s138 + $0x55] sm:$0xff]
      %v1038 = vld [vmem:[%s138 + $0x5d] sm:$0xff]
      %v1039 = vpack.c.bf16 %v1030, %v1029
      %v1040 = vpack.c.bf16 %v1032, %v1031
      %v1041 = vpack.c.bf16 %v1034, %v1033
      %v1042 = vpack.c.bf16 %v1036, %v1035
      %v1043 = vpack.c.bf16 %v1038, %v1037
      %s1044 = scalar_lea.vmem %s1, 84
      %v1045 = vld [vmem:[%s1044] sm:$0xf]
      %v1046 = vld [vmem:[%s1044 + $0x4] sm:$0xf]
      %v1047 = vld [vmem:[%s1044 + $0x8] sm:$0x3]
      %v1051 = vunpack.c.l.b16 %v1045
      %v1052 = vunpack.c.l.b16 %v1046
      %v1053 = vunpack.c.l.b16 %v1047
      %v1054 = vpack.c.b16 %v1052, %v1051
      %v1055 = vpack.c.b16 %v1053, %v1053
      %v1058 = vsel %vm191, %v1039, 0
      %v1061 = vsel %vm191, %v1040, 0
      %v1064 = vsel %vm191, %v1041, 0
      %v1067 = vsel %vm191, %v1042, 0
      %v1070 = vsel %vm191, %v1043, 0
      %v1073 = vsel %vm207, %v1055, 0
      %1075 = vmatprep.subr.bf16.mxu0 0
      %1076 = vmatpush1.bf16.msra.mxu0 0
      %1077 = vmatprep.subr.bf16.mxu0 0
      %1078 = vmatpush1.bf16.msra.mxu0 0
      %1079 = vmatprep.subr.bf16.mxu0 0
      %1080 = vmatpush1.bf16.msra.mxu0 0
      %1081 = vmatprep.subr.bf16.mxu0 0
      %1082 = vmatpush1.bf16.msra.mxu0 0
      %1083 = vmatprep.subr.bf16.mxu0 0
      %1084 = vmatpush1.bf16.msra.mxu0 0
      %1085 = vmatprep.subr.bf16.mxu0 0
      %1086 = vmatpush1.bf16.msra.mxu0 0
      %1087 = vmatprep.subr.bf16.mxu0 0
      %1088 = vmatpush1.bf16.msra.mxu0 %v1073
      %1089 = vmatprep.subr.bf16.mxu0 0
      %1090 = vmatpush1.bf16.msra.mxu0 %v1054
      %1091 = vmatprep.subr.bf16.mxu0 0
      %1092 = vmatpush2.bf16.msra.mxu0 0
      %1093 = vmatprep.subr.bf16.mxu0 0
      %1094 = vmatpush2.bf16.msra.mxu0 0
      %1095 = vmatprep.subr.bf16.mxu0 0
      %1096 = vmatpush2.bf16.msra.mxu0 0
      %1097 = vmatprep.subr.bf16.mxu0 0
      %1098 = vmatpush2.bf16.msra.mxu0 0
      %1099 = vmatprep.subr.bf16.mxu0 0
      %1100 = vmatpush2.bf16.msra.mxu0 0
      %1101 = vmatprep.subr.bf16.mxu0 0
      %1102 = vmatpush2.bf16.msra.mxu0 0
      %1103 = vmatprep.subr.bf16.mxu0 0
      %1104 = vmatpush2.bf16.msra.mxu0 0
      %1105 = vmatprep.subr.bf16.mxu0 0
      %1106 = vmatpush2.bf16.msra.mxu0 0
      %1107 = vmatprep.mubr.bf16.mxu0 0
      %1108 = vmatmul.mubr.bf16.gmra.mxu0 %v1058
      %v1109 = vpop.f32.mrf.mxu0
      %v1110 = vadd.f32 0.0, %v1109
      %v1111 = vpop.f32.mrf.mxu0
      %v1112 = vpop.f32.mrf.mxu0
      %v1113 = vadd.f32 0.0, %v1112
      %v1114 = vpop.f32.mrf.mxu0
      %1115 = vmatprep.mubr.bf16.mxu0 0
      %1116 = vmatmul.mubr.bf16.gmra.mxu0 %v1061
      %v1117 = vpop.f32.mrf.mxu0
      %v1118 = vadd.f32 0.0, %v1117
      %v1119 = vpop.f32.mrf.mxu0
      %v1120 = vpop.f32.mrf.mxu0
      %v1121 = vadd.f32 0.0, %v1120
      %v1122 = vpop.f32.mrf.mxu0
      %1123 = vmatprep.mubr.bf16.mxu0 0
      %1124 = vmatmul.mubr.bf16.gmra.mxu0 %v1064
      %v1125 = vpop.f32.mrf.mxu0
      %v1126 = vadd.f32 0.0, %v1125
      %v1127 = vpop.f32.mrf.mxu0
      %v1128 = vpop.f32.mrf.mxu0
      %v1129 = vadd.f32 0.0, %v1128
      %v1130 = vpop.f32.mrf.mxu0
      %1131 = vmatprep.mubr.bf16.mxu0 0
      %1132 = vmatmul.mubr.bf16.gmra.mxu0 %v1067
      %v1133 = vpop.f32.mrf.mxu0
      %v1134 = vadd.f32 0.0, %v1133
      %v1135 = vpop.f32.mrf.mxu0
      %v1136 = vpop.f32.mrf.mxu0
      %v1137 = vadd.f32 0.0, %v1136
      %v1138 = vpop.f32.mrf.mxu0
      %1139 = vmatprep.mubr.bf16.mxu0 0
      %1140 = vmatmul.mubr.bf16.gmra.mxu0 %v1070
      %v1141 = vpop.f32.mrf.mxu0
      %v1142 = vadd.f32 0.0, %v1141
      %v1143 = vpop.f32.mrf.mxu0
      %v1144 = vpop.f32.mrf.mxu0
      %v1145 = vadd.f32 0.0, %v1144
      %v1146 = vpop.f32.mrf.mxu0
      %1147 = vdwg.mxu0
      %v1148 = vadd.f32 %v1019, %v1110
      %v1149 = vadd.f32 %v1020, %v1113
      %v1150 = vadd.f32 %v1021, %v1118
      %v1151 = vadd.f32 %v1022, %v1121
      %v1152 = vadd.f32 %v1023, %v1126
      %v1153 = vadd.f32 %v1024, %v1129
      %v1154 = vadd.f32 %v1025, %v1134
      %v1155 = vadd.f32 %v1026, %v1137
      %v1156 = vadd.f32 %v1027, %v1142
      %v1157 = vadd.f32 %v1028, %v1145
      %v1158 = vld [vmem:[%s138 + $0x16] sm:$0xff]
      %v1159 = vld [vmem:[%s138 + $0x1e] sm:$0xff]
      %v1160 = vld [vmem:[%s138 + $0x26] sm:$0xff]
      %v1161 = vld [vmem:[%s138 + $0x2e] sm:$0xff]
      %v1162 = vld [vmem:[%s138 + $0x36] sm:$0xff]
      %v1163 = vld [vmem:[%s138 + $0x3e] sm:$0xff]
      %v1164 = vld [vmem:[%s138 + $0x46] sm:$0xff]
      %v1165 = vld [vmem:[%s138 + $0x4e] sm:$0xff]
      %v1166 = vld [vmem:[%s138 + $0x56] sm:$0xff]
      %v1167 = vld [vmem:[%s138 + $0x5e] sm:$0xff]
      %v1168 = vpack.c.bf16 %v1159, %v1158
      %v1169 = vpack.c.bf16 %v1161, %v1160
      %v1170 = vpack.c.bf16 %v1163, %v1162
      %v1171 = vpack.c.bf16 %v1165, %v1164
      %v1172 = vpack.c.bf16 %v1167, %v1166
      %s1173 = scalar_lea.vmem %s1, 96
      %v1174 = vld [vmem:[%s1173] sm:$0xf]
      %v1175 = vld [vmem:[%s1173 + $0x4] sm:$0xf]
      %v1176 = vld [vmem:[%s1173 + $0x8] sm:$0x3]
      %v1180 = vunpack.c.l.b16 %v1174
      %v1181 = vunpack.c.l.b16 %v1175
      %v1182 = vunpack.c.l.b16 %v1176
      %v1183 = vpack.c.b16 %v1181, %v1180
      %v1184 = vpack.c.b16 %v1182, %v1182
      %v1187 = vsel %vm191, %v1168, 0
      %v1190 = vsel %vm191, %v1169, 0
      %v1193 = vsel %vm191, %v1170, 0
      %v1196 = vsel %vm191, %v1171, 0
      %v1199 = vsel %vm191, %v1172, 0
      %v1202 = vsel %vm207, %v1184, 0
      %1204 = vmatprep.subr.bf16.mxu0 0
      %1205 = vmatpush1.bf16.msra.mxu0 0
      %1206 = vmatprep.subr.bf16.mxu0 0
      %1207 = vmatpush1.bf16.msra.mxu0 0
      %1208 = vmatprep.subr.bf16.mxu0 0
      %1209 = vmatpush1.bf16.msra.mxu0 0
      %1210 = vmatprep.subr.bf16.mxu0 0
      %1211 = vmatpush1.bf16.msra.mxu0 0
      %1212 = vmatprep.subr.bf16.mxu0 0
      %1213 = vmatpush1.bf16.msra.mxu0 0
      %1214 = vmatprep.subr.bf16.mxu0 0
      %1215 = vmatpush1.bf16.msra.mxu0 0
      %1216 = vmatprep.subr.bf16.mxu0 0
      %1217 = vmatpush1.bf16.msra.mxu0 %v1202
      %1218 = vmatprep.subr.bf16.mxu0 0
      %1219 = vmatpush1.bf16.msra.mxu0 %v1183
      %1220 = vmatprep.subr.bf16.mxu0 0
      %1221 = vmatpush2.bf16.msra.mxu0 0
      %1222 = vmatprep.subr.bf16.mxu0 0
      %1223 = vmatpush2.bf16.msra.mxu0 0
      %1224 = vmatprep.subr.bf16.mxu0 0
      %1225 = vmatpush2.bf16.msra.mxu0 0
      %1226 = vmatprep.subr.bf16.mxu0 0
      %1227 = vmatpush2.bf16.msra.mxu0 0
      %1228 = vmatprep.subr.bf16.mxu0 0
      %1229 = vmatpush2.bf16.msra.mxu0 0
      %1230 = vmatprep.subr.bf16.mxu0 0
      %1231 = vmatpush2.bf16.msra.mxu0 0
      %1232 = vmatprep.subr.bf16.mxu0 0
      %1233 = vmatpush2.bf16.msra.mxu0 0
      %1234 = vmatprep.subr.bf16.mxu0 0
      %1235 = vmatpush2.bf16.msra.mxu0 0
      %1236 = vmatprep.mubr.bf16.mxu0 0
      %1237 = vmatmul.mubr.bf16.gmra.mxu0 %v1187
      %v1238 = vpop.f32.mrf.mxu0
      %v1239 = vadd.f32 0.0, %v1238
      %v1240 = vpop.f32.mrf.mxu0
      %v1241 = vpop.f32.mrf.mxu0
      %v1242 = vadd.f32 0.0, %v1241
      %v1243 = vpop.f32.mrf.mxu0
      %1244 = vmatprep.mubr.bf16.mxu0 0
      %1245 = vmatmul.mubr.bf16.gmra.mxu0 %v1190
      %v1246 = vpop.f32.mrf.mxu0
      %v1247 = vadd.f32 0.0, %v1246
      %v1248 = vpop.f32.mrf.mxu0
      %v1249 = vpop.f32.mrf.mxu0
      %v1250 = vadd.f32 0.0, %v1249
      %v1251 = vpop.f32.mrf.mxu0
      %1252 = vmatprep.mubr.bf16.mxu0 0
      %1253 = vmatmul.mubr.bf16.gmra.mxu0 %v1193
      %v1254 = vpop.f32.mrf.mxu0
      %v1255 = vadd.f32 0.0, %v1254
      %v1256 = vpop.f32.mrf.mxu0
      %v1257 = vpop.f32.mrf.mxu0
      %v1258 = vadd.f32 0.0, %v1257
      %v1259 = vpop.f32.mrf.mxu0
      %1260 = vmatprep.mubr.bf16.mxu0 0
      %1261 = vmatmul.mubr.bf16.gmra.mxu0 %v1196
      %v1262 = vpop.f32.mrf.mxu0
      %v1263 = vadd.f32 0.0, %v1262
      %v1264 = vpop.f32.mrf.mxu0
      %v1265 = vpop.f32.mrf.mxu0
      %v1266 = vadd.f32 0.0, %v1265
      %v1267 = vpop.f32.mrf.mxu0
      %1268 = vmatprep.mubr.bf16.mxu0 0
      %1269 = vmatmul.mubr.bf16.gmra.mxu0 %v1199
      %v1270 = vpop.f32.mrf.mxu0
      %v1271 = vadd.f32 0.0, %v1270
      %v1272 = vpop.f32.mrf.mxu0
      %v1273 = vpop.f32.mrf.mxu0
      %v1274 = vadd.f32 0.0, %v1273
      %v1275 = vpop.f32.mrf.mxu0
      %1276 = vdwg.mxu0
      %v1277 = vadd.f32 %v1148, %v1239
      %v1278 = vadd.f32 %v1149, %v1242
      %v1279 = vadd.f32 %v1150, %v1247
      %v1280 = vadd.f32 %v1151, %v1250
      %v1281 = vadd.f32 %v1152, %v1255
      %v1282 = vadd.f32 %v1153, %v1258
      %v1283 = vadd.f32 %v1154, %v1263
      %v1284 = vadd.f32 %v1155, %v1266
      %v1285 = vadd.f32 %v1156, %v1271
      %v1286 = vadd.f32 %v1157, %v1274
      %v1287 = vmax.f32 %v1277, 0.0
      %v1288 = vmax.f32 %v1278, 0.0
      %v1289 = vmax.f32 %v1279, 0.0
      %v1290 = vmax.f32 %v1280, 0.0
      %v1291 = vmax.f32 %v1281, 0.0
      %v1292 = vmax.f32 %v1282, 0.0
      %v1293 = vmax.f32 %v1283, 0.0
      %v1294 = vmax.f32 %v1284, 0.0
      %v1295 = vmax.f32 %v1285, 0.0
      %v1296 = vmax.f32 %v1286, 0.0
      %vm1297 = vcmask 31744
      %1298 = vst.msk [vmem:[%s143] sm:$0xff] %vm1297, %v1287
      %1299 = vst.msk [vmem:[%s143 + $0x8] sm:$0xff] %vm1297, %v1288
      %1300 = vst.msk [vmem:[%s143 + $0x10] sm:$0xff] %vm1297, %v1289
      %1301 = vst.msk [vmem:[%s143 + $0x18] sm:$0xff] %vm1297, %v1290
      %1302 = vst.msk [vmem:[%s143 + $0x20] sm:$0xff] %vm1297, %v1291
      %1303 = vst.msk [vmem:[%s143 + $0x28] sm:$0xff] %vm1297, %v1292
      %1304 = vst.msk [vmem:[%s143 + $0x30] sm:$0xff] %vm1297, %v1293
      %1305 = vst.msk [vmem:[%s143 + $0x38] sm:$0xff] %vm1297, %v1294
      %1306 = vst.msk [vmem:[%s143 + $0x40] sm:$0xff] %vm1297, %v1295
      %1307 = vst.msk [vmem:[%s143 + $0x48] sm:$0xff] %vm1297, %v1296
      %p1308 = scmp.lt.s32.totalorder %s13, 1
      %s1309 = scalar_select %p1308, %s13, 1
      %s1310 = smul.addr %s1309, 10
      %s1311 = smul.addr %s1310, 8
      %s1312 = scalar_lea.vmem %s2, %s1311
      // Predicated region
      $region29: #{diin_forward.21} parent=27 // pred_check
        %p1313 = pneg %p78
      $region30: #{diin_forward.21} parent=27 // pred_check_branch
        %1315 = sbr.rel (%p1313) target = $region32
      $region31: #{diin_forward.21} parent=27 // pred_region
        _
      $region32: #{diin_forward.21} parent=27 // pred_fallthru
        _
    $region28: #{diin_forward.21} parent=5 // pred_fallthru
      _
    %p1316 = scmp.le.s32.totalorder 2, %s8
    // Predicated region
    $region33: #{diin_forward.21} parent=5 // pred_check
      %p1317 = pneg %p1316
    $region34: #{diin_forward.21} parent=5 // pred_check_branch
      %1319 = sbr.rel (%p1317) target = $region36
    $region35: #{diin_forward.21} parent=5 // pred_region
      %s1320 = ssub.s32 %s8, 2
      // Predicated region
      $region37: #{diin_forward.21} parent=35 // pred_check
        %p1321 = pneg %p84
      $region38: #{diin_forward.21} parent=35 // pred_check_branch
        %1323 = sbr.rel (%p1321) target = $region40
      $region39: #{diin_forward.21} parent=35 // pred_region
        %p1324 = scmp.lt.s32.totalorder %s14, 1
        %s1325 = scalar_select %p1324, %s14, 1
        %s1326 = smul.addr %s1325, 10
        %s1327 = smul.addr %s1326, 8
        %s1328 = scalar_lea.vmem %s2, %s1327
      $region40: #{diin_forward.21} parent=35 // pred_fallthru
        _
    $region36: #{diin_forward.21} parent=5 // pred_fallthru
      _
  $region6: #{diin_forward.21} parent=0 // loop_footer
    %s12 = sadd.s32 1, %s8
  $region7: #{diin_forward.21} parent=0 // loop_footer_branch
    %7 = sbr.rel target = $region3
  $region8: #{diin_forward.21} parent=0 // loop_exit
    _

// kernel: diin_forward.23
$region0: #{diin_forward.23}
  #allocation0 [shape = 'u32[]', space=smem, size = 0x4, offset = 0x4, fixed_abs, tag = 'smem constant byte address 0x4 - core index']
  #allocation1 [shape = 'u32[144,128]{1,0:T(1,128)}', space=vmem, size = 0x12000, scoped, tag = 'internal scratch']
  %s0 = inlined_call_operand.vmem [shape: f32[2,38,12], index: 0, kind: input, shape index: {}]
  %s1 = inlined_call_operand.vmem [shape: bf16[9,12,4], index: 1, kind: input, shape index: {}]
  %s2 = inlined_call_operand.vmem [shape: f32[2,24,4], index: 2, kind: output, shape index: {}]
  %s3 = sld [smem:[#allocation0]]
  $region41: #{diin_forward.23} parent=0
    _
  %s5 = ssub.s32 1, %s3
  %s6 = scalar_select 0, %s5, %s3
  loop: start=0, step=1, limit=4
  $region2: #{diin_forward.23} parent=0 // loop_pre_header
    _
  $region3: #{diin_forward.23} parent=0 // loop_header
    %s8 = sphi 0, %s12
    %p9 = scmp.ge.s32.totalorder %s8, 4
    %s18 = sphi 0, %s20
    %s21 = sphi 0, %s18
    %s22 = sphi 0, %s21
    %s38 = sphi 0, %s22
    %s42 = sphi 0, %s42
    %s44 = sphi 0, %s42
    %s45 = sphi 0, %s44
    %s59 = sphi 0, %s45
    %s65 = sphi 0, %s67
    %s68 = sphi 0, %s65
    %s69 = sphi 0, %s68
    %s85 = sphi 0, %s69
  $region4: #{diin_forward.23} parent=0 // loop_header_branch
    %11 = sbr.rel (%p9) target = $region8
  $region5: #{diin_forward.23} parent=0 // loop_body
    %s13 = ssub.s32 %s8, 1
    %s14 = ssub.s32 %s8, 2
    %s15 = sadd.s32 %s8, 1
    %s16 = ssub.s32 %s8, %s15
    %p17 = scmp.eq.s32.totalorder %s16, 0
    %s19 = sadd.s32 %s18, 1
    %s20 = scalar_select %p17, %s18, %s19
    %p23 = pneg %p17
    %p24 = scmp.eq.s32.totalorder %s8, 1
    %p25 = por %p23, %p24
    %p26 = scmp.ne.s32.totalorder %s18, %s21
    %p27 = scmp.eq.s32.totalorder %s8, 0
    %p28 = por %p26, %p27
    %p29 = scmp.ne.s32.totalorder %s18, %s21
    %p30 = scmp.eq.s32.totalorder %s13, 1
    %p31 = por %p29, %p30
    %p32 = scmp.ne.s32.totalorder %s21, %s22
    %p33 = scmp.eq.s32.totalorder %s13, 0
    %p34 = por %p32, %p33
    %p35 = scmp.ne.s32.totalorder %s21, %s22
    %p36 = scmp.eq.s32.totalorder %s14, 1
    %p37 = por %p35, %p36
    %p39 = scmp.ne.s32.totalorder %s22, %s38
    %p40 = scmp.eq.s32.totalorder %s14, 0
    %p41 = por %p39, %p40
    %s43 = sadd.s32 %s42, 1
    %p46 = scmp.eq.s32.totalorder %s8, 1
    %p47 = scmp.ne.s32.totalorder %s42, %s44
    %p48 = scmp.eq.s32.totalorder %s8, 0
    %p49 = por %p47, %p48
    %p50 = scmp.ne.s32.totalorder %s42, %s44
    %p51 = scmp.eq.s32.totalorder %s13, 1
    %p52 = por %p50, %p51
    %p53 = scmp.ne.s32.totalorder %s44, %s45
    %p54 = scmp.eq.s32.totalorder %s13, 0
    %p55 = por %p53, %p54
    %p56 = scmp.ne.s32.totalorder %s44, %s45
    %p57 = scmp.eq.s32.totalorder %s14, 1
    %p58 = por %p56, %p57
    %p60 = scmp.ne.s32.totalorder %s45, %s59
    %p61 = scmp.eq.s32.totalorder %s14, 0
    %p62 = por %p60, %p61
    %s63 = ssub.s32 %s8, %s15
    %p64 = scmp.eq.s32.totalorder %s63, 0
    %s66 = sadd.s32 %s65, 1
    %s67 = scalar_select %p64, %s65, %s66
    %p70 = pneg %p64
    %p71 = scmp.eq.s32.totalorder %s8, 1
    %p72 = por %p70, %p71
    %p73 = scmp.ne.s32.totalorder %s65, %s68
    %p74 = scmp.eq.s32.totalorder %s8, 0
    %p75 = por %p73, %p74
    %p76 = scmp.ne.s32.totalorder %s65, %s68
    %p77 = scmp.eq.s32.totalorder %s13, 1
    %p78 = por %p76, %p77
    %p79 = scmp.ne.s32.totalorder %s68, %s69
    %p80 = scmp.eq.s32.totalorder %s13, 0
    %p81 = por %p79, %p80
    %p82 = scmp.ne.s32.totalorder %s68, %s69
    %p83 = scmp.eq.s32.totalorder %s14, 1
    %p84 = por %p82, %p83
    %p86 = scmp.ne.s32.totalorder %s69, %s85
    %p87 = scmp.eq.s32.totalorder %s14, 0
    %p88 = por %p86, %p87
    %p89 = scmp.le.s32.totalorder 1, %s8
    %p90 = scmp.lt.s32.totalorder %s8, 3
    %p91 = pnand %p89, %p90
    %p92 = pneg %p91
    // Predicated region
    $region9: #{diin_forward.23} parent=5 // pred_check
      _
    $region10: #{diin_forward.23} parent=5 // pred_check_branch
      %94 = sbr.rel (%p91) target = $region12
    $region11: #{diin_forward.23} parent=5 // pred_region
      %s95 = ssub.s32 %s8, 1
      // Predicated region
      $region13: #{diin_forward.23} parent=11 // pred_check
        %p96 = pneg %p55
      $region14: #{diin_forward.23} parent=11 // pred_check_branch
        %98 = sbr.rel (%p96) target = $region16
      $region15: #{diin_forward.23} parent=11 // pred_region
        _
      $region16: #{diin_forward.23} parent=11 // pred_fallthru
        _
    $region12: #{diin_forward.23} parent=5 // pred_fallthru
      _
    %p99 = scmp.lt.s32.totalorder %s8, 2
    // Predicated region
    $region17: #{diin_forward.23} parent=5 // pred_check
      %p100 = pneg %p99
    $region18: #{diin_forward.23} parent=5 // pred_check_branch
      %102 = sbr.rel (%p100) target = $region20
    $region19: #{diin_forward.23} parent=5 // pred_region
      // Predicated region
      $region21: #{diin_forward.23} parent=19 // pred_check
        %p103 = pneg %p28
      $region22: #{diin_forward.23} parent=19 // pred_check_branch
        %105 = sbr.rel (%p103) target = $region24
      $region23: #{diin_forward.23} parent=19 // pred_region
        %p106 = scmp.lt.s32.totalorder %s8, 1
        %s107 = scalar_select %p106, %s8, 1
        %s108 = smul.addr %s107, 5
        %s109 = smul.addr %s108, 8
        %s110 = scalar_lea.vmem %s0, %s109
      $region24: #{diin_forward.23} parent=19 // pred_fallthru
        _
    $region20: #{diin_forward.23} parent=5 // pred_fallthru
      _
    %p111 = scmp.le.s32.totalorder 1, %s8
    %p112 = scmp.lt.s32.totalorder %s8, 3
    %p113 = pnand %p111, %p112
    %p114 = pneg %p113
    // Predicated region
    $region25: #{diin_forward.23} parent=5 // pred_check
      _
    $region26: #{diin_forward.23} parent=5 // pred_check_branch
      %116 = sbr.rel (%p113) target = $region28
    $region27: #{diin_forward.23} parent=5 // pred_region
      %s117 = ssub.s32 %s8, 1
      %p118 = scmp.lt.s32.totalorder %s13, 1
      %s119 = scalar_select %p118, %s13, 1
      %s120 = smul.addr %s119, 5
      %s121 = smul.addr %s120, 8
      %s122 = scalar_lea.vmem %s0, %s121
      %p123 = pneg %p34
      %p124 = pneg %p31
      %p125 = pneg %p55
      %p126 = pneg %p52
      %p127 = pneg %p81
      %p128 = pneg %p78
      %p129 = scmp.lt.s32.totalorder %s13, 1
      %s130 = scalar_select %p129, %s13, 1
      %s131 = smul.addr %s130, 3
      %s132 = smul.addr %s131, 8
      %s133 = scalar_lea.vmem %s2, %s132
      %p134 = scmp.lt.s32.totalorder %s13, 1
      %s135 = scalar_select %p134, %s13, 1
      %s136 = smul.addr %s135, 5
      %s137 = smul.addr %s136, 8
      %s138 = scalar_lea.vmem %s0, %s137
      %p139 = scmp.lt.s32.totalorder %s13, 1
      %s140 = scalar_select %p139, %s13, 1
      %s141 = smul.addr %s140, 3
      %s142 = smul.addr %s141, 8
      %s143 = scalar_lea.vmem %s2, %s142
      %v145 = vld [vmem:[%s138] sm:$0xff]
      %v146 = vld [vmem:[%s138 + $0x8] sm:$0xff]
      %v147 = vld [vmem:[%s138 + $0x10] sm:$0xff]
      %v148 = vpack.c.bf16 %v146, %v145
      %v149 = vpack.c.bf16 %v147, %v147
      %v150 = vld [vmem:[%s1] sm:$0xf]
      %v151 = vld [vmem:[%s1 + $0x4] sm:$0x3]
      %v152 = vld [vmem:[%s138 + $0x1] sm:$0xff]
      %v153 = vld [vmem:[%s138 + $0x9] sm:$0xff]
      %v154 = vld [vmem:[%s138 + $0x11] sm:$0xff]
      %v155 = vpack.c.bf16 %v153, %v152
      %v156 = vpack.c.bf16 %v154, %v154
      %s157 = scalar_lea.vmem %s1, 8
      %v158 = vld [vmem:[%s157] sm:$0xf]
      %v159 = vld [vmem:[%s157 + $0x4] sm:$0x3]
      %v162 = vunpack.c.l.b16 %v158
      %v163 = vunpack.c.l.b16 %v159
      %v164 = vpack.c.b16 %v163, %v162
      %vm165 = vcmask 97280
      %v167 = vsel %vm165, %v155, 0
      %v170 = vsel %vm165, %v156, 0
      %vm172 = vcmask 1045504
      %v174 = vsel %vm172, %v164, 0
      %176 = vmatprep.subr.bf16.mxu0 0
      %177 = vmatpush1.bf16.msra.mxu0 0
      %178 = vmatprep.subr.bf16.mxu0 0
      %179 = vmatpush1.bf16.msra.mxu0 0
      %180 = vmatprep.subr.bf16.mxu0 0
      %181 = vmatpush1.bf16.msra.mxu0 0
      %182 = vmatprep.subr.bf16.mxu0 0
      %183 = vmatpush1.bf16.msra.mxu0 0
      %184 = vmatprep.subr.bf16.mxu0 0
      %185 = vmatpush1.bf16.msra.mxu0 0
      %186 = vmatprep.subr.bf16.mxu0 0
      %187 = vmatpush1.bf16.msra.mxu0 0
      %188 = vmatprep.subr.bf16.mxu0 0
      %189 = vmatpush1.bf16.msra.mxu0 0
      %190 = vmatprep.subr.bf16.mxu0 0
      %191 = vmatpush1.bf16.msra.mxu0 %v174
      %192 = vmatprep.subr.bf16.mxu0 0
      %193 = vmatpush2.bf16.msra.mxu0 0
      %194 = vmatprep.subr.bf16.mxu0 0
      %195 = vmatpush2.bf16.msra.mxu0 0
      %196 = vmatprep.subr.bf16.mxu0 0
      %197 = vmatpush2.bf16.msra.mxu0 0
      %198 = vmatprep.subr.bf16.mxu0 0
      %199 = vmatpush2.bf16.msra.mxu0 0
      %200 = vmatprep.subr.bf16.mxu0 0
      %201 = vmatpush2.bf16.msra.mxu0 0
      %202 = vmatprep.subr.bf16.mxu0 0
      %203 = vmatpush2.bf16.msra.mxu0 0
      %204 = vmatprep.subr.bf16.mxu0 0
      %205 = vmatpush2.bf16.msra.mxu0 0
      %206 = vmatprep.subr.bf16.mxu0 0
      %207 = vmatpush2.bf16.msra.mxu0 0
      %208 = vmatprep.mubr.bf16.mxu0 0
      %209 = vmatmul.mubr.bf16.gmra.mxu0 %v167
      %v210 = vpop.f32.mrf.mxu0
      %v211 = vadd.f32 0.0, %v210
      %v212 = vpop.f32.mrf.mxu0
      %v213 = vpop.f32.mrf.mxu0
      %v214 = vadd.f32 0.0, %v213
      %v215 = vpop.f32.mrf.mxu0
      %216 = vmatprep.mubr.bf16.mxu0 0
      %217 = vmatmul.mubr.bf16.gmra.mxu0 %v170
      %v218 = vpop.f32.mrf.mxu0
      %v219 = vadd.f32 0.0, %v218
      %v220 = vpop.f32.mrf.mxu0
      %v221 = vpop.f32.mrf.mxu0
      %v222 = vpop.f32.mrf.mxu0
      %223 = vdwg.mxu0
      %v226 = vunpack.c.l.b16 %v150
      %v227 = vunpack.c.l.b16 %v151
      %v228 = vpack.c.b16 %v227, %v226
      %v230 = vsel %vm165, %v148, 0
      %v233 = vsel %vm165, %v149, 0
      %v236 = vsel %vm172, %v228, 0
      %238 = vmatprep.subr.bf16.mxu0 0
      %239 = vmatpush1.bf16.msra.mxu0 0
      %240 = vmatprep.subr.bf16.mxu0 0
      %241 = vmatpush1.bf16.msra.mxu0 0
      %242 = vmatprep.subr.bf16.mxu0 0
      %243 = vmatpush1.bf16.msra.mxu0 0
      %244 = vmatprep.subr.bf16.mxu0 0
      %245 = vmatpush1.bf16.msra.mxu0 0
      %246 = vmatprep.subr.bf16.mxu0 0
      %247 = vmatpush1.bf16.msra.mxu0 0
      %248 = vmatprep.subr.bf16.mxu0 0
      %249 = vmatpush1.bf16.msra.mxu0 0
      %250 = vmatprep.subr.bf16.mxu0 0
      %251 = vmatpush1.bf16.msra.mxu0 0
      %252 = vmatprep.subr.bf16.mxu0 0
      %253 = vmatpush1.bf16.msra.mxu0 %v236
      %254 = vmatprep.subr.bf16.mxu0 0
      %255 = vmatpush2.bf16.msra.mxu0 0
      %256 = vmatprep.subr.bf16.mxu0 0
      %257 = vmatpush2.bf16.msra.mxu0 0
      %258 = vmatprep.subr.bf16.mxu0 0
      %259 = vmatpush2.bf16.msra.mxu0 0
      %260 = vmatprep.subr.bf16.mxu0 0
      %261 = vmatpush2.bf16.msra.mxu0 0
      %262 = vmatprep.subr.bf16.mxu0 0
      %263 = vmatpush2.bf16.msra.mxu0 0
      %264 = vmatprep.subr.bf16.mxu0 0
      %265 = vmatpush2.bf16.msra.mxu0 0
      %266 = vmatprep.subr.bf16.mxu0 0
      %267 = vmatpush2.bf16.msra.mxu0 0
      %268 = vmatprep.subr.bf16.mxu0 0
      %269 = vmatpush2.bf16.msra.mxu0 0
      %270 = vmatprep.mubr.bf16.mxu0 0
      %271 = vmatmul.mubr.bf16.gmra.mxu0 %v230
      %v272 = vpop.f32.mrf.mxu0
      %v273 = vadd.f32 %v211, %v272
      %v274 = vpop.f32.mrf.mxu0
      %v275 = vpop.f32.mrf.mxu0
      %v276 = vadd.f32 %v214, %v275
      %v277 = vpop.f32.mrf.mxu0
      %278 = vmatprep.mubr.bf16.mxu0 0
      %279 = vmatmul.mubr.bf16.gmra.mxu0 %v233
      %v280 = vpop.f32.mrf.mxu0
      %v281 = vadd.f32 %v219, %v280
      %v282 = vpop.f32.mrf.mxu0
      %v283 = vpop.f32.mrf.mxu0
      %v284 = vpop.f32.mrf.mxu0
      %285 = vdwg.mxu0
      %v286 = vld [vmem:[%s138 + $0x2] sm:$0xff]
      %v287 = vld [vmem:[%s138 + $0xa] sm:$0xff]
      %v288 = vld [vmem:[%s138 + $0x12] sm:$0xff]
      %v289 = vpack.c.bf16 %v287, %v286
      %v290 = vpack.c.bf16 %v288, %v288
      %s291 = scalar_lea.vmem %s1, 16
      %v292 = vld [vmem:[%s291] sm:$0xf]
      %v293 = vld [vmem:[%s291 + $0x4] sm:$0x3]
      %v296 = vunpack.c.l.b16 %v292
      %v297 = vunpack.c.l.b16 %v293
      %v298 = vpack.c.b16 %v297, %v296
      %v300 = vsel %vm165, %v289, 0
      %v303 = vsel %vm165, %v290, 0
      %v306 = vsel %vm172, %v298, 0
      %308 = vmatprep.subr.bf16.mxu0 0
      %309 = vmatpush1.bf16.msra.mxu0 0
      %310 = vmatprep.subr.bf16.mxu0 0
      %311 = vmatpush1.bf16.msra.mxu0 0
      %312 = vmatprep.subr.bf16.mxu0 0
      %313 = vmatpush1.bf16.msra.mxu0 0
      %314 = vmatprep.subr.bf16.mxu0 0
      %315 = vmatpush1.bf16.msra.mxu0 0
      %316 = vmatprep.subr.bf16.mxu0 0
      %317 = vmatpush1.bf16.msra.mxu0 0
      %318 = vmatprep.subr.bf16.mxu0 0
      %319 = vmatpush1.bf16.msra.mxu0 0
      %320 = vmatprep.subr.bf16.mxu0 0
      %321 = vmatpush1.bf16.msra.mxu0 0
      %322 = vmatprep.subr.bf16.mxu0 0
      %323 = vmatpush1.bf16.msra.mxu0 %v306
      %324 = vmatprep.subr.bf16.mxu0 0
      %325 = vmatpush2.bf16.msra.mxu0 0
      %326 = vmatprep.subr.bf16.mxu0 0
      %327 = vmatpush2.bf16.msra.mxu0 0
      %328 = vmatprep.subr.bf16.mxu0 0
      %329 = vmatpush2.bf16.msra.mxu0 0
      %330 = vmatprep.subr.bf16.mxu0 0
      %331 = vmatpush2.bf16.msra.mxu0 0
      %332 = vmatprep.subr.bf16.mxu0 0
      %333 = vmatpush2.bf16.msra.mxu0 0
      %334 = vmatprep.subr.bf16.mxu0 0
      %335 = vmatpush2.bf16.msra.mxu0 0
      %336 = vmatprep.subr.bf16.mxu0 0
      %337 = vmatpush2.bf16.msra.mxu0 0
      %338 = vmatprep.subr.bf16.mxu0 0
      %339 = vmatpush2.bf16.msra.mxu0 0
      %340 = vmatprep.mubr.bf16.mxu0 0
      %341 = vmatmul.mubr.bf16.gmra.mxu0 %v300
      %v342 = vpop.f32.mrf.mxu0
      %v343 = vadd.f32 0.0, %v342
      %v344 = vpop.f32.mrf.mxu0
      %v345 = vpop.f32.mrf.mxu0
      %v346 = vadd.f32 0.0, %v345
      %v347 = vpop.f32.mrf.mxu0
      %348 = vmatprep.mubr.bf16.mxu0 0
      %349 = vmatmul.mubr.bf16.gmra.mxu0 %v303
      %v350 = vpop.f32.mrf.mxu0
      %v351 = vadd.f32 0.0, %v350
      %v352 = vpop.f32.mrf.mxu0
      %v353 = vpop.f32.mrf.mxu0
      %v354 = vpop.f32.mrf.mxu0
      %355 = vdwg.mxu0
      %v356 = vadd.f32 %v273, %v343
      %v357 = vadd.f32 %v276, %v346
      %v358 = vadd.f32 %v281, %v351
      %v359 = vld [vmem:[%s138 + $0x6] sm:$0xff]
      %v360 = vld [vmem:[%s138 + $0xe] sm:$0xff]
      %v361 = vld [vmem:[%s138 + $0x16] sm:$0xff]
      %v362 = vpack.c.bf16 %v360, %v359
      %v363 = vpack.c.bf16 %v361, %v361
      %s364 = scalar_lea.vmem %s1, 24
      %v365 = vld [vmem:[%s364] sm:$0xf]
      %v366 = vld [vmem:[%s364 + $0x4] sm:$0x3]
      %v369 = vunpack.c.l.b16 %v365
      %v370 = vunpack.c.l.b16 %v366
      %v371 = vpack.c.b16 %v370, %v369
      %v373 = vsel %vm165, %v362, 0
      %v376 = vsel %vm165, %v363, 0
      %v379 = vsel %vm172, %v371, 0
      %381 = vmatprep.subr.bf16.mxu0 0
      %382 = vmatpush1.bf16.msra.mxu0 0
      %383 = vmatprep.subr.bf16.mxu0 0
      %384 = vmatpush1.bf16.msra.mxu0 0
      %385 = vmatprep.subr.bf16.mxu0 0
      %386 = vmatpush1.bf16.msra.mxu0 0
      %387 = vmatprep.subr.bf16.mxu0 0
      %388 = vmatpush1.bf16.msra.mxu0 0
      %389 = vmatprep.subr.bf16.mxu0 0
      %390 = vmatpush1.bf16.msra.mxu0 0
      %391 = vmatprep.subr.bf16.mxu0 0
      %392 = vmatpush1.bf16.msra.mxu0 0
      %393 = vmatprep.subr.bf16.mxu0 0
      %394 = vmatpush1.bf16.msra.mxu0 0
      %395 = vmatprep.subr.bf16.mxu0 0
      %396 = vmatpush1.bf16.msra.mxu0 %v379
      %397 = vmatprep.subr.bf16.mxu0 0
      %398 = vmatpush2.bf16.msra.mxu0 0
      %399 = vmatprep.subr.bf16.mxu0 0
      %400 = vmatpush2.bf16.msra.mxu0 0
      %401 = vmatprep.subr.bf16.mxu0 0
      %402 = vmatpush2.bf16.msra.mxu0 0
      %403 = vmatprep.subr.bf16.mxu0 0
      %404 = vmatpush2.bf16.msra.mxu0 0
      %405 = vmatprep.subr.bf16.mxu0 0
      %406 = vmatpush2.bf16.msra.mxu0 0
      %407 = vmatprep.subr.bf16.mxu0 0
      %408 = vmatpush2.bf16.msra.mxu0 0
      %409 = vmatprep.subr.bf16.mxu0 0
      %410 = vmatpush2.bf16.msra.mxu0 0
      %411 = vmatprep.subr.bf16.mxu0 0
      %412 = vmatpush2.bf16.msra.mxu0 0
      %413 = vmatprep.mubr.bf16.mxu0 0
      %414 = vmatmul.mubr.bf16.gmra.mxu0 %v373
      %v415 = vpop.f32.mrf.mxu0
      %v416 = vadd.f32 0.0, %v415
      %v417 = vpop.f32.mrf.mxu0
      %v418 = vpop.f32.mrf.mxu0
      %v419 = vadd.f32 0.0, %v418
      %v420 = vpop.f32.mrf.mxu0
      %421 = vmatprep.mubr.bf16.mxu0 0
      %422 = vmatmul.mubr.bf16.gmra.mxu0 %v376
      %v423 = vpop.f32.mrf.mxu0
      %v424 = vadd.f32 0.0, %v423
      %v425 = vpop.f32.mrf.mxu0
      %v426 = vpop.f32.mrf.mxu0
      %v427 = vpop.f32.mrf.mxu0
      %428 = vdwg.mxu0
      %v429 = vadd.f32 %v356, %v416
      %v430 = vadd.f32 %v357, %v419
      %v431 = vadd.f32 %v358, %v424
      %v432 = vld [vmem:[%s138 + $0x7] sm:$0xff]
      %v433 = vld [vmem:[%s138 + $0xf] sm:$0xff]
      %v434 = vld [vmem:[%s138 + $0x17] sm:$0xff]
      %v435 = vpack.c.bf16 %v433, %v432
      %v436 = vpack.c.bf16 %v434, %v434
      %s437 = scalar_lea.vmem %s1, 32
      %v438 = vld [vmem:[%s437] sm:$0xf]
      %v439 = vld [vmem:[%s437 + $0x4] sm:$0x3]
      %v442 = vunpack.c.l.b16 %v438
      %v443 = vunpack.c.l.b16 %v439
      %v444 = vpack.c.b16 %v443, %v442
      %v446 = vsel %vm165, %v435, 0
      %v449 = vsel %vm165, %v436, 0
      %v452 = vsel %vm172, %v444, 0
      %454 = vmatprep.subr.bf16.mxu0 0
      %455 = vmatpush1.bf16.msra.mxu0 0
      %456 = vmatprep.subr.bf16.mxu0 0
      %457 = vmatpush1.bf16.msra.mxu0 0
      %458 = vmatprep.subr.bf16.mxu0 0
      %459 = vmatpush1.bf16.msra.mxu0 0
      %460 = vmatprep.subr.bf16.mxu0 0
      %461 = vmatpush1.bf16.msra.mxu0 0
      %462 = vmatprep.subr.bf16.mxu0 0
      %463 = vmatpush1.bf16.msra.mxu0 0
      %464 = vmatprep.subr.bf16.mxu0 0
      %465 = vmatpush1.bf16.msra.mxu0 0
      %466 = vmatprep.subr.bf16.mxu0 0
      %467 = vmatpush1.bf16.msra.mxu0 0
      %468 = vmatprep.subr.bf16.mxu0 0
      %469 = vmatpush1.bf16.msra.mxu0 %v452
      %470 = vmatprep.subr.bf16.mxu0 0
      %471 = vmatpush2.bf16.msra.mxu0 0
      %472 = vmatprep.subr.bf16.mxu0 0
      %473 = vmatpush2.bf16.msra.mxu0 0
      %474 = vmatprep.subr.bf16.mxu0 0
      %475 = vmatpush2.bf16.msra.mxu0 0
      %476 = vmatprep.subr.bf16.mxu0 0
      %477 = vmatpush2.bf16.msra.mxu0 0
      %478 = vmatprep.subr.bf16.mxu0 0
      %479 = vmatpush2.bf16.msra.mxu0 0
      %480 = vmatprep.subr.bf16.mxu0 0
      %481 = vmatpush2.bf16.msra.mxu0 0
      %482 = vmatprep.subr.bf16.mxu0 0
      %483 = vmatpush2.bf16.msra.mxu0 0
      %484 = vmatprep.subr.bf16.mxu0 0
      %485 = vmatpush2.bf16.msra.mxu0 0
      %486 = vmatprep.mubr.bf16.mxu0 0
      %487 = vmatmul.mubr.bf16.gmra.mxu0 %v446
      %v488 = vpop.f32.mrf.mxu0
      %v489 = vadd.f32 0.0, %v488
      %v490 = vpop.f32.mrf.mxu0
      %v491 = vpop.f32.mrf.mxu0
      %v492 = vadd.f32 0.0, %v491
      %v493 = vpop.f32.mrf.mxu0
      %494 = vmatprep.mubr.bf16.mxu0 0
      %495 = vmatmul.mubr.bf16.gmra.mxu0 %v449
      %v496 = vpop.f32.mrf.mxu0
      %v497 = vadd.f32 0.0, %v496
      %v498 = vpop.f32.mrf.mxu0
      %v499 = vpop.f32.mrf.mxu0
      %v500 = vpop.f32.mrf.mxu0
      %501 = vdwg.mxu0
      %v502 = vadd.f32 %v429, %v489
      %v503 = vadd.f32 %v430, %v492
      %v504 = vadd.f32 %v431, %v497
      %v505 = vld [vmem:[%s138 + $0x8] sm:$0xff]
      %v506 = vld [vmem:[%s138 + $0x10] sm:$0xff]
      %v507 = vld [vmem:[%s138 + $0x18] sm:$0xff]
      %v508 = vpack.c.bf16 %v506, %v505
      %v509 = vpack.c.bf16 %v507, %v507
      %s510 = scalar_lea.vmem %s1, 40
      %v511 = vld [vmem:[%s510] sm:$0xf]
      %v512 = vld [vmem:[%s510 + $0x4] sm:$0x3]
      %v515 = vunpack.c.l.b16 %v511
      %v516 = vunpack.c.l.b16 %v512
      %v517 = vpack.c.b16 %v516, %v515
      %v519 = vsel %vm165, %v508, 0
      %v522 = vsel %vm165, %v509, 0
      %v525 = vsel %vm172, %v517, 0
      %527 = vmatprep.subr.bf16.mxu0 0
      %528 = vmatpush1.bf16.msra.mxu0 0
      %529 = vmatprep.subr.bf16.mxu0 0
      %530 = vmatpush1.bf16.msra.mxu0 0
      %531 = vmatprep.subr.bf16.mxu0 0
      %532 = vmatpush1.bf16.msra.mxu0 0
      %533 = vmatprep.subr.bf16.mxu0 0
      %534 = vmatpush1.bf16.msra.mxu0 0
      %535 = vmatprep.subr.bf16.mxu0 0
      %536 = vmatpush1.bf16.msra.mxu0 0
      %537 = vmatprep.subr.bf16.mxu0 0
      %538 = vmatpush1.bf16.msra.mxu0 0
      %539 = vmatprep.subr.bf16.mxu0 0
      %540 = vmatpush1.bf16.msra.mxu0 0
      %541 = vmatprep.subr.bf16.mxu0 0
      %542 = vmatpush1.bf16.msra.mxu0 %v525
      %543 = vmatprep.subr.bf16.mxu0 0
      %544 = vmatpush2.bf16.msra.mxu0 0
      %545 = vmatprep.subr.bf16.mxu0 0
      %546 = vmatpush2.bf16.msra.mxu0 0
      %547 = vmatprep.subr.bf16.mxu0 0
      %548 = vmatpush2.bf16.msra.mxu0 0
      %549 = vmatprep.subr.bf16.mxu0 0
      %550 = vmatpush2.bf16.msra.mxu0 0
      %551 = vmatprep.subr.bf16.mxu0 0
      %552 = vmatpush2.bf16.msra.mxu0 0
      %553 = vmatprep.subr.bf16.mxu0 0
      %554 = vmatpush2.bf16.msra.mxu0 0
      %555 = vmatprep.subr.bf16.mxu0 0
      %556 = vmatpush2.bf16.msra.mxu0 0
      %557 = vmatprep.subr.bf16.mxu0 0
      %558 = vmatpush2.bf16.msra.mxu0 0
      %559 = vmatprep.mubr.bf16.mxu0 0
      %560 = vmatmul.mubr.bf16.gmra.mxu0 %v519
      %v561 = vpop.f32.mrf.mxu0
      %v562 = vadd.f32 0.0, %v561
      %v563 = vpop.f32.mrf.mxu0
      %v564 = vpop.f32.mrf.mxu0
      %v565 = vadd.f32 0.0, %v564
      %v566 = vpop.f32.mrf.mxu0
      %567 = vmatprep.mubr.bf16.mxu0 0
      %568 = vmatmul.mubr.bf16.gmra.mxu0 %v522
      %v569 = vpop.f32.mrf.mxu0
      %v570 = vadd.f32 0.0, %v569
      %v571 = vpop.f32.mrf.mxu0
      %v572 = vpop.f32.mrf.mxu0
      %v573 = vpop.f32.mrf.mxu0
      %574 = vdwg.mxu0
      %v575 = vadd.f32 %v502, %v562
      %v576 = vadd.f32 %v503, %v565
      %v577 = vadd.f32 %v504, %v570
      %v578 = vld [vmem:[%s138 + $0xc] sm:$0xff]
      %v579 = vld [vmem:[%s138 + $0x14] sm:$0xff]
      %v580 = vld [vmem:[%s138 + $0x1c] sm:$0xff]
      %v581 = vpack.c.bf16 %v579, %v578
      %v582 = vpack.c.bf16 %v580, %v580
      %s583 = scalar_lea.vmem %s1, 48
      %v584 = vld [vmem:[%s583] sm:$0xf]
      %v585 = vld [vmem:[%s583 + $0x4] sm:$0x3]
      %v588 = vunpack.c.l.b16 %v584
      %v589 = vunpack.c.l.b16 %v585
      %v590 = vpack.c.b16 %v589, %v588
      %v592 = vsel %vm165, %v581, 0
      %v595 = vsel %vm165, %v582, 0
      %v598 = vsel %vm172, %v590, 0
      %600 = vmatprep.subr.bf16.mxu0 0
      %601 = vmatpush1.bf16.msra.mxu0 0
      %602 = vmatprep.subr.bf16.mxu0 0
      %603 = vmatpush1.bf16.msra.mxu0 0
      %604 = vmatprep.subr.bf16.mxu0 0
      %605 = vmatpush1.bf16.msra.mxu0 0
      %606 = vmatprep.subr.bf16.mxu0 0
      %607 = vmatpush1.bf16.msra.mxu0 0
      %608 = vmatprep.subr.bf16.mxu0 0
      %609 = vmatpush1.bf16.msra.mxu0 0
      %610 = vmatprep.subr.bf16.mxu0 0
      %611 = vmatpush1.bf16.msra.mxu0 0
      %612 = vmatprep.subr.bf16.mxu0 0
      %613 = vmatpush1.bf16.msra.mxu0 0
      %614 = vmatprep.subr.bf16.mxu0 0
      %615 = vmatpush1.bf16.msra.mxu0 %v598
      %616 = vmatprep.subr.bf16.mxu0 0
      %617 = vmatpush2.bf16.msra.mxu0 0
      %618 = vmatprep.subr.bf16.mxu0 0
      %619 = vmatpush2.bf16.msra.mxu0 0
      %620 = vmatprep.subr.bf16.mxu0 0
      %621 = vmatpush2.bf16.msra.mxu0 0
      %622 = vmatprep.subr.bf16.mxu0 0
      %623 = vmatpush2.bf16.msra.mxu0 0
      %624 = vmatprep.subr.bf16.mxu0 0
      %625 = vmatpush2.bf16.msra.mxu0 0
      %626 = vmatprep.subr.bf16.mxu0 0
      %627 = vmatpush2.bf16.msra.mxu0 0
      %628 = vmatprep.subr.bf16.mxu0 0
      %629 = vmatpush2.bf16.msra.mxu0 0
      %630 = vmatprep.subr.bf16.mxu0 0
      %631 = vmatpush2.bf16.msra.mxu0 0
      %632 = vmatprep.mubr.bf16.mxu0 0
      %633 = vmatmul.mubr.bf16.gmra.mxu0 %v592
      %v634 = vpop.f32.mrf.mxu0
      %v635 = vadd.f32 0.0, %v634
      %v636 = vpop.f32.mrf.mxu0
      %v637 = vpop.f32.mrf.mxu0
      %v638 = vadd.f32 0.0, %v637
      %v639 = vpop.f32.mrf.mxu0
      %640 = vmatprep.mubr.bf16.mxu0 0
      %641 = vmatmul.mubr.bf16.gmra.mxu0 %v595
      %v642 = vpop.f32.mrf.mxu0
      %v643 = vadd.f32 0.0, %v642
      %v644 = vpop.f32.mrf.mxu0
      %v645 = vpop.f32.mrf.mxu0
      %v646 = vpop.f32.mrf.mxu0
      %647 = vdwg.mxu0
      %v648 = vadd.f32 %v575, %v635
      %v649 = vadd.f32 %v576, %v638
      %v650 = vadd.f32 %v577, %v643
      %v651 = vld [vmem:[%s138 + $0xd] sm:$0xff]
      %v652 = vld [vmem:[%s138 + $0x15] sm:$0xff]
      %v653 = vld [vmem:[%s138 + $0x1d] sm:$0xff]
      %v654 = vpack.c.bf16 %v652, %v651
      %v655 = vpack.c.bf16 %v653, %v653
      %s656 = scalar_lea.vmem %s1, 56
      %v657 = vld [vmem:[%s656] sm:$0xf]
      %v658 = vld [vmem:[%s656 + $0x4] sm:$0x3]
      %v661 = vunpack.c.l.b16 %v657
      %v662 = vunpack.c.l.b16 %v658
      %v663 = vpack.c.b16 %v662, %v661
      %v665 = vsel %vm165, %v654, 0
      %v668 = vsel %vm165, %v655, 0
      %v671 = vsel %vm172, %v663, 0
      %673 = vmatprep.subr.bf16.mxu0 0
      %674 = vmatpush1.bf16.msra.mxu0 0
      %675 = vmatprep.subr.bf16.mxu0 0
      %676 = vmatpush1.bf16.msra.mxu0 0
      %677 = vmatprep.subr.bf16.mxu0 0
      %678 = vmatpush1.bf16.msra.mxu0 0
      %679 = vmatprep.subr.bf16.mxu0 0
      %680 = vmatpush1.bf16.msra.mxu0 0
      %681 = vmatprep.subr.bf16.mxu0 0
      %682 = vmatpush1.bf16.msra.mxu0 0
      %683 = vmatprep.subr.bf16.mxu0 0
      %684 = vmatpush1.bf16.msra.mxu0 0
      %685 = vmatprep.subr.bf16.mxu0 0
      %686 = vmatpush1.bf16.msra.mxu0 0
      %687 = vmatprep.subr.bf16.mxu0 0
      %688 = vmatpush1.bf16.msra.mxu0 %v671
      %689 = vmatprep.subr.bf16.mxu0 0
      %690 = vmatpush2.bf16.msra.mxu0 0
      %691 = vmatprep.subr.bf16.mxu0 0
      %692 = vmatpush2.bf16.msra.mxu0 0
      %693 = vmatprep.subr.bf16.mxu0 0
      %694 = vmatpush2.bf16.msra.mxu0 0
      %695 = vmatprep.subr.bf16.mxu0 0
      %696 = vmatpush2.bf16.msra.mxu0 0
      %697 = vmatprep.subr.bf16.mxu0 0
      %698 = vmatpush2.bf16.msra.mxu0 0
      %699 = vmatprep.subr.bf16.mxu0 0
      %700 = vmatpush2.bf16.msra.mxu0 0
      %701 = vmatprep.subr.bf16.mxu0 0
      %702 = vmatpush2.bf16.msra.mxu0 0
      %703 = vmatprep.subr.bf16.mxu0 0
      %704 = vmatpush2.bf16.msra.mxu0 0
      %705 = vmatprep.mubr.bf16.mxu0 0
      %706 = vmatmul.mubr.bf16.gmra.mxu0 %v665
      %v707 = vpop.f32.mrf.mxu0
      %v708 = vadd.f32 0.0, %v707
      %v709 = vpop.f32.mrf.mxu0
      %v710 = vpop.f32.mrf.mxu0
      %v711 = vadd.f32 0.0, %v710
      %v712 = vpop.f32.mrf.mxu0
      %713 = vmatprep.mubr.bf16.mxu0 0
      %714 = vmatmul.mubr.bf16.gmra.mxu0 %v668
      %v715 = vpop.f32.mrf.mxu0
      %v716 = vadd.f32 0.0, %v715
      %v717 = vpop.f32.mrf.mxu0
      %v718 = vpop.f32.mrf.mxu0
      %v719 = vpop.f32.mrf.mxu0
      %720 = vdwg.mxu0
      %v721 = vadd.f32 %v648, %v708
      %v722 = vadd.f32 %v649, %v711
      %v723 = vadd.f32 %v650, %v716
      %v724 = vld [vmem:[%s138 + $0xe] sm:$0xff]
      %v725 = vld [vmem:[%s138 + $0x16] sm:$0xff]
      %v726 = vld [vmem:[%s138 + $0x1e] sm:$0xff]
      %v727 = vpack.c.bf16 %v725, %v724
      %v728 = vpack.c.bf16 %v726, %v726
      %s729 = scalar_lea.vmem %s1, 64
      %v730 = vld [vmem:[%s729] sm:$0xf]
      %v731 = vld [vmem:[%s729 + $0x4] sm:$0x3]
      %v734 = vunpack.c.l.b16 %v730
      %v735 = vunpack.c.l.b16 %v731
      %v736 = vpack.c.b16 %v735, %v734
      %v738 = vsel %vm165, %v727, 0
      %v741 = vsel %vm165, %v728, 0
      %v744 = vsel %vm172, %v736, 0
      %746 = vmatprep.subr.bf16.mxu0 0
      %747 = vmatpush1.bf16.msra.mxu0 0
      %748 = vmatprep.subr.bf16.mxu0 0
      %749 = vmatpush1.bf16.msra.mxu0 0
      %750 = vmatprep.subr.bf16.mxu0 0
      %751 = vmatpush1.bf16.msra.mxu0 0
      %752 = vmatprep.subr.bf16.mxu0 0
      %753 = vmatpush1.bf16.msra.mxu0 0
      %754 = vmatprep.subr.bf16.mxu0 0
      %755 = vmatpush1.bf16.msra.mxu0 0
      %756 = vmatprep.subr.bf16.mxu0 0
      %757 = vmatpush1.bf16.msra.mxu0 0
      %758 = vmatprep.subr.bf16.mxu0 0
      %759 = vmatpush1.bf16.msra.mxu0 0
      %760 = vmatprep.subr.bf16.mxu0 0
      %761 = vmatpush1.bf16.msra.mxu0 %v744
      %762 = vmatprep.subr.bf16.mxu0 0
      %763 = vmatpush2.bf16.msra.mxu0 0
      %764 = vmatprep.subr.bf16.mxu0 0
      %765 = vmatpush2.bf16.msra.mxu0 0
      %766 = vmatprep.subr.bf16.mxu0 0
      %767 = vmatpush2.bf16.msra.mxu0 0
      %768 = vmatprep.subr.bf16.mxu0 0
      %769 = vmatpush2.bf16.msra.mxu0 0
      %770 = vmatprep.subr.bf16.mxu0 0
      %771 = vmatpush2.bf16.msra.mxu0 0
      %772 = vmatprep.subr.bf16.mxu0 0
      %773 = vmatpush2.bf16.msra.mxu0 0
      %774 = vmatprep.subr.bf16.mxu0 0
      %775 = vmatpush2.bf16.msra.mxu0 0
      %776 = vmatprep.subr.bf16.mxu0 0
      %777 = vmatpush2.bf16.msra.mxu0 0
      %778 = vmatprep.mubr.bf16.mxu0 0
      %779 = vmatmul.mubr.bf16.gmra.mxu0 %v738
      %v780 = vpop.f32.mrf.mxu0
      %v781 = vadd.f32 0.0, %v780
      %v782 = vpop.f32.mrf.mxu0
      %v783 = vpop.f32.mrf.mxu0
      %v784 = vadd.f32 0.0, %v783
      %v785 = vpop.f32.mrf.mxu0
      %786 = vmatprep.mubr.bf16.mxu0 0
      %787 = vmatmul.mubr.bf16.gmra.mxu0 %v741
      %v788 = vpop.f32.mrf.mxu0
      %v789 = vadd.f32 0.0, %v788
      %v790 = vpop.f32.mrf.mxu0
      %v791 = vpop.f32.mrf.mxu0
      %v792 = vpop.f32.mrf.mxu0
      %793 = vdwg.mxu0
      %v794 = vadd.f32 %v721, %v781
      %v795 = vadd.f32 %v722, %v784
      %v796 = vadd.f32 %v723, %v789
      %v797 = vmax.f32 %v794, 0.0
      %v798 = vmax.f32 %v795, 0.0
      %v799 = vmax.f32 %v796, 0.0
      %vm800 = vcmask 31744
      %801 = vst.msk [vmem:[%s143] sm:$0xff] %vm800, %v797
      %802 = vst.msk [vmem:[%s143 + $0x8] sm:$0xff] %vm800, %v798
      %803 = vst.msk [vmem:[%s143 + $0x10] sm:$0xff] %vm800, %v799
      %p804 = scmp.lt.s32.totalorder %s13, 1
      %s805 = scalar_select %p804, %s13, 1
      %s806 = smul.addr %s805, 3
      %s807 = smul.addr %s806, 8
      %s808 = scalar_lea.vmem %s2, %s807
      // Predicated region
      $region29: #{diin_forward.23} parent=27 // pred_check
        %p809 = pneg %p78
      $region30: #{diin_forward.23} parent=27 // pred_check_branch
        %811 = sbr.rel (%p809) target = $region32
      $region31: #{diin_forward.23} parent=27 // pred_region
        _
      $region32: #{diin_forward.23} parent=27 // pred_fallthru
        _
    $region28: #{diin_forward.23} parent=5 // pred_fallthru
      _
    %p812 = scmp.le.s32.totalorder 2, %s8
    // Predicated region
    $region33: #{diin_forward.23} parent=5 // pred_check
      %p813 = pneg %p812
    $region34: #{diin_forward.23} parent=5 // pred_check_branch
      %815 = sbr.rel (%p813) target = $region36
    $region35: #{diin_forward.23} parent=5 // pred_region
      %s816 = ssub.s32 %s8, 2
      // Predicated region
      $region37: #{diin_forward.23} parent=35 // pred_check
        %p817 = pneg %p84
      $region38: #{diin_forward.23} parent=35 // pred_check_branch
        %819 = sbr.rel (%p817) target = $region40
      $region39: #{diin_forward.23} parent=35 // pred_region
        %p820 = scmp.lt.s32.totalorder %s14, 1
        %s821 = scalar_select %p820, %s14, 1
        %s822 = smul.addr %s821, 3
        %s823 = smul.addr %s822, 8
        %s824 = scalar_lea.vmem %s2, %s823
      $region40: #{diin_forward.23} parent=35 // pred_fallthru
        _
    $region36: #{diin_forward.23} parent=5 // pred_fallthru
      _
  $region6: #{diin_forward.23} parent=0 // loop_footer
    %s12 = sadd.s32 1, %s8
  $region7: #{diin_forward.23} parent=0 // loop_footer_branch
    %7 = sbr.rel target = $region3
  $region8: #{diin_forward.23} parent=0 // loop_exit
    _

// kernel: diin_forward.25
$region0: #{diin_forward.25}
  #allocation0 [shape = 'u32[]', space=smem, size = 0x4, offset = 0x4, fixed_abs, tag = 'smem constant byte address 0x4 - core index']
  #allocation1 [shape = 'u32[144,128]{1,0:T(1,128)}', space=vmem, size = 0x12000, scoped, tag = 'internal scratch']
  #allocation2 [shape = 'f32[32,128]{1,0:T(8,128)}', space=vmem, size = 0x4000, scoped, tag = 'scratch operand']
  %s0 = inlined_call_operand.vmem [shape: f32[32,20], index: 0, kind: input, shape index: {}]
  %s1 = inlined_call_operand.vmem [shape: bf16[20,128], index: 1, kind: input, shape index: {}]
  %s2 = inlined_call_operand.vmem [shape: f32[1,128], index: 2, kind: input, shape index: {}]
  %s3 = inlined_call_operand.vmem [shape: f32[32,128], index: 3, kind: output, shape index: {}]
  %s4 = sld [smem:[#allocation0]]
  $region30: #{diin_forward.25} parent=0
    _
  %s6 = ssub.s32 1, %s4
  %s7 = scalar_select 0, %s6, %s4
  // Predicated region
  $region2: #{diin_forward.25} parent=0 // pred_check
    _
  $region3: #{diin_forward.25} parent=0 // pred_check_branch
    %9 = sbr.rel (0) target = $region5
  $region4: #{diin_forward.25} parent=0 // pred_region
    _
  $region5: #{diin_forward.25} parent=0 // pred_fallthru
    _
  // Predicated region
  $region6: #{diin_forward.25} parent=0 // pred_check
    _
  $region7: #{diin_forward.25} parent=0 // pred_check_branch
    %11 = sbr.rel (0) target = $region9
  $region8: #{diin_forward.25} parent=0 // pred_region
    _
  $region9: #{diin_forward.25} parent=0 // pred_fallthru
    _
  // Predicated region
  $region10: #{diin_forward.25} parent=0 // pred_check
    _
  $region11: #{diin_forward.25} parent=0 // pred_check_branch
    %13 = sbr.rel (0) target = $region13
  $region12: #{diin_forward.25} parent=0 // pred_region
    _
  $region13: #{diin_forward.25} parent=0 // pred_fallthru
    _
  %p15 = scmp.eq.s32.totalorder 0, 0
  // Predicated region
  $region14: #{diin_forward.25} parent=0 // pred_check
    %p16 = pneg %p15
  $region15: #{diin_forward.25} parent=0 // pred_check_branch
    %18 = sbr.rel (%p16) target = $region17
  $region16: #{diin_forward.25} parent=0 // pred_region
    %19 = vst [vmem:[#allocation2] sm:$0xff] 0.0
    %20 = vst [vmem:[#allocation2 + $0x8] sm:$0xff] 0.0
    %21 = vst [vmem:[#allocation2 + $0x10] sm:$0xff] 0.0
    %22 = vst [vmem:[#allocation2 + $0x18] sm:$0xff] 0.0
  $region17: #{diin_forward.25} parent=0 // pred_fallthru
    _
  %v23 = vld [vmem:[#allocation2] sm:$0xff]
  %v24 = vld [vmem:[#allocation2 + $0x8] sm:$0xff]
  %v25 = vld [vmem:[#allocation2 + $0x10] sm:$0xff]
  %v26 = vld [vmem:[#allocation2 + $0x18] sm:$0xff]
  %v27 = vld [vmem:[%s0] sm:$0xff]
  %v28 = vld [vmem:[%s0 + $0x8] sm:$0xff]
  %v29 = vld [vmem:[%s0 + $0x10] sm:$0xff]
  %v30 = vld [vmem:[%s0 + $0x18] sm:$0xff]
  %v31 = vpack.c.bf16 %v28, %v27
  %v32 = vpack.c.bf16 %v30, %v29
  %v33 = vld [vmem:[%s1] sm:$0xf]
  %v34 = vld [vmem:[%s1 + $0x4] sm:$0xf]
  %v35 = vld [vmem:[%s1 + $0x8] sm:$0x3]
  %v39 = vunpack.c.l.b16 %v33
  %v40 = vunpack.c.l.b16 %v34
  %v41 = vunpack.c.l.b16 %v35
  %v42 = vpack.c.b16 %v40, %v39
  %v43 = vpack.c.b16 %v41, %v41
  %vm45 = vcmask 162816
  %v47 = vsel %vm45, %v31, 0
  %v50 = vsel %vm45, %v32, 0
  %vm52 = vcmask 1041408
  %v54 = vsel %vm52, %v43, 0
  %56 = vmatprep.subr.bf16.mxu0 0
  %57 = vmatpush1.bf16.msra.mxu0 0
  %58 = vmatprep.subr.bf16.mxu0 0
  %59 = vmatpush1.bf16.msra.mxu0 0
  %60 = vmatprep.subr.bf16.mxu0 0
  %61 = vmatpush1.bf16.msra.mxu0 0
  %62 = vmatprep.subr.bf16.mxu0 0
  %63 = vmatpush1.bf16.msra.mxu0 0
  %64 = vmatprep.subr.bf16.mxu0 0
  %65 = vmatpush1.bf16.msra.mxu0 0
  %66 = vmatprep.subr.bf16.mxu0 0
  %67 = vmatpush1.bf16.msra.mxu0 0
  %68 = vmatprep.subr.bf16.mxu0 0
  %69 = vmatpush1.bf16.msra.mxu0 %v54
  %70 = vmatprep.subr.bf16.mxu0 0
  %71 = vmatpush1.bf16.msra.mxu0 %v42
  %72 = vmatprep.subr.bf16.mxu0 0
  %73 = vmatpush2.bf16.msra.mxu0 0
  %74 = vmatprep.subr.bf16.mxu0 0
  %75 = vmatpush2.bf16.msra.mxu0 0
  %76 = vmatprep.subr.bf16.mxu0 0
  %77 = vmatpush2.bf16.msra.mxu0 0
  %78 = vmatprep.subr.bf16.mxu0 0
  %79 = vmatpush2.bf16.msra.mxu0 0
  %80 = vmatprep.subr.bf16.mxu0 0
  %81 = vmatpush2.bf16.msra.mxu0 0
  %82 = vmatprep.subr.bf16.mxu0 0
  %83 = vmatpush2.bf16.msra.mxu0 0
  %84 = vmatprep.subr.bf16.mxu0 0
  %85 = vmatpush2.bf16.msra.mxu0 0
  %86 = vmatprep.subr.bf16.mxu0 0
  %87 = vmatpush2.bf16.msra.mxu0 0
  %88 = vmatprep.mubr.bf16.mxu0 0
  %89 = vmatmul.mubr.bf16.gmra.mxu0 %v47
  %v90 = vpop.f32.mrf.mxu0
  %v91 = vadd.f32 0.0, %v90
  %v92 = vpop.f32.mrf.mxu0
  %v93 = vpop.f32.mrf.mxu0
  %v94 = vadd.f32 0.0, %v93
  %v95 = vpop.f32.mrf.mxu0
  %96 = vmatprep.mubr.bf16.mxu0 0
  %97 = vmatmul.mubr.bf16.gmra.mxu0 %v50
  %v98 = vpop.f32.mrf.mxu0
  %v99 = vadd.f32 0.0, %v98
  %v100 = vpop.f32.mrf.mxu0
  %v101 = vpop.f32.mrf.mxu0
  %v102 = vadd.f32 0.0, %v101
  %v103 = vpop.f32.mrf.mxu0
  %104 = vdwg.mxu0
  %v105 = vadd.f32 %v23, %v91
  %v106 = vadd.f32 %v24, %v94
  %v107 = vadd.f32 %v25, %v99
  %v108 = vadd.f32 %v26, %v102
  %109 = vst [vmem:[#allocation2] sm:$0xff] %v105
  %110 = vst [vmem:[#allocation2 + $0x8] sm:$0xff] %v106
  %111 = vst [vmem:[#allocation2 + $0x10] sm:$0xff] %v107
  %112 = vst [vmem:[#allocation2 + $0x18] sm:$0xff] %v108
  // Predicated region
  $region18: #{diin_forward.25} parent=0 // pred_check
    %p113 = pneg %p15
  $region19: #{diin_forward.25} parent=0 // pred_check_branch
    %115 = sbr.rel (%p113) target = $region21
  $region20: #{diin_forward.25} parent=0 // pred_region
    %v116 = vld [vmem:[#allocation2] sm:$0xff]
    %v117 = vld [vmem:[#allocation2 + $0x8] sm:$0xff]
    %v118 = vld [vmem:[#allocation2 + $0x10] sm:$0xff]
    %v119 = vld [vmem:[#allocation2 + $0x18] sm:$0xff]
    %v120 = vld [vmem:[%s2] sm:$0x1]
    %v122 = vlaneseq
    %v123 = vshrl.u32 %v122, 7
    %v124 = vsub.s32 0, %v123
    %v125 = vrot.slane %v120, %v124
    %v127 = vadd.f32 %v116, %v125
    %v128 = vadd.f32 %v117, %v125
    %v129 = vadd.f32 %v118, %v125
    %v130 = vadd.f32 %v119, %v125
    %131 = vst [vmem:[%s3] sm:$0xff] %v127
    %132 = vst [vmem:[%s3 + $0x8] sm:$0xff] %v128
    %133 = vst [vmem:[%s3 + $0x10] sm:$0xff] %v129
    %134 = vst [vmem:[%s3 + $0x18] sm:$0xff] %v130
  $region21: #{diin_forward.25} parent=0 // pred_fallthru
    _
  // Predicated region
  $region22: #{diin_forward.25} parent=0 // pred_check
    _
  $region23: #{diin_forward.25} parent=0 // pred_check_branch
    %136 = sbr.rel (0) target = $region25
  $region24: #{diin_forward.25} parent=0 // pred_region
    _
  $region25: #{diin_forward.25} parent=0 // pred_fallthru
    _
  // Predicated region
  $region26: #{diin_forward.25} parent=0 // pred_check
    _
  $region27: #{diin_forward.25} parent=0 // pred_check_branch
    %138 = sbr.rel (0) target = $region29
  $region28: #{diin_forward.25} parent=0 // pred_region
    _
  $region29: #{diin_forward.25} parent=0 // pred_fallthru
    _

// kernel: diin_forward.24
$region0: #{diin_forward.24}
  #allocation0 [shape = 'u32[]', space=smem, size = 0x4, offset = 0x4, fixed_abs, tag = 'smem constant byte address 0x4 - core index']
  #allocation1 [shape = 'u32[144,128]{1,0:T(1,128)}', space=vmem, size = 0x12000, scoped, tag = 'internal scratch']
  %s0 = inlined_call_operand.vmem [shape: f32[2,38,16], index: 0, kind: input, shape index: {}]
  %s1 = inlined_call_operand.vmem [shape: bf16[9,16,4], index: 1, kind: input, shape index: {}]
  %s2 = inlined_call_operand.vmem [shape: f32[2,24,4], index: 2, kind: output, shape index: {}]
  %s3 = sld [smem:[#allocation0]]
  $region41: #{diin_forward.24} parent=0
    _
  %s5 = ssub.s32 1, %s3
  %s6 = scalar_select 0, %s5, %s3
  loop: start=0, step=1, limit=4
  $region2: #{diin_forward.24} parent=0 // loop_pre_header
    _
  $region3: #{diin_forward.24} parent=0 // loop_header
    %s8 = sphi 0, %s12
    %p9 = scmp.ge.s32.totalorder %s8, 4
    %s18 = sphi 0, %s20
    %s21 = sphi 0, %s18
    %s22 = sphi 0, %s21
    %s38 = sphi 0, %s22
    %s42 = sphi 0, %s42
    %s44 = sphi 0, %s42
    %s45 = sphi 0, %s44
    %s59 = sphi 0, %s45
    %s65 = sphi 0, %s67
    %s68 = sphi 0, %s65
    %s69 = sphi 0, %s68
    %s85 = sphi 0, %s69
  $region4: #{diin_forward.24} parent=0 // loop_header_branch
    %11 = sbr.rel (%p9) target = $region8
  $region5: #{diin_forward.24} parent=0 // loop_body
    %s13 = ssub.s32 %s8, 1
    %s14 = ssub.s32 %s8, 2
    %s15 = sadd.s32 %s8, 1
    %s16 = ssub.s32 %s8, %s15
    %p17 = scmp.eq.s32.totalorder %s16, 0
    %s19 = sadd.s32 %s18, 1
    %s20 = scalar_select %p17, %s18, %s19
    %p23 = pneg %p17
    %p24 = scmp.eq.s32.totalorder %s8, 1
    %p25 = por %p23, %p24
    %p26 = scmp.ne.s32.totalorder %s18, %s21
    %p27 = scmp.eq.s32.totalorder %s8, 0
    %p28 = por %p26, %p27
    %p29 = scmp.ne.s32.totalorder %s18, %s21
    %p30 = scmp.eq.s32.totalorder %s13, 1
    %p31 = por %p29, %p30
    %p32 = scmp.ne.s32.totalorder %s21, %s22
    %p33 = scmp.eq.s32.totalorder %s13, 0
    %p34 = por %p32, %p33
    %p35 = scmp.ne.s32.totalorder %s21, %s22
    %p36 = scmp.eq.s32.totalorder %s14, 1
    %p37 = por %p35, %p36
    %p39 = scmp.ne.s32.totalorder %s22, %s38
    %p40 = scmp.eq.s32.totalorder %s14, 0
    %p41 = por %p39, %p40
    %s43 = sadd.s32 %s42, 1
    %p46 = scmp.eq.s32.totalorder %s8, 1
    %p47 = scmp.ne.s32.totalorder %s42, %s44
    %p48 = scmp.eq.s32.totalorder %s8, 0
    %p49 = por %p47, %p48
    %p50 = scmp.ne.s32.totalorder %s42, %s44
    %p51 = scmp.eq.s32.totalorder %s13, 1
    %p52 = por %p50, %p51
    %p53 = scmp.ne.s32.totalorder %s44, %s45
    %p54 = scmp.eq.s32.totalorder %s13, 0
    %p55 = por %p53, %p54
    %p56 = scmp.ne.s32.totalorder %s44, %s45
    %p57 = scmp.eq.s32.totalorder %s14, 1
    %p58 = por %p56, %p57
    %p60 = scmp.ne.s32.totalorder %s45, %s59
    %p61 = scmp.eq.s32.totalorder %s14, 0
    %p62 = por %p60, %p61
    %s63 = ssub.s32 %s8, %s15
    %p64 = scmp.eq.s32.totalorder %s63, 0
    %s66 = sadd.s32 %s65, 1
    %s67 = scalar_select %p64, %s65, %s66
    %p70 = pneg %p64
    %p71 = scmp.eq.s32.totalorder %s8, 1
    %p72 = por %p70, %p71
    %p73 = scmp.ne.s32.totalorder %s65, %s68
    %p74 = scmp.eq.s32.totalorder %s8, 0
    %p75 = por %p73, %p74
    %p76 = scmp.ne.s32.totalorder %s65, %s68
    %p77 = scmp.eq.s32.totalorder %s13, 1
    %p78 = por %p76, %p77
    %p79 = scmp.ne.s32.totalorder %s68, %s69
    %p80 = scmp.eq.s32.totalorder %s13, 0
    %p81 = por %p79, %p80
    %p82 = scmp.ne.s32.totalorder %s68, %s69
    %p83 = scmp.eq.s32.totalorder %s14, 1
    %p84 = por %p82, %p83
    %p86 = scmp.ne.s32.totalorder %s69, %s85
    %p87 = scmp.eq.s32.totalorder %s14, 0
    %p88 = por %p86, %p87
    %p89 = scmp.le.s32.totalorder 1, %s8
    %p90 = scmp.lt.s32.totalorder %s8, 3
    %p91 = pnand %p89, %p90
    %p92 = pneg %p91
    // Predicated region
    $region9: #{diin_forward.24} parent=5 // pred_check
      _
    $region10: #{diin_forward.24} parent=5 // pred_check_branch
      %94 = sbr.rel (%p91) target = $region12
    $region11: #{diin_forward.24} parent=5 // pred_region
      %s95 = ssub.s32 %s8, 1
      // Predicated region
      $region13: #{diin_forward.24} parent=11 // pred_check
        %p96 = pneg %p55
      $region14: #{diin_forward.24} parent=11 // pred_check_branch
        %98 = sbr.rel (%p96) target = $region16
      $region15: #{diin_forward.24} parent=11 // pred_region
        _
      $region16: #{diin_forward.24} parent=11 // pred_fallthru
        _
    $region12: #{diin_forward.24} parent=5 // pred_fallthru
      _
    %p99 = scmp.lt.s32.totalorder %s8, 2
    // Predicated region
    $region17: #{diin_forward.24} parent=5 // pred_check
      %p100 = pneg %p99
    $region18: #{diin_forward.24} parent=5 // pred_check_branch
      %102 = sbr.rel (%p100) target = $region20
    $region19: #{diin_forward.24} parent=5 // pred_region
      // Predicated region
      $region21: #{diin_forward.24} parent=19 // pred_check
        %p103 = pneg %p28
      $region22: #{diin_forward.24} parent=19 // pred_check_branch
        %105 = sbr.rel (%p103) target = $region24
      $region23: #{diin_forward.24} parent=19 // pred_region
        %p106 = scmp.lt.s32.totalorder %s8, 1
        %s107 = scalar_select %p106, %s8, 1
        %s108 = smul.addr %s107, 5
        %s109 = smul.addr %s108, 8
        %s110 = scalar_lea.vmem %s0, %s109
      $region24: #{diin_forward.24} parent=19 // pred_fallthru
        _
    $region20: #{diin_forward.24} parent=5 // pred_fallthru
      _
    %p111 = scmp.le.s32.totalorder 1, %s8
    %p112 = scmp.lt.s32.totalorder %s8, 3
    %p113 = pnand %p111, %p112
    %p114 = pneg %p113
    // Predicated region
    $region25: #{diin_forward.24} parent=5 // pred_check
      _
    $region26: #{diin_forward.24} parent=5 // pred_check_branch
      %116 = sbr.rel (%p113) target = $region28
    $region27: #{diin_forward.24} parent=5 // pred_region
      %s117 = ssub.s32 %s8, 1
      %p118 = scmp.lt.s32.totalorder %s13, 1
      %s119 = scalar_select %p118, %s13, 1
      %s120 = smul.addr %s119, 5
      %s121 = smul.addr %s120, 8
      %s122 = scalar_lea.vmem %s0, %s121
      %p123 = pneg %p34
      %p124 = pneg %p31
      %p125 = pneg %p55
      %p126 = pneg %p52
      %p127 = pneg %p81
      %p128 = pneg %p78
      %p129 = scmp.lt.s32.totalorder %s13, 1
      %s130 = scalar_select %p129, %s13, 1
      %s131 = smul.addr %s130, 3
      %s132 = smul.addr %s131, 8
      %s133 = scalar_lea.vmem %s2, %s132
      %p134 = scmp.lt.s32.totalorder %s13, 1
      %s135 = scalar_select %p134, %s13, 1
      %s136 = smul.addr %s135, 5
      %s137 = smul.addr %s136, 8
      %s138 = scalar_lea.vmem %s0, %s137
      %p139 = scmp.lt.s32.totalorder %s13, 1
      %s140 = scalar_select %p139, %s13, 1
      %s141 = smul.addr %s140, 3
      %s142 = smul.addr %s141, 8
      %s143 = scalar_lea.vmem %s2, %s142
      %v145 = vld [vmem:[%s138] sm:$0xff]
      %v146 = vld [vmem:[%s138 + $0x8] sm:$0xff]
      %v147 = vld [vmem:[%s138 + $0x10] sm:$0xff]
      %v148 = vpack.c.bf16 %v146, %v145
      %v149 = vpack.c.bf16 %v147, %v147
      %v150 = vld [vmem:[%s1] sm:$0xf]
      %v151 = vld [vmem:[%s1 + $0x4] sm:$0xf]
      %v152 = vld [vmem:[%s138 + $0x1] sm:$0xff]
      %v153 = vld [vmem:[%s138 + $0x9] sm:$0xff]
      %v154 = vld [vmem:[%s138 + $0x11] sm:$0xff]
      %v155 = vpack.c.bf16 %v153, %v152
      %v156 = vpack.c.bf16 %v154, %v154
      %s157 = scalar_lea.vmem %s1, 8
      %v158 = vld [vmem:[%s157] sm:$0xf]
      %v159 = vld [vmem:[%s157 + $0x4] sm:$0xf]
      %v162 = vunpack.c.l.b16 %v158
      %v163 = vunpack.c.l.b16 %v159
      %v164 = vpack.c.b16 %v163, %v162
      %vm166 = vcmask 130048
      %v168 = vsel %vm166, %v155, 0
      %v171 = vsel %vm166, %v156, 0
      %173 = vmatprep.subr.bf16.mxu0 0
      %174 = vmatpush1.bf16.msra.mxu0 0
      %175 = vmatprep.subr.bf16.mxu0 0
      %176 = vmatpush1.bf16.msra.mxu0 0
      %177 = vmatprep.subr.bf16.mxu0 0
      %178 = vmatpush1.bf16.msra.mxu0 0
      %179 = vmatprep.subr.bf16.mxu0 0
      %180 = vmatpush1.bf16.msra.mxu0 0
      %181 = vmatprep.subr.bf16.mxu0 0
      %182 = vmatpush1.bf16.msra.mxu0 0
      %183 = vmatprep.subr.bf16.mxu0 0
      %184 = vmatpush1.bf16.msra.mxu0 0
      %185 = vmatprep.subr.bf16.mxu0 0
      %186 = vmatpush1.bf16.msra.mxu0 0
      %187 = vmatprep.subr.bf16.mxu0 0
      %188 = vmatpush1.bf16.msra.mxu0 %v164
      %189 = vmatprep.subr.bf16.mxu0 0
      %190 = vmatpush2.bf16.msra.mxu0 0
      %191 = vmatprep.subr.bf16.mxu0 0
      %192 = vmatpush2.bf16.msra.mxu0 0
      %193 = vmatprep.subr.bf16.mxu0 0
      %194 = vmatpush2.bf16.msra.mxu0 0
      %195 = vmatprep.subr.bf16.mxu0 0
      %196 = vmatpush2.bf16.msra.mxu0 0
      %197 = vmatprep.subr.bf16.mxu0 0
      %198 = vmatpush2.bf16.msra.mxu0 0
      %199 = vmatprep.subr.bf16.mxu0 0
      %200 = vmatpush2.bf16.msra.mxu0 0
      %201 = vmatprep.subr.bf16.mxu0 0
      %202 = vmatpush2.bf16.msra.mxu0 0
      %203 = vmatprep.subr.bf16.mxu0 0
      %204 = vmatpush2.bf16.msra.mxu0 0
      %205 = vmatprep.mubr.bf16.mxu0 0
      %206 = vmatmul.mubr.bf16.gmra.mxu0 %v168
      %v207 = vpop.f32.mrf.mxu0
      %v208 = vadd.f32 0.0, %v207
      %v209 = vpop.f32.mrf.mxu0
      %v210 = vpop.f32.mrf.mxu0
      %v211 = vadd.f32 0.0, %v210
      %v212 = vpop.f32.mrf.mxu0
      %213 = vmatprep.mubr.bf16.mxu0 0
      %214 = vmatmul.mubr.bf16.gmra.mxu0 %v171
      %v215 = vpop.f32.mrf.mxu0
      %v216 = vadd.f32 0.0, %v215
      %v217 = vpop.f32.mrf.mxu0
      %v218 = vpop.f32.mrf.mxu0
      %v219 = vpop.f32.mrf.mxu0
      %220 = vdwg.mxu0
      %v223 = vunpack.c.l.b16 %v150
      %v224 = vunpack.c.l.b16 %v151
      %v225 = vpack.c.b16 %v224, %v223
      %v228 = vsel %vm166, %v148, 0
      %v231 = vsel %vm166, %v149, 0
      %233 = vmatprep.subr.bf16.mxu0 0
      %234 = vmatpush1.bf16.msra.mxu0 0
      %235 = vmatprep.subr.bf16.mxu0 0
      %236 = vmatpush1.bf16.msra.mxu0 0
      %237 = vmatprep.subr.bf16.mxu0 0
      %238 = vmatpush1.bf16.msra.mxu0 0
      %239 = vmatprep.subr.bf16.mxu0 0
      %240 = vmatpush1.bf16.msra.mxu0 0
      %241 = vmatprep.subr.bf16.mxu0 0
      %242 = vmatpush1.bf16.msra.mxu0 0
      %243 = vmatprep.subr.bf16.mxu0 0
      %244 = vmatpush1.bf16.msra.mxu0 0
      %245 = vmatprep.subr.bf16.mxu0 0
      %246 = vmatpush1.bf16.msra.mxu0 0
      %247 = vmatprep.subr.bf16.mxu0 0
      %248 = vmatpush1.bf16.msra.mxu0 %v225
      %249 = vmatprep.subr.bf16.mxu0 0
      %250 = vmatpush2.bf16.msra.mxu0 0
      %251 = vmatprep.subr.bf16.mxu0 0
      %252 = vmatpush2.bf16.msra.mxu0 0
      %253 = vmatprep.subr.bf16.mxu0 0
      %254 = vmatpush2.bf16.msra.mxu0 0
      %255 = vmatprep.subr.bf16.mxu0 0
      %256 = vmatpush2.bf16.msra.mxu0 0
      %257 = vmatprep.subr.bf16.mxu0 0
      %258 = vmatpush2.bf16.msra.mxu0 0
      %259 = vmatprep.subr.bf16.mxu0 0
      %260 = vmatpush2.bf16.msra.mxu0 0
      %261 = vmatprep.subr.bf16.mxu0 0
      %262 = vmatpush2.bf16.msra.mxu0 0
      %263 = vmatprep.subr.bf16.mxu0 0
      %264 = vmatpush2.bf16.msra.mxu0 0
      %265 = vmatprep.mubr.bf16.mxu0 0
      %266 = vmatmul.mubr.bf16.gmra.mxu0 %v228
      %v267 = vpop.f32.mrf.mxu0
      %v268 = vadd.f32 %v208, %v267
      %v269 = vpop.f32.mrf.mxu0
      %v270 = vpop.f32.mrf.mxu0
      %v271 = vadd.f32 %v211, %v270
      %v272 = vpop.f32.mrf.mxu0
      %273 = vmatprep.mubr.bf16.mxu0 0
      %274 = vmatmul.mubr.bf16.gmra.mxu0 %v231
      %v275 = vpop.f32.mrf.mxu0
      %v276 = vadd.f32 %v216, %v275
      %v277 = vpop.f32.mrf.mxu0
      %v278 = vpop.f32.mrf.mxu0
      %v279 = vpop.f32.mrf.mxu0
      %280 = vdwg.mxu0
      %v281 = vld [vmem:[%s138 + $0x2] sm:$0xff]
      %v282 = vld [vmem:[%s138 + $0xa] sm:$0xff]
      %v283 = vld [vmem:[%s138 + $0x12] sm:$0xff]
      %v284 = vpack.c.bf16 %v282, %v281
      %v285 = vpack.c.bf16 %v283, %v283
      %s286 = scalar_lea.vmem %s1, 16
      %v287 = vld [vmem:[%s286] sm:$0xf]
      %v288 = vld [vmem:[%s286 + $0x4] sm:$0xf]
      %v291 = vunpack.c.l.b16 %v287
      %v292 = vunpack.c.l.b16 %v288
      %v293 = vpack.c.b16 %v292, %v291
      %v296 = vsel %vm166, %v284, 0
      %v299 = vsel %vm166, %v285, 0
      %301 = vmatprep.subr.bf16.mxu0 0
      %302 = vmatpush1.bf16.msra.mxu0 0
      %303 = vmatprep.subr.bf16.mxu0 0
      %304 = vmatpush1.bf16.msra.mxu0 0
      %305 = vmatprep.subr.bf16.mxu0 0
      %306 = vmatpush1.bf16.msra.mxu0 0
      %307 = vmatprep.subr.bf16.mxu0 0
      %308 = vmatpush1.bf16.msra.mxu0 0
      %309 = vmatprep.subr.bf16.mxu0 0
      %310 = vmatpush1.bf16.msra.mxu0 0
      %311 = vmatprep.subr.bf16.mxu0 0
      %312 = vmatpush1.bf16.msra.mxu0 0
      %313 = vmatprep.subr.bf16.mxu0 0
      %314 = vmatpush1.bf16.msra.mxu0 0
      %315 = vmatprep.subr.bf16.mxu0 0
      %316 = vmatpush1.bf16.msra.mxu0 %v293
      %317 = vmatprep.subr.bf16.mxu0 0
      %318 = vmatpush2.bf16.msra.mxu0 0
      %319 = vmatprep.subr.bf16.mxu0 0
      %320 = vmatpush2.bf16.msra.mxu0 0
      %321 = vmatprep.subr.bf16.mxu0 0
      %322 = vmatpush2.bf16.msra.mxu0 0
      %323 = vmatprep.subr.bf16.mxu0 0
      %324 = vmatpush2.bf16.msra.mxu0 0
      %325 = vmatprep.subr.bf16.mxu0 0
      %326 = vmatpush2.bf16.msra.mxu0 0
      %327 = vmatprep.subr.bf16.mxu0 0
      %328 = vmatpush2.bf16.msra.mxu0 0
      %329 = vmatprep.subr.bf16.mxu0 0
      %330 = vmatpush2.bf16.msra.mxu0 0
      %331 = vmatprep.subr.bf16.mxu0 0
      %332 = vmatpush2.bf16.msra.mxu0 0
      %333 = vmatprep.mubr.bf16.mxu0 0
      %334 = vmatmul.mubr.bf16.gmra.mxu0 %v296
      %v335 = vpop.f32.mrf.mxu0
      %v336 = vadd.f32 0.0, %v335
      %v337 = vpop.f32.mrf.mxu0
      %v338 = vpop.f32.mrf.mxu0
      %v339 = vadd.f32 0.0, %v338
      %v340 = vpop.f32.mrf.mxu0
      %341 = vmatprep.mubr.bf16.mxu0 0
      %342 = vmatmul.mubr.bf16.gmra.mxu0 %v299
      %v343 = vpop.f32.mrf.mxu0
      %v344 = vadd.f32 0.0, %v343
      %v345 = vpop.f32.mrf.mxu0
      %v346 = vpop.f32.mrf.mxu0
      %v347 = vpop.f32.mrf.mxu0
      %348 = vdwg.mxu0
      %v349 = vadd.f32 %v268, %v336
      %v350 = vadd.f32 %v271, %v339
      %v351 = vadd.f32 %v276, %v344
      %v352 = vld [vmem:[%s138 + $0x6] sm:$0xff]
      %v353 = vld [vmem:[%s138 + $0xe] sm:$0xff]
      %v354 = vld [vmem:[%s138 + $0x16] sm:$0xff]
      %v355 = vpack.c.bf16 %v353, %v352
      %v356 = vpack.c.bf16 %v354, %v354
      %s357 = scalar_lea.vmem %s1, 24
      %v358 = vld [vmem:[%s357] sm:$0xf]
      %v359 = vld [vmem:[%s357 + $0x4] sm:$0xf]
      %v362 = vunpack.c.l.b16 %v358
      %v363 = vunpack.c.l.b16 %v359
      %v364 = vpack.c.b16 %v363, %v362
      %v367 = vsel %vm166, %v355, 0
      %v370 = vsel %vm166, %v356, 0
      %372 = vmatprep.subr.bf16.mxu0 0
      %373 = vmatpush1.bf16.msra.mxu0 0
      %374 = vmatprep.subr.bf16.mxu0 0
      %375 = vmatpush1.bf16.msra.mxu0 0
      %376 = vmatprep.subr.bf16.mxu0 0
      %377 = vmatpush1.bf16.msra.mxu0 0
      %378 = vmatprep.subr.bf16.mxu0 0
      %379 = vmatpush1.bf16.msra.mxu0 0
      %380 = vmatprep.subr.bf16.mxu0 0
      %381 = vmatpush1.bf16.msra.mxu0 0
      %382 = vmatprep.subr.bf16.mxu0 0
      %383 = vmatpush1.bf16.msra.mxu0 0
      %384 = vmatprep.subr.bf16.mxu0 0
      %385 = vmatpush1.bf16.msra.mxu0 0
      %386 = vmatprep.subr.bf16.mxu0 0
      %387 = vmatpush1.bf16.msra.mxu0 %v364
      %388 = vmatprep.subr.bf16.mxu0 0
      %389 = vmatpush2.bf16.msra.mxu0 0
      %390 = vmatprep.subr.bf16.mxu0 0
      %391 = vmatpush2.bf16.msra.mxu0 0
      %392 = vmatprep.subr.bf16.mxu0 0
      %393 = vmatpush2.bf16.msra.mxu0 0
      %394 = vmatprep.subr.bf16.mxu0 0
      %395 = vmatpush2.bf16.msra.mxu0 0
      %396 = vmatprep.subr.bf16.mxu0 0
      %397 = vmatpush2.bf16.msra.mxu0 0
      %398 = vmatprep.subr.bf16.mxu0 0
      %399 = vmatpush2.bf16.msra.mxu0 0
      %400 = vmatprep.subr.bf16.mxu0 0
      %401 = vmatpush2.bf16.msra.mxu0 0
      %402 = vmatprep.subr.bf16.mxu0 0
      %403 = vmatpush2.bf16.msra.mxu0 0
      %404 = vmatprep.mubr.bf16.mxu0 0
      %405 = vmatmul.mubr.bf16.gmra.mxu0 %v367
      %v406 = vpop.f32.mrf.mxu0
      %v407 = vadd.f32 0.0, %v406
      %v408 = vpop.f32.mrf.mxu0
      %v409 = vpop.f32.mrf.mxu0
      %v410 = vadd.f32 0.0, %v409
      %v411 = vpop.f32.mrf.mxu0
      %412 = vmatprep.mubr.bf16.mxu0 0
      %413 = vmatmul.mubr.bf16.gmra.mxu0 %v370
      %v414 = vpop.f32.mrf.mxu0
      %v415 = vadd.f32 0.0, %v414
      %v416 = vpop.f32.mrf.mxu0
      %v417 = vpop.f32.mrf.mxu0
      %v418 = vpop.f32.mrf.mxu0
      %419 = vdwg.mxu0
      %v420 = vadd.f32 %v349, %v407
      %v421 = vadd.f32 %v350, %v410
      %v422 = vadd.f32 %v351, %v415
      %v423 = vld [vmem:[%s138 + $0x7] sm:$0xff]
      %v424 = vld [vmem:[%s138 + $0xf] sm:$0xff]
      %v425 = vld [vmem:[%s138 + $0x17] sm:$0xff]
      %v426 = vpack.c.bf16 %v424, %v423
      %v427 = vpack.c.bf16 %v425, %v425
      %s428 = scalar_lea.vmem %s1, 32
      %v429 = vld [vmem:[%s428] sm:$0xf]
      %v430 = vld [vmem:[%s428 + $0x4] sm:$0xf]
      %v433 = vunpack.c.l.b16 %v429
      %v434 = vunpack.c.l.b16 %v430
      %v435 = vpack.c.b16 %v434, %v433
      %v438 = vsel %vm166, %v426, 0
      %v441 = vsel %vm166, %v427, 0
      %443 = vmatprep.subr.bf16.mxu0 0
      %444 = vmatpush1.bf16.msra.mxu0 0
      %445 = vmatprep.subr.bf16.mxu0 0
      %446 = vmatpush1.bf16.msra.mxu0 0
      %447 = vmatprep.subr.bf16.mxu0 0
      %448 = vmatpush1.bf16.msra.mxu0 0
      %449 = vmatprep.subr.bf16.mxu0 0
      %450 = vmatpush1.bf16.msra.mxu0 0
      %451 = vmatprep.subr.bf16.mxu0 0
      %452 = vmatpush1.bf16.msra.mxu0 0
      %453 = vmatprep.subr.bf16.mxu0 0
      %454 = vmatpush1.bf16.msra.mxu0 0
      %455 = vmatprep.subr.bf16.mxu0 0
      %456 = vmatpush1.bf16.msra.mxu0 0
      %457 = vmatprep.subr.bf16.mxu0 0
      %458 = vmatpush1.bf16.msra.mxu0 %v435
      %459 = vmatprep.subr.bf16.mxu0 0
      %460 = vmatpush2.bf16.msra.mxu0 0
      %461 = vmatprep.subr.bf16.mxu0 0
      %462 = vmatpush2.bf16.msra.mxu0 0
      %463 = vmatprep.subr.bf16.mxu0 0
      %464 = vmatpush2.bf16.msra.mxu0 0
      %465 = vmatprep.subr.bf16.mxu0 0
      %466 = vmatpush2.bf16.msra.mxu0 0
      %467 = vmatprep.subr.bf16.mxu0 0
      %468 = vmatpush2.bf16.msra.mxu0 0
      %469 = vmatprep.subr.bf16.mxu0 0
      %470 = vmatpush2.bf16.msra.mxu0 0
      %471 = vmatprep.subr.bf16.mxu0 0
      %472 = vmatpush2.bf16.msra.mxu0 0
      %473 = vmatprep.subr.bf16.mxu0 0
      %474 = vmatpush2.bf16.msra.mxu0 0
      %475 = vmatprep.mubr.bf16.mxu0 0
      %476 = vmatmul.mubr.bf16.gmra.mxu0 %v438
      %v477 = vpop.f32.mrf.mxu0
      %v478 = vadd.f32 0.0, %v477
      %v479 = vpop.f32.mrf.mxu0
      %v480 = vpop.f32.mrf.mxu0
      %v481 = vadd.f32 0.0, %v480
      %v482 = vpop.f32.mrf.mxu0
      %483 = vmatprep.mubr.bf16.mxu0 0
      %484 = vmatmul.mubr.bf16.gmra.mxu0 %v441
      %v485 = vpop.f32.mrf.mxu0
      %v486 = vadd.f32 0.0, %v485
      %v487 = vpop.f32.mrf.mxu0
      %v488 = vpop.f32.mrf.mxu0
      %v489 = vpop.f32.mrf.mxu0
      %490 = vdwg.mxu0
      %v491 = vadd.f32 %v420, %v478
      %v492 = vadd.f32 %v421, %v481
      %v493 = vadd.f32 %v422, %v486
      %v494 = vld [vmem:[%s138 + $0x8] sm:$0xff]
      %v495 = vld [vmem:[%s138 + $0x10] sm:$0xff]
      %v496 = vld [vmem:[%s138 + $0x18] sm:$0xff]
      %v497 = vpack.c.bf16 %v495, %v494
      %v498 = vpack.c.bf16 %v496, %v496
      %s499 = scalar_lea.vmem %s1, 40
      %v500 = vld [vmem:[%s499] sm:$0xf]
      %v501 = vld [vmem:[%s499 + $0x4] sm:$0xf]
      %v504 = vunpack.c.l.b16 %v500
      %v505 = vunpack.c.l.b16 %v501
      %v506 = vpack.c.b16 %v505, %v504
      %v509 = vsel %vm166, %v497, 0
      %v512 = vsel %vm166, %v498, 0
      %514 = vmatprep.subr.bf16.mxu0 0
      %515 = vmatpush1.bf16.msra.mxu0 0
      %516 = vmatprep.subr.bf16.mxu0 0
      %517 = vmatpush1.bf16.msra.mxu0 0
      %518 = vmatprep.subr.bf16.mxu0 0
      %519 = vmatpush1.bf16.msra.mxu0 0
      %520 = vmatprep.subr.bf16.mxu0 0
      %521 = vmatpush1.bf16.msra.mxu0 0
      %522 = vmatprep.subr.bf16.mxu0 0
      %523 = vmatpush1.bf16.msra.mxu0 0
      %524 = vmatprep.subr.bf16.mxu0 0
      %525 = vmatpush1.bf16.msra.mxu0 0
      %526 = vmatprep.subr.bf16.mxu0 0
      %527 = vmatpush1.bf16.msra.mxu0 0
      %528 = vmatprep.subr.bf16.mxu0 0
      %529 = vmatpush1.bf16.msra.mxu0 %v506
      %530 = vmatprep.subr.bf16.mxu0 0
      %531 = vmatpush2.bf16.msra.mxu0 0
      %532 = vmatprep.subr.bf16.mxu0 0
      %533 = vmatpush2.bf16.msra.mxu0 0
      %534 = vmatprep.subr.bf16.mxu0 0
      %535 = vmatpush2.bf16.msra.mxu0 0
      %536 = vmatprep.subr.bf16.mxu0 0
      %537 = vmatpush2.bf16.msra.mxu0 0
      %538 = vmatprep.subr.bf16.mxu0 0
      %539 = vmatpush2.bf16.msra.mxu0 0
      %540 = vmatprep.subr.bf16.mxu0 0
      %541 = vmatpush2.bf16.msra.mxu0 0
      %542 = vmatprep.subr.bf16.mxu0 0
      %543 = vmatpush2.bf16.msra.mxu0 0
      %544 = vmatprep.subr.bf16.mxu0 0
      %545 = vmatpush2.bf16.msra.mxu0 0
      %546 = vmatprep.mubr.bf16.mxu0 0
      %547 = vmatmul.mubr.bf16.gmra.mxu0 %v509
      %v548 = vpop.f32.mrf.mxu0
      %v549 = vadd.f32 0.0, %v548
      %v550 = vpop.f32.mrf.mxu0
      %v551 = vpop.f32.mrf.mxu0
      %v552 = vadd.f32 0.0, %v551
      %v553 = vpop.f32.mrf.mxu0
      %554 = vmatprep.mubr.bf16.mxu0 0
      %555 = vmatmul.mubr.bf16.gmra.mxu0 %v512
      %v556 = vpop.f32.mrf.mxu0
      %v557 = vadd.f32 0.0, %v556
      %v558 = vpop.f32.mrf.mxu0
      %v559 = vpop.f32.mrf.mxu0
      %v560 = vpop.f32.mrf.mxu0
      %561 = vdwg.mxu0
      %v562 = vadd.f32 %v491, %v549
      %v563 = vadd.f32 %v492, %v552
      %v564 = vadd.f32 %v493, %v557
      %v565 = vld [vmem:[%s138 + $0xc] sm:$0xff]
      %v566 = vld [vmem:[%s138 + $0x14] sm:$0xff]
      %v567 = vld [vmem:[%s138 + $0x1c] sm:$0xff]
      %v568 = vpack.c.bf16 %v566, %v565
      %v569 = vpack.c.bf16 %v567, %v567
      %s570 = scalar_lea.vmem %s1, 48
      %v571 = vld [vmem:[%s570] sm:$0xf]
      %v572 = vld [vmem:[%s570 + $0x4] sm:$0xf]
      %v575 = vunpack.c.l.b16 %v571
      %v576 = vunpack.c.l.b16 %v572
      %v577 = vpack.c.b16 %v576, %v575
      %v580 = vsel %vm166, %v568, 0
      %v583 = vsel %vm166, %v569, 0
      %585 = vmatprep.subr.bf16.mxu0 0
      %586 = vmatpush1.bf16.msra.mxu0 0
      %587 = vmatprep.subr.bf16.mxu0 0
      %588 = vmatpush1.bf16.msra.mxu0 0
      %589 = vmatprep.subr.bf16.mxu0 0
      %590 = vmatpush1.bf16.msra.mxu0 0
      %591 = vmatprep.subr.bf16.mxu0 0
      %592 = vmatpush1.bf16.msra.mxu0 0
      %593 = vmatprep.subr.bf16.mxu0 0
      %594 = vmatpush1.bf16.msra.mxu0 0
      %595 = vmatprep.subr.bf16.mxu0 0
      %596 = vmatpush1.bf16.msra.mxu0 0
      %597 = vmatprep.subr.bf16.mxu0 0
      %598 = vmatpush1.bf16.msra.mxu0 0
      %599 = vmatprep.subr.bf16.mxu0 0
      %600 = vmatpush1.bf16.msra.mxu0 %v577
      %601 = vmatprep.subr.bf16.mxu0 0
      %602 = vmatpush2.bf16.msra.mxu0 0
      %603 = vmatprep.subr.bf16.mxu0 0
      %604 = vmatpush2.bf16.msra.mxu0 0
      %605 = vmatprep.subr.bf16.mxu0 0
      %606 = vmatpush2.bf16.msra.mxu0 0
      %607 = vmatprep.subr.bf16.mxu0 0
      %608 = vmatpush2.bf16.msra.mxu0 0
      %609 = vmatprep.subr.bf16.mxu0 0
      %610 = vmatpush2.bf16.msra.mxu0 0
      %611 = vmatprep.subr.bf16.mxu0 0
      %612 = vmatpush2.bf16.msra.mxu0 0
      %613 = vmatprep.subr.bf16.mxu0 0
      %614 = vmatpush2.bf16.msra.mxu0 0
      %615 = vmatprep.subr.bf16.mxu0 0
      %616 = vmatpush2.bf16.msra.mxu0 0
      %617 = vmatprep.mubr.bf16.mxu0 0
      %618 = vmatmul.mubr.bf16.gmra.mxu0 %v580
      %v619 = vpop.f32.mrf.mxu0
      %v620 = vadd.f32 0.0, %v619
      %v621 = vpop.f32.mrf.mxu0
      %v622 = vpop.f32.mrf.mxu0
      %v623 = vadd.f32 0.0, %v622
      %v624 = vpop.f32.mrf.mxu0
      %625 = vmatprep.mubr.bf16.mxu0 0
      %626 = vmatmul.mubr.bf16.gmra.mxu0 %v583
      %v627 = vpop.f32.mrf.mxu0
      %v628 = vadd.f32 0.0, %v627
      %v629 = vpop.f32.mrf.mxu0
      %v630 = vpop.f32.mrf.mxu0
      %v631 = vpop.f32.mrf.mxu0
      %632 = vdwg.mxu0
      %v633 = vadd.f32 %v562, %v620
      %v634 = vadd.f32 %v563, %v623
      %v635 = vadd.f32 %v564, %v628
      %v636 = vld [vmem:[%s138 + $0xd] sm:$0xff]
      %v637 = vld [vmem:[%s138 + $0x15] sm:$0xff]
      %v638 = vld [vmem:[%s138 + $0x1d] sm:$0xff]
      %v639 = vpack.c.bf16 %v637, %v636
      %v640 = vpack.c.bf16 %v638, %v638
      %s641 = scalar_lea.vmem %s1, 56
      %v642 = vld [vmem:[%s641] sm:$0xf]
      %v643 = vld [vmem:[%s641 + $0x4] sm:$0xf]
      %v646 = vunpack.c.l.b16 %v642
      %v647 = vunpack.c.l.b16 %v643
      %v648 = vpack.c.b16 %v647, %v646
      %v651 = vsel %vm166, %v639, 0
      %v654 = vsel %vm166, %v640, 0
      %656 = vmatprep.subr.bf16.mxu0 0
      %657 = vmatpush1.bf16.msra.mxu0 0
      %658 = vmatprep.subr.bf16.mxu0 0
      %659 = vmatpush1.bf16.msra.mxu0 0
      %660 = vmatprep.subr.bf16.mxu0 0
      %661 = vmatpush1.bf16.msra.mxu0 0
      %662 = vmatprep.subr.bf16.mxu0 0
      %663 = vmatpush1.bf16.msra.mxu0 0
      %664 = vmatprep.subr.bf16.mxu0 0
      %665 = vmatpush1.bf16.msra.mxu0 0
      %666 = vmatprep.subr.bf16.mxu0 0
      %667 = vmatpush1.bf16.msra.mxu0 0
      %668 = vmatprep.subr.bf16.mxu0 0
      %669 = vmatpush1.bf16.msra.mxu0 0
      %670 = vmatprep.subr.bf16.mxu0 0
      %671 = vmatpush1.bf16.msra.mxu0 %v648
      %672 = vmatprep.subr.bf16.mxu0 0
      %673 = vmatpush2.bf16.msra.mxu0 0
      %674 = vmatprep.subr.bf16.mxu0 0
      %675 = vmatpush2.bf16.msra.mxu0 0
      %676 = vmatprep.subr.bf16.mxu0 0
      %677 = vmatpush2.bf16.msra.mxu0 0
      %678 = vmatprep.subr.bf16.mxu0 0
      %679 = vmatpush2.bf16.msra.mxu0 0
      %680 = vmatprep.subr.bf16.mxu0 0
      %681 = vmatpush2.bf16.msra.mxu0 0
      %682 = vmatprep.subr.bf16.mxu0 0
      %683 = vmatpush2.bf16.msra.mxu0 0
      %684 = vmatprep.subr.bf16.mxu0 0
      %685 = vmatpush2.bf16.msra.mxu0 0
      %686 = vmatprep.subr.bf16.mxu0 0
      %687 = vmatpush2.bf16.msra.mxu0 0
      %688 = vmatprep.mubr.bf16.mxu0 0
      %689 = vmatmul.mubr.bf16.gmra.mxu0 %v651
      %v690 = vpop.f32.mrf.mxu0
      %v691 = vadd.f32 0.0, %v690
      %v692 = vpop.f32.mrf.mxu0
      %v693 = vpop.f32.mrf.mxu0
      %v694 = vadd.f32 0.0, %v693
      %v695 = vpop.f32.mrf.mxu0
      %696 = vmatprep.mubr.bf16.mxu0 0
      %697 = vmatmul.mubr.bf16.gmra.mxu0 %v654
      %v698 = vpop.f32.mrf.mxu0
      %v699 = vadd.f32 0.0, %v698
      %v700 = vpop.f32.mrf.mxu0
      %v701 = vpop.f32.mrf.mxu0
      %v702 = vpop.f32.mrf.mxu0
      %703 = vdwg.mxu0
      %v704 = vadd.f32 %v633, %v691
      %v705 = vadd.f32 %v634, %v694
      %v706 = vadd.f32 %v635, %v699
      %v707 = vld [vmem:[%s138 + $0xe] sm:$0xff]
      %v708 = vld [vmem:[%s138 + $0x16] sm:$0xff]
      %v709 = vld [vmem:[%s138 + $0x1e] sm:$0xff]
      %v710 = vpack.c.bf16 %v708, %v707
      %v711 = vpack.c.bf16 %v709, %v709
      %s712 = scalar_lea.vmem %s1, 64
      %v713 = vld [vmem:[%s712] sm:$0xf]
      %v714 = vld [vmem:[%s712 + $0x4] sm:$0xf]
      %v717 = vunpack.c.l.b16 %v713
      %v718 = vunpack.c.l.b16 %v714
      %v719 = vpack.c.b16 %v718, %v717
      %v722 = vsel %vm166, %v710, 0
      %v725 = vsel %vm166, %v711, 0
      %727 = vmatprep.subr.bf16.mxu0 0
      %728 = vmatpush1.bf16.msra.mxu0 0
      %729 = vmatprep.subr.bf16.mxu0 0
      %730 = vmatpush1.bf16.msra.mxu0 0
      %731 = vmatprep.subr.bf16.mxu0 0
      %732 = vmatpush1.bf16.msra.mxu0 0
      %733 = vmatprep.subr.bf16.mxu0 0
      %734 = vmatpush1.bf16.msra.mxu0 0
      %735 = vmatprep.subr.bf16.mxu0 0
      %736 = vmatpush1.bf16.msra.mxu0 0
      %737 = vmatprep.subr.bf16.mxu0 0
      %738 = vmatpush1.bf16.msra.mxu0 0
      %739 = vmatprep.subr.bf16.mxu0 0
      %740 = vmatpush1.bf16.msra.mxu0 0
      %741 = vmatprep.subr.bf16.mxu0 0
      %742 = vmatpush1.bf16.msra.mxu0 %v719
      %743 = vmatprep.subr.bf16.mxu0 0
      %744 = vmatpush2.bf16.msra.mxu0 0
      %745 = vmatprep.subr.bf16.mxu0 0
      %746 = vmatpush2.bf16.msra.mxu0 0
      %747 = vmatprep.subr.bf16.mxu0 0
      %748 = vmatpush2.bf16.msra.mxu0 0
      %749 = vmatprep.subr.bf16.mxu0 0
      %750 = vmatpush2.bf16.msra.mxu0 0
      %751 = vmatprep.subr.bf16.mxu0 0
      %752 = vmatpush2.bf16.msra.mxu0 0
      %753 = vmatprep.subr.bf16.mxu0 0
      %754 = vmatpush2.bf16.msra.mxu0 0
      %755 = vmatprep.subr.bf16.mxu0 0
      %756 = vmatpush2.bf16.msra.mxu0 0
      %757 = vmatprep.subr.bf16.mxu0 0
      %758 = vmatpush2.bf16.msra.mxu0 0
      %759 = vmatprep.mubr.bf16.mxu0 0
      %760 = vmatmul.mubr.bf16.gmra.mxu0 %v722
      %v761 = vpop.f32.mrf.mxu0
      %v762 = vadd.f32 0.0, %v761
      %v763 = vpop.f32.mrf.mxu0
      %v764 = vpop.f32.mrf.mxu0
      %v765 = vadd.f32 0.0, %v764
      %v766 = vpop.f32.mrf.mxu0
      %767 = vmatprep.mubr.bf16.mxu0 0
      %768 = vmatmul.mubr.bf16.gmra.mxu0 %v725
      %v769 = vpop.f32.mrf.mxu0
      %v770 = vadd.f32 0.0, %v769
      %v771 = vpop.f32.mrf.mxu0
      %v772 = vpop.f32.mrf.mxu0
      %v773 = vpop.f32.mrf.mxu0
      %774 = vdwg.mxu0
      %v775 = vadd.f32 %v704, %v762
      %v776 = vadd.f32 %v705, %v765
      %v777 = vadd.f32 %v706, %v770
      %v778 = vmax.f32 %v775, 0.0
      %v779 = vmax.f32 %v776, 0.0
      %v780 = vmax.f32 %v777, 0.0
      %vm781 = vcmask 31744
      %782 = vst.msk [vmem:[%s143] sm:$0xff] %vm781, %v778
      %783 = vst.msk [vmem:[%s143 + $0x8] sm:$0xff] %vm781, %v779
      %784 = vst.msk [vmem:[%s143 + $0x10] sm:$0xff] %vm781, %v780
      %p785 = scmp.lt.s32.totalorder %s13, 1
      %s786 = scalar_select %p785, %s13, 1
      %s787 = smul.addr %s786, 3
      %s788 = smul.addr %s787, 8
      %s789 = scalar_lea.vmem %s2, %s788
      // Predicated region
      $region29: #{diin_forward.24} parent=27 // pred_check
        %p790 = pneg %p78
      $region30: #{diin_forward.24} parent=27 // pred_check_branch
        %792 = sbr.rel (%p790) target = $region32
      $region31: #{diin_forward.24} parent=27 // pred_region
        _
      $region32: #{diin_forward.24} parent=27 // pred_fallthru
        _
    $region28: #{diin_forward.24} parent=5 // pred_fallthru
      _
    %p793 = scmp.le.s32.totalorder 2, %s8
    // Predicated region
    $region33: #{diin_forward.24} parent=5 // pred_check
      %p794 = pneg %p793
    $region34: #{diin_forward.24} parent=5 // pred_check_branch
      %796 = sbr.rel (%p794) target = $region36
    $region35: #{diin_forward.24} parent=5 // pred_region
      %s797 = ssub.s32 %s8, 2
      // Predicated region
      $region37: #{diin_forward.24} parent=35 // pred_check
        %p798 = pneg %p84
      $region38: #{diin_forward.24} parent=35 // pred_check_branch
        %800 = sbr.rel (%p798) target = $region40
      $region39: #{diin_forward.24} parent=35 // pred_region
        %p801 = scmp.lt.s32.totalorder %s14, 1
        %s802 = scalar_select %p801, %s14, 1
        %s803 = smul.addr %s802, 3
        %s804 = smul.addr %s803, 8
        %s805 = scalar_lea.vmem %s2, %s804
      $region40: #{diin_forward.24} parent=35 // pred_fallthru
        _
    $region36: #{diin_forward.24} parent=5 // pred_fallthru
      _
  $region6: #{diin_forward.24} parent=0 // loop_footer
    %s12 = sadd.s32 1, %s8
  $region7: #{diin_forward.24} parent=0 // loop_footer_branch
    %7 = sbr.rel target = $region3
  $region8: #{diin_forward.24} parent=0 // loop_exit
    _

// kernel: diin_forward.26
$region0: #{diin_forward.26}
  #allocation0 [shape = 'u32[]', space=smem, size = 0x4, offset = 0x4, fixed_abs, tag = 'smem constant byte address 0x4 - core index']
  #allocation1 [shape = 'u32[144,128]{1,0:T(1,128)}', space=vmem, size = 0x12000, scoped, tag = 'internal scratch']
  %s0 = inlined_call_operand.vmem [shape: f32[2,18,10], index: 0, kind: input, shape index: {}]
  %s1 = inlined_call_operand.vmem [shape: bf16[9,10,4], index: 1, kind: input, shape index: {}]
  %s2 = inlined_call_operand.vmem [shape: f32[2,8,4], index: 2, kind: output, shape index: {}]
  %s3 = sld [smem:[#allocation0]]
  $region41: #{diin_forward.26} parent=0
    _
  %s5 = ssub.s32 1, %s3
  %s6 = scalar_select 0, %s5, %s3
  loop: start=0, step=1, limit=4
  $region2: #{diin_forward.26} parent=0 // loop_pre_header
    _
  $region3: #{diin_forward.26} parent=0 // loop_header
    %s8 = sphi 0, %s12
    %p9 = scmp.ge.s32.totalorder %s8, 4
    %s18 = sphi 0, %s20
    %s21 = sphi 0, %s18
    %s22 = sphi 0, %s21
    %s38 = sphi 0, %s22
    %s42 = sphi 0, %s42
    %s44 = sphi 0, %s42
    %s45 = sphi 0, %s44
    %s59 = sphi 0, %s45
    %s65 = sphi 0, %s67
    %s68 = sphi 0, %s65
    %s69 = sphi 0, %s68
    %s85 = sphi 0, %s69
  $region4: #{diin_forward.26} parent=0 // loop_header_branch
    %11 = sbr.rel (%p9) target = $region8
  $region5: #{diin_forward.26} parent=0 // loop_body
    %s13 = ssub.s32 %s8, 1
    %s14 = ssub.s32 %s8, 2
    %s15 = sadd.s32 %s8, 1
    %s16 = ssub.s32 %s8, %s15
    %p17 = scmp.eq.s32.totalorder %s16, 0
    %s19 = sadd.s32 %s18, 1
    %s20 = scalar_select %p17, %s18, %s19
    %p23 = pneg %p17
    %p24 = scmp.eq.s32.totalorder %s8, 1
    %p25 = por %p23, %p24
    %p26 = scmp.ne.s32.totalorder %s18, %s21
    %p27 = scmp.eq.s32.totalorder %s8, 0
    %p28 = por %p26, %p27
    %p29 = scmp.ne.s32.totalorder %s18, %s21
    %p30 = scmp.eq.s32.totalorder %s13, 1
    %p31 = por %p29, %p30
    %p32 = scmp.ne.s32.totalorder %s21, %s22
    %p33 = scmp.eq.s32.totalorder %s13, 0
    %p34 = por %p32, %p33
    %p35 = scmp.ne.s32.totalorder %s21, %s22
    %p36 = scmp.eq.s32.totalorder %s14, 1
    %p37 = por %p35, %p36
    %p39 = scmp.ne.s32.totalorder %s22, %s38
    %p40 = scmp.eq.s32.totalorder %s14, 0
    %p41 = por %p39, %p40
    %s43 = sadd.s32 %s42, 1
    %p46 = scmp.eq.s32.totalorder %s8, 1
    %p47 = scmp.ne.s32.totalorder %s42, %s44
    %p48 = scmp.eq.s32.totalorder %s8, 0
    %p49 = por %p47, %p48
    %p50 = scmp.ne.s32.totalorder %s42, %s44
    %p51 = scmp.eq.s32.totalorder %s13, 1
    %p52 = por %p50, %p51
    %p53 = scmp.ne.s32.totalorder %s44, %s45
    %p54 = scmp.eq.s32.totalorder %s13, 0
    %p55 = por %p53, %p54
    %p56 = scmp.ne.s32.totalorder %s44, %s45
    %p57 = scmp.eq.s32.totalorder %s14, 1
    %p58 = por %p56, %p57
    %p60 = scmp.ne.s32.totalorder %s45, %s59
    %p61 = scmp.eq.s32.totalorder %s14, 0
    %p62 = por %p60, %p61
    %s63 = ssub.s32 %s8, %s15
    %p64 = scmp.eq.s32.totalorder %s63, 0
    %s66 = sadd.s32 %s65, 1
    %s67 = scalar_select %p64, %s65, %s66
    %p70 = pneg %p64
    %p71 = scmp.eq.s32.totalorder %s8, 1
    %p72 = por %p70, %p71
    %p73 = scmp.ne.s32.totalorder %s65, %s68
    %p74 = scmp.eq.s32.totalorder %s8, 0
    %p75 = por %p73, %p74
    %p76 = scmp.ne.s32.totalorder %s65, %s68
    %p77 = scmp.eq.s32.totalorder %s13, 1
    %p78 = por %p76, %p77
    %p79 = scmp.ne.s32.totalorder %s68, %s69
    %p80 = scmp.eq.s32.totalorder %s13, 0
    %p81 = por %p79, %p80
    %p82 = scmp.ne.s32.totalorder %s68, %s69
    %p83 = scmp.eq.s32.totalorder %s14, 1
    %p84 = por %p82, %p83
    %p86 = scmp.ne.s32.totalorder %s69, %s85
    %p87 = scmp.eq.s32.totalorder %s14, 0
    %p88 = por %p86, %p87
    %p89 = scmp.le.s32.totalorder 1, %s8
    %p90 = scmp.lt.s32.totalorder %s8, 3
    %p91 = pnand %p89, %p90
    %p92 = pneg %p91
    // Predicated region
    $region9: #{diin_forward.26} parent=5 // pred_check
      _
    $region10: #{diin_forward.26} parent=5 // pred_check_branch
      %94 = sbr.rel (%p91) target = $region12
    $region11: #{diin_forward.26} parent=5 // pred_region
      %s95 = ssub.s32 %s8, 1
      // Predicated region
      $region13: #{diin_forward.26} parent=11 // pred_check
        %p96 = pneg %p55
      $region14: #{diin_forward.26} parent=11 // pred_check_branch
        %98 = sbr.rel (%p96) target = $region16
      $region15: #{diin_forward.26} parent=11 // pred_region
        _
      $region16: #{diin_forward.26} parent=11 // pred_fallthru
        _
    $region12: #{diin_forward.26} parent=5 // pred_fallthru
      _
    %p99 = scmp.lt.s32.totalorder %s8, 2
    // Predicated region
    $region17: #{diin_forward.26} parent=5 // pred_check
      %p100 = pneg %p99
    $region18: #{diin_forward.26} parent=5 // pred_check_branch
      %102 = sbr.rel (%p100) target = $region20
    $region19: #{diin_forward.26} parent=5 // pred_region
      // Predicated region
      $region21: #{diin_forward.26} parent=19 // pred_check
        %p103 = pneg %p28
      $region22: #{diin_forward.26} parent=19 // pred_check_branch
        %105 = sbr.rel (%p103) target = $region24
      $region23: #{diin_forward.26} parent=19 // pred_region
        %p106 = scmp.lt.s32.totalorder %s8, 1
        %s107 = scalar_select %p106, %s8, 1
        %s108 = smul.addr %s107, 3
        %s109 = smul.addr %s108, 8
        %s110 = scalar_lea.vmem %s0, %s109
      $region24: #{diin_forward.26} parent=19 // pred_fallthru
        _
    $region20: #{diin_forward.26} parent=5 // pred_fallthru
      _
    %p111 = scmp.le.s32.totalorder 1, %s8
    %p112 = scmp.lt.s32.totalorder %s8, 3
    %p113 = pnand %p111, %p112
    %p114 = pneg %p113
    // Predicated region
    $region25: #{diin_forward.26} parent=5 // pred_check
      _
    $region26: #{diin_forward.26} parent=5 // pred_check_branch
      %116 = sbr.rel (%p113) target = $region28
    $region27: #{diin_forward.26} parent=5 // pred_region
      %s117 = ssub.s32 %s8, 1
      %p118 = scmp.lt.s32.totalorder %s13, 1
      %s119 = scalar_select %p118, %s13, 1
      %s120 = smul.addr %s119, 3
      %s121 = smul.addr %s120, 8
      %s122 = scalar_lea.vmem %s0, %s121
      %p123 = pneg %p34
      %p124 = pneg %p31
      %p125 = pneg %p55
      %p126 = pneg %p52
      %p127 = pneg %p81
      %p128 = pneg %p78
      %p129 = scmp.lt.s32.totalorder %s13, 1
      %s130 = scalar_select %p129, %s13, 1
      %s131 = smul.addr %s130, 8
      %s132 = scalar_lea.vmem %s2, %s131
      %p133 = scmp.lt.s32.totalorder %s13, 1
      %s134 = scalar_select %p133, %s13, 1
      %s135 = smul.addr %s134, 3
      %s136 = smul.addr %s135, 8
      %s137 = scalar_lea.vmem %s0, %s136
      %p138 = scmp.lt.s32.totalorder %s13, 1
      %s139 = scalar_select %p138, %s13, 1
      %s140 = smul.addr %s139, 8
      %s141 = scalar_lea.vmem %s2, %s140
      %v143 = vld [vmem:[%s137] sm:$0xff]
      %v144 = vpack.c.bf16 %v143, %v143
      %v145 = vld [vmem:[%s1] sm:$0xf]
      %v146 = vld [vmem:[%s1 + $0x4] sm:$0x1]
      %v147 = vld [vmem:[%s137 + $0x1] sm:$0xff]
      %v148 = vpack.c.bf16 %v147, %v147
      %s149 = scalar_lea.vmem %s1, 8
      %v150 = vld [vmem:[%s149] sm:$0xf]
      %v151 = vld [vmem:[%s149 + $0x4] sm:$0x1]
      %v154 = vunpack.c.l.b16 %v150
      %v155 = vunpack.c.l.b16 %v151
      %v156 = vpack.c.b16 %v155, %v154
      %vm157 = vcmask 80896
      %v159 = vsel %vm157, %v148, 0
      %vm161 = vcmask 1044480
      %v163 = vsel %vm161, %v156, 0
      %165 = vmatprep.subr.bf16.mxu0 0
      %166 = vmatpush1.bf16.msra.mxu0 0
      %167 = vmatprep.subr.bf16.mxu0 0
      %168 = vmatpush1.bf16.msra.mxu0 0
      %169 = vmatprep.subr.bf16.mxu0 0
      %170 = vmatpush1.bf16.msra.mxu0 0
      %171 = vmatprep.subr.bf16.mxu0 0
      %172 = vmatpush1.bf16.msra.mxu0 0
      %173 = vmatprep.subr.bf16.mxu0 0
      %174 = vmatpush1.bf16.msra.mxu0 0
      %175 = vmatprep.subr.bf16.mxu0 0
      %176 = vmatpush1.bf16.msra.mxu0 0
      %177 = vmatprep.subr.bf16.mxu0 0
      %178 = vmatpush1.bf16.msra.mxu0 0
      %179 = vmatprep.subr.bf16.mxu0 0
      %180 = vmatpush1.bf16.msra.mxu0 %v163
      %181 = vmatprep.subr.bf16.mxu0 0
      %182 = vmatpush2.bf16.msra.mxu0 0
      %183 = vmatprep.subr.bf16.mxu0 0
      %184 = vmatpush2.bf16.msra.mxu0 0
      %185 = vmatprep.subr.bf16.mxu0 0
      %186 = vmatpush2.bf16.msra.mxu0 0
      %187 = vmatprep.subr.bf16.mxu0 0
      %188 = vmatpush2.bf16.msra.mxu0 0
      %189 = vmatprep.subr.bf16.mxu0 0
      %190 = vmatpush2.bf16.msra.mxu0 0
      %191 = vmatprep.subr.bf16.mxu0 0
      %192 = vmatpush2.bf16.msra.mxu0 0
      %193 = vmatprep.subr.bf16.mxu0 0
      %194 = vmatpush2.bf16.msra.mxu0 0
      %195 = vmatprep.subr.bf16.mxu0 0
      %196 = vmatpush2.bf16.msra.mxu0 0
      %197 = vmatprep.mubr.bf16.mxu0 0
      %198 = vmatmul.mubr.bf16.gmra.mxu0 %v159
      %v199 = vpop.f32.mrf.mxu0
      %v200 = vadd.f32 0.0, %v199
      %v201 = vpop.f32.mrf.mxu0
      %v202 = vpop.f32.mrf.mxu0
      %v203 = vpop.f32.mrf.mxu0
      %204 = vdwg.mxu0
      %v207 = vunpack.c.l.b16 %v145
      %v208 = vunpack.c.l.b16 %v146
      %v209 = vpack.c.b16 %v208, %v207
      %v211 = vsel %vm157, %v144, 0
      %v214 = vsel %vm161, %v209, 0
      %216 = vmatprep.subr.bf16.mxu0 0
      %217 = vmatpush1.bf16.msra.mxu0 0
      %218 = vmatprep.subr.bf16.mxu0 0
      %219 = vmatpush1.bf16.msra.mxu0 0
      %220 = vmatprep.subr.bf16.mxu0 0
      %221 = vmatpush1.bf16.msra.mxu0 0
      %222 = vmatprep.subr.bf16.mxu0 0
      %223 = vmatpush1.bf16.msra.mxu0 0
      %224 = vmatprep.subr.bf16.mxu0 0
      %225 = vmatpush1.bf16.msra.mxu0 0
      %226 = vmatprep.subr.bf16.mxu0 0
      %227 = vmatpush1.bf16.msra.mxu0 0
      %228 = vmatprep.subr.bf16.mxu0 0
      %229 = vmatpush1.bf16.msra.mxu0 0
      %230 = vmatprep.subr.bf16.mxu0 0
      %231 = vmatpush1.bf16.msra.mxu0 %v214
      %232 = vmatprep.subr.bf16.mxu0 0
      %233 = vmatpush2.bf16.msra.mxu0 0
      %234 = vmatprep.subr.bf16.mxu0 0
      %235 = vmatpush2.bf16.msra.mxu0 0
      %236 = vmatprep.subr.bf16.mxu0 0
      %237 = vmatpush2.bf16.msra.mxu0 0
      %238 = vmatprep.subr.bf16.mxu0 0
      %239 = vmatpush2.bf16.msra.mxu0 0
      %240 = vmatprep.subr.bf16.mxu0 0
      %241 = vmatpush2.bf16.msra.mxu0 0
      %242 = vmatprep.subr.bf16.mxu0 0
      %243 = vmatpush2.bf16.msra.mxu0 0
      %244 = vmatprep.subr.bf16.mxu0 0
      %245 = vmatpush2.bf16.msra.mxu0 0
      %246 = vmatprep.subr.bf16.mxu0 0
      %247 = vmatpush2.bf16.msra.mxu0 0
      %248 = vmatprep.mubr.bf16.mxu0 0
      %249 = vmatmul.mubr.bf16.gmra.mxu0 %v211
      %v250 = vpop.f32.mrf.mxu0
      %v251 = vadd.f32 %v200, %v250
      %v252 = vpop.f32.mrf.mxu0
      %v253 = vpop.f32.mrf.mxu0
      %v254 = vpop.f32.mrf.mxu0
      %255 = vdwg.mxu0
      %v256 = vld [vmem:[%s137 + $0x2] sm:$0xff]
      %v257 = vpack.c.bf16 %v256, %v256
      %s258 = scalar_lea.vmem %s1, 16
      %v259 = vld [vmem:[%s258] sm:$0xf]
      %v260 = vld [vmem:[%s258 + $0x4] sm:$0x1]
      %v263 = vunpack.c.l.b16 %v259
      %v264 = vunpack.c.l.b16 %v260
      %v265 = vpack.c.b16 %v264, %v263
      %v267 = vsel %vm157, %v257, 0
      %v270 = vsel %vm161, %v265, 0
      %272 = vmatprep.subr.bf16.mxu0 0
      %273 = vmatpush1.bf16.msra.mxu0 0
      %274 = vmatprep.subr.bf16.mxu0 0
      %275 = vmatpush1.bf16.msra.mxu0 0
      %276 = vmatprep.subr.bf16.mxu0 0
      %277 = vmatpush1.bf16.msra.mxu0 0
      %278 = vmatprep.subr.bf16.mxu0 0
      %279 = vmatpush1.bf16.msra.mxu0 0
      %280 = vmatprep.subr.bf16.mxu0 0
      %281 = vmatpush1.bf16.msra.mxu0 0
      %282 = vmatprep.subr.bf16.mxu0 0
      %283 = vmatpush1.bf16.msra.mxu0 0
      %284 = vmatprep.subr.bf16.mxu0 0
      %285 = vmatpush1.bf16.msra.mxu0 0
      %286 = vmatprep.subr.bf16.mxu0 0
      %287 = vmatpush1.bf16.msra.mxu0 %v270
      %288 = vmatprep.subr.bf16.mxu0 0
      %289 = vmatpush2.bf16.msra.mxu0 0
      %290 = vmatprep.subr.bf16.mxu0 0
      %291 = vmatpush2.bf16.msra.mxu0 0
      %292 = vmatprep.subr.bf16.mxu0 0
      %293 = vmatpush2.bf16.msra.mxu0 0
      %294 = vmatprep.subr.bf16.mxu0 0
      %295 = vmatpush2.bf16.msra.mxu0 0
      %296 = vmatprep.subr.bf16.mxu0 0
      %297 = vmatpush2.bf16.msra.mxu0 0
      %298 = vmatprep.subr.bf16.mxu0 0
      %299 = vmatpush2.bf16.msra.mxu0 0
      %300 = vmatprep.subr.bf16.mxu0 0
      %301 = vmatpush2.bf16.msra.mxu0 0
      %302 = vmatprep.subr.bf16.mxu0 0
      %303 = vmatpush2.bf16.msra.mxu0 0
      %304 = vmatprep.mubr.bf16.mxu0 0
      %305 = vmatmul.mubr.bf16.gmra.mxu0 %v267
      %v306 = vpop.f32.mrf.mxu0
      %v307 = vadd.f32 0.0, %v306
      %v308 = vpop.f32.mrf.mxu0
      %v309 = vpop.f32.mrf.mxu0
      %v310 = vpop.f32.mrf.mxu0
      %311 = vdwg.mxu0
      %v312 = vadd.f32 %v251, %v307
      %v313 = vld [vmem:[%s137 + $0x4] sm:$0xff]
      %v314 = vpack.c.bf16 %v313, %v313
      %s315 = scalar_lea.vmem %s1, 24
      %v316 = vld [vmem:[%s315] sm:$0xf]
      %v317 = vld [vmem:[%s315 + $0x4] sm:$0x1]
      %v320 = vunpack.c.l.b16 %v316
      %v321 = vunpack.c.l.b16 %v317
      %v322 = vpack.c.b16 %v321, %v320
      %v324 = vsel %vm157, %v314, 0
      %v327 = vsel %vm161, %v322, 0
      %329 = vmatprep.subr.bf16.mxu0 0
      %330 = vmatpush1.bf16.msra.mxu0 0
      %331 = vmatprep.subr.bf16.mxu0 0
      %332 = vmatpush1.bf16.msra.mxu0 0
      %333 = vmatprep.subr.bf16.mxu0 0
      %334 = vmatpush1.bf16.msra.mxu0 0
      %335 = vmatprep.subr.bf16.mxu0 0
      %336 = vmatpush1.bf16.msra.mxu0 0
      %337 = vmatprep.subr.bf16.mxu0 0
      %338 = vmatpush1.bf16.msra.mxu0 0
      %339 = vmatprep.subr.bf16.mxu0 0
      %340 = vmatpush1.bf16.msra.mxu0 0
      %341 = vmatprep.subr.bf16.mxu0 0
      %342 = vmatpush1.bf16.msra.mxu0 0
      %343 = vmatprep.subr.bf16.mxu0 0
      %344 = vmatpush1.bf16.msra.mxu0 %v327
      %345 = vmatprep.subr.bf16.mxu0 0
      %346 = vmatpush2.bf16.msra.mxu0 0
      %347 = vmatprep.subr.bf16.mxu0 0
      %348 = vmatpush2.bf16.msra.mxu0 0
      %349 = vmatprep.subr.bf16.mxu0 0
      %350 = vmatpush2.bf16.msra.mxu0 0
      %351 = vmatprep.subr.bf16.mxu0 0
      %352 = vmatpush2.bf16.msra.mxu0 0
      %353 = vmatprep.subr.bf16.mxu0 0
      %354 = vmatpush2.bf16.msra.mxu0 0
      %355 = vmatprep.subr.bf16.mxu0 0
      %356 = vmatpush2.bf16.msra.mxu0 0
      %357 = vmatprep.subr.bf16.mxu0 0
      %358 = vmatpush2.bf16.msra.mxu0 0
      %359 = vmatprep.subr.bf16.mxu0 0
      %360 = vmatpush2.bf16.msra.mxu0 0
      %361 = vmatprep.mubr.bf16.mxu0 0
      %362 = vmatmul.mubr.bf16.gmra.mxu0 %v324
      %v363 = vpop.f32.mrf.mxu0
      %v364 = vadd.f32 0.0, %v363
      %v365 = vpop.f32.mrf.mxu0
      %v366 = vpop.f32.mrf.mxu0
      %v367 = vpop.f32.mrf.mxu0
      %368 = vdwg.mxu0
      %v369 = vadd.f32 %v312, %v364
      %v370 = vld [vmem:[%s137 + $0x5] sm:$0xff]
      %v371 = vpack.c.bf16 %v370, %v370
      %s372 = scalar_lea.vmem %s1, 32
      %v373 = vld [vmem:[%s372] sm:$0xf]
      %v374 = vld [vmem:[%s372 + $0x4] sm:$0x1]
      %v377 = vunpack.c.l.b16 %v373
      %v378 = vunpack.c.l.b16 %v374
      %v379 = vpack.c.b16 %v378, %v377
      %v381 = vsel %vm157, %v371, 0
      %v384 = vsel %vm161, %v379, 0
      %386 = vmatprep.subr.bf16.mxu0 0
      %387 = vmatpush1.bf16.msra.mxu0 0
      %388 = vmatprep.subr.bf16.mxu0 0
      %389 = vmatpush1.bf16.msra.mxu0 0
      %390 = vmatprep.subr.bf16.mxu0 0
      %391 = vmatpush1.bf16.msra.mxu0 0
      %392 = vmatprep.subr.bf16.mxu0 0
      %393 = vmatpush1.bf16.msra.mxu0 0
      %394 = vmatprep.subr.bf16.mxu0 0
      %395 = vmatpush1.bf16.msra.mxu0 0
      %396 = vmatprep.subr.bf16.mxu0 0
      %397 = vmatpush1.bf16.msra.mxu0 0
      %398 = vmatprep.subr.bf16.mxu0 0
      %399 = vmatpush1.bf16.msra.mxu0 0
      %400 = vmatprep.subr.bf16.mxu0 0
      %401 = vmatpush1.bf16.msra.mxu0 %v384
      %402 = vmatprep.subr.bf16.mxu0 0
      %403 = vmatpush2.bf16.msra.mxu0 0
      %404 = vmatprep.subr.bf16.mxu0 0
      %405 = vmatpush2.bf16.msra.mxu0 0
      %406 = vmatprep.subr.bf16.mxu0 0
      %407 = vmatpush2.bf16.msra.mxu0 0
      %408 = vmatprep.subr.bf16.mxu0 0
      %409 = vmatpush2.bf16.msra.mxu0 0
      %410 = vmatprep.subr.bf16.mxu0 0
      %411 = vmatpush2.bf16.msra.mxu0 0
      %412 = vmatprep.subr.bf16.mxu0 0
      %413 = vmatpush2.bf16.msra.mxu0 0
      %414 = vmatprep.subr.bf16.mxu0 0
      %415 = vmatpush2.bf16.msra.mxu0 0
      %416 = vmatprep.subr.bf16.mxu0 0
      %417 = vmatpush2.bf16.msra.mxu0 0
      %418 = vmatprep.mubr.bf16.mxu0 0
      %419 = vmatmul.mubr.bf16.gmra.mxu0 %v381
      %v420 = vpop.f32.mrf.mxu0
      %v421 = vadd.f32 0.0, %v420
      %v422 = vpop.f32.mrf.mxu0
      %v423 = vpop.f32.mrf.mxu0
      %v424 = vpop.f32.mrf.mxu0
      %425 = vdwg.mxu0
      %v426 = vadd.f32 %v369, %v421
      %v427 = vld [vmem:[%s137 + $0x6] sm:$0xff]
      %v428 = vpack.c.bf16 %v427, %v427
      %s429 = scalar_lea.vmem %s1, 40
      %v430 = vld [vmem:[%s429] sm:$0xf]
      %v431 = vld [vmem:[%s429 + $0x4] sm:$0x1]
      %v434 = vunpack.c.l.b16 %v430
      %v435 = vunpack.c.l.b16 %v431
      %v436 = vpack.c.b16 %v435, %v434
      %v438 = vsel %vm157, %v428, 0
      %v441 = vsel %vm161, %v436, 0
      %443 = vmatprep.subr.bf16.mxu0 0
      %444 = vmatpush1.bf16.msra.mxu0 0
      %445 = vmatprep.subr.bf16.mxu0 0
      %446 = vmatpush1.bf16.msra.mxu0 0
      %447 = vmatprep.subr.bf16.mxu0 0
      %448 = vmatpush1.bf16.msra.mxu0 0
      %449 = vmatprep.subr.bf16.mxu0 0
      %450 = vmatpush1.bf16.msra.mxu0 0
      %451 = vmatprep.subr.bf16.mxu0 0
      %452 = vmatpush1.bf16.msra.mxu0 0
      %453 = vmatprep.subr.bf16.mxu0 0
      %454 = vmatpush1.bf16.msra.mxu0 0
      %455 = vmatprep.subr.bf16.mxu0 0
      %456 = vmatpush1.bf16.msra.mxu0 0
      %457 = vmatprep.subr.bf16.mxu0 0
      %458 = vmatpush1.bf16.msra.mxu0 %v441
      %459 = vmatprep.subr.bf16.mxu0 0
      %460 = vmatpush2.bf16.msra.mxu0 0
      %461 = vmatprep.subr.bf16.mxu0 0
      %462 = vmatpush2.bf16.msra.mxu0 0
      %463 = vmatprep.subr.bf16.mxu0 0
      %464 = vmatpush2.bf16.msra.mxu0 0
      %465 = vmatprep.subr.bf16.mxu0 0
      %466 = vmatpush2.bf16.msra.mxu0 0
      %467 = vmatprep.subr.bf16.mxu0 0
      %468 = vmatpush2.bf16.msra.mxu0 0
      %469 = vmatprep.subr.bf16.mxu0 0
      %470 = vmatpush2.bf16.msra.mxu0 0
      %471 = vmatprep.subr.bf16.mxu0 0
      %472 = vmatpush2.bf16.msra.mxu0 0
      %473 = vmatprep.subr.bf16.mxu0 0
      %474 = vmatpush2.bf16.msra.mxu0 0
      %475 = vmatprep.mubr.bf16.mxu0 0
      %476 = vmatmul.mubr.bf16.gmra.mxu0 %v438
      %v477 = vpop.f32.mrf.mxu0
      %v478 = vadd.f32 0.0, %v477
      %v479 = vpop.f32.mrf.mxu0
      %v480 = vpop.f32.mrf.mxu0
      %v481 = vpop.f32.mrf.mxu0
      %482 = vdwg.mxu0
      %v483 = vadd.f32 %v426, %v478
      %v484 = vld [vmem:[%s137 + $0x8] sm:$0xff]
      %v485 = vpack.c.bf16 %v484, %v484
      %s486 = scalar_lea.vmem %s1, 48
      %v487 = vld [vmem:[%s486] sm:$0xf]
      %v488 = vld [vmem:[%s486 + $0x4] sm:$0x1]
      %v491 = vunpack.c.l.b16 %v487
      %v492 = vunpack.c.l.b16 %v488
      %v493 = vpack.c.b16 %v492, %v491
      %v495 = vsel %vm157, %v485, 0
      %v498 = vsel %vm161, %v493, 0
      %500 = vmatprep.subr.bf16.mxu0 0
      %501 = vmatpush1.bf16.msra.mxu0 0
      %502 = vmatprep.subr.bf16.mxu0 0
      %503 = vmatpush1.bf16.msra.mxu0 0
      %504 = vmatprep.subr.bf16.mxu0 0
      %505 = vmatpush1.bf16.msra.mxu0 0
      %506 = vmatprep.subr.bf16.mxu0 0
      %507 = vmatpush1.bf16.msra.mxu0 0
      %508 = vmatprep.subr.bf16.mxu0 0
      %509 = vmatpush1.bf16.msra.mxu0 0
      %510 = vmatprep.subr.bf16.mxu0 0
      %511 = vmatpush1.bf16.msra.mxu0 0
      %512 = vmatprep.subr.bf16.mxu0 0
      %513 = vmatpush1.bf16.msra.mxu0 0
      %514 = vmatprep.subr.bf16.mxu0 0
      %515 = vmatpush1.bf16.msra.mxu0 %v498
      %516 = vmatprep.subr.bf16.mxu0 0
      %517 = vmatpush2.bf16.msra.mxu0 0
      %518 = vmatprep.subr.bf16.mxu0 0
      %519 = vmatpush2.bf16.msra.mxu0 0
      %520 = vmatprep.subr.bf16.mxu0 0
      %521 = vmatpush2.bf16.msra.mxu0 0
      %522 = vmatprep.subr.bf16.mxu0 0
      %523 = vmatpush2.bf16.msra.mxu0 0
      %524 = vmatprep.subr.bf16.mxu0 0
      %525 = vmatpush2.bf16.msra.mxu0 0
      %526 = vmatprep.subr.bf16.mxu0 0
      %527 = vmatpush2.bf16.msra.mxu0 0
      %528 = vmatprep.subr.bf16.mxu0 0
      %529 = vmatpush2.bf16.msra.mxu0 0
      %530 = vmatprep.subr.bf16.mxu0 0
      %531 = vmatpush2.bf16.msra.mxu0 0
      %532 = vmatprep.mubr.bf16.mxu0 0
      %533 = vmatmul.mubr.bf16.gmra.mxu0 %v495
      %v534 = vpop.f32.mrf.mxu0
      %v535 = vadd.f32 0.0, %v534
      %v536 = vpop.f32.mrf.mxu0
      %v537 = vpop.f32.mrf.mxu0
      %v538 = vpop.f32.mrf.mxu0
      %539 = vdwg.mxu0
      %v540 = vadd.f32 %v483, %v535
      %v541 = vld [vmem:[%s137 + $0x9] sm:$0xff]
      %v542 = vpack.c.bf16 %v541, %v541
      %s543 = scalar_lea.vmem %s1, 56
      %v544 = vld [vmem:[%s543] sm:$0xf]
      %v545 = vld [vmem:[%s543 + $0x4] sm:$0x1]
      %v548 = vunpack.c.l.b16 %v544
      %v549 = vunpack.c.l.b16 %v545
      %v550 = vpack.c.b16 %v549, %v548
      %v552 = vsel %vm157, %v542, 0
      %v555 = vsel %vm161, %v550, 0
      %557 = vmatprep.subr.bf16.mxu0 0
      %558 = vmatpush1.bf16.msra.mxu0 0
      %559 = vmatprep.subr.bf16.mxu0 0
      %560 = vmatpush1.bf16.msra.mxu0 0
      %561 = vmatprep.subr.bf16.mxu0 0
      %562 = vmatpush1.bf16.msra.mxu0 0
      %563 = vmatprep.subr.bf16.mxu0 0
      %564 = vmatpush1.bf16.msra.mxu0 0
      %565 = vmatprep.subr.bf16.mxu0 0
      %566 = vmatpush1.bf16.msra.mxu0 0
      %567 = vmatprep.subr.bf16.mxu0 0
      %568 = vmatpush1.bf16.msra.mxu0 0
      %569 = vmatprep.subr.bf16.mxu0 0
      %570 = vmatpush1.bf16.msra.mxu0 0
      %571 = vmatprep.subr.bf16.mxu0 0
      %572 = vmatpush1.bf16.msra.mxu0 %v555
      %573 = vmatprep.subr.bf16.mxu0 0
      %574 = vmatpush2.bf16.msra.mxu0 0
      %575 = vmatprep.subr.bf16.mxu0 0
      %576 = vmatpush2.bf16.msra.mxu0 0
      %577 = vmatprep.subr.bf16.mxu0 0
      %578 = vmatpush2.bf16.msra.mxu0 0
      %579 = vmatprep.subr.bf16.mxu0 0
      %580 = vmatpush2.bf16.msra.mxu0 0
      %581 = vmatprep.subr.bf16.mxu0 0
      %582 = vmatpush2.bf16.msra.mxu0 0
      %583 = vmatprep.subr.bf16.mxu0 0
      %584 = vmatpush2.bf16.msra.mxu0 0
      %585 = vmatprep.subr.bf16.mxu0 0
      %586 = vmatpush2.bf16.msra.mxu0 0
      %587 = vmatprep.subr.bf16.mxu0 0
      %588 = vmatpush2.bf16.msra.mxu0 0
      %589 = vmatprep.mubr.bf16.mxu0 0
      %590 = vmatmul.mubr.bf16.gmra.mxu0 %v552
      %v591 = vpop.f32.mrf.mxu0
      %v592 = vadd.f32 0.0, %v591
      %v593 = vpop.f32.mrf.mxu0
      %v594 = vpop.f32.mrf.mxu0
      %v595 = vpop.f32.mrf.mxu0
      %596 = vdwg.mxu0
      %v597 = vadd.f32 %v540, %v592
      %v598 = vld [vmem:[%s137 + $0xa] sm:$0xff]
      %v599 = vpack.c.bf16 %v598, %v598
      %s600 = scalar_lea.vmem %s1, 64
      %v601 = vld [vmem:[%s600] sm:$0xf]
      %v602 = vld [vmem:[%s600 + $0x4] sm:$0x1]
      %v605 = vunpack.c.l.b16 %v601
      %v606 = vunpack.c.l.b16 %v602
      %v607 = vpack.c.b16 %v606, %v605
      %v609 = vsel %vm157, %v599, 0
      %v612 = vsel %vm161, %v607, 0
      %614 = vmatprep.subr.bf16.mxu0 0
      %615 = vmatpush1.bf16.msra.mxu0 0
      %616 = vmatprep.subr.bf16.mxu0 0
      %617 = vmatpush1.bf16.msra.mxu0 0
      %618 = vmatprep.subr.bf16.mxu0 0
      %619 = vmatpush1.bf16.msra.mxu0 0
      %620 = vmatprep.subr.bf16.mxu0 0
      %621 = vmatpush1.bf16.msra.mxu0 0
      %622 = vmatprep.subr.bf16.mxu0 0
      %623 = vmatpush1.bf16.msra.mxu0 0
      %624 = vmatprep.subr.bf16.mxu0 0
      %625 = vmatpush1.bf16.msra.mxu0 0
      %626 = vmatprep.subr.bf16.mxu0 0
      %627 = vmatpush1.bf16.msra.mxu0 0
      %628 = vmatprep.subr.bf16.mxu0 0
      %629 = vmatpush1.bf16.msra.mxu0 %v612
      %630 = vmatprep.subr.bf16.mxu0 0
      %631 = vmatpush2.bf16.msra.mxu0 0
      %632 = vmatprep.subr.bf16.mxu0 0
      %633 = vmatpush2.bf16.msra.mxu0 0
      %634 = vmatprep.subr.bf16.mxu0 0
      %635 = vmatpush2.bf16.msra.mxu0 0
      %636 = vmatprep.subr.bf16.mxu0 0
      %637 = vmatpush2.bf16.msra.mxu0 0
      %638 = vmatprep.subr.bf16.mxu0 0
      %639 = vmatpush2.bf16.msra.mxu0 0
      %640 = vmatprep.subr.bf16.mxu0 0
      %641 = vmatpush2.bf16.msra.mxu0 0
      %642 = vmatprep.subr.bf16.mxu0 0
      %643 = vmatpush2.bf16.msra.mxu0 0
      %644 = vmatprep.subr.bf16.mxu0 0
      %645 = vmatpush2.bf16.msra.mxu0 0
      %646 = vmatprep.mubr.bf16.mxu0 0
      %647 = vmatmul.mubr.bf16.gmra.mxu0 %v609
      %v648 = vpop.f32.mrf.mxu0
      %v649 = vadd.f32 0.0, %v648
      %v650 = vpop.f32.mrf.mxu0
      %v651 = vpop.f32.mrf.mxu0
      %v652 = vpop.f32.mrf.mxu0
      %653 = vdwg.mxu0
      %v654 = vadd.f32 %v597, %v649
      %v655 = vmax.f32 %v654, 0.0
      %vm656 = vcmask 31744
      %657 = vst.msk [vmem:[%s141] sm:$0xff] %vm656, %v655
      %p658 = scmp.lt.s32.totalorder %s13, 1
      %s659 = scalar_select %p658, %s13, 1
      %s660 = smul.addr %s659, 8
      %s661 = scalar_lea.vmem %s2, %s660
      // Predicated region
      $region29: #{diin_forward.26} parent=27 // pred_check
        %p662 = pneg %p78
      $region30: #{diin_forward.26} parent=27 // pred_check_branch
        %664 = sbr.rel (%p662) target = $region32
      $region31: #{diin_forward.26} parent=27 // pred_region
        _
      $region32: #{diin_forward.26} parent=27 // pred_fallthru
        _
    $region28: #{diin_forward.26} parent=5 // pred_fallthru
      _
    %p665 = scmp.le.s32.totalorder 2, %s8
    // Predicated region
    $region33: #{diin_forward.26} parent=5 // pred_check
      %p666 = pneg %p665
    $region34: #{diin_forward.26} parent=5 // pred_check_branch
      %668 = sbr.rel (%p666) target = $region36
    $region35: #{diin_forward.26} parent=5 // pred_region
      %s669 = ssub.s32 %s8, 2
      // Predicated region
      $region37: #{diin_forward.26} parent=35 // pred_check
        %p670 = pneg %p84
      $region38: #{diin_forward.26} parent=35 // pred_check_branch
        %672 = sbr.rel (%p670) target = $region40
      $region39: #{diin_forward.26} parent=35 // pred_region
        %p673 = scmp.lt.s32.totalorder %s14, 1
        %s674 = scalar_select %p673, %s14, 1
        %s675 = smul.addr %s674, 8
        %s676 = scalar_lea.vmem %s2, %s675
      $region40: #{diin_forward.26} parent=35 // pred_fallthru
        _
    $region36: #{diin_forward.26} parent=5 // pred_fallthru
      _
  $region6: #{diin_forward.26} parent=0 // loop_footer
    %s12 = sadd.s32 1, %s8
  $region7: #{diin_forward.26} parent=0 // loop_footer_branch
    %7 = sbr.rel target = $region3
  $region8: #{diin_forward.26} parent=0 // loop_exit
    _

// kernel: diin_forward.28
$region0: #{diin_forward.28}
  #allocation0 [shape = 'u32[]', space=smem, size = 0x4, offset = 0x4, fixed_abs, tag = 'smem constant byte address 0x4 - core index']
  #allocation1 [shape = 'u32[144,128]{1,0:T(1,128)}', space=vmem, size = 0x12000, scoped, tag = 'internal scratch']
  #allocation2 [shape = 'f32[8,128]{1,0:T(8,128)}', space=vmem, size = 0x1000, scoped, tag = 'scratch operand']
  %s0 = inlined_call_operand.vmem [shape: f32[8,18], index: 0, kind: input, shape index: {}]
  %s1 = inlined_call_operand.vmem [shape: bf16[18,128], index: 1, kind: input, shape index: {}]
  %s2 = inlined_call_operand.vmem [shape: f32[1,128], index: 2, kind: input, shape index: {}]
  %s3 = inlined_call_operand.vmem [shape: f32[8,128], index: 3, kind: output, shape index: {}]
  %s4 = sld [smem:[#allocation0]]
  $region30: #{diin_forward.28} parent=0
    _
  %s6 = ssub.s32 1, %s4
  %s7 = scalar_select 0, %s6, %s4
  // Predicated region
  $region2: #{diin_forward.28} parent=0 // pred_check
    _
  $region3: #{diin_forward.28} parent=0 // pred_check_branch
    %9 = sbr.rel (0) target = $region5
  $region4: #{diin_forward.28} parent=0 // pred_region
    _
  $region5: #{diin_forward.28} parent=0 // pred_fallthru
    _
  // Predicated region
  $region6: #{diin_forward.28} parent=0 // pred_check
    _
  $region7: #{diin_forward.28} parent=0 // pred_check_branch
    %11 = sbr.rel (0) target = $region9
  $region8: #{diin_forward.28} parent=0 // pred_region
    _
  $region9: #{diin_forward.28} parent=0 // pred_fallthru
    _
  // Predicated region
  $region10: #{diin_forward.28} parent=0 // pred_check
    _
  $region11: #{diin_forward.28} parent=0 // pred_check_branch
    %13 = sbr.rel (0) target = $region13
  $region12: #{diin_forward.28} parent=0 // pred_region
    _
  $region13: #{diin_forward.28} parent=0 // pred_fallthru
    _
  %p15 = scmp.eq.s32.totalorder 0, 0
  // Predicated region
  $region14: #{diin_forward.28} parent=0 // pred_check
    %p16 = pneg %p15
  $region15: #{diin_forward.28} parent=0 // pred_check_branch
    %18 = sbr.rel (%p16) target = $region17
  $region16: #{diin_forward.28} parent=0 // pred_region
    %19 = vst [vmem:[#allocation2] sm:$0xff] 0.0
  $region17: #{diin_forward.28} parent=0 // pred_fallthru
    _
  %v20 = vld [vmem:[#allocation2] sm:$0xff]
  %v21 = vld [vmem:[%s0] sm:$0xff]
  %v22 = vpack.c.bf16 %v21, %v21
  %v23 = vld [vmem:[%s1] sm:$0xf]
  %v24 = vld [vmem:[%s1 + $0x4] sm:$0xf]
  %v25 = vld [vmem:[%s1 + $0x8] sm:$0x1]
  %v29 = vunpack.c.l.b16 %v23
  %v30 = vunpack.c.l.b16 %v24
  %v31 = vunpack.c.l.b16 %v25
  %v32 = vpack.c.b16 %v30, %v29
  %v33 = vpack.c.b16 %v31, %v31
  %vm35 = vcmask 146432
  %v37 = vsel %vm35, %v22, 0
  %vm39 = vcmask 1040384
  %v41 = vsel %vm39, %v33, 0
  %43 = vmatprep.subr.bf16.mxu0 0
  %44 = vmatpush1.bf16.msra.mxu0 0
  %45 = vmatprep.subr.bf16.mxu0 0
  %46 = vmatpush1.bf16.msra.mxu0 0
  %47 = vmatprep.subr.bf16.mxu0 0
  %48 = vmatpush1.bf16.msra.mxu0 0
  %49 = vmatprep.subr.bf16.mxu0 0
  %50 = vmatpush1.bf16.msra.mxu0 0
  %51 = vmatprep.subr.bf16.mxu0 0
  %52 = vmatpush1.bf16.msra.mxu0 0
  %53 = vmatprep.subr.bf16.mxu0 0
  %54 = vmatpush1.bf16.msra.mxu0 0
  %55 = vmatprep.subr.bf16.mxu0 0
  %56 = vmatpush1.bf16.msra.mxu0 %v41
  %57 = vmatprep.subr.bf16.mxu0 0
  %58 = vmatpush1.bf16.msra.mxu0 %v32
  %59 = vmatprep.subr.bf16.mxu0 0
  %60 = vmatpush2.bf16.msra.mxu0 0
  %61 = vmatprep.subr.bf16.mxu0 0
  %62 = vmatpush2.bf16.msra.mxu0 0
  %63 = vmatprep.subr.bf16.mxu0 0
  %64 = vmatpush2.bf16.msra.mxu0 0
  %65 = vmatprep.subr.bf16.mxu0 0
  %66 = vmatpush2.bf16.msra.mxu0 0
  %67 = vmatprep.subr.bf16.mxu0 0
  %68 = vmatpush2.bf16.msra.mxu0 0
  %69 = vmatprep.subr.bf16.mxu0 0
  %70 = vmatpush2.bf16.msra.mxu0 0
  %71 = vmatprep.subr.bf16.mxu0 0
  %72 = vmatpush2.bf16.msra.mxu0 0
  %73 = vmatprep.subr.bf16.mxu0 0
  %74 = vmatpush2.bf16.msra.mxu0 0
  %75 = vmatprep.mubr.bf16.mxu0 0
  %76 = vmatmul.mubr.bf16.gmra.mxu0 %v37
  %v77 = vpop.f32.mrf.mxu0
  %v78 = vadd.f32 0.0, %v77
  %v79 = vpop.f32.mrf.mxu0
  %v80 = vpop.f32.mrf.mxu0
  %v81 = vpop.f32.mrf.mxu0
  %82 = vdwg.mxu0
  %v83 = vadd.f32 %v20, %v78
  %84 = vst [vmem:[#allocation2] sm:$0xff] %v83
  // Predicated region
  $region18: #{diin_forward.28} parent=0 // pred_check
    %p85 = pneg %p15
  $region19: #{diin_forward.28} parent=0 // pred_check_branch
    %87 = sbr.rel (%p85) target = $region21
  $region20: #{diin_forward.28} parent=0 // pred_region
    %v88 = vld [vmem:[#allocation2] sm:$0xff]
    %v89 = vld [vmem:[%s2] sm:$0x1]
    %v91 = vlaneseq
    %v92 = vshrl.u32 %v91, 7
    %v93 = vsub.s32 0, %v92
    %v94 = vrot.slane %v89, %v93
    %v96 = vadd.f32 %v88, %v94
    %97 = vst [vmem:[%s3] sm:$0xff] %v96
  $region21: #{diin_forward.28} parent=0 // pred_fallthru
    _
  // Predicated region
  $region22: #{diin_forward.28} parent=0 // pred_check
    _
  $region23: #{diin_forward.28} parent=0 // pred_check_branch
    %99 = sbr.rel (0) target = $region25
  $region24: #{diin_forward.28} parent=0 // pred_region
    _
  $region25: #{diin_forward.28} parent=0 // pred_fallthru
    _
  // Predicated region
  $region26: #{diin_forward.28} parent=0 // pred_check
    _
  $region27: #{diin_forward.28} parent=0 // pred_check_branch
    %101 = sbr.rel (0) target = $region29
  $region28: #{diin_forward.28} parent=0 // pred_region
    _
  $region29: #{diin_forward.28} parent=0 // pred_fallthru
    _

// kernel: diin_forward.29
$region0: #{diin_forward.29}
  #allocation0 [shape = 'u32[]', space=smem, size = 0x4, offset = 0x4, fixed_abs, tag = 'smem constant byte address 0x4 - core index']
  #allocation1 [shape = 'u32[144,128]{1,0:T(1,128)}', space=vmem, size = 0x12000, scoped, tag = 'internal scratch']
  #allocation2 [shape = 'f32[2,128]{1,0:T(2,128)}', space=vmem, size = 0x400, scoped, tag = 'scratch operand']
  %s0 = inlined_call_operand.vmem [shape: f32[2,9], index: 0, kind: input, shape index: {}]
  %s1 = inlined_call_operand.vmem [shape: bf16[9,128], index: 1, kind: input, shape index: {}]
  %s2 = inlined_call_operand.vmem [shape: f32[1,128], index: 2, kind: input, shape index: {}]
  %s3 = inlined_call_operand.hbm [shape: f32[2,128], index: 3, kind: output, shape index: {}]
  %s4 = sld [smem:[#allocation0]]
  $region30: #{diin_forward.29} parent=0
    _
  %s6 = ssub.s32 1, %s4
  %s7 = scalar_select 0, %s6, %s4
  $region1: #{diin_forward.29} parent=0
    #allocation3 [shape = 'u8[1024]{0}', space=vmem, size = 0x400, scoped, tag = 'output window, operand 0, single buffered']
    #allocation4 [shape = 's32[1]{0}', space=sflag, size = 0x4, scoped, tag = 'scoped memory for diin_forward.29']
    %8 = vsyncpa [#allocation4], 0
    // Predicated region
    $region2: #{diin_forward.29} parent=1 // pred_check
      _
    $region3: #{diin_forward.29} parent=1 // pred_check_branch
      %10 = sbr.rel (0) target = $region5
    $region4: #{diin_forward.29} parent=1 // pred_region
      _
    $region5: #{diin_forward.29} parent=1 // pred_fallthru
      _
    // Predicated region
    $region6: #{diin_forward.29} parent=1 // pred_check
      _
    $region7: #{diin_forward.29} parent=1 // pred_check_branch
      %12 = sbr.rel (0) target = $region9
    $region8: #{diin_forward.29} parent=1 // pred_region
      _
    $region9: #{diin_forward.29} parent=1 // pred_fallthru
      _
    // Predicated region
    $region10: #{diin_forward.29} parent=1 // pred_check
      _
    $region11: #{diin_forward.29} parent=1 // pred_check_branch
      %14 = sbr.rel (0) target = $region13
    $region12: #{diin_forward.29} parent=1 // pred_region
      _
    $region13: #{diin_forward.29} parent=1 // pred_fallthru
      _
    %p16 = scmp.eq.s32.totalorder 0, 0
    // Predicated region
    $region14: #{diin_forward.29} parent=1 // pred_check
      %p17 = pneg %p16
    $region15: #{diin_forward.29} parent=1 // pred_check_branch
      %19 = sbr.rel (%p17) target = $region17
    $region16: #{diin_forward.29} parent=1 // pred_region
      %20 = vst [vmem:[#allocation2] sm:$0x3] 0.0
    $region17: #{diin_forward.29} parent=1 // pred_fallthru
      _
    %v21 = vld [vmem:[#allocation2] sm:$0x3]
    %v22 = vld [vmem:[%s0] sm:$0x3]
    %v23 = vpack.c.bf16 %v22, %v22
    %v24 = vld [vmem:[%s1] sm:$0xf]
    %v25 = vld [vmem:[%s1 + $0x4] sm:$0x1]
    %v28 = vunpack.c.l.b16 %v24
    %v29 = vunpack.c.l.b16 %v25
    %v30 = vpack.c.b16 %v29, %v28
    %vm31 = vcmask 72704
    %v33 = vsel %vm31, %v23, 0
    %vm35 = vcmask 1043456
    %vm36 = vcmask 1044480
    %v37 = vsel %vm35, 4294967295, 65535
    %v38 = vsel %vm36, %v37, 0
    %v40 = vand.u32 %v30, %v38
    %42 = vmatprep.subr.bf16.mxu0 0
    %43 = vmatpush1.bf16.msra.mxu0 0
    %44 = vmatprep.subr.bf16.mxu0 0
    %45 = vmatpush1.bf16.msra.mxu0 0
    %46 = vmatprep.subr.bf16.mxu0 0
    %47 = vmatpush1.bf16.msra.mxu0 0
    %48 = vmatprep.subr.bf16.mxu0 0
    %49 = vmatpush1.bf16.msra.mxu0 0
    %50 = vmatprep.subr.bf16.mxu0 0
    %51 = vmatpush1.bf16.msra.mxu0 0
    %52 = vmatprep.subr.bf16.mxu0 0
    %53 = vmatpush1.bf16.msra.mxu0 0
    %54 = vmatprep.subr.bf16.mxu0 0
    %55 = vmatpush1.bf16.msra.mxu0 0
    %56 = vmatprep.subr.bf16.mxu0 0
    %57 = vmatpush1.bf16.msra.mxu0 %v40
    %58 = vmatprep.subr.bf16.mxu0 0
    %59 = vmatpush2.bf16.msra.mxu0 0
    %60 = vmatprep.subr.bf16.mxu0 0
    %61 = vmatpush2.bf16.msra.mxu0 0
    %62 = vmatprep.subr.bf16.mxu0 0
    %63 = vmatpush2.bf16.msra.mxu0 0
    %64 = vmatprep.subr.bf16.mxu0 0
    %65 = vmatpush2.bf16.msra.mxu0 0
    %66 = vmatprep.subr.bf16.mxu0 0
    %67 = vmatpush2.bf16.msra.mxu0 0
    %68 = vmatprep.subr.bf16.mxu0 0
    %69 = vmatpush2.bf16.msra.mxu0 0
    %70 = vmatprep.subr.bf16.mxu0 0
    %71 = vmatpush2.bf16.msra.mxu0 0
    %72 = vmatprep.subr.bf16.mxu0 0
    %73 = vmatpush2.bf16.msra.mxu0 0
    %74 = vmatprep.mubr.bf16.mxu0 0
    %75 = vmatmul.mubr.bf16.gmra.mxu0 %v33
    %v76 = vpop.f32.mrf.mxu0
    %v77 = vadd.f32 0.0, %v76
    %v78 = vpop.f32.mrf.mxu0
    %v79 = vpop.f32.mrf.mxu0
    %v80 = vpop.f32.mrf.mxu0
    %81 = vdwg.mxu0
    %v82 = vadd.f32 %v21, %v77
    %83 = vst [vmem:[#allocation2] sm:$0x3] %v82
    // Predicated region
    $region18: #{diin_forward.29} parent=1 // pred_check
      %p84 = pneg %p16
    $region19: #{diin_forward.29} parent=1 // pred_check_branch
      %86 = sbr.rel (%p84) target = $region21
    $region20: #{diin_forward.29} parent=1 // pred_region
      %v87 = vld [vmem:[#allocation2] sm:$0x3]
      %v88 = vld [vmem:[%s2] sm:$0x1]
      %v90 = vlaneseq
      %v91 = vshrl.u32 %v90, 7
      %v92 = vsub.s32 0, %v91
      %v93 = vrot.slane %v88, %v92
      %v95 = vadd.f32 %v87, %v93
      %96 = vst [vmem:[#allocation3] sm:$0x3] %v95
    $region21: #{diin_forward.29} parent=1 // pred_fallthru
      _
    // Predicated region
    $region22: #{diin_forward.29} parent=1 // pred_check
      _
    $region23: #{diin_forward.29} parent=1 // pred_check_branch
      %98 = sbr.rel (0) target = $region25
    $region24: #{diin_forward.29} parent=1 // pred_region
      %s100 = ssub.s32 32, 32
      %101 = vsyncadd [#allocation4], %s100
      %s103 = sshll.u32 [#allocation3], 4
      %s104 = int_to_ptr.vmem [resolvable:$true] %s103
      %106 = dma.vmem_to_hbm [thread:$0]  %s104, 32, %s3, [#allocation4]
    $region25: #{diin_forward.29} parent=1 // pred_fallthru
      _
    // Predicated region
    $region26: #{diin_forward.29} parent=1 // pred_check
      _
    $region27: #{diin_forward.29} parent=1 // pred_check_branch
      %108 = sbr.rel (0) target = $region29
    $region28: #{diin_forward.29} parent=1 // pred_region
      %109 = dma.done [#allocation4], 32
    $region29: #{diin_forward.29} parent=1 // pred_fallthru
      _
    %110 = vsyncpa [#allocation4], 1

// kernel: diin_forward.27
$region0: #{diin_forward.27}
  #allocation0 [shape = 'u32[]', space=smem, size = 0x4, offset = 0x4, fixed_abs, tag = 'smem constant byte address 0x4 - core index']
  #allocation1 [shape = 'u32[144,128]{1,0:T(1,128)}', space=vmem, size = 0x12000, scoped, tag = 'internal scratch']
  %s0 = inlined_call_operand.vmem [shape: f32[2,18,14], index: 0, kind: input, shape index: {}]
  %s1 = inlined_call_operand.vmem [shape: bf16[9,14,4], index: 1, kind: input, shape index: {}]
  %s2 = inlined_call_operand.vmem [shape: f32[2,8,4], index: 2, kind: output, shape index: {}]
  %s3 = sld [smem:[#allocation0]]
  $region41: #{diin_forward.27} parent=0
    _
  %s5 = ssub.s32 1, %s3
  %s6 = scalar_select 0, %s5, %s3
  loop: start=0, step=1, limit=4
  $region2: #{diin_forward.27} parent=0 // loop_pre_header
    _
  $region3: #{diin_forward.27} parent=0 // loop_header
    %s8 = sphi 0, %s12
    %p9 = scmp.ge.s32.totalorder %s8, 4
    %s18 = sphi 0, %s20
    %s21 = sphi 0, %s18
    %s22 = sphi 0, %s21
    %s38 = sphi 0, %s22
    %s42 = sphi 0, %s42
    %s44 = sphi 0, %s42
    %s45 = sphi 0, %s44
    %s59 = sphi 0, %s45
    %s65 = sphi 0, %s67
    %s68 = sphi 0, %s65
    %s69 = sphi 0, %s68
    %s85 = sphi 0, %s69
  $region4: #{diin_forward.27} parent=0 // loop_header_branch
    %11 = sbr.rel (%p9) target = $region8
  $region5: #{diin_forward.27} parent=0 // loop_body
    %s13 = ssub.s32 %s8, 1
    %s14 = ssub.s32 %s8, 2
    %s15 = sadd.s32 %s8, 1
    %s16 = ssub.s32 %s8, %s15
    %p17 = scmp.eq.s32.totalorder %s16, 0
    %s19 = sadd.s32 %s18, 1
    %s20 = scalar_select %p17, %s18, %s19
    %p23 = pneg %p17
    %p24 = scmp.eq.s32.totalorder %s8, 1
    %p25 = por %p23, %p24
    %p26 = scmp.ne.s32.totalorder %s18, %s21
    %p27 = scmp.eq.s32.totalorder %s8, 0
    %p28 = por %p26, %p27
    %p29 = scmp.ne.s32.totalorder %s18, %s21
    %p30 = scmp.eq.s32.totalorder %s13, 1
    %p31 = por %p29, %p30
    %p32 = scmp.ne.s32.totalorder %s21, %s22
    %p33 = scmp.eq.s32.totalorder %s13, 0
    %p34 = por %p32, %p33
    %p35 = scmp.ne.s32.totalorder %s21, %s22
    %p36 = scmp.eq.s32.totalorder %s14, 1
    %p37 = por %p35, %p36
    %p39 = scmp.ne.s32.totalorder %s22, %s38
    %p40 = scmp.eq.s32.totalorder %s14, 0
    %p41 = por %p39, %p40
    %s43 = sadd.s32 %s42, 1
    %p46 = scmp.eq.s32.totalorder %s8, 1
    %p47 = scmp.ne.s32.totalorder %s42, %s44
    %p48 = scmp.eq.s32.totalorder %s8, 0
    %p49 = por %p47, %p48
    %p50 = scmp.ne.s32.totalorder %s42, %s44
    %p51 = scmp.eq.s32.totalorder %s13, 1
    %p52 = por %p50, %p51
    %p53 = scmp.ne.s32.totalorder %s44, %s45
    %p54 = scmp.eq.s32.totalorder %s13, 0
    %p55 = por %p53, %p54
    %p56 = scmp.ne.s32.totalorder %s44, %s45
    %p57 = scmp.eq.s32.totalorder %s14, 1
    %p58 = por %p56, %p57
    %p60 = scmp.ne.s32.totalorder %s45, %s59
    %p61 = scmp.eq.s32.totalorder %s14, 0
    %p62 = por %p60, %p61
    %s63 = ssub.s32 %s8, %s15
    %p64 = scmp.eq.s32.totalorder %s63, 0
    %s66 = sadd.s32 %s65, 1
    %s67 = scalar_select %p64, %s65, %s66
    %p70 = pneg %p64
    %p71 = scmp.eq.s32.totalorder %s8, 1
    %p72 = por %p70, %p71
    %p73 = scmp.ne.s32.totalorder %s65, %s68
    %p74 = scmp.eq.s32.totalorder %s8, 0
    %p75 = por %p73, %p74
    %p76 = scmp.ne.s32.totalorder %s65, %s68
    %p77 = scmp.eq.s32.totalorder %s13, 1
    %p78 = por %p76, %p77
    %p79 = scmp.ne.s32.totalorder %s68, %s69
    %p80 = scmp.eq.s32.totalorder %s13, 0
    %p81 = por %p79, %p80
    %p82 = scmp.ne.s32.totalorder %s68, %s69
    %p83 = scmp.eq.s32.totalorder %s14, 1
    %p84 = por %p82, %p83
    %p86 = scmp.ne.s32.totalorder %s69, %s85
    %p87 = scmp.eq.s32.totalorder %s14, 0
    %p88 = por %p86, %p87
    %p89 = scmp.le.s32.totalorder 1, %s8
    %p90 = scmp.lt.s32.totalorder %s8, 3
    %p91 = pnand %p89, %p90
    %p92 = pneg %p91
    // Predicated region
    $region9: #{diin_forward.27} parent=5 // pred_check
      _
    $region10: #{diin_forward.27} parent=5 // pred_check_branch
      %94 = sbr.rel (%p91) target = $region12
    $region11: #{diin_forward.27} parent=5 // pred_region
      %s95 = ssub.s32 %s8, 1
      // Predicated region
      $region13: #{diin_forward.27} parent=11 // pred_check
        %p96 = pneg %p55
      $region14: #{diin_forward.27} parent=11 // pred_check_branch
        %98 = sbr.rel (%p96) target = $region16
      $region15: #{diin_forward.27} parent=11 // pred_region
        _
      $region16: #{diin_forward.27} parent=11 // pred_fallthru
        _
    $region12: #{diin_forward.27} parent=5 // pred_fallthru
      _
    %p99 = scmp.lt.s32.totalorder %s8, 2
    // Predicated region
    $region17: #{diin_forward.27} parent=5 // pred_check
      %p100 = pneg %p99
    $region18: #{diin_forward.27} parent=5 // pred_check_branch
      %102 = sbr.rel (%p100) target = $region20
    $region19: #{diin_forward.27} parent=5 // pred_region
      // Predicated region
      $region21: #{diin_forward.27} parent=19 // pred_check
        %p103 = pneg %p28
      $region22: #{diin_forward.27} parent=19 // pred_check_branch
        %105 = sbr.rel (%p103) target = $region24
      $region23: #{diin_forward.27} parent=19 // pred_region
        %p106 = scmp.lt.s32.totalorder %s8, 1
        %s107 = scalar_select %p106, %s8, 1
        %s108 = smul.addr %s107, 3
        %s109 = smul.addr %s108, 8
        %s110 = scalar_lea.vmem %s0, %s109
      $region24: #{diin_forward.27} parent=19 // pred_fallthru
        _
    $region20: #{diin_forward.27} parent=5 // pred_fallthru
      _
    %p111 = scmp.le.s32.totalorder 1, %s8
    %p112 = scmp.lt.s32.totalorder %s8, 3
    %p113 = pnand %p111, %p112
    %p114 = pneg %p113
    // Predicated region
    $region25: #{diin_forward.27} parent=5 // pred_check
      _
    $region26: #{diin_forward.27} parent=5 // pred_check_branch
      %116 = sbr.rel (%p113) target = $region28
    $region27: #{diin_forward.27} parent=5 // pred_region
      %s117 = ssub.s32 %s8, 1
      %p118 = scmp.lt.s32.totalorder %s13, 1
      %s119 = scalar_select %p118, %s13, 1
      %s120 = smul.addr %s119, 3
      %s121 = smul.addr %s120, 8
      %s122 = scalar_lea.vmem %s0, %s121
      %p123 = pneg %p34
      %p124 = pneg %p31
      %p125 = pneg %p55
      %p126 = pneg %p52
      %p127 = pneg %p81
      %p128 = pneg %p78
      %p129 = scmp.lt.s32.totalorder %s13, 1
      %s130 = scalar_select %p129, %s13, 1
      %s131 = smul.addr %s130, 8
      %s132 = scalar_lea.vmem %s2, %s131
      %p133 = scmp.lt.s32.totalorder %s13, 1
      %s134 = scalar_select %p133, %s13, 1
      %s135 = smul.addr %s134, 3
      %s136 = smul.addr %s135, 8
      %s137 = scalar_lea.vmem %s0, %s136
      %p138 = scmp.lt.s32.totalorder %s13, 1
      %s139 = scalar_select %p138, %s13, 1
      %s140 = smul.addr %s139, 8
      %s141 = scalar_lea.vmem %s2, %s140
      %v143 = vld [vmem:[%s137] sm:$0xff]
      %v144 = vpack.c.bf16 %v143, %v143
      %v145 = vld [vmem:[%s1] sm:$0xf]
      %v146 = vld [vmem:[%s1 + $0x4] sm:$0x7]
      %v147 = vld [vmem:[%s137 + $0x1] sm:$0xff]
      %v148 = vpack.c.bf16 %v147, %v147
      %s149 = scalar_lea.vmem %s1, 8
      %v150 = vld [vmem:[%s149] sm:$0xf]
      %v151 = vld [vmem:[%s149 + $0x4] sm:$0x7]
      %v154 = vunpack.c.l.b16 %v150
      %v155 = vunpack.c.l.b16 %v151
      %v156 = vpack.c.b16 %v155, %v154
      %vm157 = vcmask 113664
      %v159 = vsel %vm157, %v148, 0
      %vm161 = vcmask 1046528
      %v163 = vsel %vm161, %v156, 0
      %165 = vmatprep.subr.bf16.mxu0 0
      %166 = vmatpush1.bf16.msra.mxu0 0
      %167 = vmatprep.subr.bf16.mxu0 0
      %168 = vmatpush1.bf16.msra.mxu0 0
      %169 = vmatprep.subr.bf16.mxu0 0
      %170 = vmatpush1.bf16.msra.mxu0 0
      %171 = vmatprep.subr.bf16.mxu0 0
      %172 = vmatpush1.bf16.msra.mxu0 0
      %173 = vmatprep.subr.bf16.mxu0 0
      %174 = vmatpush1.bf16.msra.mxu0 0
      %175 = vmatprep.subr.bf16.mxu0 0
      %176 = vmatpush1.bf16.msra.mxu0 0
      %177 = vmatprep.subr.bf16.mxu0 0
      %178 = vmatpush1.bf16.msra.mxu0 0
      %179 = vmatprep.subr.bf16.mxu0 0
      %180 = vmatpush1.bf16.msra.mxu0 %v163
      %181 = vmatprep.subr.bf16.mxu0 0
      %182 = vmatpush2.bf16.msra.mxu0 0
      %183 = vmatprep.subr.bf16.mxu0 0
      %184 = vmatpush2.bf16.msra.mxu0 0
      %185 = vmatprep.subr.bf16.mxu0 0
      %186 = vmatpush2.bf16.msra.mxu0 0
      %187 = vmatprep.subr.bf16.mxu0 0
      %188 = vmatpush2.bf16.msra.mxu0 0
      %189 = vmatprep.subr.bf16.mxu0 0
      %190 = vmatpush2.bf16.msra.mxu0 0
      %191 = vmatprep.subr.bf16.mxu0 0
      %192 = vmatpush2.bf16.msra.mxu0 0
      %193 = vmatprep.subr.bf16.mxu0 0
      %194 = vmatpush2.bf16.msra.mxu0 0
      %195 = vmatprep.subr.bf16.mxu0 0
      %196 = vmatpush2.bf16.msra.mxu0 0
      %197 = vmatprep.mubr.bf16.mxu0 0
      %198 = vmatmul.mubr.bf16.gmra.mxu0 %v159
      %v199 = vpop.f32.mrf.mxu0
      %v200 = vadd.f32 0.0, %v199
      %v201 = vpop.f32.mrf.mxu0
      %v202 = vpop.f32.mrf.mxu0
      %v203 = vpop.f32.mrf.mxu0
      %204 = vdwg.mxu0
      %v207 = vunpack.c.l.b16 %v145
      %v208 = vunpack.c.l.b16 %v146
      %v209 = vpack.c.b16 %v208, %v207
      %v211 = vsel %vm157, %v144, 0
      %v214 = vsel %vm161, %v209, 0
      %216 = vmatprep.subr.bf16.mxu0 0
      %217 = vmatpush1.bf16.msra.mxu0 0
      %218 = vmatprep.subr.bf16.mxu0 0
      %219 = vmatpush1.bf16.msra.mxu0 0
      %220 = vmatprep.subr.bf16.mxu0 0
      %221 = vmatpush1.bf16.msra.mxu0 0
      %222 = vmatprep.subr.bf16.mxu0 0
      %223 = vmatpush1.bf16.msra.mxu0 0
      %224 = vmatprep.subr.bf16.mxu0 0
      %225 = vmatpush1.bf16.msra.mxu0 0
      %226 = vmatprep.subr.bf16.mxu0 0
      %227 = vmatpush1.bf16.msra.mxu0 0
      %228 = vmatprep.subr.bf16.mxu0 0
      %229 = vmatpush1.bf16.msra.mxu0 0
      %230 = vmatprep.subr.bf16.mxu0 0
      %231 = vmatpush1.bf16.msra.mxu0 %v214
      %232 = vmatprep.subr.bf16.mxu0 0
      %233 = vmatpush2.bf16.msra.mxu0 0
      %234 = vmatprep.subr.bf16.mxu0 0
      %235 = vmatpush2.bf16.msra.mxu0 0
      %236 = vmatprep.subr.bf16.mxu0 0
      %237 = vmatpush2.bf16.msra.mxu0 0
      %238 = vmatprep.subr.bf16.mxu0 0
      %239 = vmatpush2.bf16.msra.mxu0 0
      %240 = vmatprep.subr.bf16.mxu0 0
      %241 = vmatpush2.bf16.msra.mxu0 0
      %242 = vmatprep.subr.bf16.mxu0 0
      %243 = vmatpush2.bf16.msra.mxu0 0
      %244 = vmatprep.subr.bf16.mxu0 0
      %245 = vmatpush2.bf16.msra.mxu0 0
      %246 = vmatprep.subr.bf16.mxu0 0
      %247 = vmatpush2.bf16.msra.mxu0 0
      %248 = vmatprep.mubr.bf16.mxu0 0
      %249 = vmatmul.mubr.bf16.gmra.mxu0 %v211
      %v250 = vpop.f32.mrf.mxu0
      %v251 = vadd.f32 %v200, %v250
      %v252 = vpop.f32.mrf.mxu0
      %v253 = vpop.f32.mrf.mxu0
      %v254 = vpop.f32.mrf.mxu0
      %255 = vdwg.mxu0
      %v256 = vld [vmem:[%s137 + $0x2] sm:$0xff]
      %v257 = vpack.c.bf16 %v256, %v256
      %s258 = scalar_lea.vmem %s1, 16
      %v259 = vld [vmem:[%s258] sm:$0xf]
      %v260 = vld [vmem:[%s258 + $0x4] sm:$0x7]
      %v263 = vunpack.c.l.b16 %v259
      %v264 = vunpack.c.l.b16 %v260
      %v265 = vpack.c.b16 %v264, %v263
      %v267 = vsel %vm157, %v257, 0
      %v270 = vsel %vm161, %v265, 0
      %272 = vmatprep.subr.bf16.mxu0 0
      %273 = vmatpush1.bf16.msra.mxu0 0
      %274 = vmatprep.subr.bf16.mxu0 0
      %275 = vmatpush1.bf16.msra.mxu0 0
      %276 = vmatprep.subr.bf16.mxu0 0
      %277 = vmatpush1.bf16.msra.mxu0 0
      %278 = vmatprep.subr.bf16.mxu0 0
      %279 = vmatpush1.bf16.msra.mxu0 0
      %280 = vmatprep.subr.bf16.mxu0 0
      %281 = vmatpush1.bf16.msra.mxu0 0
      %282 = vmatprep.subr.bf16.mxu0 0
      %283 = vmatpush1.bf16.msra.mxu0 0
      %284 = vmatprep.subr.bf16.mxu0 0
      %285 = vmatpush1.bf16.msra.mxu0 0
      %286 = vmatprep.subr.bf16.mxu0 0
      %287 = vmatpush1.bf16.msra.mxu0 %v270
      %288 = vmatprep.subr.bf16.mxu0 0
      %289 = vmatpush2.bf16.msra.mxu0 0
      %290 = vmatprep.subr.bf16.mxu0 0
      %291 = vmatpush2.bf16.msra.mxu0 0
      %292 = vmatprep.subr.bf16.mxu0 0
      %293 = vmatpush2.bf16.msra.mxu0 0
      %294 = vmatprep.subr.bf16.mxu0 0
      %295 = vmatpush2.bf16.msra.mxu0 0
      %296 = vmatprep.subr.bf16.mxu0 0
      %297 = vmatpush2.bf16.msra.mxu0 0
      %298 = vmatprep.subr.bf16.mxu0 0
      %299 = vmatpush2.bf16.msra.mxu0 0
      %300 = vmatprep.subr.bf16.mxu0 0
      %301 = vmatpush2.bf16.msra.mxu0 0
      %302 = vmatprep.subr.bf16.mxu0 0
      %303 = vmatpush2.bf16.msra.mxu0 0
      %304 = vmatprep.mubr.bf16.mxu0 0
      %305 = vmatmul.mubr.bf16.gmra.mxu0 %v267
      %v306 = vpop.f32.mrf.mxu0
      %v307 = vadd.f32 0.0, %v306
      %v308 = vpop.f32.mrf.mxu0
      %v309 = vpop.f32.mrf.mxu0
      %v310 = vpop.f32.mrf.mxu0
      %311 = vdwg.mxu0
      %v312 = vadd.f32 %v251, %v307
      %v313 = vld [vmem:[%s137 + $0x4] sm:$0xff]
      %v314 = vpack.c.bf16 %v313, %v313
      %s315 = scalar_lea.vmem %s1, 24
      %v316 = vld [vmem:[%s315] sm:$0xf]
      %v317 = vld [vmem:[%s315 + $0x4] sm:$0x7]
      %v320 = vunpack.c.l.b16 %v316
      %v321 = vunpack.c.l.b16 %v317
      %v322 = vpack.c.b16 %v321, %v320
      %v324 = vsel %vm157, %v314, 0
      %v327 = vsel %vm161, %v322, 0
      %329 = vmatprep.subr.bf16.mxu0 0
      %330 = vmatpush1.bf16.msra.mxu0 0
      %331 = vmatprep.subr.bf16.mxu0 0
      %332 = vmatpush1.bf16.msra.mxu0 0
      %333 = vmatprep.subr.bf16.mxu0 0
      %334 = vmatpush1.bf16.msra.mxu0 0
      %335 = vmatprep.subr.bf16.mxu0 0
      %336 = vmatpush1.bf16.msra.mxu0 0
      %337 = vmatprep.subr.bf16.mxu0 0
      %338 = vmatpush1.bf16.msra.mxu0 0
      %339 = vmatprep.subr.bf16.mxu0 0
      %340 = vmatpush1.bf16.msra.mxu0 0
      %341 = vmatprep.subr.bf16.mxu0 0
      %342 = vmatpush1.bf16.msra.mxu0 0
      %343 = vmatprep.subr.bf16.mxu0 0
      %344 = vmatpush1.bf16.msra.mxu0 %v327
      %345 = vmatprep.subr.bf16.mxu0 0
      %346 = vmatpush2.bf16.msra.mxu0 0
      %347 = vmatprep.subr.bf16.mxu0 0
      %348 = vmatpush2.bf16.msra.mxu0 0
      %349 = vmatprep.subr.bf16.mxu0 0
      %350 = vmatpush2.bf16.msra.mxu0 0
      %351 = vmatprep.subr.bf16.mxu0 0
      %352 = vmatpush2.bf16.msra.mxu0 0
      %353 = vmatprep.subr.bf16.mxu0 0
      %354 = vmatpush2.bf16.msra.mxu0 0
      %355 = vmatprep.subr.bf16.mxu0 0
      %356 = vmatpush2.bf16.msra.mxu0 0
      %357 = vmatprep.subr.bf16.mxu0 0
      %358 = vmatpush2.bf16.msra.mxu0 0
      %359 = vmatprep.subr.bf16.mxu0 0
      %360 = vmatpush2.bf16.msra.mxu0 0
      %361 = vmatprep.mubr.bf16.mxu0 0
      %362 = vmatmul.mubr.bf16.gmra.mxu0 %v324
      %v363 = vpop.f32.mrf.mxu0
      %v364 = vadd.f32 0.0, %v363
      %v365 = vpop.f32.mrf.mxu0
      %v366 = vpop.f32.mrf.mxu0
      %v367 = vpop.f32.mrf.mxu0
      %368 = vdwg.mxu0
      %v369 = vadd.f32 %v312, %v364
      %v370 = vld [vmem:[%s137 + $0x5] sm:$0xff]
      %v371 = vpack.c.bf16 %v370, %v370
      %s372 = scalar_lea.vmem %s1, 32
      %v373 = vld [vmem:[%s372] sm:$0xf]
      %v374 = vld [vmem:[%s372 + $0x4] sm:$0x7]
      %v377 = vunpack.c.l.b16 %v373
      %v378 = vunpack.c.l.b16 %v374
      %v379 = vpack.c.b16 %v378, %v377
      %v381 = vsel %vm157, %v371, 0
      %v384 = vsel %vm161, %v379, 0
      %386 = vmatprep.subr.bf16.mxu0 0
      %387 = vmatpush1.bf16.msra.mxu0 0
      %388 = vmatprep.subr.bf16.mxu0 0
      %389 = vmatpush1.bf16.msra.mxu0 0
      %390 = vmatprep.subr.bf16.mxu0 0
      %391 = vmatpush1.bf16.msra.mxu0 0
      %392 = vmatprep.subr.bf16.mxu0 0
      %393 = vmatpush1.bf16.msra.mxu0 0
      %394 = vmatprep.subr.bf16.mxu0 0
      %395 = vmatpush1.bf16.msra.mxu0 0
      %396 = vmatprep.subr.bf16.mxu0 0
      %397 = vmatpush1.bf16.msra.mxu0 0
      %398 = vmatprep.subr.bf16.mxu0 0
      %399 = vmatpush1.bf16.msra.mxu0 0
      %400 = vmatprep.subr.bf16.mxu0 0
      %401 = vmatpush1.bf16.msra.mxu0 %v384
      %402 = vmatprep.subr.bf16.mxu0 0
      %403 = vmatpush2.bf16.msra.mxu0 0
      %404 = vmatprep.subr.bf16.mxu0 0
      %405 = vmatpush2.bf16.msra.mxu0 0
      %406 = vmatprep.subr.bf16.mxu0 0
      %407 = vmatpush2.bf16.msra.mxu0 0
      %408 = vmatprep.subr.bf16.mxu0 0
      %409 = vmatpush2.bf16.msra.mxu0 0
      %410 = vmatprep.subr.bf16.mxu0 0
      %411 = vmatpush2.bf16.msra.mxu0 0
      %412 = vmatprep.subr.bf16.mxu0 0
      %413 = vmatpush2.bf16.msra.mxu0 0
      %414 = vmatprep.subr.bf16.mxu0 0
      %415 = vmatpush2.bf16.msra.mxu0 0
      %416 = vmatprep.subr.bf16.mxu0 0
      %417 = vmatpush2.bf16.msra.mxu0 0
      %418 = vmatprep.mubr.bf16.mxu0 0
      %419 = vmatmul.mubr.bf16.gmra.mxu0 %v381
      %v420 = vpop.f32.mrf.mxu0
      %v421 = vadd.f32 0.0, %v420
      %v422 = vpop.f32.mrf.mxu0
      %v423 = vpop.f32.mrf.mxu0
      %v424 = vpop.f32.mrf.mxu0
      %425 = vdwg.mxu0
      %v426 = vadd.f32 %v369, %v421
      %v427 = vld [vmem:[%s137 + $0x6] sm:$0xff]
      %v428 = vpack.c.bf16 %v427, %v427
      %s429 = scalar_lea.vmem %s1, 40
      %v430 = vld [vmem:[%s429] sm:$0xf]
      %v431 = vld [vmem:[%s429 + $0x4] sm:$0x7]
      %v434 = vunpack.c.l.b16 %v430
      %v435 = vunpack.c.l.b16 %v431
      %v436 = vpack.c.b16 %v435, %v434
      %v438 = vsel %vm157, %v428, 0
      %v441 = vsel %vm161, %v436, 0
      %443 = vmatprep.subr.bf16.mxu0 0
      %444 = vmatpush1.bf16.msra.mxu0 0
      %445 = vmatprep.subr.bf16.mxu0 0
      %446 = vmatpush1.bf16.msra.mxu0 0
      %447 = vmatprep.subr.bf16.mxu0 0
      %448 = vmatpush1.bf16.msra.mxu0 0
      %449 = vmatprep.subr.bf16.mxu0 0
      %450 = vmatpush1.bf16.msra.mxu0 0
      %451 = vmatprep.subr.bf16.mxu0 0
      %452 = vmatpush1.bf16.msra.mxu0 0
      %453 = vmatprep.subr.bf16.mxu0 0
      %454 = vmatpush1.bf16.msra.mxu0 0
      %455 = vmatprep.subr.bf16.mxu0 0
      %456 = vmatpush1.bf16.msra.mxu0 0
      %457 = vmatprep.subr.bf16.mxu0 0
      %458 = vmatpush1.bf16.msra.mxu0 %v441
      %459 = vmatprep.subr.bf16.mxu0 0
      %460 = vmatpush2.bf16.msra.mxu0 0
      %461 = vmatprep.subr.bf16.mxu0 0
      %462 = vmatpush2.bf16.msra.mxu0 0
      %463 = vmatprep.subr.bf16.mxu0 0
      %464 = vmatpush2.bf16.msra.mxu0 0
      %465 = vmatprep.subr.bf16.mxu0 0
      %466 = vmatpush2.bf16.msra.mxu0 0
      %467 = vmatprep.subr.bf16.mxu0 0
      %468 = vmatpush2.bf16.msra.mxu0 0
      %469 = vmatprep.subr.bf16.mxu0 0
      %470 = vmatpush2.bf16.msra.mxu0 0
      %471 = vmatprep.subr.bf16.mxu0 0
      %472 = vmatpush2.bf16.msra.mxu0 0
      %473 = vmatprep.subr.bf16.mxu0 0
      %474 = vmatpush2.bf16.msra.mxu0 0
      %475 = vmatprep.mubr.bf16.mxu0 0
      %476 = vmatmul.mubr.bf16.gmra.mxu0 %v438
      %v477 = vpop.f32.mrf.mxu0
      %v478 = vadd.f32 0.0, %v477
      %v479 = vpop.f32.mrf.mxu0
      %v480 = vpop.f32.mrf.mxu0
      %v481 = vpop.f32.mrf.mxu0
      %482 = vdwg.mxu0
      %v483 = vadd.f32 %v426, %v478
      %v484 = vld [vmem:[%s137 + $0x8] sm:$0xff]
      %v485 = vpack.c.bf16 %v484, %v484
      %s486 = scalar_lea.vmem %s1, 48
      %v487 = vld [vmem:[%s486] sm:$0xf]
      %v488 = vld [vmem:[%s486 + $0x4] sm:$0x7]
      %v491 = vunpack.c.l.b16 %v487
      %v492 = vunpack.c.l.b16 %v488
      %v493 = vpack.c.b16 %v492, %v491
      %v495 = vsel %vm157, %v485, 0
      %v498 = vsel %vm161, %v493, 0
      %500 = vmatprep.subr.bf16.mxu0 0
      %501 = vmatpush1.bf16.msra.mxu0 0
      %502 = vmatprep.subr.bf16.mxu0 0
      %503 = vmatpush1.bf16.msra.mxu0 0
      %504 = vmatprep.subr.bf16.mxu0 0
      %505 = vmatpush1.bf16.msra.mxu0 0
      %506 = vmatprep.subr.bf16.mxu0 0
      %507 = vmatpush1.bf16.msra.mxu0 0
      %508 = vmatprep.subr.bf16.mxu0 0
      %509 = vmatpush1.bf16.msra.mxu0 0
      %510 = vmatprep.subr.bf16.mxu0 0
      %511 = vmatpush1.bf16.msra.mxu0 0
      %512 = vmatprep.subr.bf16.mxu0 0
      %513 = vmatpush1.bf16.msra.mxu0 0
      %514 = vmatprep.subr.bf16.mxu0 0
      %515 = vmatpush1.bf16.msra.mxu0 %v498
      %516 = vmatprep.subr.bf16.mxu0 0
      %517 = vmatpush2.bf16.msra.mxu0 0
      %518 = vmatprep.subr.bf16.mxu0 0
      %519 = vmatpush2.bf16.msra.mxu0 0
      %520 = vmatprep.subr.bf16.mxu0 0
      %521 = vmatpush2.bf16.msra.mxu0 0
      %522 = vmatprep.subr.bf16.mxu0 0
      %523 = vmatpush2.bf16.msra.mxu0 0
      %524 = vmatprep.subr.bf16.mxu0 0
      %525 = vmatpush2.bf16.msra.mxu0 0
      %526 = vmatprep.subr.bf16.mxu0 0
      %527 = vmatpush2.bf16.msra.mxu0 0
      %528 = vmatprep.subr.bf16.mxu0 0
      %529 = vmatpush2.bf16.msra.mxu0 0
      %530 = vmatprep.subr.bf16.mxu0 0
      %531 = vmatpush2.bf16.msra.mxu0 0
      %532 = vmatprep.mubr.bf16.mxu0 0
      %533 = vmatmul.mubr.bf16.gmra.mxu0 %v495
      %v534 = vpop.f32.mrf.mxu0
      %v535 = vadd.f32 0.0, %v534
      %v536 = vpop.f32.mrf.mxu0
      %v537 = vpop.f32.mrf.mxu0
      %v538 = vpop.f32.mrf.mxu0
      %539 = vdwg.mxu0
      %v540 = vadd.f32 %v483, %v535
      %v541 = vld [vmem:[%s137 + $0x9] sm:$0xff]
      %v542 = vpack.c.bf16 %v541, %v541
      %s543 = scalar_lea.vmem %s1, 56
      %v544 = vld [vmem:[%s543] sm:$0xf]
      %v545 = vld [vmem:[%s543 + $0x4] sm:$0x7]
      %v548 = vunpack.c.l.b16 %v544
      %v549 = vunpack.c.l.b16 %v545
      %v550 = vpack.c.b16 %v549, %v548
      %v552 = vsel %vm157, %v542, 0
      %v555 = vsel %vm161, %v550, 0
      %557 = vmatprep.subr.bf16.mxu0 0
      %558 = vmatpush1.bf16.msra.mxu0 0
      %559 = vmatprep.subr.bf16.mxu0 0
      %560 = vmatpush1.bf16.msra.mxu0 0
      %561 = vmatprep.subr.bf16.mxu0 0
      %562 = vmatpush1.bf16.msra.mxu0 0
      %563 = vmatprep.subr.bf16.mxu0 0
      %564 = vmatpush1.bf16.msra.mxu0 0
      %565 = vmatprep.subr.bf16.mxu0 0
      %566 = vmatpush1.bf16.msra.mxu0 0
      %567 = vmatprep.subr.bf16.mxu0 0
      %568 = vmatpush1.bf16.msra.mxu0 0
      %569 = vmatprep.subr.bf16.mxu0 0
      %570 = vmatpush1.bf16.msra.mxu0 0
      %571 = vmatprep.subr.bf16.mxu0 0
      %572 = vmatpush1.bf16.msra.mxu0 %v555
      %573 = vmatprep.subr.bf16.mxu0 0
      %574 = vmatpush2.bf16.msra.mxu0 0
      %575 = vmatprep.subr.bf16.mxu0 0
      %576 = vmatpush2.bf16.msra.mxu0 0
      %577 = vmatprep.subr.bf16.mxu0 0
      %578 = vmatpush2.bf16.msra.mxu0 0
      %579 = vmatprep.subr.bf16.mxu0 0
      %580 = vmatpush2.bf16.msra.mxu0 0
      %581 = vmatprep.subr.bf16.mxu0 0
      %582 = vmatpush2.bf16.msra.mxu0 0
      %583 = vmatprep.subr.bf16.mxu0 0
      %584 = vmatpush2.bf16.msra.mxu0 0
      %585 = vmatprep.subr.bf16.mxu0 0
      %586 = vmatpush2.bf16.msra.mxu0 0
      %587 = vmatprep.subr.bf16.mxu0 0
      %588 = vmatpush2.bf16.msra.mxu0 0
      %589 = vmatprep.mubr.bf16.mxu0 0
      %590 = vmatmul.mubr.bf16.gmra.mxu0 %v552
      %v591 = vpop.f32.mrf.mxu0
      %v592 = vadd.f32 0.0, %v591
      %v593 = vpop.f32.mrf.mxu0
      %v594 = vpop.f32.mrf.mxu0
      %v595 = vpop.f32.mrf.mxu0
      %596 = vdwg.mxu0
      %v597 = vadd.f32 %v540, %v592
      %v598 = vld [vmem:[%s137 + $0xa] sm:$0xff]
      %v599 = vpack.c.bf16 %v598, %v598
      %s600 = scalar_lea.vmem %s1, 64
      %v601 = vld [vmem:[%s600] sm:$0xf]
      %v602 = vld [vmem:[%s600 + $0x4] sm:$0x7]
      %v605 = vunpack.c.l.b16 %v601
      %v606 = vunpack.c.l.b16 %v602
      %v607 = vpack.c.b16 %v606, %v605
      %v609 = vsel %vm157, %v599, 0
      %v612 = vsel %vm161, %v607, 0
      %614 = vmatprep.subr.bf16.mxu0 0
      %615 = vmatpush1.bf16.msra.mxu0 0
      %616 = vmatprep.subr.bf16.mxu0 0
      %617 = vmatpush1.bf16.msra.mxu0 0
      %618 = vmatprep.subr.bf16.mxu0 0
      %619 = vmatpush1.bf16.msra.mxu0 0
      %620 = vmatprep.subr.bf16.mxu0 0
      %621 = vmatpush1.bf16.msra.mxu0 0
      %622 = vmatprep.subr.bf16.mxu0 0
      %623 = vmatpush1.bf16.msra.mxu0 0
      %624 = vmatprep.subr.bf16.mxu0 0
      %625 = vmatpush1.bf16.msra.mxu0 0
      %626 = vmatprep.subr.bf16.mxu0 0
      %627 = vmatpush1.bf16.msra.mxu0 0
      %628 = vmatprep.subr.bf16.mxu0 0
      %629 = vmatpush1.bf16.msra.mxu0 %v612
      %630 = vmatprep.subr.bf16.mxu0 0
      %631 = vmatpush2.bf16.msra.mxu0 0
      %632 = vmatprep.subr.bf16.mxu0 0
      %633 = vmatpush2.bf16.msra.mxu0 0
      %634 = vmatprep.subr.bf16.mxu0 0
      %635 = vmatpush2.bf16.msra.mxu0 0
      %636 = vmatprep.subr.bf16.mxu0 0
      %637 = vmatpush2.bf16.msra.mxu0 0
      %638 = vmatprep.subr.bf16.mxu0 0
      %639 = vmatpush2.bf16.msra.mxu0 0
      %640 = vmatprep.subr.bf16.mxu0 0
      %641 = vmatpush2.bf16.msra.mxu0 0
      %642 = vmatprep.subr.bf16.mxu0 0
      %643 = vmatpush2.bf16.msra.mxu0 0
      %644 = vmatprep.subr.bf16.mxu0 0
      %645 = vmatpush2.bf16.msra.mxu0 0
      %646 = vmatprep.mubr.bf16.mxu0 0
      %647 = vmatmul.mubr.bf16.gmra.mxu0 %v609
      %v648 = vpop.f32.mrf.mxu0
      %v649 = vadd.f32 0.0, %v648
      %v650 = vpop.f32.mrf.mxu0
      %v651 = vpop.f32.mrf.mxu0
      %v652 = vpop.f32.mrf.mxu0
      %653 = vdwg.mxu0
      %v654 = vadd.f32 %v597, %v649
      %v655 = vmax.f32 %v654, 0.0
      %vm656 = vcmask 31744
      %657 = vst.msk [vmem:[%s141] sm:$0xff] %vm656, %v655
      %p658 = scmp.lt.s32.totalorder %s13, 1
      %s659 = scalar_select %p658, %s13, 1
      %s660 = smul.addr %s659, 8
      %s661 = scalar_lea.vmem %s2, %s660
      // Predicated region
      $region29: #{diin_forward.27} parent=27 // pred_check
        %p662 = pneg %p78
      $region30: #{diin_forward.27} parent=27 // pred_check_branch
        %664 = sbr.rel (%p662) target = $region32
      $region31: #{diin_forward.27} parent=27 // pred_region
        _
      $region32: #{diin_forward.27} parent=27 // pred_fallthru
        _
    $region28: #{diin_forward.27} parent=5 // pred_fallthru
      _
    %p665 = scmp.le.s32.totalorder 2, %s8
    // Predicated region
    $region33: #{diin_forward.27} parent=5 // pred_check
      %p666 = pneg %p665
    $region34: #{diin_forward.27} parent=5 // pred_check_branch
      %668 = sbr.rel (%p666) target = $region36
    $region35: #{diin_forward.27} parent=5 // pred_region
      %s669 = ssub.s32 %s8, 2
      // Predicated region
      $region37: #{diin_forward.27} parent=35 // pred_check
        %p670 = pneg %p84
      $region38: #{diin_forward.27} parent=35 // pred_check_branch
        %672 = sbr.rel (%p670) target = $region40
      $region39: #{diin_forward.27} parent=35 // pred_region
        %p673 = scmp.lt.s32.totalorder %s14, 1
        %s674 = scalar_select %p673, %s14, 1
        %s675 = smul.addr %s674, 8
        %s676 = scalar_lea.vmem %s2, %s675
      $region40: #{diin_forward.27} parent=35 // pred_fallthru
        _
    $region36: #{diin_forward.27} parent=5 // pred_fallthru
      _
  $region6: #{diin_forward.27} parent=0 // loop_footer
    %s12 = sadd.s32 1, %s8
  $region7: #{diin_forward.27} parent=0 // loop_footer_branch
    %7 = sbr.rel target = $region3
  $region8: #{diin_forward.27} parent=0 // loop_exit
    _

</llo_original>
